<compile_context>
chip_gen: v7x
topology: tpu7x:2x2x1
jax: 0.10.0
libtpu: 0.0.40
codegen_flags: <defaults>
</compile_context>

<pallas_src>
import functools
import math

import jax
import jax.numpy as jnp
from jax.experimental import pallas as pl
from jax.experimental.pallas import tpu as pltpu


def _round_up(x, m):
    return ((x + m - 1) // m) * m


# ----------------------------------------------------------------------------
# Generic tiled linear kernel: out = x @ W + b   (W pre-transposed (D_in,D_out))
# ----------------------------------------------------------------------------
def _linear_kernel(x_ref, w_ref, b_ref, o_ref):
    o_ref[...] = (jnp.dot(x_ref[...], w_ref[...],
                          preferred_element_type=jnp.float32) + b_ref[...])


def _pack_linear(wt, b):
    """wt: (D_in, D_out) already transposed; b: (D_out,).
    Pads D_out to a multiple of 128 once, at init time (lane-dense stores)."""
    d_in, d_out = wt.shape
    d_pad = _round_up(d_out, 128)
    if d_pad != d_out:
        wt = jnp.pad(wt, ((0, 0), (0, d_pad - d_out)))
        b = jnp.pad(b, (0, d_pad - d_out))
    return {"wt": jnp.asarray(wt, jnp.float32),
            "b": jnp.asarray(b, jnp.float32).reshape(1, d_pad),
            "dout": d_out}


def linear(x2d, lin):
    """x2d: (N, D_in).  Returns (N, lin['dout'])."""
    wt, b, d_out = lin["wt"], lin["b"], lin["dout"]
    N, D_in = x2d.shape
    D_pad = wt.shape[1]

    tn = min(_round_up(N, 8), 256)
    N_pad = _round_up(N, tn)
    if D_pad % 512 == 0:
        td = 512
    elif D_pad % 256 == 0:
        td = 256
    else:
        td = 128

    x_p = jnp.pad(x2d, ((0, N_pad - N), (0, 0))) if N_pad != N else x2d
    # TODO(synk): D_in (contraction dim) is not tiled; fine at d_model scale,
    # would need a K-loop + accumulator for very wide inputs.
    out = pl.pallas_call(
        _linear_kernel,
        out_shape=jax.ShapeDtypeStruct((N_pad, D_pad), jnp.float32),
        grid=(N_pad // tn, D_pad // td),
        in_specs=[pl.BlockSpec((tn, D_in), lambda i, j: (i, 0)),
                  pl.BlockSpec((D_in, td), lambda i, j: (0, j)),
                  pl.BlockSpec((1, td), lambda i, j: (0, j))],
        out_specs=pl.BlockSpec((tn, td), lambda i, j: (i, j)),
        compiler_params=pltpu.CompilerParams(
            dimension_semantics=("parallel", "parallel")),
    )(x_p, wt, b)
    return out[:N, :d_out]


# ----------------------------------------------------------------------------
# LSTM recurrence kernel: grid over directions, lax.fori_loop over time,
# h/c in VMEM scratch, only h @ W_hh per step (input gates precomputed).
# ----------------------------------------------------------------------------
def _lstm_recurrence_kernel(gx_ref, whh_ref, mask_ref, out_ref,
                            h_scr, c_scr, *, hidden, pad_value):
    T = gx_ref.shape[0]
    h_scr[...] = jnp.zeros_like(h_scr)
    c_scr[...] = jnp.zeros_like(c_scr)
    whh = whh_ref[...]                       # (H, 4H), loop-invariant in vregs

    def step(s, carry):
        h = h_scr[...]                       # (B, H)
        c = c_scr[...]
        gates = gx_ref[s] + jnp.dot(h, whh,
                                    preferred_element_type=jnp.float32)  # (B,4H)
        # activations over the full lane-dense (B, 4H) tile, then slice gates
        sg = jax.nn.sigmoid(gates)
        tg = jnp.tanh(gates)
        i = sg[:, 0 * hidden:1 * hidden]
        f = sg[:, 1 * hidden:2 * hidden]
        g = tg[:, 2 * hidden:3 * hidden]
        o = sg[:, 3 * hidden:4 * hidden]

        c_new = f * c + i * g
        h_new = o * jnp.tanh(c_new)

        m = mask_ref[s]                      # (B, 1) in {0, 1}
        h_scr[...] = m * h_new + (1.0 - m) * h
        c_scr[...] = m * c_new + (1.0 - m) * c
        out_ref[s] = m * h_new + (1.0 - m) * pad_value
        return carry

    jax.lax.fori_loop(0, T, step, 0, unroll=True)


def lstm_layer(x, lengths, lp, *, packed, pad_value):
    """x: (T, B, D_in).  lp: {'lin', 'whh_t'(nd,H,4H)}.  Returns (T,B,nd*H)."""
    T, B, D_in = x.shape
    nd, H, _ = lp["whh_t"].shape

    # 1. input projection for all directions at once (one lane-dense matmul)
    gx = linear(x.reshape(T * B, D_in), lp["lin"])            # (T*B, nd*4H)
    gx = gx.reshape(T, B, nd, 4 * H).transpose(2, 0, 1, 3)    # (nd, T, B, 4H)
    if nd == 2:
        # backward direction processes the sequence in reverse order
        gx = jnp.concatenate([gx[:1], jnp.flip(gx[1:], axis=1)], axis=0)

    # 2. packed-sequence masks (per direction, in processing order)
    if packed:
        lens = lengths.astype(jnp.int32)
        t_idx = jnp.arange(T, dtype=jnp.int32)
        m_list = [(t_idx[:, None] < lens[None, :]).astype(jnp.float32)]
        if nd == 2:
            m_list.append((((T - 1) - t_idx)[:, None]
                           < lens[None, :]).astype(jnp.float32))
        mask = jnp.stack(m_list, axis=0)[..., None]           # (nd, T, B, 1)
    else:
        mask = jnp.ones((nd, T, B, 1), jnp.float32)

    # 3. recurrence: one program per direction (parallel -> 2 TCs on v7x)
    out = pl.pallas_call(
        functools.partial(_lstm_recurrence_kernel, hidden=H,
                          pad_value=float(pad_value)),
        out_shape=jax.ShapeDtypeStruct((nd, T, B, H), jnp.float32),
        grid=(nd,),
        in_specs=[
            pl.BlockSpec((None, T, B, 4 * H), lambda d: (d, 0, 0, 0)),
            pl.BlockSpec((None, H, 4 * H), lambda d: (d, 0, 0)),
            pl.BlockSpec((None, T, B, 1), lambda d: (d, 0, 0, 0)),
        ],
        out_specs=pl.BlockSpec((None, T, B, H), lambda d: (d, 0, 0, 0)),
        scratch_shapes=[pltpu.VMEM((B, H), jnp.float32),
                        pltpu.VMEM((B, H), jnp.float32)],
        compiler_params=pltpu.CompilerParams(
            dimension_semantics=("parallel",)),
    )(gx, lp["whh_t"], mask)

    if nd == 2:
        return jnp.concatenate([out[0], jnp.flip(out[1], axis=0)], axis=-1)
    return out[0]


def lstm_stack(x, lengths, layers, *, packed, pad_value):
    h = x
    for lp in layers:
        h = lstm_layer(h, lengths, lp, packed=packed, pad_value=pad_value)
    return h


# ----------------------------------------------------------------------------
# Multi-head attention core: single program, all (batch*heads) batched einsum
# ----------------------------------------------------------------------------
def _attn_kernel(q_ref, k_ref, v_ref, o_ref, *, scale):
    q = q_ref[...] * scale                                    # (BH, Tq, hd)
    k = k_ref[...]                                            # (BH, Tk, hd)
    v = v_ref[...]
    s = jnp.einsum("bqd,bkd->bqk", q, k,
                   preferred_element_type=jnp.float32)        # (BH, Tq, Tk)
    s = s - jnp.max(s, axis=-1, keepdims=True)
    p = jnp.exp(s)
    p = p * pl.reciprocal(jnp.sum(p, axis=-1, keepdims=True), approx=True)
    o_ref[...] = jnp.einsum("bqk,bkd->bqd", p, v,
                            preferred_element_type=jnp.float32)


def multihead_attention(query, key, value, params):
    """nn.MultiheadAttention (batch_first=False) forward, no padding mask
    (matching the reference module, which does not pass one)."""
    n_heads = params["n_heads"]
    Tq, B, E = query.shape
    Tk = key.shape[0]
    hd = E // n_heads

    q = linear(query.reshape(Tq * B, E), params["attn_q"]).reshape(Tq, B, E)
    k = linear(key.reshape(Tk * B, E), params["attn_k"]).reshape(Tk, B, E)
    v = linear(value.reshape(Tk * B, E), params["attn_v"]).reshape(Tk, B, E)

    def to_heads(a, T):  # (T,B,E) -> (B*nh, T, hd), b-major / h-minor (torch)
        return a.reshape(T, B, n_heads, hd).transpose(1, 2, 0, 3) \
                .reshape(B * n_heads, T, hd)

    qh, kh, vh = to_heads(q, Tq), to_heads(k, Tk), to_heads(v, Tk)
    BH = B * n_heads

    attn = pl.pallas_call(
        functools.partial(_attn_kernel, scale=1.0 / math.sqrt(hd)),
        out_shape=jax.ShapeDtypeStruct((BH, Tq, hd), jnp.float32),
        grid=(1,),
        in_specs=[pl.BlockSpec((BH, Tq, hd), lambda i: (0, 0, 0)),
                  pl.BlockSpec((BH, Tk, hd), lambda i: (0, 0, 0)),
                  pl.BlockSpec((BH, Tk, hd), lambda i: (0, 0, 0))],
        out_specs=pl.BlockSpec((BH, Tq, hd), lambda i: (0, 0, 0)),
    )(qh, kh, vh)

    attn = attn.reshape(B, n_heads, Tq, hd).transpose(2, 0, 1, 3) \
               .reshape(Tq * B, E)
    return linear(attn, params["attn_o"]).reshape(Tq, B, E)


# ----------------------------------------------------------------------------
# Parameters (deterministic synthetic init; weights pre-transposed / pre-padded
# and biases pre-folded once, so no per-forward HBM reshuffles)
# ----------------------------------------------------------------------------
def _uniform(key, shape, scale):
    return jax.random.uniform(key, shape, jnp.float32, -scale, scale)


def _init_lstm_stack(keys, n_layers, input_size, hidden, bidirectional):
    nd = 2 if bidirectional else 1
    layers = []
    for layer in range(n_layers):
        in_size = input_size if layer == 0 else hidden * nd
        k = 1.0 / math.sqrt(hidden)
        wih_t, whh_t, bias = [], [], []
        for _ in range(nd):
            w_ih = _uniform(next(keys), (4 * hidden, in_size), k)
            w_hh = _uniform(next(keys), (4 * hidden, hidden), k)
            b_ih = _uniform(next(keys), (4 * hidden,), k)
            b_hh = _uniform(next(keys), (4 * hidden,), k)
            wih_t.append(w_ih.T)           # (in_size, 4H)
            whh_t.append(w_hh.T)           # (H, 4H)
            bias.append(b_ih + b_hh)       # fold the two biases once
        layers.append({
            "lin": _pack_linear(jnp.concatenate(wih_t, axis=1),
                                jnp.concatenate(bias, axis=0)),
            "whh_t": jnp.stack(whh_t, axis=0),       # (nd, H, 4H)
        })
    return layers


def init_params(key, vocab_src, vocab_tgt, d_model, n_enc_layers, n_dec_layers,
                n_heads, pad_id, bidirectional=True):
    keys = iter(jax.random.split(key, 256))
    E = (1 + int(bidirectional)) * d_model
    kE = 1.0 / math.sqrt(E)

    in_w = _uniform(next(keys), (3 * E, E), kE)
    in_b = _uniform(next(keys), (3 * E,), kE)
    out_w = _uniform(next(keys), (E, E), kE)
    out_b = _uniform(next(keys), (E,), kE)
    dense_w = _uniform(next(keys), (vocab_tgt, E), kE)
    dense_b = _uniform(next(keys), (vocab_tgt,), kE)

    return {
        "pad_id": pad_id,
        "n_heads": n_heads,
        "emb_src": jax.random.normal(next(keys), (vocab_src, d_model), jnp.float32),
        "emb_tgt": jax.random.normal(next(keys), (vocab_tgt, d_model), jnp.float32),
        "enc_layers": _init_lstm_stack(keys, n_enc_layers, d_model, d_model,
                                       bidirectional),
        "pre_dec_layers": _init_lstm_stack(keys, 1, d_model, d_model,
                                           bidirectional),
        "attn_q": _pack_linear(in_w[0:E].T, in_b[0:E]),
        "attn_k": _pack_linear(in_w[E:2 * E].T, in_b[E:2 * E]),
        "attn_v": _pack_linear(in_w[2 * E:3 * E].T, in_b[2 * E:3 * E]),
        "attn_o": _pack_linear(out_w.T, out_b),
        "dec_layers": _init_lstm_stack(keys, n_dec_layers, E, E, False),
        "dense": _pack_linear(dense_w.T, dense_b),
    }


# ----------------------------------------------------------------------------
# Full forward pass (mirrors FiEnTranslatorRNN.forward)
# ----------------------------------------------------------------------------
def fi_en_translator_forward(params, x_ids, y_ids, len_x, len_y):
    pad_value = float(params["pad_id"])
    T, B = x_ids.shape
    B_pad = _round_up(max(B, 8), 8)        # sublane-dense batch
    if B_pad != B:
        pb = B_pad - B
        x_ids = jnp.pad(x_ids, ((0, 0), (0, pb)))
        y_ids = jnp.pad(y_ids, ((0, 0), (0, pb)))
        len_x = jnp.pad(len_x, (0, pb))    # length 0 -> fully masked rows
        len_y = jnp.pad(len_y, (0, pb))

    # TODO(synk): embedding gather stays in XLA (no clean Pallas gather here).
    x = jnp.take(params["emb_src"], x_ids, axis=0)            # (T, B_pad, d)
    x = lstm_stack(x, len_x, params["enc_layers"],
                   packed=True, pad_value=pad_value)

    y = jnp.take(params["emb_tgt"], y_ids, axis=0)
    y = lstm_stack(y, len_y, params["pre_dec_layers"],
                   packed=True, pad_value=pad_value)

    out = multihead_attention(y, x, x, params)
    out = out + y

    out = lstm_stack(out, None, params["dec_layers"],
                     packed=False, pad_value=0.0)

    Tq, Bp, E = out.shape
    logits = linear(out.reshape(Tq * Bp, E), params["dense"]).reshape(Tq, Bp, -1)
    return logits[:, :B, :]


# ----------------------------------------------------------------------------
if __name__ == "__main__":
    vocab_src, vocab_tgt = 37, 41
    d_model, n_heads = 32, 4
    n_enc_layers, n_dec_layers = 2, 2
    pad_id = 0
    B, T = 2, 8                            # total_length = 8

    key = jax.random.PRNGKey(0)
    k_par, k_x, k_y = jax.random.split(key, 3)

    params = init_params(k_par, vocab_src, vocab_tgt, d_model,
                         n_enc_layers, n_dec_layers, n_heads, pad_id)

    x_ids = jax.random.randint(k_x, (T, B), 0, vocab_src, dtype=jnp.int32)
    y_ids = jax.random.randint(k_y, (T, B), 0, vocab_tgt, dtype=jnp.int32)
    len_x = jnp.array([8, 5], dtype=jnp.int32)
    len_y = jnp.array([7, 8], dtype=jnp.int32)

    fwd = jax.jit(functools.partial(fi_en_translator_forward, params))
    logits = fwd(x_ids, y_ids, len_x, len_y)
    jax.block_until_ready(logits)

    assert logits.shape == (T, B, vocab_tgt), logits.shape
    assert bool(jnp.all(jnp.isfinite(logits)))
    print("KERNEL_OK")
</pallas_src>

<mosaic_0001>
module attributes {stable_mosaic.version = 11 : i64} {
  func.func @_linear_kernel(%arg0: i32, %arg1: i32, %arg2: memref<64x32xf32, #tpu.memory_space<vmem>>, %arg3: memref<32x256xf32, #tpu.memory_space<vmem>>, %arg4: memref<1x256xf32, #tpu.memory_space<vmem>>, %arg5: memref<64x256xf32, #tpu.memory_space<vmem>>) attributes {dimension_semantics = [#tpu.dimension_semantics<parallel>, #tpu.dimension_semantics<parallel>], iteration_bounds = array<i64: 1, 1>, scalar_prefetch = 0 : i64, scratch_operands = 0 : i64, tpu.core_type = #tpu.core_type<tc>, window_params = [{transform_indices = @transform_0, window_bounds = array<i64: 64, 32>}, {transform_indices = @transform_1, window_bounds = array<i64: 32, 256>}, {transform_indices = @transform_2, window_bounds = array<i64: 1, 256>}, {transform_indices = @transform_3, window_bounds = array<i64: 64, 256>}]} {
    %c0 = arith.constant 0 : index
    %c0_0 = arith.constant 0 : index
    %0 = vector.load %arg2[%c0, %c0_0] : memref<64x32xf32, #tpu.memory_space<vmem>>, vector<64x32xf32>
    %c0_1 = arith.constant 0 : index
    %c0_2 = arith.constant 0 : index
    %1 = vector.load %arg3[%c0_1, %c0_2] : memref<32x256xf32, #tpu.memory_space<vmem>>, vector<32x256xf32>
    %cst = arith.constant dense<0.000000e+00> : vector<64x256xf32>
    %2 = tpu.matmul %0, %1, %cst {dimension_numbers = #tpu.dot_dimension_numbers<[1], [0], [0], [1], [0, 0, 1, 1], [], []>} : vector<64x32xf32>, vector<32x256xf32>, vector<64x256xf32> -> vector<64x256xf32>
    %c0_3 = arith.constant 0 : index
    %c0_4 = arith.constant 0 : index
    %3 = vector.load %arg4[%c0_3, %c0_4] : memref<1x256xf32, #tpu.memory_space<vmem>>, vector<1x256xf32>
    %4 = vector.broadcast %3 : vector<1x256xf32> to vector<64x256xf32>
    %5 = arith.addf %2, %4 : vector<64x256xf32>
    %c0_5 = arith.constant 0 : index
    %c0_6 = arith.constant 0 : index
    %6 = vector.load %arg5[%c0_5, %c0_6] : memref<64x256xf32, #tpu.memory_space<vmem>>, vector<64x256xf32>
    tpu.vector_store %arg5[%c0_5, %c0_6], %5 {strides = array<i32>} : memref<64x256xf32, #tpu.memory_space<vmem>>, vector<64x256xf32>,
    return
  }
  func.func @transform_0(%arg0: i32, %arg1: i32) -> (i32, i32) {
    %c0_i32 = arith.constant 0 : i32
    %c0_i32_0 = arith.constant 0 : i32
    return %arg0, %c0_i32 : i32, i32
  }
  func.func @transform_1(%arg0: i32, %arg1: i32) -> (i32, i32) {
    %c0_i32 = arith.constant 0 : i32
    %c0_i32_0 = arith.constant 0 : i32
    return %c0_i32, %arg1 : i32, i32
  }
  func.func @transform_2(%arg0: i32, %arg1: i32) -> (i32, i32) {
    %c0_i32 = arith.constant 0 : i32
    %c0_i32_0 = arith.constant 0 : i32
    return %c0_i32, %arg1 : i32, i32
  }
  func.func @transform_3(%arg0: i32, %arg1: i32) -> (i32, i32) {
    %c0_i32 = arith.constant 0 : i32
    return %arg0, %arg1 : i32, i32
  }
}

module attributes {stable_mosaic.version = 11 : i64} {
  func.func @_lstm_recurrence_kernel(%arg0: i32, %arg1: memref<1x8x8x128xf32, #tpu.memory_space<vmem>>, %arg2: memref<1x32x128xf32, #tpu.memory_space<vmem>>, %arg3: memref<1x8x8x1xf32, #tpu.memory_space<vmem>>, %arg4: memref<1x8x8x32xf32, #tpu.memory_space<vmem>>, %arg5: memref<8x32xf32, #tpu.memory_space<vmem>>, %arg6: memref<8x32xf32, #tpu.memory_space<vmem>>) attributes {dimension_semantics = [#tpu.dimension_semantics<parallel>], iteration_bounds = array<i64: 2>, scalar_prefetch = 0 : i64, scratch_operands = 2 : i64, tpu.core_type = #tpu.core_type<tc>, window_params = [{transform_indices = @transform_0, window_bounds = array<i64: 1, 8, 8, 128>}, {transform_indices = @transform_1, window_bounds = array<i64: 1, 32, 128>}, {transform_indices = @transform_2, window_bounds = array<i64: 1, 8, 8, 1>}, {transform_indices = @transform_3, window_bounds = array<i64: 1, 8, 8, 32>}]} {
    %cst = arith.constant 0.000000e+00 : f32
    %0 = vector.broadcast %cst : f32 to vector<8x32xf32>
    %c0 = arith.constant 0 : index
    %c0_0 = arith.constant 0 : index
    %1 = vector.load %arg5[%c0, %c0_0] : memref<8x32xf32, #tpu.memory_space<vmem>>, vector<8x32xf32>
    tpu.vector_store %arg5[%c0, %c0_0], %0 {strides = array<i32>} : memref<8x32xf32, #tpu.memory_space<vmem>>, vector<8x32xf32>,
    %cst_1 = arith.constant 0.000000e+00 : f32
    %2 = vector.broadcast %cst_1 : f32 to vector<8x32xf32>
    %c0_2 = arith.constant 0 : index
    %c0_3 = arith.constant 0 : index
    %3 = vector.load %arg6[%c0_2, %c0_3] : memref<8x32xf32, #tpu.memory_space<vmem>>, vector<8x32xf32>
    tpu.vector_store %arg6[%c0_2, %c0_3], %2 {strides = array<i32>} : memref<8x32xf32, #tpu.memory_space<vmem>>, vector<8x32xf32>,
    %c0_4 = arith.constant 0 : index
    %c0_5 = arith.constant 0 : index
    %c0_6 = arith.constant 0 : index
    %4 = vector.load %arg2[%c0_4, %c0_5, %c0_6] : memref<1x32x128xf32, #tpu.memory_space<vmem>>, vector<1x32x128xf32>
    %5 = vector.shape_cast %4 : vector<1x32x128xf32> to vector<32x128xf32>
    %c0_i32 = arith.constant 0 : i32
    %c0_7 = arith.constant 0 : index
    %c0_8 = arith.constant 0 : index
    %6 = vector.load %arg5[%c0_7, %c0_8] : memref<8x32xf32, #tpu.memory_space<vmem>>, vector<8x32xf32>
    %c0_9 = arith.constant 0 : index
    %c0_10 = arith.constant 0 : index
    %7 = vector.load %arg6[%c0_9, %c0_10] : memref<8x32xf32, #tpu.memory_space<vmem>>, vector<8x32xf32>
    %c0_11 = arith.constant 0 : index
    %8 = arith.index_cast %c0_i32 : i32 to index
    %c0_12 = arith.constant 0 : index
    %c0_13 = arith.constant 0 : index
    %9 = vector.load %arg1[%c0_11, %8, %c0_12, %c0_13] : memref<1x8x8x128xf32, #tpu.memory_space<vmem>>, vector<1x1x8x128xf32>
    %10 = vector.shape_cast %9 : vector<1x1x8x128xf32> to vector<8x128xf32>
    %cst_14 = arith.constant dense<0.000000e+00> : vector<8x128xf32>
    %11 = tpu.matmul %6, %5, %cst_14 {dimension_numbers = #tpu.dot_dimension_numbers<[1], [0], [0], [1], [0, 0, 1, 1], [], []>} : vector<8x32xf32>, vector<32x128xf32>, vector<8x128xf32> -> vector<8x128xf32>
    %12 = arith.addf %10, %11 : vector<8x128xf32>
    %13 = arith.negf %12 : vector<8x128xf32>
    %14 = math.exp %13 : vector<8x128xf32>
    %cst_15 = arith.constant 1.000000e+00 : f32
    %15 = vector.broadcast %cst_15 : f32 to vector<8x128xf32>
    %16 = arith.addf %15, %14 : vector<8x128xf32>
    %17 = arith.divf %15, %16 : vector<8x128xf32>
    %18 = math.tanh %12 : vector<8x128xf32>
    %19 = vector.extract_strided_slice %17 {offsets = [0, 0], sizes = [8, 32], strides = [1, 1]} : vector<8x128xf32> to vector<8x32xf32>
    %20 = vector.extract_strided_slice %17 {offsets = [0, 32], sizes = [8, 32], strides = [1, 1]} : vector<8x128xf32> to vector<8x32xf32>
    %21 = vector.extract_strided_slice %18 {offsets = [0, 64], sizes = [8, 32], strides = [1, 1]} : vector<8x128xf32> to vector<8x32xf32>
    %22 = vector.extract_strided_slice %17 {offsets = [0, 96], sizes = [8, 32], strides = [1, 1]} : vector<8x128xf32> to vector<8x32xf32>
    %23 = arith.mulf %20, %7 : vector<8x32xf32>
    %24 = arith.mulf %19, %21 : vector<8x32xf32>
    %25 = arith.addf %23, %24 : vector<8x32xf32>
    %26 = math.tanh %25 : vector<8x32xf32>
    %27 = arith.mulf %22, %26 : vector<8x32xf32>
    %c0_16 = arith.constant 0 : index
    %28 = arith.index_cast %c0_i32 : i32 to index
    %c0_17 = arith.constant 0 : index
    %c0_18 = arith.constant 0 : index
    %29 = vector.load %arg3[%c0_16, %28, %c0_17, %c0_18] : memref<1x8x8x1xf32, #tpu.memory_space<vmem>>, vector<1x1x8x1xf32>
    %30 = vector.shape_cast %29 : vector<1x1x8x1xf32> to vector<8x1xf32>
    %31 = vector.broadcast %30 : vector<8x1xf32> to vector<8x32xf32>
    %32 = arith.mulf %31, %27 : vector<8x32xf32>
    %cst_19 = arith.constant 1.000000e+00 : f32
    %33 = vector.broadcast %cst_19 : f32 to vector<8x1xf32>
    %34 = arith.subf %33, %30 : vector<8x1xf32>
    %35 = vector.broadcast %34 : vector<8x1xf32> to vector<8x32xf32>
    %36 = arith.mulf %35, %6 : vector<8x32xf32>
    %37 = arith.addf %32, %36 : vector<8x32xf32>
    %c0_20 = arith.constant 0 : index
    %c0_21 = arith.constant 0 : index
    %38 = vector.load %arg5[%c0_20, %c0_21] : memref<8x32xf32, #tpu.memory_space<vmem>>, vector<8x32xf32>
    tpu.vector_store %arg5[%c0_20, %c0_21], %37 {strides = array<i32>} : memref<8x32xf32, #tpu.memory_space<vmem>>, vector<8x32xf32>,
    %39 = vector.broadcast %30 : vector<8x1xf32> to vector<8x32xf32>
    %40 = arith.mulf %39, %25 : vector<8x32xf32>
    %cst_22 = arith.constant 1.000000e+00 : f32
    %41 = vector.broadcast %cst_22 : f32 to vector<8x1xf32>
    %42 = arith.subf %41, %30 : vector<8x1xf32>
    %43 = vector.broadcast %42 : vector<8x1xf32> to vector<8x32xf32>
    %44 = arith.mulf %43, %7 : vector<8x32xf32>
    %45 = arith.addf %40, %44 : vector<8x32xf32>
    %c0_23 = arith.constant 0 : index
    %c0_24 = arith.constant 0 : index
    %46 = vector.load %arg6[%c0_23, %c0_24] : memref<8x32xf32, #tpu.memory_space<vmem>>, vector<8x32xf32>
    tpu.vector_store %arg6[%c0_23, %c0_24], %45 {strides = array<i32>} : memref<8x32xf32, #tpu.memory_space<vmem>>, vector<8x32xf32>,
    %47 = vector.broadcast %30 : vector<8x1xf32> to vector<8x32xf32>
    %48 = arith.mulf %47, %27 : vector<8x32xf32>
    %cst_25 = arith.constant 1.000000e+00 : f32
    %49 = vector.broadcast %cst_25 : f32 to vector<8x1xf32>
    %50 = arith.subf %49, %30 : vector<8x1xf32>
    %cst_26 = arith.constant 0.000000e+00 : f32
    %51 = vector.broadcast %cst_26 : f32 to vector<8x1xf32>
    %52 = arith.mulf %50, %51 : vector<8x1xf32>
    %53 = vector.broadcast %52 : vector<8x1xf32> to vector<8x32xf32>
    %54 = arith.addf %48, %53 : vector<8x32xf32>
    %c0_27 = arith.constant 0 : index
    %55 = arith.index_cast %c0_i32 : i32 to index
    %c0_28 = arith.constant 0 : index
    %c0_29 = arith.constant 0 : index
    %56 = vector.load %arg4[%c0_27, %55, %c0_28, %c0_29] : memref<1x8x8x32xf32, #tpu.memory_space<vmem>>, vector<1x1x8x32xf32>
    %57 = vector.shape_cast %56 : vector<1x1x8x32xf32> to vector<8x32xf32>
    %58 = vector.shape_cast %54 : vector<8x32xf32> to vector<1x1x8x32xf32>
    tpu.vector_store %arg4[%c0_27, %55, %c0_28, %c0_29], %58 {strides = array<i32>} : memref<1x8x8x32xf32, #tpu.memory_space<vmem>>, vector<1x1x8x32xf32>,
    %c1_i32 = arith.constant 1 : i32
    %c0_30 = arith.constant 0 : index
    %c0_31 = arith.constant 0 : index
    %59 = vector.load %arg5[%c0_30, %c0_31] : memref<8x32xf32, #tpu.memory_space<vmem>>, vector<8x32xf32>
    %c0_32 = arith.constant 0 : index
    %c0_33 = arith.constant 0 : index
    %60 = vector.load %arg6[%c0_32, %c0_33] : memref<8x32xf32, #tpu.memory_space<vmem>>, vector<8x32xf32>
    %c0_34 = arith.constant 0 : index
    %61 = arith.index_cast %c1_i32 : i32 to index
    %c0_35 = arith.constant 0 : index
    %c0_36 = arith.constant 0 : index
    %62 = vector.load %arg1[%c0_34, %61, %c0_35, %c0_36] : memref<1x8x8x128xf32, #tpu.memory_space<vmem>>, vector<1x1x8x128xf32>
    %63 = vector.shape_cast %62 : vector<1x1x8x128xf32> to vector<8x128xf32>
    %cst_37 = arith.constant dense<0.000000e+00> : vector<8x128xf32>
    %64 = tpu.matmul %59, %5, %cst_37 {dimension_numbers = #tpu.dot_dimension_numbers<[1], [0], [0], [1], [0, 0, 1, 1], [], []>} : vector<8x32xf32>, vector<32x128xf32>, vector<8x128xf32> -> vector<8x128xf32>
    %65 = arith.addf %63, %64 : vector<8x128xf32>
    %66 = arith.negf %65 : vector<8x128xf32>
    %67 = math.exp %66 : vector<8x128xf32>
    %cst_38 = arith.constant 1.000000e+00 : f32
    %68 = vector.broadcast %cst_38 : f32 to vector<8x128xf32>
    %69 = arith.addf %68, %67 : vector<8x128xf32>
    %70 = arith.divf %68, %69 : vector<8x128xf32>
    %71 = math.tanh %65 : vector<8x128xf32>
    %72 = vector.extract_strided_slice %70 {offsets = [0, 0], sizes = [8, 32], strides = [1, 1]} : vector<8x128xf32> to vector<8x32xf32>
    %73 = vector.extract_strided_slice %70 {offsets = [0, 32], sizes = [8, 32], strides = [1, 1]} : vector<8x128xf32> to vector<8x32xf32>
    %74 = vector.extract_strided_slice %71 {offsets = [0, 64], sizes = [8, 32], strides = [1, 1]} : vector<8x128xf32> to vector<8x32xf32>
    %75 = vector.extract_strided_slice %70 {offsets = [0, 96], sizes = [8, 32], strides = [1, 1]} : vector<8x128xf32> to vector<8x32xf32>
    %76 = arith.mulf %73, %60 : vector<8x32xf32>
    %77 = arith.mulf %72, %74 : vector<8x32xf32>
    %78 = arith.addf %76, %77 : vector<8x32xf32>
    %79 = math.tanh %78 : vector<8x32xf32>
    %80 = arith.mulf %75, %79 : vector<8x32xf32>
    %c0_39 = arith.constant 0 : index
    %81 = arith.index_cast %c1_i32 : i32 to index
    %c0_40 = arith.constant 0 : index
    %c0_41 = arith.constant 0 : index
    %82 = vector.load %arg3[%c0_39, %81, %c0_40, %c0_41] : memref<1x8x8x1xf32, #tpu.memory_space<vmem>>, vector<1x1x8x1xf32>
    %83 = vector.shape_cast %82 : vector<1x1x8x1xf32> to vector<8x1xf32>
    %84 = vector.broadcast %83 : vector<8x1xf32> to vector<8x32xf32>
    %85 = arith.mulf %84, %80 : vector<8x32xf32>
    %cst_42 = arith.constant 1.000000e+00 : f32
    %86 = vector.broadcast %cst_42 : f32 to vector<8x1xf32>
    %87 = arith.subf %86, %83 : vector<8x1xf32>
    %88 = vector.broadcast %87 : vector<8x1xf32> to vector<8x32xf32>
    %89 = arith.mulf %88, %59 : vector<8x32xf32>
    %90 = arith.addf %85, %89 : vector<8x32xf32>
    %c0_43 = arith.constant 0 : index
    %c0_44 = arith.constant 0 : index
    %91 = vector.load %arg5[%c0_43, %c0_44] : memref<8x32xf32, #tpu.memory_space<vmem>>, vector<8x32xf32>
    tpu.vector_store %arg5[%c0_43, %c0_44], %90 {strides = array<i32>} : memref<8x32xf32, #tpu.memory_space<vmem>>, vector<8x32xf32>,
    %92 = vector.broadcast %83 : vector<8x1xf32> to vector<8x32xf32>
    %93 = arith.mulf %92, %78 : vector<8x32xf32>
    %cst_45 = arith.constant 1.000000e+00 : f32
    %94 = vector.broadcast %cst_45 : f32 to vector<8x1xf32>
    %95 = arith.subf %94, %83 : vector<8x1xf32>
    %96 = vector.broadcast %95 : vector<8x1xf32> to vector<8x32xf32>
    %97 = arith.mulf %96, %60 : vector<8x32xf32>
    %98 = arith.addf %93, %97 : vector<8x32xf32>
    %c0_46 = arith.constant 0 : index
    %c0_47 = arith.constant 0 : index
    %99 = vector.load %arg6[%c0_46, %c0_47] : memref<8x32xf32, #tpu.memory_space<vmem>>, vector<8x32xf32>
    tpu.vector_store %arg6[%c0_46, %c0_47], %98 {strides = array<i32>} : memref<8x32xf32, #tpu.memory_space<vmem>>, vector<8x32xf32>,
    %100 = vector.broadcast %83 : vector<8x1xf32> to vector<8x32xf32>
    %101 = arith.mulf %100, %80 : vector<8x32xf32>
    %cst_48 = arith.constant 1.000000e+00 : f32
    %102 = vector.broadcast %cst_48 : f32 to vector<8x1xf32>
    %103 = arith.subf %102, %83 : vector<8x1xf32>
    %cst_49 = arith.constant 0.000000e+00 : f32
    %104 = vector.broadcast %cst_49 : f32 to vector<8x1xf32>
    %105 = arith.mulf %103, %104 : vector<8x1xf32>
    %106 = vector.broadcast %105 : vector<8x1xf32> to vector<8x32xf32>
    %107 = arith.addf %101, %106 : vector<8x32xf32>
    %c0_50 = arith.constant 0 : index
    %108 = arith.index_cast %c1_i32 : i32 to index
    %c0_51 = arith.constant 0 : index
    %c0_52 = arith.constant 0 : index
    %109 = vector.load %arg4[%c0_50, %108, %c0_51, %c0_52] : memref<1x8x8x32xf32, #tpu.memory_space<vmem>>, vector<1x1x8x32xf32>
    %110 = vector.shape_cast %109 : vector<1x1x8x32xf32> to vector<8x32xf32>
    %111 = vector.shape_cast %107 : vector<8x32xf32> to vector<1x1x8x32xf32>
    tpu.vector_store %arg4[%c0_50, %108, %c0_51, %c0_52], %111 {strides = array<i32>} : memref<1x8x8x32xf32, #tpu.memory_space<vmem>>, vector<1x1x8x32xf32>,
    %c2_i32 = arith.constant 2 : i32
    %c0_53 = arith.constant 0 : index
    %c0_54 = arith.constant 0 : index
    %112 = vector.load %arg5[%c0_53, %c0_54] : memref<8x32xf32, #tpu.memory_space<vmem>>, vector<8x32xf32>
    %c0_55 = arith.constant 0 : index
    %c0_56 = arith.constant 0 : index
    %113 = vector.load %arg6[%c0_55, %c0_56] : memref<8x32xf32, #tpu.memory_space<vmem>>, vector<8x32xf32>
    %c0_57 = arith.constant 0 : index
    %114 = arith.index_cast %c2_i32 : i32 to index
    %c0_58 = arith.constant 0 : index
    %c0_59 = arith.constant 0 : index
    %115 = vector.load %arg1[%c0_57, %114, %c0_58, %c0_59] : memref<1x8x8x128xf32, #tpu.memory_space<vmem>>, vector<1x1x8x128xf32>
    %116 = vector.shape_cast %115 : vector<1x1x8x128xf32> to vector<8x128xf32>
    %cst_60 = arith.constant dense<0.000000e+00> : vector<8x128xf32>
    %117 = tpu.matmul %112, %5, %cst_60 {dimension_numbers = #tpu.dot_dimension_numbers<[1], [0], [0], [1], [0, 0, 1, 1], [], []>} : vector<8x32xf32>, vector<32x128xf32>, vector<8x128xf32> -> vector<8x128xf32>
    %118 = arith.addf %116, %117 : vector<8x128xf32>
    %119 = arith.negf %118 : vector<8x128xf32>
    %120 = math.exp %119 : vector<8x128xf32>
    %cst_61 = arith.constant 1.000000e+00 : f32
    %121 = vector.broadcast %cst_61 : f32 to vector<8x128xf32>
    %122 = arith.addf %121, %120 : vector<8x128xf32>
    %123 = arith.divf %121, %122 : vector<8x128xf32>
    %124 = math.tanh %118 : vector<8x128xf32>
    %125 = vector.extract_strided_slice %123 {offsets = [0, 0], sizes = [8, 32], strides = [1, 1]} : vector<8x128xf32> to vector<8x32xf32>
    %126 = vector.extract_strided_slice %123 {offsets = [0, 32], sizes = [8, 32], strides = [1, 1]} : vector<8x128xf32> to vector<8x32xf32>
    %127 = vector.extract_strided_slice %124 {offsets = [0, 64], sizes = [8, 32], strides = [1, 1]} : vector<8x128xf32> to vector<8x32xf32>
    %128 = vector.extract_strided_slice %123 {offsets = [0, 96], sizes = [8, 32], strides = [1, 1]} : vector<8x128xf32> to vector<8x32xf32>
    %129 = arith.mulf %126, %113 : vector<8x32xf32>
    %130 = arith.mulf %125, %127 : vector<8x32xf32>
    %131 = arith.addf %129, %130 : vector<8x32xf32>
    %132 = math.tanh %131 : vector<8x32xf32>
    %133 = arith.mulf %128, %132 : vector<8x32xf32>
    %c0_62 = arith.constant 0 : index
    %134 = arith.index_cast %c2_i32 : i32 to index
    %c0_63 = arith.constant 0 : index
    %c0_64 = arith.constant 0 : index
    %135 = vector.load %arg3[%c0_62, %134, %c0_63, %c0_64] : memref<1x8x8x1xf32, #tpu.memory_space<vmem>>, vector<1x1x8x1xf32>
    %136 = vector.shape_cast %135 : vector<1x1x8x1xf32> to vector<8x1xf32>
    %137 = vector.broadcast %136 : vector<8x1xf32> to vector<8x32xf32>
    %138 = arith.mulf %137, %133 : vector<8x32xf32>
    %cst_65 = arith.constant 1.000000e+00 : f32
    %139 = vector.broadcast %cst_65 : f32 to vector<8x1xf32>
    %140 = arith.subf %139, %136 : vector<8x1xf32>
    %141 = vector.broadcast %140 : vector<8x1xf32> to vector<8x32xf32>
    %142 = arith.mulf %141, %112 : vector<8x32xf32>
    %143 = arith.addf %138, %142 : vector<8x32xf32>
    %c0_66 = arith.constant 0 : index
    %c0_67 = arith.constant 0 : index
    %144 = vector.load %arg5[%c0_66, %c0_67] : memref<8x32xf32, #tpu.memory_space<vmem>>, vector<8x32xf32>
    tpu.vector_store %arg5[%c0_66, %c0_67], %143 {strides = array<i32>} : memref<8x32xf32, #tpu.memory_space<vmem>>, vector<8x32xf32>,
    %145 = vector.broadcast %136 : vector<8x1xf32> to vector<8x32xf32>
    %146 = arith.mulf %145, %131 : vector<8x32xf32>
    %cst_68 = arith.constant 1.000000e+00 : f32
    %147 = vector.broadcast %cst_68 : f32 to vector<8x1xf32>
    %148 = arith.subf %147, %136 : vector<8x1xf32>
    %149 = vector.broadcast %148 : vector<8x1xf32> to vector<8x32xf32>
    %150 = arith.mulf %149, %113 : vector<8x32xf32>
    %151 = arith.addf %146, %150 : vector<8x32xf32>
    %c0_69 = arith.constant 0 : index
    %c0_70 = arith.constant 0 : index
    %152 = vector.load %arg6[%c0_69, %c0_70] : memref<8x32xf32, #tpu.memory_space<vmem>>, vector<8x32xf32>
    tpu.vector_store %arg6[%c0_69, %c0_70], %151 {strides = array<i32>} : memref<8x32xf32, #tpu.memory_space<vmem>>, vector<8x32xf32>,
    %153 = vector.broadcast %136 : vector<8x1xf32> to vector<8x32xf32>
    %154 = arith.mulf %153, %133 : vector<8x32xf32>
    %cst_71 = arith.constant 1.000000e+00 : f32
    %155 = vector.broadcast %cst_71 : f32 to vector<8x1xf32>
    %156 = arith.subf %155, %136 : vector<8x1xf32>
    %cst_72 = arith.constant 0.000000e+00 : f32
    %157 = vector.broadcast %cst_72 : f32 to vector<8x1xf32>
    %158 = arith.mulf %156, %157 : vector<8x1xf32>
    %159 = vector.broadcast %158 : vector<8x1xf32> to vector<8x32xf32>
    %160 = arith.addf %154, %159 : vector<8x32xf32>
    %c0_73 = arith.constant 0 : index
    %161 = arith.index_cast %c2_i32 : i32 to index
    %c0_74 = arith.constant 0 : index
    %c0_75 = arith.constant 0 : index
    %162 = vector.load %arg4[%c0_73, %161, %c0_74, %c0_75] : memref<1x8x8x32xf32, #tpu.memory_space<vmem>>, vector<1x1x8x32xf32>
    %163 = vector.shape_cast %162 : vector<1x1x8x32xf32> to vector<8x32xf32>
    %164 = vector.shape_cast %160 : vector<8x32xf32> to vector<1x1x8x32xf32>
    tpu.vector_store %arg4[%c0_73, %161, %c0_74, %c0_75], %164 {strides = array<i32>} : memref<1x8x8x32xf32, #tpu.memory_space<vmem>>, vector<1x1x8x32xf32>,
    %c3_i32 = arith.constant 3 : i32
    %c0_76 = arith.constant 0 : index
    %c0_77 = arith.constant 0 : index
    %165 = vector.load %arg5[%c0_76, %c0_77] : memref<8x32xf32, #tpu.memory_space<vmem>>, vector<8x32xf32>
    %c0_78 = arith.constant 0 : index
    %c0_79 = arith.constant 0 : index
    %166 = vector.load %arg6[%c0_78, %c0_79] : memref<8x32xf32, #tpu.memory_space<vmem>>, vector<8x32xf32>
    %c0_80 = arith.constant 0 : index
    %167 = arith.index_cast %c3_i32 : i32 to index
    %c0_81 = arith.constant 0 : index
    %c0_82 = arith.constant 0 : index
    %168 = vector.load %arg1[%c0_80, %167, %c0_81, %c0_82] : memref<1x8x8x128xf32, #tpu.memory_space<vmem>>, vector<1x1x8x128xf32>
    %169 = vector.shape_cast %168 : vector<1x1x8x128xf32> to vector<8x128xf32>
    %cst_83 = arith.constant dense<0.000000e+00> : vector<8x128xf32>
    %170 = tpu.matmul %165, %5, %cst_83 {dimension_numbers = #tpu.dot_dimension_numbers<[1], [0], [0], [1], [0, 0, 1, 1], [], []>} : vector<8x32xf32>, vector<32x128xf32>, vector<8x128xf32> -> vector<8x128xf32>
    %171 = arith.addf %169, %170 : vector<8x128xf32>
    %172 = arith.negf %171 : vector<8x128xf32>
    %173 = math.exp %172 : vector<8x128xf32>
    %cst_84 = arith.constant 1.000000e+00 : f32
    %174 = vector.broadcast %cst_84 : f32 to vector<8x128xf32>
    %175 = arith.addf %174, %173 : vector<8x128xf32>
    %176 = arith.divf %174, %175 : vector<8x128xf32>
    %177 = math.tanh %171 : vector<8x128xf32>
    %178 = vector.extract_strided_slice %176 {offsets = [0, 0], sizes = [8, 32], strides = [1, 1]} : vector<8x128xf32> to vector<8x32xf32>
    %179 = vector.extract_strided_slice %176 {offsets = [0, 32], sizes = [8, 32], strides = [1, 1]} : vector<8x128xf32> to vector<8x32xf32>
    %180 = vector.extract_strided_slice %177 {offsets = [0, 64], sizes = [8, 32], strides = [1, 1]} : vector<8x128xf32> to vector<8x32xf32>
    %181 = vector.extract_strided_slice %176 {offsets = [0, 96], sizes = [8, 32], strides = [1, 1]} : vector<8x128xf32> to vector<8x32xf32>
    %182 = arith.mulf %179, %166 : vector<8x32xf32>
    %183 = arith.mulf %178, %180 : vector<8x32xf32>
    %184 = arith.addf %182, %183 : vector<8x32xf32>
    %185 = math.tanh %184 : vector<8x32xf32>
    %186 = arith.mulf %181, %185 : vector<8x32xf32>
    %c0_85 = arith.constant 0 : index
    %187 = arith.index_cast %c3_i32 : i32 to index
    %c0_86 = arith.constant 0 : index
    %c0_87 = arith.constant 0 : index
    %188 = vector.load %arg3[%c0_85, %187, %c0_86, %c0_87] : memref<1x8x8x1xf32, #tpu.memory_space<vmem>>, vector<1x1x8x1xf32>
    %189 = vector.shape_cast %188 : vector<1x1x8x1xf32> to vector<8x1xf32>
    %190 = vector.broadcast %189 : vector<8x1xf32> to vector<8x32xf32>
    %191 = arith.mulf %190, %186 : vector<8x32xf32>
    %cst_88 = arith.constant 1.000000e+00 : f32
    %192 = vector.broadcast %cst_88 : f32 to vector<8x1xf32>
    %193 = arith.subf %192, %189 : vector<8x1xf32>
    %194 = vector.broadcast %193 : vector<8x1xf32> to vector<8x32xf32>
    %195 = arith.mulf %194, %165 : vector<8x32xf32>
    %196 = arith.addf %191, %195 : vector<8x32xf32>
    %c0_89 = arith.constant 0 : index
    %c0_90 = arith.constant 0 : index
    %197 = vector.load %arg5[%c0_89, %c0_90] : memref<8x32xf32, #tpu.memory_space<vmem>>, vector<8x32xf32>
    tpu.vector_store %arg5[%c0_89, %c0_90], %196 {strides = array<i32>} : memref<8x32xf32, #tpu.memory_space<vmem>>, vector<8x32xf32>,
    %198 = vector.broadcast %189 : vector<8x1xf32> to vector<8x32xf32>
    %199 = arith.mulf %198, %184 : vector<8x32xf32>
    %cst_91 = arith.constant 1.000000e+00 : f32
    %200 = vector.broadcast %cst_91 : f32 to vector<8x1xf32>
    %201 = arith.subf %200, %189 : vector<8x1xf32>
    %202 = vector.broadcast %201 : vector<8x1xf32> to vector<8x32xf32>
    %203 = arith.mulf %202, %166 : vector<8x32xf32>
    %204 = arith.addf %199, %203 : vector<8x32xf32>
    %c0_92 = arith.constant 0 : index
    %c0_93 = arith.constant 0 : index
    %205 = vector.load %arg6[%c0_92, %c0_93] : memref<8x32xf32, #tpu.memory_space<vmem>>, vector<8x32xf32>
    tpu.vector_store %arg6[%c0_92, %c0_93], %204 {strides = array<i32>} : memref<8x32xf32, #tpu.memory_space<vmem>>, vector<8x32xf32>,
    %206 = vector.broadcast %189 : vector<8x1xf32> to vector<8x32xf32>
    %207 = arith.mulf %206, %186 : vector<8x32xf32>
    %cst_94 = arith.constant 1.000000e+00 : f32
    %208 = vector.broadcast %cst_94 : f32 to vector<8x1xf32>
    %209 = arith.subf %208, %189 : vector<8x1xf32>
    %cst_95 = arith.constant 0.000000e+00 : f32
    %210 = vector.broadcast %cst_95 : f32 to vector<8x1xf32>
    %211 = arith.mulf %209, %210 : vector<8x1xf32>
    %212 = vector.broadcast %211 : vector<8x1xf32> to vector<8x32xf32>
    %213 = arith.addf %207, %212 : vector<8x32xf32>
    %c0_96 = arith.constant 0 : index
    %214 = arith.index_cast %c3_i32 : i32 to index
    %c0_97 = arith.constant 0 : index
    %c0_98 = arith.constant 0 : index
    %215 = vector.load %arg4[%c0_96, %214, %c0_97, %c0_98] : memref<1x8x8x32xf32, #tpu.memory_space<vmem>>, vector<1x1x8x32xf32>
    %216 = vector.shape_cast %215 : vector<1x1x8x32xf32> to vector<8x32xf32>
    %217 = vector.shape_cast %213 : vector<8x32xf32> to vector<1x1x8x32xf32>
    tpu.vector_store %arg4[%c0_96, %214, %c0_97, %c0_98], %217 {strides = array<i32>} : memref<1x8x8x32xf32, #tpu.memory_space<vmem>>, vector<1x1x8x32xf32>,
    %c4_i32 = arith.constant 4 : i32
    %c0_99 = arith.constant 0 : index
    %c0_100 = arith.constant 0 : index
    %218 = vector.load %arg5[%c0_99, %c0_100] : memref<8x32xf32, #tpu.memory_space<vmem>>, vector<8x32xf32>
    %c0_101 = arith.constant 0 : index
    %c0_102 = arith.constant 0 : index
    %219 = vector.load %arg6[%c0_101, %c0_102] : memref<8x32xf32, #tpu.memory_space<vmem>>, vector<8x32xf32>
    %c0_103 = arith.constant 0 : index
    %220 = arith.index_cast %c4_i32 : i32 to index
    %c0_104 = arith.constant 0 : index
    %c0_105 = arith.constant 0 : index
    %221 = vector.load %arg1[%c0_103, %220, %c0_104, %c0_105] : memref<1x8x8x128xf32, #tpu.memory_space<vmem>>, vector<1x1x8x128xf32>
    %222 = vector.shape_cast %221 : vector<1x1x8x128xf32> to vector<8x128xf32>
    %cst_106 = arith.constant dense<0.000000e+00> : vector<8x128xf32>
    %223 = tpu.matmul %218, %5, %cst_106 {dimension_numbers = #tpu.dot_dimension_numbers<[1], [0], [0], [1], [0, 0, 1, 1], [], []>} : vector<8x32xf32>, vector<32x128xf32>, vector<8x128xf32> -> vector<8x128xf32>
    %224 = arith.addf %222, %223 : vector<8x128xf32>
    %225 = arith.negf %224 : vector<8x128xf32>
    %226 = math.exp %225 : vector<8x128xf32>
    %cst_107 = arith.constant 1.000000e+00 : f32
    %227 = vector.broadcast %cst_107 : f32 to vector<8x128xf32>
    %228 = arith.addf %227, %226 : vector<8x128xf32>
    %229 = arith.divf %227, %228 : vector<8x128xf32>
    %230 = math.tanh %224 : vector<8x128xf32>
    %231 = vector.extract_strided_slice %229 {offsets = [0, 0], sizes = [8, 32], strides = [1, 1]} : vector<8x128xf32> to vector<8x32xf32>
    %232 = vector.extract_strided_slice %229 {offsets = [0, 32], sizes = [8, 32], strides = [1, 1]} : vector<8x128xf32> to vector<8x32xf32>
    %233 = vector.extract_strided_slice %230 {offsets = [0, 64], sizes = [8, 32], strides = [1, 1]} : vector<8x128xf32> to vector<8x32xf32>
    %234 = vector.extract_strided_slice %229 {offsets = [0, 96], sizes = [8, 32], strides = [1, 1]} : vector<8x128xf32> to vector<8x32xf32>
    %235 = arith.mulf %232, %219 : vector<8x32xf32>
    %236 = arith.mulf %231, %233 : vector<8x32xf32>
    %237 = arith.addf %235, %236 : vector<8x32xf32>
    %238 = math.tanh %237 : vector<8x32xf32>
    %239 = arith.mulf %234, %238 : vector<8x32xf32>
    %c0_108 = arith.constant 0 : index
    %240 = arith.index_cast %c4_i32 : i32 to index
    %c0_109 = arith.constant 0 : index
    %c0_110 = arith.constant 0 : index
    %241 = vector.load %arg3[%c0_108, %240, %c0_109, %c0_110] : memref<1x8x8x1xf32, #tpu.memory_space<vmem>>, vector<1x1x8x1xf32>
    %242 = vector.shape_cast %241 : vector<1x1x8x1xf32> to vector<8x1xf32>
    %243 = vector.broadcast %242 : vector<8x1xf32> to vector<8x32xf32>
    %244 = arith.mulf %243, %239 : vector<8x32xf32>
    %cst_111 = arith.constant 1.000000e+00 : f32
    %245 = vector.broadcast %cst_111 : f32 to vector<8x1xf32>
    %246 = arith.subf %245, %242 : vector<8x1xf32>
    %247 = vector.broadcast %246 : vector<8x1xf32> to vector<8x32xf32>
    %248 = arith.mulf %247, %218 : vector<8x32xf32>
    %249 = arith.addf %244, %248 : vector<8x32xf32>
    %c0_112 = arith.constant 0 : index
    %c0_113 = arith.constant 0 : index
    %250 = vector.load %arg5[%c0_112, %c0_113] : memref<8x32xf32, #tpu.memory_space<vmem>>, vector<8x32xf32>
    tpu.vector_store %arg5[%c0_112, %c0_113], %249 {strides = array<i32>} : memref<8x32xf32, #tpu.memory_space<vmem>>, vector<8x32xf32>,
    %251 = vector.broadcast %242 : vector<8x1xf32> to vector<8x32xf32>
    %252 = arith.mulf %251, %237 : vector<8x32xf32>
    %cst_114 = arith.constant 1.000000e+00 : f32
    %253 = vector.broadcast %cst_114 : f32 to vector<8x1xf32>
    %254 = arith.subf %253, %242 : vector<8x1xf32>
    %255 = vector.broadcast %254 : vector<8x1xf32> to vector<8x32xf32>
    %256 = arith.mulf %255, %219 : vector<8x32xf32>
    %257 = arith.addf %252, %256 : vector<8x32xf32>
    %c0_115 = arith.constant 0 : index
    %c0_116 = arith.constant 0 : index
    %258 = vector.load %arg6[%c0_115, %c0_116] : memref<8x32xf32, #tpu.memory_space<vmem>>, vector<8x32xf32>
    tpu.vector_store %arg6[%c0_115, %c0_116], %257 {strides = array<i32>} : memref<8x32xf32, #tpu.memory_space<vmem>>, vector<8x32xf32>,
    %259 = vector.broadcast %242 : vector<8x1xf32> to vector<8x32xf32>
    %260 = arith.mulf %259, %239 : vector<8x32xf32>
    %cst_117 = arith.constant 1.000000e+00 : f32
    %261 = vector.broadcast %cst_117 : f32 to vector<8x1xf32>
    %262 = arith.subf %261, %242 : vector<8x1xf32>
    %cst_118 = arith.constant 0.000000e+00 : f32
    %263 = vector.broadcast %cst_118 : f32 to vector<8x1xf32>
    %264 = arith.mulf %262, %263 : vector<8x1xf32>
    %265 = vector.broadcast %264 : vector<8x1xf32> to vector<8x32xf32>
    %266 = arith.addf %260, %265 : vector<8x32xf32>
    %c0_119 = arith.constant 0 : index
    %267 = arith.index_cast %c4_i32 : i32 to index
    %c0_120 = arith.constant 0 : index
    %c0_121 = arith.constant 0 : index
    %268 = vector.load %arg4[%c0_119, %267, %c0_120, %c0_121] : memref<1x8x8x32xf32, #tpu.memory_space<vmem>>, vector<1x1x8x32xf32>
    %269 = vector.shape_cast %268 : vector<1x1x8x32xf32> to vector<8x32xf32>
    %270 = vector.shape_cast %266 : vector<8x32xf32> to vector<1x1x8x32xf32>
    tpu.vector_store %arg4[%c0_119, %267, %c0_120, %c0_121], %270 {strides = array<i32>} : memref<1x8x8x32xf32, #tpu.memory_space<vmem>>, vector<1x1x8x32xf32>,
    %c5_i32 = arith.constant 5 : i32
    %c0_122 = arith.constant 0 : index
    %c0_123 = arith.constant 0 : index
    %271 = vector.load %arg5[%c0_122, %c0_123] : memref<8x32xf32, #tpu.memory_space<vmem>>, vector<8x32xf32>
    %c0_124 = arith.constant 0 : index
    %c0_125 = arith.constant 0 : index
    %272 = vector.load %arg6[%c0_124, %c0_125] : memref<8x32xf32, #tpu.memory_space<vmem>>, vector<8x32xf32>
    %c0_126 = arith.constant 0 : index
    %273 = arith.index_cast %c5_i32 : i32 to index
    %c0_127 = arith.constant 0 : index
    %c0_128 = arith.constant 0 : index
    %274 = vector.load %arg1[%c0_126, %273, %c0_127, %c0_128] : memref<1x8x8x128xf32, #tpu.memory_space<vmem>>, vector<1x1x8x128xf32>
    %275 = vector.shape_cast %274 : vector<1x1x8x128xf32> to vector<8x128xf32>
    %cst_129 = arith.constant dense<0.000000e+00> : vector<8x128xf32>
    %276 = tpu.matmul %271, %5, %cst_129 {dimension_numbers = #tpu.dot_dimension_numbers<[1], [0], [0], [1], [0, 0, 1, 1], [], []>} : vector<8x32xf32>, vector<32x128xf32>, vector<8x128xf32> -> vector<8x128xf32>
    %277 = arith.addf %275, %276 : vector<8x128xf32>
    %278 = arith.negf %277 : vector<8x128xf32>
    %279 = math.exp %278 : vector<8x128xf32>
    %cst_130 = arith.constant 1.000000e+00 : f32
    %280 = vector.broadcast %cst_130 : f32 to vector<8x128xf32>
    %281 = arith.addf %280, %279 : vector<8x128xf32>
    %282 = arith.divf %280, %281 : vector<8x128xf32>
    %283 = math.tanh %277 : vector<8x128xf32>
    %284 = vector.extract_strided_slice %282 {offsets = [0, 0], sizes = [8, 32], strides = [1, 1]} : vector<8x128xf32> to vector<8x32xf32>
    %285 = vector.extract_strided_slice %282 {offsets = [0, 32], sizes = [8, 32], strides = [1, 1]} : vector<8x128xf32> to vector<8x32xf32>
    %286 = vector.extract_strided_slice %283 {offsets = [0, 64], sizes = [8, 32], strides = [1, 1]} : vector<8x128xf32> to vector<8x32xf32>
    %287 = vector.extract_strided_slice %282 {offsets = [0, 96], sizes = [8, 32], strides = [1, 1]} : vector<8x128xf32> to vector<8x32xf32>
    %288 = arith.mulf %285, %272 : vector<8x32xf32>
    %289 = arith.mulf %284, %286 : vector<8x32xf32>
    %290 = arith.addf %288, %289 : vector<8x32xf32>
    %291 = math.tanh %290 : vector<8x32xf32>
    %292 = arith.mulf %287, %291 : vector<8x32xf32>
    %c0_131 = arith.constant 0 : index
    %293 = arith.index_cast %c5_i32 : i32 to index
    %c0_132 = arith.constant 0 : index
    %c0_133 = arith.constant 0 : index
    %294 = vector.load %arg3[%c0_131, %293, %c0_132, %c0_133] : memref<1x8x8x1xf32, #tpu.memory_space<vmem>>, vector<1x1x8x1xf32>
    %295 = vector.shape_cast %294 : vector<1x1x8x1xf32> to vector<8x1xf32>
    %296 = vector.broadcast %295 : vector<8x1xf32> to vector<8x32xf32>
    %297 = arith.mulf %296, %292 : vector<8x32xf32>
    %cst_134 = arith.constant 1.000000e+00 : f32
    %298 = vector.broadcast %cst_134 : f32 to vector<8x1xf32>
    %299 = arith.subf %298, %295 : vector<8x1xf32>
    %300 = vector.broadcast %299 : vector<8x1xf32> to vector<8x32xf32>
    %301 = arith.mulf %300, %271 : vector<8x32xf32>
    %302 = arith.addf %297, %301 : vector<8x32xf32>
    %c0_135 = arith.constant 0 : index
    %c0_136 = arith.constant 0 : index
    %303 = vector.load %arg5[%c0_135, %c0_136] : memref<8x32xf32, #tpu.memory_space<vmem>>, vector<8x32xf32>
    tpu.vector_store %arg5[%c0_135, %c0_136], %302 {strides = array<i32>} : memref<8x32xf32, #tpu.memory_space<vmem>>, vector<8x32xf32>,
    %304 = vector.broadcast %295 : vector<8x1xf32> to vector<8x32xf32>
    %305 = arith.mulf %304, %290 : vector<8x32xf32>
    %cst_137 = arith.constant 1.000000e+00 : f32
    %306 = vector.broadcast %cst_137 : f32 to vector<8x1xf32>
    %307 = arith.subf %306, %295 : vector<8x1xf32>
    %308 = vector.broadcast %307 : vector<8x1xf32> to vector<8x32xf32>
    %309 = arith.mulf %308, %272 : vector<8x32xf32>
    %310 = arith.addf %305, %309 : vector<8x32xf32>
    %c0_138 = arith.constant 0 : index
    %c0_139 = arith.constant 0 : index
    %311 = vector.load %arg6[%c0_138, %c0_139] : memref<8x32xf32, #tpu.memory_space<vmem>>, vector<8x32xf32>
    tpu.vector_store %arg6[%c0_138, %c0_139], %310 {strides = array<i32>} : memref<8x32xf32, #tpu.memory_space<vmem>>, vector<8x32xf32>,
    %312 = vector.broadcast %295 : vector<8x1xf32> to vector<8x32xf32>
    %313 = arith.mulf %312, %292 : vector<8x32xf32>
    %cst_140 = arith.constant 1.000000e+00 : f32
    %314 = vector.broadcast %cst_140 : f32 to vector<8x1xf32>
    %315 = arith.subf %314, %295 : vector<8x1xf32>
    %cst_141 = arith.constant 0.000000e+00 : f32
    %316 = vector.broadcast %cst_141 : f32 to vector<8x1xf32>
    %317 = arith.mulf %315, %316 : vector<8x1xf32>
    %318 = vector.broadcast %317 : vector<8x1xf32> to vector<8x32xf32>
    %319 = arith.addf %313, %318 : vector<8x32xf32>
    %c0_142 = arith.constant 0 : index
    %320 = arith.index_cast %c5_i32 : i32 to index
    %c0_143 = arith.constant 0 : index
    %c0_144 = arith.constant 0 : index
    %321 = vector.load %arg4[%c0_142, %320, %c0_143, %c0_144] : memref<1x8x8x32xf32, #tpu.memory_space<vmem>>, vector<1x1x8x32xf32>
    %322 = vector.shape_cast %321 : vector<1x1x8x32xf32> to vector<8x32xf32>
    %323 = vector.shape_cast %319 : vector<8x32xf32> to vector<1x1x8x32xf32>
    tpu.vector_store %arg4[%c0_142, %320, %c0_143, %c0_144], %323 {strides = array<i32>} : memref<1x8x8x32xf32, #tpu.memory_space<vmem>>, vector<1x1x8x32xf32>,
    %c6_i32 = arith.constant 6 : i32
    %c0_145 = arith.constant 0 : index
    %c0_146 = arith.constant 0 : index
    %324 = vector.load %arg5[%c0_145, %c0_146] : memref<8x32xf32, #tpu.memory_space<vmem>>, vector<8x32xf32>
    %c0_147 = arith.constant 0 : index
    %c0_148 = arith.constant 0 : index
    %325 = vector.load %arg6[%c0_147, %c0_148] : memref<8x32xf32, #tpu.memory_space<vmem>>, vector<8x32xf32>
    %c0_149 = arith.constant 0 : index
    %326 = arith.index_cast %c6_i32 : i32 to index
    %c0_150 = arith.constant 0 : index
    %c0_151 = arith.constant 0 : index
    %327 = vector.load %arg1[%c0_149, %326, %c0_150, %c0_151] : memref<1x8x8x128xf32, #tpu.memory_space<vmem>>, vector<1x1x8x128xf32>
    %328 = vector.shape_cast %327 : vector<1x1x8x128xf32> to vector<8x128xf32>
    %cst_152 = arith.constant dense<0.000000e+00> : vector<8x128xf32>
    %329 = tpu.matmul %324, %5, %cst_152 {dimension_numbers = #tpu.dot_dimension_numbers<[1], [0], [0], [1], [0, 0, 1, 1], [], []>} : vector<8x32xf32>, vector<32x128xf32>, vector<8x128xf32> -> vector<8x128xf32>
    %330 = arith.addf %328, %329 : vector<8x128xf32>
    %331 = arith.negf %330 : vector<8x128xf32>
    %332 = math.exp %331 : vector<8x128xf32>
    %cst_153 = arith.constant 1.000000e+00 : f32
    %333 = vector.broadcast %cst_153 : f32 to vector<8x128xf32>
    %334 = arith.addf %333, %332 : vector<8x128xf32>
    %335 = arith.divf %333, %334 : vector<8x128xf32>
    %336 = math.tanh %330 : vector<8x128xf32>
    %337 = vector.extract_strided_slice %335 {offsets = [0, 0], sizes = [8, 32], strides = [1, 1]} : vector<8x128xf32> to vector<8x32xf32>
    %338 = vector.extract_strided_slice %335 {offsets = [0, 32], sizes = [8, 32], strides = [1, 1]} : vector<8x128xf32> to vector<8x32xf32>
    %339 = vector.extract_strided_slice %336 {offsets = [0, 64], sizes = [8, 32], strides = [1, 1]} : vector<8x128xf32> to vector<8x32xf32>
    %340 = vector.extract_strided_slice %335 {offsets = [0, 96], sizes = [8, 32], strides = [1, 1]} : vector<8x128xf32> to vector<8x32xf32>
    %341 = arith.mulf %338, %325 : vector<8x32xf32>
    %342 = arith.mulf %337, %339 : vector<8x32xf32>
    %343 = arith.addf %341, %342 : vector<8x32xf32>
    %344 = math.tanh %343 : vector<8x32xf32>
    %345 = arith.mulf %340, %344 : vector<8x32xf32>
    %c0_154 = arith.constant 0 : index
    %346 = arith.index_cast %c6_i32 : i32 to index
    %c0_155 = arith.constant 0 : index
    %c0_156 = arith.constant 0 : index
    %347 = vector.load %arg3[%c0_154, %346, %c0_155, %c0_156] : memref<1x8x8x1xf32, #tpu.memory_space<vmem>>, vector<1x1x8x1xf32>
    %348 = vector.shape_cast %347 : vector<1x1x8x1xf32> to vector<8x1xf32>
    %349 = vector.broadcast %348 : vector<8x1xf32> to vector<8x32xf32>
    %350 = arith.mulf %349, %345 : vector<8x32xf32>
    %cst_157 = arith.constant 1.000000e+00 : f32
    %351 = vector.broadcast %cst_157 : f32 to vector<8x1xf32>
    %352 = arith.subf %351, %348 : vector<8x1xf32>
    %353 = vector.broadcast %352 : vector<8x1xf32> to vector<8x32xf32>
    %354 = arith.mulf %353, %324 : vector<8x32xf32>
    %355 = arith.addf %350, %354 : vector<8x32xf32>
    %c0_158 = arith.constant 0 : index
    %c0_159 = arith.constant 0 : index
    %356 = vector.load %arg5[%c0_158, %c0_159] : memref<8x32xf32, #tpu.memory_space<vmem>>, vector<8x32xf32>
    tpu.vector_store %arg5[%c0_158, %c0_159], %355 {strides = array<i32>} : memref<8x32xf32, #tpu.memory_space<vmem>>, vector<8x32xf32>,
    %357 = vector.broadcast %348 : vector<8x1xf32> to vector<8x32xf32>
    %358 = arith.mulf %357, %343 : vector<8x32xf32>
    %cst_160 = arith.constant 1.000000e+00 : f32
    %359 = vector.broadcast %cst_160 : f32 to vector<8x1xf32>
    %360 = arith.subf %359, %348 : vector<8x1xf32>
    %361 = vector.broadcast %360 : vector<8x1xf32> to vector<8x32xf32>
    %362 = arith.mulf %361, %325 : vector<8x32xf32>
    %363 = arith.addf %358, %362 : vector<8x32xf32>
    %c0_161 = arith.constant 0 : index
    %c0_162 = arith.constant 0 : index
    %364 = vector.load %arg6[%c0_161, %c0_162] : memref<8x32xf32, #tpu.memory_space<vmem>>, vector<8x32xf32>
    tpu.vector_store %arg6[%c0_161, %c0_162], %363 {strides = array<i32>} : memref<8x32xf32, #tpu.memory_space<vmem>>, vector<8x32xf32>,
    %365 = vector.broadcast %348 : vector<8x1xf32> to vector<8x32xf32>
    %366 = arith.mulf %365, %345 : vector<8x32xf32>
    %cst_163 = arith.constant 1.000000e+00 : f32
    %367 = vector.broadcast %cst_163 : f32 to vector<8x1xf32>
    %368 = arith.subf %367, %348 : vector<8x1xf32>
    %cst_164 = arith.constant 0.000000e+00 : f32
    %369 = vector.broadcast %cst_164 : f32 to vector<8x1xf32>
    %370 = arith.mulf %368, %369 : vector<8x1xf32>
    %371 = vector.broadcast %370 : vector<8x1xf32> to vector<8x32xf32>
    %372 = arith.addf %366, %371 : vector<8x32xf32>
    %c0_165 = arith.constant 0 : index
    %373 = arith.index_cast %c6_i32 : i32 to index
    %c0_166 = arith.constant 0 : index
    %c0_167 = arith.constant 0 : index
    %374 = vector.load %arg4[%c0_165, %373, %c0_166, %c0_167] : memref<1x8x8x32xf32, #tpu.memory_space<vmem>>, vector<1x1x8x32xf32>
    %375 = vector.shape_cast %374 : vector<1x1x8x32xf32> to vector<8x32xf32>
    %376 = vector.shape_cast %372 : vector<8x32xf32> to vector<1x1x8x32xf32>
    tpu.vector_store %arg4[%c0_165, %373, %c0_166, %c0_167], %376 {strides = array<i32>} : memref<1x8x8x32xf32, #tpu.memory_space<vmem>>, vector<1x1x8x32xf32>,
    %c7_i32 = arith.constant 7 : i32
    %c0_168 = arith.constant 0 : index
    %c0_169 = arith.constant 0 : index
    %377 = vector.load %arg5[%c0_168, %c0_169] : memref<8x32xf32, #tpu.memory_space<vmem>>, vector<8x32xf32>
    %c0_170 = arith.constant 0 : index
    %c0_171 = arith.constant 0 : index
    %378 = vector.load %arg6[%c0_170, %c0_171] : memref<8x32xf32, #tpu.memory_space<vmem>>, vector<8x32xf32>
    %c0_172 = arith.constant 0 : index
    %379 = arith.index_cast %c7_i32 : i32 to index
    %c0_173 = arith.constant 0 : index
    %c0_174 = arith.constant 0 : index
    %380 = vector.load %arg1[%c0_172, %379, %c0_173, %c0_174] : memref<1x8x8x128xf32, #tpu.memory_space<vmem>>, vector<1x1x8x128xf32>
    %381 = vector.shape_cast %380 : vector<1x1x8x128xf32> to vector<8x128xf32>
    %cst_175 = arith.constant dense<0.000000e+00> : vector<8x128xf32>
    %382 = tpu.matmul %377, %5, %cst_175 {dimension_numbers = #tpu.dot_dimension_numbers<[1], [0], [0], [1], [0, 0, 1, 1], [], []>} : vector<8x32xf32>, vector<32x128xf32>, vector<8x128xf32> -> vector<8x128xf32>
    %383 = arith.addf %381, %382 : vector<8x128xf32>
    %384 = arith.negf %383 : vector<8x128xf32>
    %385 = math.exp %384 : vector<8x128xf32>
    %cst_176 = arith.constant 1.000000e+00 : f32
    %386 = vector.broadcast %cst_176 : f32 to vector<8x128xf32>
    %387 = arith.addf %386, %385 : vector<8x128xf32>
    %388 = arith.divf %386, %387 : vector<8x128xf32>
    %389 = math.tanh %383 : vector<8x128xf32>
    %390 = vector.extract_strided_slice %388 {offsets = [0, 0], sizes = [8, 32], strides = [1, 1]} : vector<8x128xf32> to vector<8x32xf32>
    %391 = vector.extract_strided_slice %388 {offsets = [0, 32], sizes = [8, 32], strides = [1, 1]} : vector<8x128xf32> to vector<8x32xf32>
    %392 = vector.extract_strided_slice %389 {offsets = [0, 64], sizes = [8, 32], strides = [1, 1]} : vector<8x128xf32> to vector<8x32xf32>
    %393 = vector.extract_strided_slice %388 {offsets = [0, 96], sizes = [8, 32], strides = [1, 1]} : vector<8x128xf32> to vector<8x32xf32>
    %394 = arith.mulf %391, %378 : vector<8x32xf32>
    %395 = arith.mulf %390, %392 : vector<8x32xf32>
    %396 = arith.addf %394, %395 : vector<8x32xf32>
    %397 = math.tanh %396 : vector<8x32xf32>
    %398 = arith.mulf %393, %397 : vector<8x32xf32>
    %c0_177 = arith.constant 0 : index
    %399 = arith.index_cast %c7_i32 : i32 to index
    %c0_178 = arith.constant 0 : index
    %c0_179 = arith.constant 0 : index
    %400 = vector.load %arg3[%c0_177, %399, %c0_178, %c0_179] : memref<1x8x8x1xf32, #tpu.memory_space<vmem>>, vector<1x1x8x1xf32>
    %401 = vector.shape_cast %400 : vector<1x1x8x1xf32> to vector<8x1xf32>
    %402 = vector.broadcast %401 : vector<8x1xf32> to vector<8x32xf32>
    %403 = arith.mulf %402, %398 : vector<8x32xf32>
    %cst_180 = arith.constant 1.000000e+00 : f32
    %404 = vector.broadcast %cst_180 : f32 to vector<8x1xf32>
    %405 = arith.subf %404, %401 : vector<8x1xf32>
    %406 = vector.broadcast %405 : vector<8x1xf32> to vector<8x32xf32>
    %407 = arith.mulf %406, %377 : vector<8x32xf32>
    %408 = arith.addf %403, %407 : vector<8x32xf32>
    %c0_181 = arith.constant 0 : index
    %c0_182 = arith.constant 0 : index
    %409 = vector.load %arg5[%c0_181, %c0_182] : memref<8x32xf32, #tpu.memory_space<vmem>>, vector<8x32xf32>
    tpu.vector_store %arg5[%c0_181, %c0_182], %408 {strides = array<i32>} : memref<8x32xf32, #tpu.memory_space<vmem>>, vector<8x32xf32>,
    %410 = vector.broadcast %401 : vector<8x1xf32> to vector<8x32xf32>
    %411 = arith.mulf %410, %396 : vector<8x32xf32>
    %cst_183 = arith.constant 1.000000e+00 : f32
    %412 = vector.broadcast %cst_183 : f32 to vector<8x1xf32>
    %413 = arith.subf %412, %401 : vector<8x1xf32>
    %414 = vector.broadcast %413 : vector<8x1xf32> to vector<8x32xf32>
    %415 = arith.mulf %414, %378 : vector<8x32xf32>
    %416 = arith.addf %411, %415 : vector<8x32xf32>
    %c0_184 = arith.constant 0 : index
    %c0_185 = arith.constant 0 : index
    %417 = vector.load %arg6[%c0_184, %c0_185] : memref<8x32xf32, #tpu.memory_space<vmem>>, vector<8x32xf32>
    tpu.vector_store %arg6[%c0_184, %c0_185], %416 {strides = array<i32>} : memref<8x32xf32, #tpu.memory_space<vmem>>, vector<8x32xf32>,
    %418 = vector.broadcast %401 : vector<8x1xf32> to vector<8x32xf32>
    %419 = arith.mulf %418, %398 : vector<8x32xf32>
    %cst_186 = arith.constant 1.000000e+00 : f32
    %420 = vector.broadcast %cst_186 : f32 to vector<8x1xf32>
    %421 = arith.subf %420, %401 : vector<8x1xf32>
    %cst_187 = arith.constant 0.000000e+00 : f32
    %422 = vector.broadcast %cst_187 : f32 to vector<8x1xf32>
    %423 = arith.mulf %421, %422 : vector<8x1xf32>
    %424 = vector.broadcast %423 : vector<8x1xf32> to vector<8x32xf32>
    %425 = arith.addf %419, %424 : vector<8x32xf32>
    %c0_188 = arith.constant 0 : index
    %426 = arith.index_cast %c7_i32 : i32 to index
    %c0_189 = arith.constant 0 : index
    %c0_190 = arith.constant 0 : index
    %427 = vector.load %arg4[%c0_188, %426, %c0_189, %c0_190] : memref<1x8x8x32xf32, #tpu.memory_space<vmem>>, vector<1x1x8x32xf32>
    %428 = vector.shape_cast %427 : vector<1x1x8x32xf32> to vector<8x32xf32>
    %429 = vector.shape_cast %425 : vector<8x32xf32> to vector<1x1x8x32xf32>
    tpu.vector_store %arg4[%c0_188, %426, %c0_189, %c0_190], %429 {strides = array<i32>} : memref<1x8x8x32xf32, #tpu.memory_space<vmem>>, vector<1x1x8x32xf32>,
    %c8_i32 = arith.constant 8 : i32
    return
  }
  func.func @transform_0(%arg0: i32) -> (i32, i32, i32, i32) {
    %c0_i32 = arith.constant 0 : i32
    %c0_i32_0 = arith.constant 0 : i32
    %c0_i32_1 = arith.constant 0 : i32
    %c0_i32_2 = arith.constant 0 : i32
    return %arg0, %c0_i32, %c0_i32_0, %c0_i32_1 : i32, i32, i32, i32
  }
  func.func @transform_1(%arg0: i32) -> (i32, i32, i32) {
    %c0_i32 = arith.constant 0 : i32
    %c0_i32_0 = arith.constant 0 : i32
    %c0_i32_1 = arith.constant 0 : i32
    return %arg0, %c0_i32, %c0_i32_0 : i32, i32, i32
  }
  func.func @transform_2(%arg0: i32) -> (i32, i32, i32, i32) {
    %c0_i32 = arith.constant 0 : i32
    %c0_i32_0 = arith.constant 0 : i32
    %c0_i32_1 = arith.constant 0 : i32
    %c0_i32_2 = arith.constant 0 : i32
    return %arg0, %c0_i32, %c0_i32_0, %c0_i32_1 : i32, i32, i32, i32
  }
  func.func @transform_3(%arg0: i32) -> (i32, i32, i32, i32) {
    %c0_i32 = arith.constant 0 : i32
    %c0_i32_0 = arith.constant 0 : i32
    %c0_i32_1 = arith.constant 0 : i32
    %c0_i32_2 = arith.constant 0 : i32
    return %arg0, %c0_i32, %c0_i32_0, %c0_i32_1 : i32, i32, i32, i32
  }
}

module attributes {stable_mosaic.version = 11 : i64} {
  func.func @_linear_kernel(%arg0: i32, %arg1: i32, %arg2: memref<64x64xf32, #tpu.memory_space<vmem>>, %arg3: memref<64x256xf32, #tpu.memory_space<vmem>>, %arg4: memref<1x256xf32, #tpu.memory_space<vmem>>, %arg5: memref<64x256xf32, #tpu.memory_space<vmem>>) attributes {dimension_semantics = [#tpu.dimension_semantics<parallel>, #tpu.dimension_semantics<parallel>], iteration_bounds = array<i64: 1, 1>, scalar_prefetch = 0 : i64, scratch_operands = 0 : i64, tpu.core_type = #tpu.core_type<tc>, window_params = [{transform_indices = @transform_0, window_bounds = array<i64: 64, 64>}, {transform_indices = @transform_1, window_bounds = array<i64: 64, 256>}, {transform_indices = @transform_2, window_bounds = array<i64: 1, 256>}, {transform_indices = @transform_3, window_bounds = array<i64: 64, 256>}]} {
    %c0 = arith.constant 0 : index
    %c0_0 = arith.constant 0 : index
    %0 = vector.load %arg2[%c0, %c0_0] : memref<64x64xf32, #tpu.memory_space<vmem>>, vector<64x64xf32>
    %c0_1 = arith.constant 0 : index
    %c0_2 = arith.constant 0 : index
    %1 = vector.load %arg3[%c0_1, %c0_2] : memref<64x256xf32, #tpu.memory_space<vmem>>, vector<64x256xf32>
    %cst = arith.constant dense<0.000000e+00> : vector<64x256xf32>
    %2 = tpu.matmul %0, %1, %cst {dimension_numbers = #tpu.dot_dimension_numbers<[1], [0], [0], [1], [0, 0, 1, 1], [], []>} : vector<64x64xf32>, vector<64x256xf32>, vector<64x256xf32> -> vector<64x256xf32>
    %c0_3 = arith.constant 0 : index
    %c0_4 = arith.constant 0 : index
    %3 = vector.load %arg4[%c0_3, %c0_4] : memref<1x256xf32, #tpu.memory_space<vmem>>, vector<1x256xf32>
    %4 = vector.broadcast %3 : vector<1x256xf32> to vector<64x256xf32>
    %5 = arith.addf %2, %4 : vector<64x256xf32>
    %c0_5 = arith.constant 0 : index
    %c0_6 = arith.constant 0 : index
    %6 = vector.load %arg5[%c0_5, %c0_6] : memref<64x256xf32, #tpu.memory_space<vmem>>, vector<64x256xf32>
    tpu.vector_store %arg5[%c0_5, %c0_6], %5 {strides = array<i32>} : memref<64x256xf32, #tpu.memory_space<vmem>>, vector<64x256xf32>,
    return
  }
  func.func @transform_0(%arg0: i32, %arg1: i32) -> (i32, i32) {
    %c0_i32 = arith.constant 0 : i32
    %c0_i32_0 = arith.constant 0 : i32
    return %arg0, %c0_i32 : i32, i32
  }
  func.func @transform_1(%arg0: i32, %arg1: i32) -> (i32, i32) {
    %c0_i32 = arith.constant 0 : i32
    %c0_i32_0 = arith.constant 0 : i32
    return %c0_i32, %arg1 : i32, i32
  }
  func.func @transform_2(%arg0: i32, %arg1: i32) -> (i32, i32) {
    %c0_i32 = arith.constant 0 : i32
    %c0_i32_0 = arith.constant 0 : i32
    return %c0_i32, %arg1 : i32, i32
  }
  func.func @transform_3(%arg0: i32, %arg1: i32) -> (i32, i32) {
    %c0_i32 = arith.constant 0 : i32
    return %arg0, %arg1 : i32, i32
  }
}

module attributes {stable_mosaic.version = 11 : i64} {
  func.func @_linear_kernel(%arg0: i32, %arg1: i32, %arg2: memref<64x64xf32, #tpu.memory_space<vmem>>, %arg3: memref<64x128xf32, #tpu.memory_space<vmem>>, %arg4: memref<1x128xf32, #tpu.memory_space<vmem>>, %arg5: memref<64x128xf32, #tpu.memory_space<vmem>>) attributes {dimension_semantics = [#tpu.dimension_semantics<parallel>, #tpu.dimension_semantics<parallel>], iteration_bounds = array<i64: 1, 1>, scalar_prefetch = 0 : i64, scratch_operands = 0 : i64, tpu.core_type = #tpu.core_type<tc>, window_params = [{transform_indices = @transform_0, window_bounds = array<i64: 64, 64>}, {transform_indices = @transform_1, window_bounds = array<i64: 64, 128>}, {transform_indices = @transform_2, window_bounds = array<i64: 1, 128>}, {transform_indices = @transform_3, window_bounds = array<i64: 64, 128>}]} {
    %c0 = arith.constant 0 : index
    %c0_0 = arith.constant 0 : index
    %0 = vector.load %arg2[%c0, %c0_0] : memref<64x64xf32, #tpu.memory_space<vmem>>, vector<64x64xf32>
    %c0_1 = arith.constant 0 : index
    %c0_2 = arith.constant 0 : index
    %1 = vector.load %arg3[%c0_1, %c0_2] : memref<64x128xf32, #tpu.memory_space<vmem>>, vector<64x128xf32>
    %cst = arith.constant dense<0.000000e+00> : vector<64x128xf32>
    %2 = tpu.matmul %0, %1, %cst {dimension_numbers = #tpu.dot_dimension_numbers<[1], [0], [0], [1], [0, 0, 1, 1], [], []>} : vector<64x64xf32>, vector<64x128xf32>, vector<64x128xf32> -> vector<64x128xf32>
    %c0_3 = arith.constant 0 : index
    %c0_4 = arith.constant 0 : index
    %3 = vector.load %arg4[%c0_3, %c0_4] : memref<1x128xf32, #tpu.memory_space<vmem>>, vector<1x128xf32>
    %4 = vector.broadcast %3 : vector<1x128xf32> to vector<64x128xf32>
    %5 = arith.addf %2, %4 : vector<64x128xf32>
    %c0_5 = arith.constant 0 : index
    %c0_6 = arith.constant 0 : index
    %6 = vector.load %arg5[%c0_5, %c0_6] : memref<64x128xf32, #tpu.memory_space<vmem>>, vector<64x128xf32>
    tpu.vector_store %arg5[%c0_5, %c0_6], %5 {strides = array<i32>} : memref<64x128xf32, #tpu.memory_space<vmem>>, vector<64x128xf32>,
    return
  }
  func.func @transform_0(%arg0: i32, %arg1: i32) -> (i32, i32) {
    %c0_i32 = arith.constant 0 : i32
    %c0_i32_0 = arith.constant 0 : i32
    return %arg0, %c0_i32 : i32, i32
  }
  func.func @transform_1(%arg0: i32, %arg1: i32) -> (i32, i32) {
    %c0_i32 = arith.constant 0 : i32
    %c0_i32_0 = arith.constant 0 : i32
    return %c0_i32, %arg1 : i32, i32
  }
  func.func @transform_2(%arg0: i32, %arg1: i32) -> (i32, i32) {
    %c0_i32 = arith.constant 0 : i32
    %c0_i32_0 = arith.constant 0 : i32
    return %c0_i32, %arg1 : i32, i32
  }
  func.func @transform_3(%arg0: i32, %arg1: i32) -> (i32, i32) {
    %c0_i32 = arith.constant 0 : i32
    return %arg0, %arg1 : i32, i32
  }
}

module attributes {stable_mosaic.version = 11 : i64} {
  func.func @_attn_kernel(%arg0: i32, %arg1: memref<32x8x16xf32, #tpu.memory_space<vmem>>, %arg2: memref<32x8x16xf32, #tpu.memory_space<vmem>>, %arg3: memref<32x8x16xf32, #tpu.memory_space<vmem>>, %arg4: memref<32x8x16xf32, #tpu.memory_space<vmem>>) attributes {dimension_semantics = [#tpu.dimension_semantics<arbitrary>], iteration_bounds = array<i64: 1>, scalar_prefetch = 0 : i64, scratch_operands = 0 : i64, tpu.core_type = #tpu.core_type<tc>, window_params = [{pipeline_mode = #tpu.pipeline_mode<synchronous>, transform_indices = @transform_0, window_bounds = array<i64: 32, 8, 16>}, {pipeline_mode = #tpu.pipeline_mode<synchronous>, transform_indices = @transform_1, window_bounds = array<i64: 32, 8, 16>}, {pipeline_mode = #tpu.pipeline_mode<synchronous>, transform_indices = @transform_2, window_bounds = array<i64: 32, 8, 16>}, {pipeline_mode = #tpu.pipeline_mode<synchronous>, transform_indices = @transform_3, window_bounds = array<i64: 32, 8, 16>}]} {
    %c0 = arith.constant 0 : index
    %c0_0 = arith.constant 0 : index
    %c0_1 = arith.constant 0 : index
    %0 = vector.load %arg1[%c0, %c0_0, %c0_1] : memref<32x8x16xf32, #tpu.memory_space<vmem>>, vector<32x8x16xf32>
    %cst = arith.constant 2.500000e-01 : f32
    %1 = vector.broadcast %cst : f32 to vector<32x8x16xf32>
    %2 = arith.mulf %0, %1 : vector<32x8x16xf32>
    %c0_2 = arith.constant 0 : index
    %c0_3 = arith.constant 0 : index
    %c0_4 = arith.constant 0 : index
    %3 = vector.load %arg2[%c0_2, %c0_3, %c0_4] : memref<32x8x16xf32, #tpu.memory_space<vmem>>, vector<32x8x16xf32>
    %c0_5 = arith.constant 0 : index
    %c0_6 = arith.constant 0 : index
    %c0_7 = arith.constant 0 : index
    %4 = vector.load %arg3[%c0_5, %c0_6, %c0_7] : memref<32x8x16xf32, #tpu.memory_space<vmem>>, vector<32x8x16xf32>
    "tpu.trace_start"() <{level = 10 : i32, message = "bqd,bkd->bqk"}> : () -> ()
    %cst_8 = arith.constant dense<0.000000e+00> : vector<32x8x8xf32>
    %5 = tpu.matmul %2, %3, %cst_8 {dimension_numbers = #tpu.dot_dimension_numbers<[2], [2], [1], [1], [0, 0, 0, 1, 1, 1], [0], [0]>} : vector<32x8x16xf32>, vector<32x8x16xf32>, vector<32x8x8xf32> -> vector<32x8x8xf32>
    "tpu.trace_stop"() : () -> ()
    %cst_9 = arith.constant dense<0xFF800000> : vector<32x8xf32>
    %6 = vector.multi_reduction <maximumf>, %5, %cst_9 [2] : vector<32x8x8xf32> to vector<32x8xf32>
    %7 = vector.shape_cast %6 : vector<32x8xf32> to vector<32x8x1xf32>
    %8 = vector.broadcast %7 : vector<32x8x1xf32> to vector<32x8x8xf32>
    %9 = arith.subf %5, %8 : vector<32x8x8xf32>
    %10 = math.exp %9 : vector<32x8x8xf32>
    %cst_10 = arith.constant dense<0.000000e+00> : vector<32x8xf32>
    %11 = vector.multi_reduction <add>, %10, %cst_10 [2] : vector<32x8x8xf32> to vector<32x8xf32>
    %12 = vector.shape_cast %11 : vector<32x8xf32> to vector<32x8x1xf32>
    %13 = tpu.reciprocal %12 {approx = true} : vector<32x8x1xf32> -> vector<32x8x1xf32>
    %14 = vector.broadcast %13 : vector<32x8x1xf32> to vector<32x8x8xf32>
    %15 = arith.mulf %10, %14 : vector<32x8x8xf32>
    "tpu.trace_start"() <{level = 10 : i32, message = "bqk,bkd->bqd"}> : () -> ()
    %cst_11 = arith.constant dense<0.000000e+00> : vector<32x8x16xf32>
    %16 = tpu.matmul %15, %4, %cst_11 {dimension_numbers = #tpu.dot_dimension_numbers<[2], [1], [1], [2], [0, 0, 0, 1, 1, 2], [0], [0]>} : vector<32x8x8xf32>, vector<32x8x16xf32>, vector<32x8x16xf32> -> vector<32x8x16xf32>
    "tpu.trace_stop"() : () -> ()
    %c0_12 = arith.constant 0 : index
    %c0_13 = arith.constant 0 : index
    %c0_14 = arith.constant 0 : index
    %17 = vector.load %arg4[%c0_12, %c0_13, %c0_14] : memref<32x8x16xf32, #tpu.memory_space<vmem>>, vector<32x8x16xf32>
    tpu.vector_store %arg4[%c0_12, %c0_13, %c0_14], %16 {strides = array<i32>} : memref<32x8x16xf32, #tpu.memory_space<vmem>>, vector<32x8x16xf32>,
    return
  }
  func.func @transform_0(%arg0: i32) -> (i32, i32, i32) {
    %c0_i32 = arith.constant 0 : i32
    %c0_i32_0 = arith.constant 0 : i32
    %c0_i32_1 = arith.constant 0 : i32
    %c0_i32_2 = arith.constant 0 : i32
    return %c0_i32, %c0_i32_0, %c0_i32_1 : i32, i32, i32
  }
  func.func @transform_1(%arg0: i32) -> (i32, i32, i32) {
    %c0_i32 = arith.constant 0 : i32
    %c0_i32_0 = arith.constant 0 : i32
    %c0_i32_1 = arith.constant 0 : i32
    %c0_i32_2 = arith.constant 0 : i32
    return %c0_i32, %c0_i32_0, %c0_i32_1 : i32, i32, i32
  }
  func.func @transform_2(%arg0: i32) -> (i32, i32, i32) {
    %c0_i32 = arith.constant 0 : i32
    %c0_i32_0 = arith.constant 0 : i32
    %c0_i32_1 = arith.constant 0 : i32
    %c0_i32_2 = arith.constant 0 : i32
    return %c0_i32, %c0_i32_0, %c0_i32_1 : i32, i32, i32
  }
  func.func @transform_3(%arg0: i32) -> (i32, i32, i32) {
    %c0_i32 = arith.constant 0 : i32
    %c0_i32_0 = arith.constant 0 : i32
    %c0_i32_1 = arith.constant 0 : i32
    %c0_i32_2 = arith.constant 0 : i32
    return %c0_i32, %c0_i32_0, %c0_i32_1 : i32, i32, i32
  }
}

module attributes {stable_mosaic.version = 11 : i64} {
  func.func @_lstm_recurrence_kernel(%arg0: i32, %arg1: memref<1x8x8x256xf32, #tpu.memory_space<vmem>>, %arg2: memref<1x64x256xf32, #tpu.memory_space<vmem>>, %arg3: memref<1x8x8x1xf32, #tpu.memory_space<vmem>>, %arg4: memref<1x8x8x64xf32, #tpu.memory_space<vmem>>, %arg5: memref<8x64xf32, #tpu.memory_space<vmem>>, %arg6: memref<8x64xf32, #tpu.memory_space<vmem>>) attributes {dimension_semantics = [#tpu.dimension_semantics<parallel>], iteration_bounds = array<i64: 1>, scalar_prefetch = 0 : i64, scratch_operands = 2 : i64, tpu.core_type = #tpu.core_type<tc>, window_params = [{transform_indices = @transform_0, window_bounds = array<i64: 1, 8, 8, 256>}, {transform_indices = @transform_1, window_bounds = array<i64: 1, 64, 256>}, {transform_indices = @transform_2, window_bounds = array<i64: 1, 8, 8, 1>}, {transform_indices = @transform_3, window_bounds = array<i64: 1, 8, 8, 64>}]} {
    %cst = arith.constant 0.000000e+00 : f32
    %0 = vector.broadcast %cst : f32 to vector<8x64xf32>
    %c0 = arith.constant 0 : index
    %c0_0 = arith.constant 0 : index
    %1 = vector.load %arg5[%c0, %c0_0] : memref<8x64xf32, #tpu.memory_space<vmem>>, vector<8x64xf32>
    tpu.vector_store %arg5[%c0, %c0_0], %0 {strides = array<i32>} : memref<8x64xf32, #tpu.memory_space<vmem>>, vector<8x64xf32>,
    %cst_1 = arith.constant 0.000000e+00 : f32
    %2 = vector.broadcast %cst_1 : f32 to vector<8x64xf32>
    %c0_2 = arith.constant 0 : index
    %c0_3 = arith.constant 0 : index
    %3 = vector.load %arg6[%c0_2, %c0_3] : memref<8x64xf32, #tpu.memory_space<vmem>>, vector<8x64xf32>
    tpu.vector_store %arg6[%c0_2, %c0_3], %2 {strides = array<i32>} : memref<8x64xf32, #tpu.memory_space<vmem>>, vector<8x64xf32>,
    %c0_4 = arith.constant 0 : index
    %c0_5 = arith.constant 0 : index
    %c0_6 = arith.constant 0 : index
    %4 = vector.load %arg2[%c0_4, %c0_5, %c0_6] : memref<1x64x256xf32, #tpu.memory_space<vmem>>, vector<1x64x256xf32>
    %5 = vector.shape_cast %4 : vector<1x64x256xf32> to vector<64x256xf32>
    %c0_i32 = arith.constant 0 : i32
    %c0_7 = arith.constant 0 : index
    %c0_8 = arith.constant 0 : index
    %6 = vector.load %arg5[%c0_7, %c0_8] : memref<8x64xf32, #tpu.memory_space<vmem>>, vector<8x64xf32>
    %c0_9 = arith.constant 0 : index
    %c0_10 = arith.constant 0 : index
    %7 = vector.load %arg6[%c0_9, %c0_10] : memref<8x64xf32, #tpu.memory_space<vmem>>, vector<8x64xf32>
    %c0_11 = arith.constant 0 : index
    %8 = arith.index_cast %c0_i32 : i32 to index
    %c0_12 = arith.constant 0 : index
    %c0_13 = arith.constant 0 : index
    %9 = vector.load %arg1[%c0_11, %8, %c0_12, %c0_13] : memref<1x8x8x256xf32, #tpu.memory_space<vmem>>, vector<1x1x8x256xf32>
    %10 = vector.shape_cast %9 : vector<1x1x8x256xf32> to vector<8x256xf32>
    %cst_14 = arith.constant dense<0.000000e+00> : vector<8x256xf32>
    %11 = tpu.matmul %6, %5, %cst_14 {dimension_numbers = #tpu.dot_dimension_numbers<[1], [0], [0], [1], [0, 0, 1, 1], [], []>} : vector<8x64xf32>, vector<64x256xf32>, vector<8x256xf32> -> vector<8x256xf32>
    %12 = arith.addf %10, %11 : vector<8x256xf32>
    %13 = arith.negf %12 : vector<8x256xf32>
    %14 = math.exp %13 : vector<8x256xf32>
    %cst_15 = arith.constant 1.000000e+00 : f32
    %15 = vector.broadcast %cst_15 : f32 to vector<8x256xf32>
    %16 = arith.addf %15, %14 : vector<8x256xf32>
    %17 = arith.divf %15, %16 : vector<8x256xf32>
    %18 = math.tanh %12 : vector<8x256xf32>
    %19 = vector.extract_strided_slice %17 {offsets = [0, 0], sizes = [8, 64], strides = [1, 1]} : vector<8x256xf32> to vector<8x64xf32>
    %20 = vector.extract_strided_slice %17 {offsets = [0, 64], sizes = [8, 64], strides = [1, 1]} : vector<8x256xf32> to vector<8x64xf32>
    %21 = vector.extract_strided_slice %18 {offsets = [0, 128], sizes = [8, 64], strides = [1, 1]} : vector<8x256xf32> to vector<8x64xf32>
    %22 = vector.extract_strided_slice %17 {offsets = [0, 192], sizes = [8, 64], strides = [1, 1]} : vector<8x256xf32> to vector<8x64xf32>
    %23 = arith.mulf %20, %7 : vector<8x64xf32>
    %24 = arith.mulf %19, %21 : vector<8x64xf32>
    %25 = arith.addf %23, %24 : vector<8x64xf32>
    %26 = math.tanh %25 : vector<8x64xf32>
    %27 = arith.mulf %22, %26 : vector<8x64xf32>
    %c0_16 = arith.constant 0 : index
    %28 = arith.index_cast %c0_i32 : i32 to index
    %c0_17 = arith.constant 0 : index
    %c0_18 = arith.constant 0 : index
    %29 = vector.load %arg3[%c0_16, %28, %c0_17, %c0_18] : memref<1x8x8x1xf32, #tpu.memory_space<vmem>>, vector<1x1x8x1xf32>
    %30 = vector.shape_cast %29 : vector<1x1x8x1xf32> to vector<8x1xf32>
    %31 = vector.broadcast %30 : vector<8x1xf32> to vector<8x64xf32>
    %32 = arith.mulf %31, %27 : vector<8x64xf32>
    %cst_19 = arith.constant 1.000000e+00 : f32
    %33 = vector.broadcast %cst_19 : f32 to vector<8x1xf32>
    %34 = arith.subf %33, %30 : vector<8x1xf32>
    %35 = vector.broadcast %34 : vector<8x1xf32> to vector<8x64xf32>
    %36 = arith.mulf %35, %6 : vector<8x64xf32>
    %37 = arith.addf %32, %36 : vector<8x64xf32>
    %c0_20 = arith.constant 0 : index
    %c0_21 = arith.constant 0 : index
    %38 = vector.load %arg5[%c0_20, %c0_21] : memref<8x64xf32, #tpu.memory_space<vmem>>, vector<8x64xf32>
    tpu.vector_store %arg5[%c0_20, %c0_21], %37 {strides = array<i32>} : memref<8x64xf32, #tpu.memory_space<vmem>>, vector<8x64xf32>,
    %39 = vector.broadcast %30 : vector<8x1xf32> to vector<8x64xf32>
    %40 = arith.mulf %39, %25 : vector<8x64xf32>
    %cst_22 = arith.constant 1.000000e+00 : f32
    %41 = vector.broadcast %cst_22 : f32 to vector<8x1xf32>
    %42 = arith.subf %41, %30 : vector<8x1xf32>
    %43 = vector.broadcast %42 : vector<8x1xf32> to vector<8x64xf32>
    %44 = arith.mulf %43, %7 : vector<8x64xf32>
    %45 = arith.addf %40, %44 : vector<8x64xf32>
    %c0_23 = arith.constant 0 : index
    %c0_24 = arith.constant 0 : index
    %46 = vector.load %arg6[%c0_23, %c0_24] : memref<8x64xf32, #tpu.memory_space<vmem>>, vector<8x64xf32>
    tpu.vector_store %arg6[%c0_23, %c0_24], %45 {strides = array<i32>} : memref<8x64xf32, #tpu.memory_space<vmem>>, vector<8x64xf32>,
    %47 = vector.broadcast %30 : vector<8x1xf32> to vector<8x64xf32>
    %48 = arith.mulf %47, %27 : vector<8x64xf32>
    %cst_25 = arith.constant 1.000000e+00 : f32
    %49 = vector.broadcast %cst_25 : f32 to vector<8x1xf32>
    %50 = arith.subf %49, %30 : vector<8x1xf32>
    %cst_26 = arith.constant 0.000000e+00 : f32
    %51 = vector.broadcast %cst_26 : f32 to vector<8x1xf32>
    %52 = arith.mulf %50, %51 : vector<8x1xf32>
    %53 = vector.broadcast %52 : vector<8x1xf32> to vector<8x64xf32>
    %54 = arith.addf %48, %53 : vector<8x64xf32>
    %c0_27 = arith.constant 0 : index
    %55 = arith.index_cast %c0_i32 : i32 to index
    %c0_28 = arith.constant 0 : index
    %c0_29 = arith.constant 0 : index
    %56 = vector.load %arg4[%c0_27, %55, %c0_28, %c0_29] : memref<1x8x8x64xf32, #tpu.memory_space<vmem>>, vector<1x1x8x64xf32>
    %57 = vector.shape_cast %56 : vector<1x1x8x64xf32> to vector<8x64xf32>
    %58 = vector.shape_cast %54 : vector<8x64xf32> to vector<1x1x8x64xf32>
    tpu.vector_store %arg4[%c0_27, %55, %c0_28, %c0_29], %58 {strides = array<i32>} : memref<1x8x8x64xf32, #tpu.memory_space<vmem>>, vector<1x1x8x64xf32>,
    %c1_i32 = arith.constant 1 : i32
    %c0_30 = arith.constant 0 : index
    %c0_31 = arith.constant 0 : index
    %59 = vector.load %arg5[%c0_30, %c0_31] : memref<8x64xf32, #tpu.memory_space<vmem>>, vector<8x64xf32>
    %c0_32 = arith.constant 0 : index
    %c0_33 = arith.constant 0 : index
    %60 = vector.load %arg6[%c0_32, %c0_33] : memref<8x64xf32, #tpu.memory_space<vmem>>, vector<8x64xf32>
    %c0_34 = arith.constant 0 : index
    %61 = arith.index_cast %c1_i32 : i32 to index
    %c0_35 = arith.constant 0 : index
    %c0_36 = arith.constant 0 : index
    %62 = vector.load %arg1[%c0_34, %61, %c0_35, %c0_36] : memref<1x8x8x256xf32, #tpu.memory_space<vmem>>, vector<1x1x8x256xf32>
    %63 = vector.shape_cast %62 : vector<1x1x8x256xf32> to vector<8x256xf32>
    %cst_37 = arith.constant dense<0.000000e+00> : vector<8x256xf32>
    %64 = tpu.matmul %59, %5, %cst_37 {dimension_numbers = #tpu.dot_dimension_numbers<[1], [0], [0], [1], [0, 0, 1, 1], [], []>} : vector<8x64xf32>, vector<64x256xf32>, vector<8x256xf32> -> vector<8x256xf32>
    %65 = arith.addf %63, %64 : vector<8x256xf32>
    %66 = arith.negf %65 : vector<8x256xf32>
    %67 = math.exp %66 : vector<8x256xf32>
    %cst_38 = arith.constant 1.000000e+00 : f32
    %68 = vector.broadcast %cst_38 : f32 to vector<8x256xf32>
    %69 = arith.addf %68, %67 : vector<8x256xf32>
    %70 = arith.divf %68, %69 : vector<8x256xf32>
    %71 = math.tanh %65 : vector<8x256xf32>
    %72 = vector.extract_strided_slice %70 {offsets = [0, 0], sizes = [8, 64], strides = [1, 1]} : vector<8x256xf32> to vector<8x64xf32>
    %73 = vector.extract_strided_slice %70 {offsets = [0, 64], sizes = [8, 64], strides = [1, 1]} : vector<8x256xf32> to vector<8x64xf32>
    %74 = vector.extract_strided_slice %71 {offsets = [0, 128], sizes = [8, 64], strides = [1, 1]} : vector<8x256xf32> to vector<8x64xf32>
    %75 = vector.extract_strided_slice %70 {offsets = [0, 192], sizes = [8, 64], strides = [1, 1]} : vector<8x256xf32> to vector<8x64xf32>
    %76 = arith.mulf %73, %60 : vector<8x64xf32>
    %77 = arith.mulf %72, %74 : vector<8x64xf32>
    %78 = arith.addf %76, %77 : vector<8x64xf32>
    %79 = math.tanh %78 : vector<8x64xf32>
    %80 = arith.mulf %75, %79 : vector<8x64xf32>
    %c0_39 = arith.constant 0 : index
    %81 = arith.index_cast %c1_i32 : i32 to index
    %c0_40 = arith.constant 0 : index
    %c0_41 = arith.constant 0 : index
    %82 = vector.load %arg3[%c0_39, %81, %c0_40, %c0_41] : memref<1x8x8x1xf32, #tpu.memory_space<vmem>>, vector<1x1x8x1xf32>
    %83 = vector.shape_cast %82 : vector<1x1x8x1xf32> to vector<8x1xf32>
    %84 = vector.broadcast %83 : vector<8x1xf32> to vector<8x64xf32>
    %85 = arith.mulf %84, %80 : vector<8x64xf32>
    %cst_42 = arith.constant 1.000000e+00 : f32
    %86 = vector.broadcast %cst_42 : f32 to vector<8x1xf32>
    %87 = arith.subf %86, %83 : vector<8x1xf32>
    %88 = vector.broadcast %87 : vector<8x1xf32> to vector<8x64xf32>
    %89 = arith.mulf %88, %59 : vector<8x64xf32>
    %90 = arith.addf %85, %89 : vector<8x64xf32>
    %c0_43 = arith.constant 0 : index
    %c0_44 = arith.constant 0 : index
    %91 = vector.load %arg5[%c0_43, %c0_44] : memref<8x64xf32, #tpu.memory_space<vmem>>, vector<8x64xf32>
    tpu.vector_store %arg5[%c0_43, %c0_44], %90 {strides = array<i32>} : memref<8x64xf32, #tpu.memory_space<vmem>>, vector<8x64xf32>,
    %92 = vector.broadcast %83 : vector<8x1xf32> to vector<8x64xf32>
    %93 = arith.mulf %92, %78 : vector<8x64xf32>
    %cst_45 = arith.constant 1.000000e+00 : f32
    %94 = vector.broadcast %cst_45 : f32 to vector<8x1xf32>
    %95 = arith.subf %94, %83 : vector<8x1xf32>
    %96 = vector.broadcast %95 : vector<8x1xf32> to vector<8x64xf32>
    %97 = arith.mulf %96, %60 : vector<8x64xf32>
    %98 = arith.addf %93, %97 : vector<8x64xf32>
    %c0_46 = arith.constant 0 : index
    %c0_47 = arith.constant 0 : index
    %99 = vector.load %arg6[%c0_46, %c0_47] : memref<8x64xf32, #tpu.memory_space<vmem>>, vector<8x64xf32>
    tpu.vector_store %arg6[%c0_46, %c0_47], %98 {strides = array<i32>} : memref<8x64xf32, #tpu.memory_space<vmem>>, vector<8x64xf32>,
    %100 = vector.broadcast %83 : vector<8x1xf32> to vector<8x64xf32>
    %101 = arith.mulf %100, %80 : vector<8x64xf32>
    %cst_48 = arith.constant 1.000000e+00 : f32
    %102 = vector.broadcast %cst_48 : f32 to vector<8x1xf32>
    %103 = arith.subf %102, %83 : vector<8x1xf32>
    %cst_49 = arith.constant 0.000000e+00 : f32
    %104 = vector.broadcast %cst_49 : f32 to vector<8x1xf32>
    %105 = arith.mulf %103, %104 : vector<8x1xf32>
    %106 = vector.broadcast %105 : vector<8x1xf32> to vector<8x64xf32>
    %107 = arith.addf %101, %106 : vector<8x64xf32>
    %c0_50 = arith.constant 0 : index
    %108 = arith.index_cast %c1_i32 : i32 to index
    %c0_51 = arith.constant 0 : index
    %c0_52 = arith.constant 0 : index
    %109 = vector.load %arg4[%c0_50, %108, %c0_51, %c0_52] : memref<1x8x8x64xf32, #tpu.memory_space<vmem>>, vector<1x1x8x64xf32>
    %110 = vector.shape_cast %109 : vector<1x1x8x64xf32> to vector<8x64xf32>
    %111 = vector.shape_cast %107 : vector<8x64xf32> to vector<1x1x8x64xf32>
    tpu.vector_store %arg4[%c0_50, %108, %c0_51, %c0_52], %111 {strides = array<i32>} : memref<1x8x8x64xf32, #tpu.memory_space<vmem>>, vector<1x1x8x64xf32>,
    %c2_i32 = arith.constant 2 : i32
    %c0_53 = arith.constant 0 : index
    %c0_54 = arith.constant 0 : index
    %112 = vector.load %arg5[%c0_53, %c0_54] : memref<8x64xf32, #tpu.memory_space<vmem>>, vector<8x64xf32>
    %c0_55 = arith.constant 0 : index
    %c0_56 = arith.constant 0 : index
    %113 = vector.load %arg6[%c0_55, %c0_56] : memref<8x64xf32, #tpu.memory_space<vmem>>, vector<8x64xf32>
    %c0_57 = arith.constant 0 : index
    %114 = arith.index_cast %c2_i32 : i32 to index
    %c0_58 = arith.constant 0 : index
    %c0_59 = arith.constant 0 : index
    %115 = vector.load %arg1[%c0_57, %114, %c0_58, %c0_59] : memref<1x8x8x256xf32, #tpu.memory_space<vmem>>, vector<1x1x8x256xf32>
    %116 = vector.shape_cast %115 : vector<1x1x8x256xf32> to vector<8x256xf32>
    %cst_60 = arith.constant dense<0.000000e+00> : vector<8x256xf32>
    %117 = tpu.matmul %112, %5, %cst_60 {dimension_numbers = #tpu.dot_dimension_numbers<[1], [0], [0], [1], [0, 0, 1, 1], [], []>} : vector<8x64xf32>, vector<64x256xf32>, vector<8x256xf32> -> vector<8x256xf32>
    %118 = arith.addf %116, %117 : vector<8x256xf32>
    %119 = arith.negf %118 : vector<8x256xf32>
    %120 = math.exp %119 : vector<8x256xf32>
    %cst_61 = arith.constant 1.000000e+00 : f32
    %121 = vector.broadcast %cst_61 : f32 to vector<8x256xf32>
    %122 = arith.addf %121, %120 : vector<8x256xf32>
    %123 = arith.divf %121, %122 : vector<8x256xf32>
    %124 = math.tanh %118 : vector<8x256xf32>
    %125 = vector.extract_strided_slice %123 {offsets = [0, 0], sizes = [8, 64], strides = [1, 1]} : vector<8x256xf32> to vector<8x64xf32>
    %126 = vector.extract_strided_slice %123 {offsets = [0, 64], sizes = [8, 64], strides = [1, 1]} : vector<8x256xf32> to vector<8x64xf32>
    %127 = vector.extract_strided_slice %124 {offsets = [0, 128], sizes = [8, 64], strides = [1, 1]} : vector<8x256xf32> to vector<8x64xf32>
    %128 = vector.extract_strided_slice %123 {offsets = [0, 192], sizes = [8, 64], strides = [1, 1]} : vector<8x256xf32> to vector<8x64xf32>
    %129 = arith.mulf %126, %113 : vector<8x64xf32>
    %130 = arith.mulf %125, %127 : vector<8x64xf32>
    %131 = arith.addf %129, %130 : vector<8x64xf32>
    %132 = math.tanh %131 : vector<8x64xf32>
    %133 = arith.mulf %128, %132 : vector<8x64xf32>
    %c0_62 = arith.constant 0 : index
    %134 = arith.index_cast %c2_i32 : i32 to index
    %c0_63 = arith.constant 0 : index
    %c0_64 = arith.constant 0 : index
    %135 = vector.load %arg3[%c0_62, %134, %c0_63, %c0_64] : memref<1x8x8x1xf32, #tpu.memory_space<vmem>>, vector<1x1x8x1xf32>
    %136 = vector.shape_cast %135 : vector<1x1x8x1xf32> to vector<8x1xf32>
    %137 = vector.broadcast %136 : vector<8x1xf32> to vector<8x64xf32>
    %138 = arith.mulf %137, %133 : vector<8x64xf32>
    %cst_65 = arith.constant 1.000000e+00 : f32
    %139 = vector.broadcast %cst_65 : f32 to vector<8x1xf32>
    %140 = arith.subf %139, %136 : vector<8x1xf32>
    %141 = vector.broadcast %140 : vector<8x1xf32> to vector<8x64xf32>
    %142 = arith.mulf %141, %112 : vector<8x64xf32>
    %143 = arith.addf %138, %142 : vector<8x64xf32>
    %c0_66 = arith.constant 0 : index
    %c0_67 = arith.constant 0 : index
    %144 = vector.load %arg5[%c0_66, %c0_67] : memref<8x64xf32, #tpu.memory_space<vmem>>, vector<8x64xf32>
    tpu.vector_store %arg5[%c0_66, %c0_67], %143 {strides = array<i32>} : memref<8x64xf32, #tpu.memory_space<vmem>>, vector<8x64xf32>,
    %145 = vector.broadcast %136 : vector<8x1xf32> to vector<8x64xf32>
    %146 = arith.mulf %145, %131 : vector<8x64xf32>
    %cst_68 = arith.constant 1.000000e+00 : f32
    %147 = vector.broadcast %cst_68 : f32 to vector<8x1xf32>
    %148 = arith.subf %147, %136 : vector<8x1xf32>
    %149 = vector.broadcast %148 : vector<8x1xf32> to vector<8x64xf32>
    %150 = arith.mulf %149, %113 : vector<8x64xf32>
    %151 = arith.addf %146, %150 : vector<8x64xf32>
    %c0_69 = arith.constant 0 : index
    %c0_70 = arith.constant 0 : index
    %152 = vector.load %arg6[%c0_69, %c0_70] : memref<8x64xf32, #tpu.memory_space<vmem>>, vector<8x64xf32>
    tpu.vector_store %arg6[%c0_69, %c0_70], %151 {strides = array<i32>} : memref<8x64xf32, #tpu.memory_space<vmem>>, vector<8x64xf32>,
    %153 = vector.broadcast %136 : vector<8x1xf32> to vector<8x64xf32>
    %154 = arith.mulf %153, %133 : vector<8x64xf32>
    %cst_71 = arith.constant 1.000000e+00 : f32
    %155 = vector.broadcast %cst_71 : f32 to vector<8x1xf32>
    %156 = arith.subf %155, %136 : vector<8x1xf32>
    %cst_72 = arith.constant 0.000000e+00 : f32
    %157 = vector.broadcast %cst_72 : f32 to vector<8x1xf32>
    %158 = arith.mulf %156, %157 : vector<8x1xf32>
    %159 = vector.broadcast %158 : vector<8x1xf32> to vector<8x64xf32>
    %160 = arith.addf %154, %159 : vector<8x64xf32>
    %c0_73 = arith.constant 0 : index
    %161 = arith.index_cast %c2_i32 : i32 to index
    %c0_74 = arith.constant 0 : index
    %c0_75 = arith.constant 0 : index
    %162 = vector.load %arg4[%c0_73, %161, %c0_74, %c0_75] : memref<1x8x8x64xf32, #tpu.memory_space<vmem>>, vector<1x1x8x64xf32>
    %163 = vector.shape_cast %162 : vector<1x1x8x64xf32> to vector<8x64xf32>
    %164 = vector.shape_cast %160 : vector<8x64xf32> to vector<1x1x8x64xf32>
    tpu.vector_store %arg4[%c0_73, %161, %c0_74, %c0_75], %164 {strides = array<i32>} : memref<1x8x8x64xf32, #tpu.memory_space<vmem>>, vector<1x1x8x64xf32>,
    %c3_i32 = arith.constant 3 : i32
    %c0_76 = arith.constant 0 : index
    %c0_77 = arith.constant 0 : index
    %165 = vector.load %arg5[%c0_76, %c0_77] : memref<8x64xf32, #tpu.memory_space<vmem>>, vector<8x64xf32>
    %c0_78 = arith.constant 0 : index
    %c0_79 = arith.constant 0 : index
    %166 = vector.load %arg6[%c0_78, %c0_79] : memref<8x64xf32, #tpu.memory_space<vmem>>, vector<8x64xf32>
    %c0_80 = arith.constant 0 : index
    %167 = arith.index_cast %c3_i32 : i32 to index
    %c0_81 = arith.constant 0 : index
    %c0_82 = arith.constant 0 : index
    %168 = vector.load %arg1[%c0_80, %167, %c0_81, %c0_82] : memref<1x8x8x256xf32, #tpu.memory_space<vmem>>, vector<1x1x8x256xf32>
    %169 = vector.shape_cast %168 : vector<1x1x8x256xf32> to vector<8x256xf32>
    %cst_83 = arith.constant dense<0.000000e+00> : vector<8x256xf32>
    %170 = tpu.matmul %165, %5, %cst_83 {dimension_numbers = #tpu.dot_dimension_numbers<[1], [0], [0], [1], [0, 0, 1, 1], [], []>} : vector<8x64xf32>, vector<64x256xf32>, vector<8x256xf32> -> vector<8x256xf32>
    %171 = arith.addf %169, %170 : vector<8x256xf32>
    %172 = arith.negf %171 : vector<8x256xf32>
    %173 = math.exp %172 : vector<8x256xf32>
    %cst_84 = arith.constant 1.000000e+00 : f32
    %174 = vector.broadcast %cst_84 : f32 to vector<8x256xf32>
    %175 = arith.addf %174, %173 : vector<8x256xf32>
    %176 = arith.divf %174, %175 : vector<8x256xf32>
    %177 = math.tanh %171 : vector<8x256xf32>
    %178 = vector.extract_strided_slice %176 {offsets = [0, 0], sizes = [8, 64], strides = [1, 1]} : vector<8x256xf32> to vector<8x64xf32>
    %179 = vector.extract_strided_slice %176 {offsets = [0, 64], sizes = [8, 64], strides = [1, 1]} : vector<8x256xf32> to vector<8x64xf32>
    %180 = vector.extract_strided_slice %177 {offsets = [0, 128], sizes = [8, 64], strides = [1, 1]} : vector<8x256xf32> to vector<8x64xf32>
    %181 = vector.extract_strided_slice %176 {offsets = [0, 192], sizes = [8, 64], strides = [1, 1]} : vector<8x256xf32> to vector<8x64xf32>
    %182 = arith.mulf %179, %166 : vector<8x64xf32>
    %183 = arith.mulf %178, %180 : vector<8x64xf32>
    %184 = arith.addf %182, %183 : vector<8x64xf32>
    %185 = math.tanh %184 : vector<8x64xf32>
    %186 = arith.mulf %181, %185 : vector<8x64xf32>
    %c0_85 = arith.constant 0 : index
    %187 = arith.index_cast %c3_i32 : i32 to index
    %c0_86 = arith.constant 0 : index
    %c0_87 = arith.constant 0 : index
    %188 = vector.load %arg3[%c0_85, %187, %c0_86, %c0_87] : memref<1x8x8x1xf32, #tpu.memory_space<vmem>>, vector<1x1x8x1xf32>
    %189 = vector.shape_cast %188 : vector<1x1x8x1xf32> to vector<8x1xf32>
    %190 = vector.broadcast %189 : vector<8x1xf32> to vector<8x64xf32>
    %191 = arith.mulf %190, %186 : vector<8x64xf32>
    %cst_88 = arith.constant 1.000000e+00 : f32
    %192 = vector.broadcast %cst_88 : f32 to vector<8x1xf32>
    %193 = arith.subf %192, %189 : vector<8x1xf32>
    %194 = vector.broadcast %193 : vector<8x1xf32> to vector<8x64xf32>
    %195 = arith.mulf %194, %165 : vector<8x64xf32>
    %196 = arith.addf %191, %195 : vector<8x64xf32>
    %c0_89 = arith.constant 0 : index
    %c0_90 = arith.constant 0 : index
    %197 = vector.load %arg5[%c0_89, %c0_90] : memref<8x64xf32, #tpu.memory_space<vmem>>, vector<8x64xf32>
    tpu.vector_store %arg5[%c0_89, %c0_90], %196 {strides = array<i32>} : memref<8x64xf32, #tpu.memory_space<vmem>>, vector<8x64xf32>,
    %198 = vector.broadcast %189 : vector<8x1xf32> to vector<8x64xf32>
    %199 = arith.mulf %198, %184 : vector<8x64xf32>
    %cst_91 = arith.constant 1.000000e+00 : f32
    %200 = vector.broadcast %cst_91 : f32 to vector<8x1xf32>
    %201 = arith.subf %200, %189 : vector<8x1xf32>
    %202 = vector.broadcast %201 : vector<8x1xf32> to vector<8x64xf32>
    %203 = arith.mulf %202, %166 : vector<8x64xf32>
    %204 = arith.addf %199, %203 : vector<8x64xf32>
    %c0_92 = arith.constant 0 : index
    %c0_93 = arith.constant 0 : index
    %205 = vector.load %arg6[%c0_92, %c0_93] : memref<8x64xf32, #tpu.memory_space<vmem>>, vector<8x64xf32>
    tpu.vector_store %arg6[%c0_92, %c0_93], %204 {strides = array<i32>} : memref<8x64xf32, #tpu.memory_space<vmem>>, vector<8x64xf32>,
    %206 = vector.broadcast %189 : vector<8x1xf32> to vector<8x64xf32>
    %207 = arith.mulf %206, %186 : vector<8x64xf32>
    %cst_94 = arith.constant 1.000000e+00 : f32
    %208 = vector.broadcast %cst_94 : f32 to vector<8x1xf32>
    %209 = arith.subf %208, %189 : vector<8x1xf32>
    %cst_95 = arith.constant 0.000000e+00 : f32
    %210 = vector.broadcast %cst_95 : f32 to vector<8x1xf32>
    %211 = arith.mulf %209, %210 : vector<8x1xf32>
    %212 = vector.broadcast %211 : vector<8x1xf32> to vector<8x64xf32>
    %213 = arith.addf %207, %212 : vector<8x64xf32>
    %c0_96 = arith.constant 0 : index
    %214 = arith.index_cast %c3_i32 : i32 to index
    %c0_97 = arith.constant 0 : index
    %c0_98 = arith.constant 0 : index
    %215 = vector.load %arg4[%c0_96, %214, %c0_97, %c0_98] : memref<1x8x8x64xf32, #tpu.memory_space<vmem>>, vector<1x1x8x64xf32>
    %216 = vector.shape_cast %215 : vector<1x1x8x64xf32> to vector<8x64xf32>
    %217 = vector.shape_cast %213 : vector<8x64xf32> to vector<1x1x8x64xf32>
    tpu.vector_store %arg4[%c0_96, %214, %c0_97, %c0_98], %217 {strides = array<i32>} : memref<1x8x8x64xf32, #tpu.memory_space<vmem>>, vector<1x1x8x64xf32>,
    %c4_i32 = arith.constant 4 : i32
    %c0_99 = arith.constant 0 : index
    %c0_100 = arith.constant 0 : index
    %218 = vector.load %arg5[%c0_99, %c0_100] : memref<8x64xf32, #tpu.memory_space<vmem>>, vector<8x64xf32>
    %c0_101 = arith.constant 0 : index
    %c0_102 = arith.constant 0 : index
    %219 = vector.load %arg6[%c0_101, %c0_102] : memref<8x64xf32, #tpu.memory_space<vmem>>, vector<8x64xf32>
    %c0_103 = arith.constant 0 : index
    %220 = arith.index_cast %c4_i32 : i32 to index
    %c0_104 = arith.constant 0 : index
    %c0_105 = arith.constant 0 : index
    %221 = vector.load %arg1[%c0_103, %220, %c0_104, %c0_105] : memref<1x8x8x256xf32, #tpu.memory_space<vmem>>, vector<1x1x8x256xf32>
    %222 = vector.shape_cast %221 : vector<1x1x8x256xf32> to vector<8x256xf32>
    %cst_106 = arith.constant dense<0.000000e+00> : vector<8x256xf32>
    %223 = tpu.matmul %218, %5, %cst_106 {dimension_numbers = #tpu.dot_dimension_numbers<[1], [0], [0], [1], [0, 0, 1, 1], [], []>} : vector<8x64xf32>, vector<64x256xf32>, vector<8x256xf32> -> vector<8x256xf32>
    %224 = arith.addf %222, %223 : vector<8x256xf32>
    %225 = arith.negf %224 : vector<8x256xf32>
    %226 = math.exp %225 : vector<8x256xf32>
    %cst_107 = arith.constant 1.000000e+00 : f32
    %227 = vector.broadcast %cst_107 : f32 to vector<8x256xf32>
    %228 = arith.addf %227, %226 : vector<8x256xf32>
    %229 = arith.divf %227, %228 : vector<8x256xf32>
    %230 = math.tanh %224 : vector<8x256xf32>
    %231 = vector.extract_strided_slice %229 {offsets = [0, 0], sizes = [8, 64], strides = [1, 1]} : vector<8x256xf32> to vector<8x64xf32>
    %232 = vector.extract_strided_slice %229 {offsets = [0, 64], sizes = [8, 64], strides = [1, 1]} : vector<8x256xf32> to vector<8x64xf32>
    %233 = vector.extract_strided_slice %230 {offsets = [0, 128], sizes = [8, 64], strides = [1, 1]} : vector<8x256xf32> to vector<8x64xf32>
    %234 = vector.extract_strided_slice %229 {offsets = [0, 192], sizes = [8, 64], strides = [1, 1]} : vector<8x256xf32> to vector<8x64xf32>
    %235 = arith.mulf %232, %219 : vector<8x64xf32>
    %236 = arith.mulf %231, %233 : vector<8x64xf32>
    %237 = arith.addf %235, %236 : vector<8x64xf32>
    %238 = math.tanh %237 : vector<8x64xf32>
    %239 = arith.mulf %234, %238 : vector<8x64xf32>
    %c0_108 = arith.constant 0 : index
    %240 = arith.index_cast %c4_i32 : i32 to index
    %c0_109 = arith.constant 0 : index
    %c0_110 = arith.constant 0 : index
    %241 = vector.load %arg3[%c0_108, %240, %c0_109, %c0_110] : memref<1x8x8x1xf32, #tpu.memory_space<vmem>>, vector<1x1x8x1xf32>
    %242 = vector.shape_cast %241 : vector<1x1x8x1xf32> to vector<8x1xf32>
    %243 = vector.broadcast %242 : vector<8x1xf32> to vector<8x64xf32>
    %244 = arith.mulf %243, %239 : vector<8x64xf32>
    %cst_111 = arith.constant 1.000000e+00 : f32
    %245 = vector.broadcast %cst_111 : f32 to vector<8x1xf32>
    %246 = arith.subf %245, %242 : vector<8x1xf32>
    %247 = vector.broadcast %246 : vector<8x1xf32> to vector<8x64xf32>
    %248 = arith.mulf %247, %218 : vector<8x64xf32>
    %249 = arith.addf %244, %248 : vector<8x64xf32>
    %c0_112 = arith.constant 0 : index
    %c0_113 = arith.constant 0 : index
    %250 = vector.load %arg5[%c0_112, %c0_113] : memref<8x64xf32, #tpu.memory_space<vmem>>, vector<8x64xf32>
    tpu.vector_store %arg5[%c0_112, %c0_113], %249 {strides = array<i32>} : memref<8x64xf32, #tpu.memory_space<vmem>>, vector<8x64xf32>,
    %251 = vector.broadcast %242 : vector<8x1xf32> to vector<8x64xf32>
    %252 = arith.mulf %251, %237 : vector<8x64xf32>
    %cst_114 = arith.constant 1.000000e+00 : f32
    %253 = vector.broadcast %cst_114 : f32 to vector<8x1xf32>
    %254 = arith.subf %253, %242 : vector<8x1xf32>
    %255 = vector.broadcast %254 : vector<8x1xf32> to vector<8x64xf32>
    %256 = arith.mulf %255, %219 : vector<8x64xf32>
    %257 = arith.addf %252, %256 : vector<8x64xf32>
    %c0_115 = arith.constant 0 : index
    %c0_116 = arith.constant 0 : index
    %258 = vector.load %arg6[%c0_115, %c0_116] : memref<8x64xf32, #tpu.memory_space<vmem>>, vector<8x64xf32>
    tpu.vector_store %arg6[%c0_115, %c0_116], %257 {strides = array<i32>} : memref<8x64xf32, #tpu.memory_space<vmem>>, vector<8x64xf32>,
    %259 = vector.broadcast %242 : vector<8x1xf32> to vector<8x64xf32>
    %260 = arith.mulf %259, %239 : vector<8x64xf32>
    %cst_117 = arith.constant 1.000000e+00 : f32
    %261 = vector.broadcast %cst_117 : f32 to vector<8x1xf32>
    %262 = arith.subf %261, %242 : vector<8x1xf32>
    %cst_118 = arith.constant 0.000000e+00 : f32
    %263 = vector.broadcast %cst_118 : f32 to vector<8x1xf32>
    %264 = arith.mulf %262, %263 : vector<8x1xf32>
    %265 = vector.broadcast %264 : vector<8x1xf32> to vector<8x64xf32>
    %266 = arith.addf %260, %265 : vector<8x64xf32>
    %c0_119 = arith.constant 0 : index
    %267 = arith.index_cast %c4_i32 : i32 to index
    %c0_120 = arith.constant 0 : index
    %c0_121 = arith.constant 0 : index
    %268 = vector.load %arg4[%c0_119, %267, %c0_120, %c0_121] : memref<1x8x8x64xf32, #tpu.memory_space<vmem>>, vector<1x1x8x64xf32>
    %269 = vector.shape_cast %268 : vector<1x1x8x64xf32> to vector<8x64xf32>
    %270 = vector.shape_cast %266 : vector<8x64xf32> to vector<1x1x8x64xf32>
    tpu.vector_store %arg4[%c0_119, %267, %c0_120, %c0_121], %270 {strides = array<i32>} : memref<1x8x8x64xf32, #tpu.memory_space<vmem>>, vector<1x1x8x64xf32>,
    %c5_i32 = arith.constant 5 : i32
    %c0_122 = arith.constant 0 : index
    %c0_123 = arith.constant 0 : index
    %271 = vector.load %arg5[%c0_122, %c0_123] : memref<8x64xf32, #tpu.memory_space<vmem>>, vector<8x64xf32>
    %c0_124 = arith.constant 0 : index
    %c0_125 = arith.constant 0 : index
    %272 = vector.load %arg6[%c0_124, %c0_125] : memref<8x64xf32, #tpu.memory_space<vmem>>, vector<8x64xf32>
    %c0_126 = arith.constant 0 : index
    %273 = arith.index_cast %c5_i32 : i32 to index
    %c0_127 = arith.constant 0 : index
    %c0_128 = arith.constant 0 : index
    %274 = vector.load %arg1[%c0_126, %273, %c0_127, %c0_128] : memref<1x8x8x256xf32, #tpu.memory_space<vmem>>, vector<1x1x8x256xf32>
    %275 = vector.shape_cast %274 : vector<1x1x8x256xf32> to vector<8x256xf32>
    %cst_129 = arith.constant dense<0.000000e+00> : vector<8x256xf32>
    %276 = tpu.matmul %271, %5, %cst_129 {dimension_numbers = #tpu.dot_dimension_numbers<[1], [0], [0], [1], [0, 0, 1, 1], [], []>} : vector<8x64xf32>, vector<64x256xf32>, vector<8x256xf32> -> vector<8x256xf32>
    %277 = arith.addf %275, %276 : vector<8x256xf32>
    %278 = arith.negf %277 : vector<8x256xf32>
    %279 = math.exp %278 : vector<8x256xf32>
    %cst_130 = arith.constant 1.000000e+00 : f32
    %280 = vector.broadcast %cst_130 : f32 to vector<8x256xf32>
    %281 = arith.addf %280, %279 : vector<8x256xf32>
    %282 = arith.divf %280, %281 : vector<8x256xf32>
    %283 = math.tanh %277 : vector<8x256xf32>
    %284 = vector.extract_strided_slice %282 {offsets = [0, 0], sizes = [8, 64], strides = [1, 1]} : vector<8x256xf32> to vector<8x64xf32>
    %285 = vector.extract_strided_slice %282 {offsets = [0, 64], sizes = [8, 64], strides = [1, 1]} : vector<8x256xf32> to vector<8x64xf32>
    %286 = vector.extract_strided_slice %283 {offsets = [0, 128], sizes = [8, 64], strides = [1, 1]} : vector<8x256xf32> to vector<8x64xf32>
    %287 = vector.extract_strided_slice %282 {offsets = [0, 192], sizes = [8, 64], strides = [1, 1]} : vector<8x256xf32> to vector<8x64xf32>
    %288 = arith.mulf %285, %272 : vector<8x64xf32>
    %289 = arith.mulf %284, %286 : vector<8x64xf32>
    %290 = arith.addf %288, %289 : vector<8x64xf32>
    %291 = math.tanh %290 : vector<8x64xf32>
    %292 = arith.mulf %287, %291 : vector<8x64xf32>
    %c0_131 = arith.constant 0 : index
    %293 = arith.index_cast %c5_i32 : i32 to index
    %c0_132 = arith.constant 0 : index
    %c0_133 = arith.constant 0 : index
    %294 = vector.load %arg3[%c0_131, %293, %c0_132, %c0_133] : memref<1x8x8x1xf32, #tpu.memory_space<vmem>>, vector<1x1x8x1xf32>
    %295 = vector.shape_cast %294 : vector<1x1x8x1xf32> to vector<8x1xf32>
    %296 = vector.broadcast %295 : vector<8x1xf32> to vector<8x64xf32>
    %297 = arith.mulf %296, %292 : vector<8x64xf32>
    %cst_134 = arith.constant 1.000000e+00 : f32
    %298 = vector.broadcast %cst_134 : f32 to vector<8x1xf32>
    %299 = arith.subf %298, %295 : vector<8x1xf32>
    %300 = vector.broadcast %299 : vector<8x1xf32> to vector<8x64xf32>
    %301 = arith.mulf %300, %271 : vector<8x64xf32>
    %302 = arith.addf %297, %301 : vector<8x64xf32>
    %c0_135 = arith.constant 0 : index
    %c0_136 = arith.constant 0 : index
    %303 = vector.load %arg5[%c0_135, %c0_136] : memref<8x64xf32, #tpu.memory_space<vmem>>, vector<8x64xf32>
    tpu.vector_store %arg5[%c0_135, %c0_136], %302 {strides = array<i32>} : memref<8x64xf32, #tpu.memory_space<vmem>>, vector<8x64xf32>,
    %304 = vector.broadcast %295 : vector<8x1xf32> to vector<8x64xf32>
    %305 = arith.mulf %304, %290 : vector<8x64xf32>
    %cst_137 = arith.constant 1.000000e+00 : f32
    %306 = vector.broadcast %cst_137 : f32 to vector<8x1xf32>
    %307 = arith.subf %306, %295 : vector<8x1xf32>
    %308 = vector.broadcast %307 : vector<8x1xf32> to vector<8x64xf32>
    %309 = arith.mulf %308, %272 : vector<8x64xf32>
    %310 = arith.addf %305, %309 : vector<8x64xf32>
    %c0_138 = arith.constant 0 : index
    %c0_139 = arith.constant 0 : index
    %311 = vector.load %arg6[%c0_138, %c0_139] : memref<8x64xf32, #tpu.memory_space<vmem>>, vector<8x64xf32>
    tpu.vector_store %arg6[%c0_138, %c0_139], %310 {strides = array<i32>} : memref<8x64xf32, #tpu.memory_space<vmem>>, vector<8x64xf32>,
    %312 = vector.broadcast %295 : vector<8x1xf32> to vector<8x64xf32>
    %313 = arith.mulf %312, %292 : vector<8x64xf32>
    %cst_140 = arith.constant 1.000000e+00 : f32
    %314 = vector.broadcast %cst_140 : f32 to vector<8x1xf32>
    %315 = arith.subf %314, %295 : vector<8x1xf32>
    %cst_141 = arith.constant 0.000000e+00 : f32
    %316 = vector.broadcast %cst_141 : f32 to vector<8x1xf32>
    %317 = arith.mulf %315, %316 : vector<8x1xf32>
    %318 = vector.broadcast %317 : vector<8x1xf32> to vector<8x64xf32>
    %319 = arith.addf %313, %318 : vector<8x64xf32>
    %c0_142 = arith.constant 0 : index
    %320 = arith.index_cast %c5_i32 : i32 to index
    %c0_143 = arith.constant 0 : index
    %c0_144 = arith.constant 0 : index
    %321 = vector.load %arg4[%c0_142, %320, %c0_143, %c0_144] : memref<1x8x8x64xf32, #tpu.memory_space<vmem>>, vector<1x1x8x64xf32>
    %322 = vector.shape_cast %321 : vector<1x1x8x64xf32> to vector<8x64xf32>
    %323 = vector.shape_cast %319 : vector<8x64xf32> to vector<1x1x8x64xf32>
    tpu.vector_store %arg4[%c0_142, %320, %c0_143, %c0_144], %323 {strides = array<i32>} : memref<1x8x8x64xf32, #tpu.memory_space<vmem>>, vector<1x1x8x64xf32>,
    %c6_i32 = arith.constant 6 : i32
    %c0_145 = arith.constant 0 : index
    %c0_146 = arith.constant 0 : index
    %324 = vector.load %arg5[%c0_145, %c0_146] : memref<8x64xf32, #tpu.memory_space<vmem>>, vector<8x64xf32>
    %c0_147 = arith.constant 0 : index
    %c0_148 = arith.constant 0 : index
    %325 = vector.load %arg6[%c0_147, %c0_148] : memref<8x64xf32, #tpu.memory_space<vmem>>, vector<8x64xf32>
    %c0_149 = arith.constant 0 : index
    %326 = arith.index_cast %c6_i32 : i32 to index
    %c0_150 = arith.constant 0 : index
    %c0_151 = arith.constant 0 : index
    %327 = vector.load %arg1[%c0_149, %326, %c0_150, %c0_151] : memref<1x8x8x256xf32, #tpu.memory_space<vmem>>, vector<1x1x8x256xf32>
    %328 = vector.shape_cast %327 : vector<1x1x8x256xf32> to vector<8x256xf32>
    %cst_152 = arith.constant dense<0.000000e+00> : vector<8x256xf32>
    %329 = tpu.matmul %324, %5, %cst_152 {dimension_numbers = #tpu.dot_dimension_numbers<[1], [0], [0], [1], [0, 0, 1, 1], [], []>} : vector<8x64xf32>, vector<64x256xf32>, vector<8x256xf32> -> vector<8x256xf32>
    %330 = arith.addf %328, %329 : vector<8x256xf32>
    %331 = arith.negf %330 : vector<8x256xf32>
    %332 = math.exp %331 : vector<8x256xf32>
    %cst_153 = arith.constant 1.000000e+00 : f32
    %333 = vector.broadcast %cst_153 : f32 to vector<8x256xf32>
    %334 = arith.addf %333, %332 : vector<8x256xf32>
    %335 = arith.divf %333, %334 : vector<8x256xf32>
    %336 = math.tanh %330 : vector<8x256xf32>
    %337 = vector.extract_strided_slice %335 {offsets = [0, 0], sizes = [8, 64], strides = [1, 1]} : vector<8x256xf32> to vector<8x64xf32>
    %338 = vector.extract_strided_slice %335 {offsets = [0, 64], sizes = [8, 64], strides = [1, 1]} : vector<8x256xf32> to vector<8x64xf32>
    %339 = vector.extract_strided_slice %336 {offsets = [0, 128], sizes = [8, 64], strides = [1, 1]} : vector<8x256xf32> to vector<8x64xf32>
    %340 = vector.extract_strided_slice %335 {offsets = [0, 192], sizes = [8, 64], strides = [1, 1]} : vector<8x256xf32> to vector<8x64xf32>
    %341 = arith.mulf %338, %325 : vector<8x64xf32>
    %342 = arith.mulf %337, %339 : vector<8x64xf32>
    %343 = arith.addf %341, %342 : vector<8x64xf32>
    %344 = math.tanh %343 : vector<8x64xf32>
    %345 = arith.mulf %340, %344 : vector<8x64xf32>
    %c0_154 = arith.constant 0 : index
    %346 = arith.index_cast %c6_i32 : i32 to index
    %c0_155 = arith.constant 0 : index
    %c0_156 = arith.constant 0 : index
    %347 = vector.load %arg3[%c0_154, %346, %c0_155, %c0_156] : memref<1x8x8x1xf32, #tpu.memory_space<vmem>>, vector<1x1x8x1xf32>
    %348 = vector.shape_cast %347 : vector<1x1x8x1xf32> to vector<8x1xf32>
    %349 = vector.broadcast %348 : vector<8x1xf32> to vector<8x64xf32>
    %350 = arith.mulf %349, %345 : vector<8x64xf32>
    %cst_157 = arith.constant 1.000000e+00 : f32
    %351 = vector.broadcast %cst_157 : f32 to vector<8x1xf32>
    %352 = arith.subf %351, %348 : vector<8x1xf32>
    %353 = vector.broadcast %352 : vector<8x1xf32> to vector<8x64xf32>
    %354 = arith.mulf %353, %324 : vector<8x64xf32>
    %355 = arith.addf %350, %354 : vector<8x64xf32>
    %c0_158 = arith.constant 0 : index
    %c0_159 = arith.constant 0 : index
    %356 = vector.load %arg5[%c0_158, %c0_159] : memref<8x64xf32, #tpu.memory_space<vmem>>, vector<8x64xf32>
    tpu.vector_store %arg5[%c0_158, %c0_159], %355 {strides = array<i32>} : memref<8x64xf32, #tpu.memory_space<vmem>>, vector<8x64xf32>,
    %357 = vector.broadcast %348 : vector<8x1xf32> to vector<8x64xf32>
    %358 = arith.mulf %357, %343 : vector<8x64xf32>
    %cst_160 = arith.constant 1.000000e+00 : f32
    %359 = vector.broadcast %cst_160 : f32 to vector<8x1xf32>
    %360 = arith.subf %359, %348 : vector<8x1xf32>
    %361 = vector.broadcast %360 : vector<8x1xf32> to vector<8x64xf32>
    %362 = arith.mulf %361, %325 : vector<8x64xf32>
    %363 = arith.addf %358, %362 : vector<8x64xf32>
    %c0_161 = arith.constant 0 : index
    %c0_162 = arith.constant 0 : index
    %364 = vector.load %arg6[%c0_161, %c0_162] : memref<8x64xf32, #tpu.memory_space<vmem>>, vector<8x64xf32>
    tpu.vector_store %arg6[%c0_161, %c0_162], %363 {strides = array<i32>} : memref<8x64xf32, #tpu.memory_space<vmem>>, vector<8x64xf32>,
    %365 = vector.broadcast %348 : vector<8x1xf32> to vector<8x64xf32>
    %366 = arith.mulf %365, %345 : vector<8x64xf32>
    %cst_163 = arith.constant 1.000000e+00 : f32
    %367 = vector.broadcast %cst_163 : f32 to vector<8x1xf32>
    %368 = arith.subf %367, %348 : vector<8x1xf32>
    %cst_164 = arith.constant 0.000000e+00 : f32
    %369 = vector.broadcast %cst_164 : f32 to vector<8x1xf32>
    %370 = arith.mulf %368, %369 : vector<8x1xf32>
    %371 = vector.broadcast %370 : vector<8x1xf32> to vector<8x64xf32>
    %372 = arith.addf %366, %371 : vector<8x64xf32>
    %c0_165 = arith.constant 0 : index
    %373 = arith.index_cast %c6_i32 : i32 to index
    %c0_166 = arith.constant 0 : index
    %c0_167 = arith.constant 0 : index
    %374 = vector.load %arg4[%c0_165, %373, %c0_166, %c0_167] : memref<1x8x8x64xf32, #tpu.memory_space<vmem>>, vector<1x1x8x64xf32>
    %375 = vector.shape_cast %374 : vector<1x1x8x64xf32> to vector<8x64xf32>
    %376 = vector.shape_cast %372 : vector<8x64xf32> to vector<1x1x8x64xf32>
    tpu.vector_store %arg4[%c0_165, %373, %c0_166, %c0_167], %376 {strides = array<i32>} : memref<1x8x8x64xf32, #tpu.memory_space<vmem>>, vector<1x1x8x64xf32>,
    %c7_i32 = arith.constant 7 : i32
    %c0_168 = arith.constant 0 : index
    %c0_169 = arith.constant 0 : index
    %377 = vector.load %arg5[%c0_168, %c0_169] : memref<8x64xf32, #tpu.memory_space<vmem>>, vector<8x64xf32>
    %c0_170 = arith.constant 0 : index
    %c0_171 = arith.constant 0 : index
    %378 = vector.load %arg6[%c0_170, %c0_171] : memref<8x64xf32, #tpu.memory_space<vmem>>, vector<8x64xf32>
    %c0_172 = arith.constant 0 : index
    %379 = arith.index_cast %c7_i32 : i32 to index
    %c0_173 = arith.constant 0 : index
    %c0_174 = arith.constant 0 : index
    %380 = vector.load %arg1[%c0_172, %379, %c0_173, %c0_174] : memref<1x8x8x256xf32, #tpu.memory_space<vmem>>, vector<1x1x8x256xf32>
    %381 = vector.shape_cast %380 : vector<1x1x8x256xf32> to vector<8x256xf32>
    %cst_175 = arith.constant dense<0.000000e+00> : vector<8x256xf32>
    %382 = tpu.matmul %377, %5, %cst_175 {dimension_numbers = #tpu.dot_dimension_numbers<[1], [0], [0], [1], [0, 0, 1, 1], [], []>} : vector<8x64xf32>, vector<64x256xf32>, vector<8x256xf32> -> vector<8x256xf32>
    %383 = arith.addf %381, %382 : vector<8x256xf32>
    %384 = arith.negf %383 : vector<8x256xf32>
    %385 = math.exp %384 : vector<8x256xf32>
    %cst_176 = arith.constant 1.000000e+00 : f32
    %386 = vector.broadcast %cst_176 : f32 to vector<8x256xf32>
    %387 = arith.addf %386, %385 : vector<8x256xf32>
    %388 = arith.divf %386, %387 : vector<8x256xf32>
    %389 = math.tanh %383 : vector<8x256xf32>
    %390 = vector.extract_strided_slice %388 {offsets = [0, 0], sizes = [8, 64], strides = [1, 1]} : vector<8x256xf32> to vector<8x64xf32>
    %391 = vector.extract_strided_slice %388 {offsets = [0, 64], sizes = [8, 64], strides = [1, 1]} : vector<8x256xf32> to vector<8x64xf32>
    %392 = vector.extract_strided_slice %389 {offsets = [0, 128], sizes = [8, 64], strides = [1, 1]} : vector<8x256xf32> to vector<8x64xf32>
    %393 = vector.extract_strided_slice %388 {offsets = [0, 192], sizes = [8, 64], strides = [1, 1]} : vector<8x256xf32> to vector<8x64xf32>
    %394 = arith.mulf %391, %378 : vector<8x64xf32>
    %395 = arith.mulf %390, %392 : vector<8x64xf32>
    %396 = arith.addf %394, %395 : vector<8x64xf32>
    %397 = math.tanh %396 : vector<8x64xf32>
    %398 = arith.mulf %393, %397 : vector<8x64xf32>
    %c0_177 = arith.constant 0 : index
    %399 = arith.index_cast %c7_i32 : i32 to index
    %c0_178 = arith.constant 0 : index
    %c0_179 = arith.constant 0 : index
    %400 = vector.load %arg3[%c0_177, %399, %c0_178, %c0_179] : memref<1x8x8x1xf32, #tpu.memory_space<vmem>>, vector<1x1x8x1xf32>
    %401 = vector.shape_cast %400 : vector<1x1x8x1xf32> to vector<8x1xf32>
    %402 = vector.broadcast %401 : vector<8x1xf32> to vector<8x64xf32>
    %403 = arith.mulf %402, %398 : vector<8x64xf32>
    %cst_180 = arith.constant 1.000000e+00 : f32
    %404 = vector.broadcast %cst_180 : f32 to vector<8x1xf32>
    %405 = arith.subf %404, %401 : vector<8x1xf32>
    %406 = vector.broadcast %405 : vector<8x1xf32> to vector<8x64xf32>
    %407 = arith.mulf %406, %377 : vector<8x64xf32>
    %408 = arith.addf %403, %407 : vector<8x64xf32>
    %c0_181 = arith.constant 0 : index
    %c0_182 = arith.constant 0 : index
    %409 = vector.load %arg5[%c0_181, %c0_182] : memref<8x64xf32, #tpu.memory_space<vmem>>, vector<8x64xf32>
    tpu.vector_store %arg5[%c0_181, %c0_182], %408 {strides = array<i32>} : memref<8x64xf32, #tpu.memory_space<vmem>>, vector<8x64xf32>,
    %410 = vector.broadcast %401 : vector<8x1xf32> to vector<8x64xf32>
    %411 = arith.mulf %410, %396 : vector<8x64xf32>
    %cst_183 = arith.constant 1.000000e+00 : f32
    %412 = vector.broadcast %cst_183 : f32 to vector<8x1xf32>
    %413 = arith.subf %412, %401 : vector<8x1xf32>
    %414 = vector.broadcast %413 : vector<8x1xf32> to vector<8x64xf32>
    %415 = arith.mulf %414, %378 : vector<8x64xf32>
    %416 = arith.addf %411, %415 : vector<8x64xf32>
    %c0_184 = arith.constant 0 : index
    %c0_185 = arith.constant 0 : index
    %417 = vector.load %arg6[%c0_184, %c0_185] : memref<8x64xf32, #tpu.memory_space<vmem>>, vector<8x64xf32>
    tpu.vector_store %arg6[%c0_184, %c0_185], %416 {strides = array<i32>} : memref<8x64xf32, #tpu.memory_space<vmem>>, vector<8x64xf32>,
    %418 = vector.broadcast %401 : vector<8x1xf32> to vector<8x64xf32>
    %419 = arith.mulf %418, %398 : vector<8x64xf32>
    %cst_186 = arith.constant 1.000000e+00 : f32
    %420 = vector.broadcast %cst_186 : f32 to vector<8x1xf32>
    %421 = arith.subf %420, %401 : vector<8x1xf32>
    %cst_187 = arith.constant 0.000000e+00 : f32
    %422 = vector.broadcast %cst_187 : f32 to vector<8x1xf32>
    %423 = arith.mulf %421, %422 : vector<8x1xf32>
    %424 = vector.broadcast %423 : vector<8x1xf32> to vector<8x64xf32>
    %425 = arith.addf %419, %424 : vector<8x64xf32>
    %c0_188 = arith.constant 0 : index
    %426 = arith.index_cast %c7_i32 : i32 to index
    %c0_189 = arith.constant 0 : index
    %c0_190 = arith.constant 0 : index
    %427 = vector.load %arg4[%c0_188, %426, %c0_189, %c0_190] : memref<1x8x8x64xf32, #tpu.memory_space<vmem>>, vector<1x1x8x64xf32>
    %428 = vector.shape_cast %427 : vector<1x1x8x64xf32> to vector<8x64xf32>
    %429 = vector.shape_cast %425 : vector<8x64xf32> to vector<1x1x8x64xf32>
    tpu.vector_store %arg4[%c0_188, %426, %c0_189, %c0_190], %429 {strides = array<i32>} : memref<1x8x8x64xf32, #tpu.memory_space<vmem>>, vector<1x1x8x64xf32>,
    %c8_i32 = arith.constant 8 : i32
    return
  }
  func.func @transform_0(%arg0: i32) -> (i32, i32, i32, i32) {
    %c0_i32 = arith.constant 0 : i32
    %c0_i32_0 = arith.constant 0 : i32
    %c0_i32_1 = arith.constant 0 : i32
    %c0_i32_2 = arith.constant 0 : i32
    return %arg0, %c0_i32, %c0_i32_0, %c0_i32_1 : i32, i32, i32, i32
  }
  func.func @transform_1(%arg0: i32) -> (i32, i32, i32) {
    %c0_i32 = arith.constant 0 : i32
    %c0_i32_0 = arith.constant 0 : i32
    %c0_i32_1 = arith.constant 0 : i32
    return %arg0, %c0_i32, %c0_i32_0 : i32, i32, i32
  }
  func.func @transform_2(%arg0: i32) -> (i32, i32, i32, i32) {
    %c0_i32 = arith.constant 0 : i32
    %c0_i32_0 = arith.constant 0 : i32
    %c0_i32_1 = arith.constant 0 : i32
    %c0_i32_2 = arith.constant 0 : i32
    return %arg0, %c0_i32, %c0_i32_0, %c0_i32_1 : i32, i32, i32, i32
  }
  func.func @transform_3(%arg0: i32) -> (i32, i32, i32, i32) {
    %c0_i32 = arith.constant 0 : i32
    %c0_i32_0 = arith.constant 0 : i32
    %c0_i32_1 = arith.constant 0 : i32
    %c0_i32_2 = arith.constant 0 : i32
    return %arg0, %c0_i32, %c0_i32_0, %c0_i32_1 : i32, i32, i32, i32
  }
}

</mosaic_0001>

<llo_original>
// kernel: fi_en_translator_forward.18
$region0: #{fi_en_translator_forward.18}
  #allocation0 [shape = 'u32[]', space=smem, size = 0x4, offset = 0x4, fixed_abs, tag = 'smem constant byte address 0x4 - core index']
  #allocation1 [shape = 'u32[144,128]{1,0:T(1,128)}', space=vmem, size = 0x12000, scoped, tag = 'internal scratch']
  %s0 = inlined_call_operand.vmem [shape: f32[64,64], index: 0, kind: input, shape index: {}]
  %s1 = inlined_call_operand.vmem [shape: f32[64,256], index: 1, kind: input, shape index: {}]
  %s2 = inlined_call_operand.vmem [shape: f32[1,256], index: 2, kind: input, shape index: {}]
  %s3 = inlined_call_operand.vmem [shape: f32[64,256], index: 3, kind: output, shape index: {}]
  %s4 = sld [smem:[#allocation0]]
  $region22: #{fi_en_translator_forward.18} parent=0
    _
  %s6 = ssub.s32 1, %s4
  %s7 = scalar_select 0, %s6, %s4
  // Predicated region
  $region2: #{fi_en_translator_forward.18} parent=0 // pred_check
    _
  $region3: #{fi_en_translator_forward.18} parent=0 // pred_check_branch
    %9 = sbr.rel (0) target = $region5
  $region4: #{fi_en_translator_forward.18} parent=0 // pred_region
    _
  $region5: #{fi_en_translator_forward.18} parent=0 // pred_fallthru
    _
  // Predicated region
  $region6: #{fi_en_translator_forward.18} parent=0 // pred_check
    _
  $region7: #{fi_en_translator_forward.18} parent=0 // pred_check_branch
    %11 = sbr.rel (0) target = $region9
  $region8: #{fi_en_translator_forward.18} parent=0 // pred_region
    _
  $region9: #{fi_en_translator_forward.18} parent=0 // pred_fallthru
    _
  // Predicated region
  $region10: #{fi_en_translator_forward.18} parent=0 // pred_check
    _
  $region11: #{fi_en_translator_forward.18} parent=0 // pred_check_branch
    %13 = sbr.rel (0) target = $region13
  $region12: #{fi_en_translator_forward.18} parent=0 // pred_region
    _
  $region13: #{fi_en_translator_forward.18} parent=0 // pred_fallthru
    _
  %v14 = vld [vmem:[%s0] sm:$0xff]
  %v15 = vld [vmem:[%s0 + $0x8] sm:$0xff]
  %v16 = vld [vmem:[%s0 + $0x10] sm:$0xff]
  %v17 = vld [vmem:[%s0 + $0x18] sm:$0xff]
  %v18 = vld [vmem:[%s0 + $0x20] sm:$0xff]
  %v19 = vld [vmem:[%s0 + $0x28] sm:$0xff]
  %v20 = vld [vmem:[%s0 + $0x30] sm:$0xff]
  %v21 = vld [vmem:[%s0 + $0x38] sm:$0xff]
  %v22 = vld [vmem:[%s1] sm:$0xff]
  %v23 = vld [vmem:[%s1 + $0x8] sm:$0xff]
  %v24 = vld [vmem:[%s1 + $0x10] sm:$0xff]
  %v25 = vld [vmem:[%s1 + $0x18] sm:$0xff]
  %v26 = vld [vmem:[%s1 + $0x20] sm:$0xff]
  %v27 = vld [vmem:[%s1 + $0x28] sm:$0xff]
  %v28 = vld [vmem:[%s1 + $0x30] sm:$0xff]
  %v29 = vld [vmem:[%s1 + $0x38] sm:$0xff]
  %v30 = vld [vmem:[%s1 + $0x40] sm:$0xff]
  %v31 = vld [vmem:[%s1 + $0x48] sm:$0xff]
  %v32 = vld [vmem:[%s1 + $0x50] sm:$0xff]
  %v33 = vld [vmem:[%s1 + $0x58] sm:$0xff]
  %v34 = vld [vmem:[%s1 + $0x60] sm:$0xff]
  %v35 = vld [vmem:[%s1 + $0x68] sm:$0xff]
  %v36 = vld [vmem:[%s1 + $0x70] sm:$0xff]
  %v37 = vld [vmem:[%s1 + $0x78] sm:$0xff]
  %v38 = vld [vmem:[%s2] sm:$0x3]
  %v40 = vlaneseq
  %v41 = vshrl.u32 %v40, 7
  %v42 = vsub.s32 0, %v41
  %v43 = vrot.slane %v38, %v42
  %v44 = vlaneseq
  %v45 = vshrl.u32 %v44, 7
  %v46 = vsub.s32 1, %v45
  %v47 = vrot.slane %v38, %v46
  %vm50 = vcmask 523264
  %v52 = vsel %vm50, %v14, 0
  %v55 = vsel %vm50, %v15, 0
  %v58 = vsel %vm50, %v16, 0
  %v61 = vsel %vm50, %v17, 0
  %v64 = vsel %vm50, %v18, 0
  %v67 = vsel %vm50, %v19, 0
  %v70 = vsel %vm50, %v20, 0
  %v73 = vsel %vm50, %v21, 0
  %75 = vmatprep.subr.mxu0 %v23
  %76 = vmatpush1.msra.mxu0 %v22
  %77 = vmatprep.subr.mxu0 %v25
  %78 = vmatpush1.msra.mxu0 %v24
  %79 = vmatprep.subr.mxu0 %v27
  %80 = vmatpush1.msra.mxu0 %v26
  %81 = vmatprep.subr.mxu0 %v29
  %82 = vmatpush1.msra.mxu0 %v28
  %83 = vmatprep.subr.mxu0 %v31
  %84 = vmatpush1.msra.mxu0 %v30
  %85 = vmatprep.subr.mxu0 %v33
  %86 = vmatpush1.msra.mxu0 %v32
  %87 = vmatprep.subr.mxu0 %v35
  %88 = vmatpush1.msra.mxu0 %v34
  %89 = vmatprep.subr.mxu0 %v37
  %90 = vmatpush1.msra.mxu0 %v36
  %91 = vmatprep.subr.mxu0 0.0
  %92 = vmatpush1.msra.mxu0 0.0
  %93 = vmatprep.subr.mxu0 0.0
  %94 = vmatpush1.msra.mxu0 0.0
  %95 = vmatprep.subr.mxu0 0.0
  %96 = vmatpush1.msra.mxu0 0.0
  %97 = vmatprep.subr.mxu0 0.0
  %98 = vmatpush1.msra.mxu0 0.0
  %99 = vmatprep.subr.mxu0 0.0
  %100 = vmatpush1.msra.mxu0 0.0
  %101 = vmatprep.subr.mxu0 0.0
  %102 = vmatpush1.msra.mxu0 0.0
  %103 = vmatprep.subr.mxu0 0.0
  %104 = vmatpush1.msra.mxu0 0.0
  %105 = vmatprep.subr.mxu0 0.0
  %106 = vmatpush1.msra.mxu0 0.0
  %107 = vmatprep.subr.mxu0 0.0
  %108 = vmatpush1.msra.mxu0 0.0
  %109 = vmatprep.subr.mxu0 0.0
  %110 = vmatpush1.msra.mxu0 0.0
  %111 = vmatprep.subr.mxu0 0.0
  %112 = vmatpush1.msra.mxu0 0.0
  %113 = vmatprep.subr.mxu0 0.0
  %114 = vmatpush1.msra.mxu0 0.0
  %115 = vmatprep.subr.mxu0 0.0
  %116 = vmatpush1.msra.mxu0 0.0
  %117 = vmatprep.subr.mxu0 0.0
  %118 = vmatpush1.msra.mxu0 0.0
  %119 = vmatprep.subr.mxu0 0.0
  %120 = vmatpush1.msra.mxu0 0.0
  %121 = vmatprep.subr.mxu0 0.0
  %122 = vmatpush1.msra.mxu0 0.0
  %123 = vmatprep.subr.mxu0 0.0
  %124 = vmatpush1.msra.mxu0 0.0
  %125 = vmatprep.subr.mxu0 0.0
  %126 = vmatpush1.msra.mxu0 0.0
  %127 = vmatprep.subr.mxu0 0.0
  %128 = vmatpush1.msra.mxu0 0.0
  %129 = vmatprep.subr.mxu0 0.0
  %130 = vmatpush1.msra.mxu0 0.0
  %131 = vmatprep.subr.mxu0 0.0
  %132 = vmatpush1.msra.mxu0 0.0
  %133 = vmatprep.subr.mxu0 0.0
  %134 = vmatpush1.msra.mxu0 0.0
  %135 = vmatprep.subr.mxu0 0.0
  %136 = vmatpush1.msra.mxu0 0.0
  %137 = vmatprep.subr.mxu0 0.0
  %138 = vmatpush1.msra.mxu0 0.0
  %139 = vmatprep.mubr.f32.mxu0 0.0
  %140 = vmatmul.mubr.f32.gmra.mrb[0].mxu0 %v52
  %v141 = vpop.f32.mrb[0].mxu0
  %v142 = vadd.f32 %v43, %v141
  %v143 = vpop.f32.mrb[0].mxu0
  %v144 = vadd.f32 %v47, %v143
  %145 = vmatprep.mubr.f32.mxu0 0.0
  %146 = vmatmul.mubr.f32.gmra.mrb[0].mxu0 %v55
  %v147 = vpop.f32.mrb[0].mxu0
  %v148 = vadd.f32 %v43, %v147
  %v149 = vpop.f32.mrb[0].mxu0
  %v150 = vadd.f32 %v47, %v149
  %151 = vmatprep.mubr.f32.mxu0 0.0
  %152 = vmatmul.mubr.f32.gmra.mrb[0].mxu0 %v58
  %v153 = vpop.f32.mrb[0].mxu0
  %v154 = vadd.f32 %v43, %v153
  %v155 = vpop.f32.mrb[0].mxu0
  %v156 = vadd.f32 %v47, %v155
  %157 = vmatprep.mubr.f32.mxu0 0.0
  %158 = vmatmul.mubr.f32.gmra.mrb[0].mxu0 %v61
  %v159 = vpop.f32.mrb[0].mxu0
  %v160 = vadd.f32 %v43, %v159
  %v161 = vpop.f32.mrb[0].mxu0
  %v162 = vadd.f32 %v47, %v161
  %163 = vmatprep.mubr.f32.mxu0 0.0
  %164 = vmatmul.mubr.f32.gmra.mrb[0].mxu0 %v64
  %v165 = vpop.f32.mrb[0].mxu0
  %v166 = vadd.f32 %v43, %v165
  %v167 = vpop.f32.mrb[0].mxu0
  %v168 = vadd.f32 %v47, %v167
  %169 = vmatprep.mubr.f32.mxu0 0.0
  %170 = vmatmul.mubr.f32.gmra.mrb[0].mxu0 %v67
  %v171 = vpop.f32.mrb[0].mxu0
  %v172 = vadd.f32 %v43, %v171
  %v173 = vpop.f32.mrb[0].mxu0
  %v174 = vadd.f32 %v47, %v173
  %175 = vmatprep.mubr.f32.mxu0 0.0
  %176 = vmatmul.mubr.f32.gmra.mrb[0].mxu0 %v70
  %v177 = vpop.f32.mrb[0].mxu0
  %v178 = vadd.f32 %v43, %v177
  %v179 = vpop.f32.mrb[0].mxu0
  %v180 = vadd.f32 %v47, %v179
  %181 = vmatprep.mubr.f32.mxu0 0.0
  %182 = vmatmul.mubr.f32.gmra.mrb[0].mxu0 %v73
  %v183 = vpop.f32.mrb[0].mxu0
  %v184 = vadd.f32 %v43, %v183
  %v185 = vpop.f32.mrb[0].mxu0
  %v186 = vadd.f32 %v47, %v185
  %187 = vdwg.mxu0
  %188 = vst [vmem:[%s3] sm:$0xff] %v142
  %189 = vst [vmem:[%s3 + $0x8] sm:$0xff] %v144
  %190 = vst [vmem:[%s3 + $0x10] sm:$0xff] %v148
  %191 = vst [vmem:[%s3 + $0x18] sm:$0xff] %v150
  %192 = vst [vmem:[%s3 + $0x20] sm:$0xff] %v154
  %193 = vst [vmem:[%s3 + $0x28] sm:$0xff] %v156
  %194 = vst [vmem:[%s3 + $0x30] sm:$0xff] %v160
  %195 = vst [vmem:[%s3 + $0x38] sm:$0xff] %v162
  %196 = vst [vmem:[%s3 + $0x40] sm:$0xff] %v166
  %197 = vst [vmem:[%s3 + $0x48] sm:$0xff] %v168
  %198 = vst [vmem:[%s3 + $0x50] sm:$0xff] %v172
  %199 = vst [vmem:[%s3 + $0x58] sm:$0xff] %v174
  %200 = vst [vmem:[%s3 + $0x60] sm:$0xff] %v178
  %201 = vst [vmem:[%s3 + $0x68] sm:$0xff] %v180
  %202 = vst [vmem:[%s3 + $0x70] sm:$0xff] %v184
  %203 = vst [vmem:[%s3 + $0x78] sm:$0xff] %v186
  // Predicated region
  $region14: #{fi_en_translator_forward.18} parent=0 // pred_check
    _
  $region15: #{fi_en_translator_forward.18} parent=0 // pred_check_branch
    %205 = sbr.rel (0) target = $region17
  $region16: #{fi_en_translator_forward.18} parent=0 // pred_region
    _
  $region17: #{fi_en_translator_forward.18} parent=0 // pred_fallthru
    _
  // Predicated region
  $region18: #{fi_en_translator_forward.18} parent=0 // pred_check
    _
  $region19: #{fi_en_translator_forward.18} parent=0 // pred_check_branch
    %207 = sbr.rel (0) target = $region21
  $region20: #{fi_en_translator_forward.18} parent=0 // pred_region
    _
  $region21: #{fi_en_translator_forward.18} parent=0 // pred_fallthru
    _

// kernel: fi_en_translator_forward.16
$region0: #{fi_en_translator_forward.16}
  #allocation0 [shape = 'u32[]', space=smem, size = 0x4, offset = 0x4, fixed_abs, tag = 'smem constant byte address 0x4 - core index']
  #allocation1 [shape = 'u32[144,128]{1,0:T(1,128)}', space=vmem, size = 0x12000, scoped, tag = 'internal scratch']
  %s0 = inlined_call_operand.vmem [shape: f32[64,32], index: 0, kind: input, shape index: {}]
  %s1 = inlined_call_operand.vmem [shape: f32[32,256], index: 1, kind: input, shape index: {}]
  %s2 = inlined_call_operand.vmem [shape: f32[1,256], index: 2, kind: input, shape index: {}]
  %s3 = inlined_call_operand.vmem [shape: f32[64,256], index: 3, kind: output, shape index: {}]
  %s4 = sld [smem:[#allocation0]]
  $region22: #{fi_en_translator_forward.16} parent=0
    _
  %s6 = ssub.s32 1, %s4
  %s7 = scalar_select 0, %s6, %s4
  // Predicated region
  $region2: #{fi_en_translator_forward.16} parent=0 // pred_check
    _
  $region3: #{fi_en_translator_forward.16} parent=0 // pred_check_branch
    %9 = sbr.rel (0) target = $region5
  $region4: #{fi_en_translator_forward.16} parent=0 // pred_region
    _
  $region5: #{fi_en_translator_forward.16} parent=0 // pred_fallthru
    _
  // Predicated region
  $region6: #{fi_en_translator_forward.16} parent=0 // pred_check
    _
  $region7: #{fi_en_translator_forward.16} parent=0 // pred_check_branch
    %11 = sbr.rel (0) target = $region9
  $region8: #{fi_en_translator_forward.16} parent=0 // pred_region
    _
  $region9: #{fi_en_translator_forward.16} parent=0 // pred_fallthru
    _
  // Predicated region
  $region10: #{fi_en_translator_forward.16} parent=0 // pred_check
    _
  $region11: #{fi_en_translator_forward.16} parent=0 // pred_check_branch
    %13 = sbr.rel (0) target = $region13
  $region12: #{fi_en_translator_forward.16} parent=0 // pred_region
    _
  $region13: #{fi_en_translator_forward.16} parent=0 // pred_fallthru
    _
  %v14 = vld [vmem:[%s0] sm:$0xff]
  %v15 = vld [vmem:[%s0 + $0x8] sm:$0xff]
  %v16 = vld [vmem:[%s0 + $0x10] sm:$0xff]
  %v17 = vld [vmem:[%s0 + $0x18] sm:$0xff]
  %v18 = vld [vmem:[%s0 + $0x20] sm:$0xff]
  %v19 = vld [vmem:[%s0 + $0x28] sm:$0xff]
  %v20 = vld [vmem:[%s0 + $0x30] sm:$0xff]
  %v21 = vld [vmem:[%s0 + $0x38] sm:$0xff]
  %v22 = vld [vmem:[%s1] sm:$0xff]
  %v23 = vld [vmem:[%s1 + $0x8] sm:$0xff]
  %v24 = vld [vmem:[%s1 + $0x10] sm:$0xff]
  %v25 = vld [vmem:[%s1 + $0x18] sm:$0xff]
  %v26 = vld [vmem:[%s1 + $0x20] sm:$0xff]
  %v27 = vld [vmem:[%s1 + $0x28] sm:$0xff]
  %v28 = vld [vmem:[%s1 + $0x30] sm:$0xff]
  %v29 = vld [vmem:[%s1 + $0x38] sm:$0xff]
  %v30 = vld [vmem:[%s2] sm:$0x3]
  %v32 = vlaneseq
  %v33 = vshrl.u32 %v32, 7
  %v34 = vsub.s32 0, %v33
  %v35 = vrot.slane %v30, %v34
  %v36 = vlaneseq
  %v37 = vshrl.u32 %v36, 7
  %v38 = vsub.s32 1, %v37
  %v39 = vrot.slane %v30, %v38
  %vm42 = vcmask 261120
  %v44 = vsel %vm42, %v14, 0
  %v47 = vsel %vm42, %v15, 0
  %v50 = vsel %vm42, %v16, 0
  %v53 = vsel %vm42, %v17, 0
  %v56 = vsel %vm42, %v18, 0
  %v59 = vsel %vm42, %v19, 0
  %v62 = vsel %vm42, %v20, 0
  %v65 = vsel %vm42, %v21, 0
  %67 = vmatprep.subr.mxu0 %v23
  %68 = vmatpush1.msra.mxu0 %v22
  %69 = vmatprep.subr.mxu0 %v25
  %70 = vmatpush1.msra.mxu0 %v24
  %71 = vmatprep.subr.mxu0 %v27
  %72 = vmatpush1.msra.mxu0 %v26
  %73 = vmatprep.subr.mxu0 %v29
  %74 = vmatpush1.msra.mxu0 %v28
  %75 = vmatprep.subr.mxu0 0.0
  %76 = vmatpush1.msra.mxu0 0.0
  %77 = vmatprep.subr.mxu0 0.0
  %78 = vmatpush1.msra.mxu0 0.0
  %79 = vmatprep.subr.mxu0 0.0
  %80 = vmatpush1.msra.mxu0 0.0
  %81 = vmatprep.subr.mxu0 0.0
  %82 = vmatpush1.msra.mxu0 0.0
  %83 = vmatprep.subr.mxu0 0.0
  %84 = vmatpush1.msra.mxu0 0.0
  %85 = vmatprep.subr.mxu0 0.0
  %86 = vmatpush1.msra.mxu0 0.0
  %87 = vmatprep.subr.mxu0 0.0
  %88 = vmatpush1.msra.mxu0 0.0
  %89 = vmatprep.subr.mxu0 0.0
  %90 = vmatpush1.msra.mxu0 0.0
  %91 = vmatprep.subr.mxu0 0.0
  %92 = vmatpush1.msra.mxu0 0.0
  %93 = vmatprep.subr.mxu0 0.0
  %94 = vmatpush1.msra.mxu0 0.0
  %95 = vmatprep.subr.mxu0 0.0
  %96 = vmatpush1.msra.mxu0 0.0
  %97 = vmatprep.subr.mxu0 0.0
  %98 = vmatpush1.msra.mxu0 0.0
  %99 = vmatprep.subr.mxu0 0.0
  %100 = vmatpush1.msra.mxu0 0.0
  %101 = vmatprep.subr.mxu0 0.0
  %102 = vmatpush1.msra.mxu0 0.0
  %103 = vmatprep.subr.mxu0 0.0
  %104 = vmatpush1.msra.mxu0 0.0
  %105 = vmatprep.subr.mxu0 0.0
  %106 = vmatpush1.msra.mxu0 0.0
  %107 = vmatprep.subr.mxu0 0.0
  %108 = vmatpush1.msra.mxu0 0.0
  %109 = vmatprep.subr.mxu0 0.0
  %110 = vmatpush1.msra.mxu0 0.0
  %111 = vmatprep.subr.mxu0 0.0
  %112 = vmatpush1.msra.mxu0 0.0
  %113 = vmatprep.subr.mxu0 0.0
  %114 = vmatpush1.msra.mxu0 0.0
  %115 = vmatprep.subr.mxu0 0.0
  %116 = vmatpush1.msra.mxu0 0.0
  %117 = vmatprep.subr.mxu0 0.0
  %118 = vmatpush1.msra.mxu0 0.0
  %119 = vmatprep.subr.mxu0 0.0
  %120 = vmatpush1.msra.mxu0 0.0
  %121 = vmatprep.subr.mxu0 0.0
  %122 = vmatpush1.msra.mxu0 0.0
  %123 = vmatprep.subr.mxu0 0.0
  %124 = vmatpush1.msra.mxu0 0.0
  %125 = vmatprep.subr.mxu0 0.0
  %126 = vmatpush1.msra.mxu0 0.0
  %127 = vmatprep.subr.mxu0 0.0
  %128 = vmatpush1.msra.mxu0 0.0
  %129 = vmatprep.subr.mxu0 0.0
  %130 = vmatpush1.msra.mxu0 0.0
  %131 = vmatprep.mubr.f32.mxu0 0.0
  %132 = vmatmul.mubr.f32.gmra.mrb[0].mxu0 %v44
  %v133 = vpop.f32.mrb[0].mxu0
  %v134 = vadd.f32 %v35, %v133
  %v135 = vpop.f32.mrb[0].mxu0
  %v136 = vadd.f32 %v39, %v135
  %137 = vmatprep.mubr.f32.mxu0 0.0
  %138 = vmatmul.mubr.f32.gmra.mrb[0].mxu0 %v47
  %v139 = vpop.f32.mrb[0].mxu0
  %v140 = vadd.f32 %v35, %v139
  %v141 = vpop.f32.mrb[0].mxu0
  %v142 = vadd.f32 %v39, %v141
  %143 = vmatprep.mubr.f32.mxu0 0.0
  %144 = vmatmul.mubr.f32.gmra.mrb[0].mxu0 %v50
  %v145 = vpop.f32.mrb[0].mxu0
  %v146 = vadd.f32 %v35, %v145
  %v147 = vpop.f32.mrb[0].mxu0
  %v148 = vadd.f32 %v39, %v147
  %149 = vmatprep.mubr.f32.mxu0 0.0
  %150 = vmatmul.mubr.f32.gmra.mrb[0].mxu0 %v53
  %v151 = vpop.f32.mrb[0].mxu0
  %v152 = vadd.f32 %v35, %v151
  %v153 = vpop.f32.mrb[0].mxu0
  %v154 = vadd.f32 %v39, %v153
  %155 = vmatprep.mubr.f32.mxu0 0.0
  %156 = vmatmul.mubr.f32.gmra.mrb[0].mxu0 %v56
  %v157 = vpop.f32.mrb[0].mxu0
  %v158 = vadd.f32 %v35, %v157
  %v159 = vpop.f32.mrb[0].mxu0
  %v160 = vadd.f32 %v39, %v159
  %161 = vmatprep.mubr.f32.mxu0 0.0
  %162 = vmatmul.mubr.f32.gmra.mrb[0].mxu0 %v59
  %v163 = vpop.f32.mrb[0].mxu0
  %v164 = vadd.f32 %v35, %v163
  %v165 = vpop.f32.mrb[0].mxu0
  %v166 = vadd.f32 %v39, %v165
  %167 = vmatprep.mubr.f32.mxu0 0.0
  %168 = vmatmul.mubr.f32.gmra.mrb[0].mxu0 %v62
  %v169 = vpop.f32.mrb[0].mxu0
  %v170 = vadd.f32 %v35, %v169
  %v171 = vpop.f32.mrb[0].mxu0
  %v172 = vadd.f32 %v39, %v171
  %173 = vmatprep.mubr.f32.mxu0 0.0
  %174 = vmatmul.mubr.f32.gmra.mrb[0].mxu0 %v65
  %v175 = vpop.f32.mrb[0].mxu0
  %v176 = vadd.f32 %v35, %v175
  %v177 = vpop.f32.mrb[0].mxu0
  %v178 = vadd.f32 %v39, %v177
  %179 = vdwg.mxu0
  %180 = vst [vmem:[%s3] sm:$0xff] %v134
  %181 = vst [vmem:[%s3 + $0x8] sm:$0xff] %v136
  %182 = vst [vmem:[%s3 + $0x10] sm:$0xff] %v140
  %183 = vst [vmem:[%s3 + $0x18] sm:$0xff] %v142
  %184 = vst [vmem:[%s3 + $0x20] sm:$0xff] %v146
  %185 = vst [vmem:[%s3 + $0x28] sm:$0xff] %v148
  %186 = vst [vmem:[%s3 + $0x30] sm:$0xff] %v152
  %187 = vst [vmem:[%s3 + $0x38] sm:$0xff] %v154
  %188 = vst [vmem:[%s3 + $0x40] sm:$0xff] %v158
  %189 = vst [vmem:[%s3 + $0x48] sm:$0xff] %v160
  %190 = vst [vmem:[%s3 + $0x50] sm:$0xff] %v164
  %191 = vst [vmem:[%s3 + $0x58] sm:$0xff] %v166
  %192 = vst [vmem:[%s3 + $0x60] sm:$0xff] %v170
  %193 = vst [vmem:[%s3 + $0x68] sm:$0xff] %v172
  %194 = vst [vmem:[%s3 + $0x70] sm:$0xff] %v176
  %195 = vst [vmem:[%s3 + $0x78] sm:$0xff] %v178
  // Predicated region
  $region14: #{fi_en_translator_forward.16} parent=0 // pred_check
    _
  $region15: #{fi_en_translator_forward.16} parent=0 // pred_check_branch
    %197 = sbr.rel (0) target = $region17
  $region16: #{fi_en_translator_forward.16} parent=0 // pred_region
    _
  $region17: #{fi_en_translator_forward.16} parent=0 // pred_fallthru
    _
  // Predicated region
  $region18: #{fi_en_translator_forward.16} parent=0 // pred_check
    _
  $region19: #{fi_en_translator_forward.16} parent=0 // pred_check_branch
    %199 = sbr.rel (0) target = $region21
  $region20: #{fi_en_translator_forward.16} parent=0 // pred_region
    _
  $region21: #{fi_en_translator_forward.16} parent=0 // pred_fallthru
    _

// kernel: fi_en_translator_forward.23
$region0: #{fi_en_translator_forward.23}
  #allocation0 [shape = 'u32[]', space=smem, size = 0x4, offset = 0x4, fixed_abs, tag = 'smem constant byte address 0x4 - core index']
  #allocation1 [shape = 'u32[144,128]{1,0:T(1,128)}', space=vmem, size = 0x12000, scoped, tag = 'internal scratch']
  %s0 = inlined_call_operand.vmem [shape: f32[64,64], index: 0, kind: input, shape index: {}]
  %s1 = inlined_call_operand.vmem [shape: f32[64,128], index: 1, kind: input, shape index: {}]
  %s2 = inlined_call_operand.vmem [shape: f32[1,128], index: 2, kind: input, shape index: {}]
  %s3 = inlined_call_operand.vmem [shape: f32[64,128], index: 3, kind: output, shape index: {}]
  %s4 = sld [smem:[#allocation0]]
  $region22: #{fi_en_translator_forward.23} parent=0
    _
  %s6 = ssub.s32 1, %s4
  %s7 = scalar_select 0, %s6, %s4
  // Predicated region
  $region2: #{fi_en_translator_forward.23} parent=0 // pred_check
    _
  $region3: #{fi_en_translator_forward.23} parent=0 // pred_check_branch
    %9 = sbr.rel (0) target = $region5
  $region4: #{fi_en_translator_forward.23} parent=0 // pred_region
    _
  $region5: #{fi_en_translator_forward.23} parent=0 // pred_fallthru
    _
  // Predicated region
  $region6: #{fi_en_translator_forward.23} parent=0 // pred_check
    _
  $region7: #{fi_en_translator_forward.23} parent=0 // pred_check_branch
    %11 = sbr.rel (0) target = $region9
  $region8: #{fi_en_translator_forward.23} parent=0 // pred_region
    _
  $region9: #{fi_en_translator_forward.23} parent=0 // pred_fallthru
    _
  // Predicated region
  $region10: #{fi_en_translator_forward.23} parent=0 // pred_check
    _
  $region11: #{fi_en_translator_forward.23} parent=0 // pred_check_branch
    %13 = sbr.rel (0) target = $region13
  $region12: #{fi_en_translator_forward.23} parent=0 // pred_region
    _
  $region13: #{fi_en_translator_forward.23} parent=0 // pred_fallthru
    _
  %v14 = vld [vmem:[%s0] sm:$0xff]
  %v15 = vld [vmem:[%s0 + $0x8] sm:$0xff]
  %v16 = vld [vmem:[%s0 + $0x10] sm:$0xff]
  %v17 = vld [vmem:[%s0 + $0x18] sm:$0xff]
  %v18 = vld [vmem:[%s0 + $0x20] sm:$0xff]
  %v19 = vld [vmem:[%s0 + $0x28] sm:$0xff]
  %v20 = vld [vmem:[%s0 + $0x30] sm:$0xff]
  %v21 = vld [vmem:[%s0 + $0x38] sm:$0xff]
  %v22 = vld [vmem:[%s1] sm:$0xff]
  %v23 = vld [vmem:[%s1 + $0x8] sm:$0xff]
  %v24 = vld [vmem:[%s1 + $0x10] sm:$0xff]
  %v25 = vld [vmem:[%s1 + $0x18] sm:$0xff]
  %v26 = vld [vmem:[%s1 + $0x20] sm:$0xff]
  %v27 = vld [vmem:[%s1 + $0x28] sm:$0xff]
  %v28 = vld [vmem:[%s1 + $0x30] sm:$0xff]
  %v29 = vld [vmem:[%s1 + $0x38] sm:$0xff]
  %v30 = vld [vmem:[%s2] sm:$0x1]
  %v32 = vlaneseq
  %v33 = vshrl.u32 %v32, 7
  %v34 = vsub.s32 0, %v33
  %v35 = vrot.slane %v30, %v34
  %vm37 = vcmask 523264
  %v39 = vsel %vm37, %v14, 0
  %v42 = vsel %vm37, %v15, 0
  %v45 = vsel %vm37, %v16, 0
  %v48 = vsel %vm37, %v17, 0
  %v51 = vsel %vm37, %v18, 0
  %v54 = vsel %vm37, %v19, 0
  %v57 = vsel %vm37, %v20, 0
  %v60 = vsel %vm37, %v21, 0
  %62 = vmatprep.subr.mxu0 0.0
  %63 = vmatpush1.msra.mxu0 %v22
  %64 = vmatprep.subr.mxu0 0.0
  %65 = vmatpush1.msra.mxu0 %v23
  %66 = vmatprep.subr.mxu0 0.0
  %67 = vmatpush1.msra.mxu0 %v24
  %68 = vmatprep.subr.mxu0 0.0
  %69 = vmatpush1.msra.mxu0 %v25
  %70 = vmatprep.subr.mxu0 0.0
  %71 = vmatpush1.msra.mxu0 %v26
  %72 = vmatprep.subr.mxu0 0.0
  %73 = vmatpush1.msra.mxu0 %v27
  %74 = vmatprep.subr.mxu0 0.0
  %75 = vmatpush1.msra.mxu0 %v28
  %76 = vmatprep.subr.mxu0 0.0
  %77 = vmatpush1.msra.mxu0 %v29
  %78 = vmatprep.subr.mxu0 0.0
  %79 = vmatpush1.msra.mxu0 0.0
  %80 = vmatprep.subr.mxu0 0.0
  %81 = vmatpush1.msra.mxu0 0.0
  %82 = vmatprep.subr.mxu0 0.0
  %83 = vmatpush1.msra.mxu0 0.0
  %84 = vmatprep.subr.mxu0 0.0
  %85 = vmatpush1.msra.mxu0 0.0
  %86 = vmatprep.subr.mxu0 0.0
  %87 = vmatpush1.msra.mxu0 0.0
  %88 = vmatprep.subr.mxu0 0.0
  %89 = vmatpush1.msra.mxu0 0.0
  %90 = vmatprep.subr.mxu0 0.0
  %91 = vmatpush1.msra.mxu0 0.0
  %92 = vmatprep.subr.mxu0 0.0
  %93 = vmatpush1.msra.mxu0 0.0
  %94 = vmatprep.subr.mxu0 0.0
  %95 = vmatpush1.msra.mxu0 0.0
  %96 = vmatprep.subr.mxu0 0.0
  %97 = vmatpush1.msra.mxu0 0.0
  %98 = vmatprep.subr.mxu0 0.0
  %99 = vmatpush1.msra.mxu0 0.0
  %100 = vmatprep.subr.mxu0 0.0
  %101 = vmatpush1.msra.mxu0 0.0
  %102 = vmatprep.subr.mxu0 0.0
  %103 = vmatpush1.msra.mxu0 0.0
  %104 = vmatprep.subr.mxu0 0.0
  %105 = vmatpush1.msra.mxu0 0.0
  %106 = vmatprep.subr.mxu0 0.0
  %107 = vmatpush1.msra.mxu0 0.0
  %108 = vmatprep.subr.mxu0 0.0
  %109 = vmatpush1.msra.mxu0 0.0
  %110 = vmatprep.subr.mxu0 0.0
  %111 = vmatpush1.msra.mxu0 0.0
  %112 = vmatprep.subr.mxu0 0.0
  %113 = vmatpush1.msra.mxu0 0.0
  %114 = vmatprep.subr.mxu0 0.0
  %115 = vmatpush1.msra.mxu0 0.0
  %116 = vmatprep.subr.mxu0 0.0
  %117 = vmatpush1.msra.mxu0 0.0
  %118 = vmatprep.subr.mxu0 0.0
  %119 = vmatpush1.msra.mxu0 0.0
  %120 = vmatprep.subr.mxu0 0.0
  %121 = vmatpush1.msra.mxu0 0.0
  %122 = vmatprep.subr.mxu0 0.0
  %123 = vmatpush1.msra.mxu0 0.0
  %124 = vmatprep.subr.mxu0 0.0
  %125 = vmatpush1.msra.mxu0 0.0
  %126 = vmatprep.mubr.f32.mxu0 0.0
  %127 = vmatmul.mubr.f32.gmra.mrb[0].mxu0 %v39
  %v128 = vpop.f32.mrb[0].mxu0
  %v129 = vadd.f32 %v35, %v128
  %v130 = vpop.f32.mrb[0].mxu0
  %131 = vmatprep.mubr.f32.mxu0 0.0
  %132 = vmatmul.mubr.f32.gmra.mrb[0].mxu0 %v42
  %v133 = vpop.f32.mrb[0].mxu0
  %v134 = vadd.f32 %v35, %v133
  %v135 = vpop.f32.mrb[0].mxu0
  %136 = vmatprep.mubr.f32.mxu0 0.0
  %137 = vmatmul.mubr.f32.gmra.mrb[0].mxu0 %v45
  %v138 = vpop.f32.mrb[0].mxu0
  %v139 = vadd.f32 %v35, %v138
  %v140 = vpop.f32.mrb[0].mxu0
  %141 = vmatprep.mubr.f32.mxu0 0.0
  %142 = vmatmul.mubr.f32.gmra.mrb[0].mxu0 %v48
  %v143 = vpop.f32.mrb[0].mxu0
  %v144 = vadd.f32 %v35, %v143
  %v145 = vpop.f32.mrb[0].mxu0
  %146 = vmatprep.mubr.f32.mxu0 0.0
  %147 = vmatmul.mubr.f32.gmra.mrb[0].mxu0 %v51
  %v148 = vpop.f32.mrb[0].mxu0
  %v149 = vadd.f32 %v35, %v148
  %v150 = vpop.f32.mrb[0].mxu0
  %151 = vmatprep.mubr.f32.mxu0 0.0
  %152 = vmatmul.mubr.f32.gmra.mrb[0].mxu0 %v54
  %v153 = vpop.f32.mrb[0].mxu0
  %v154 = vadd.f32 %v35, %v153
  %v155 = vpop.f32.mrb[0].mxu0
  %156 = vmatprep.mubr.f32.mxu0 0.0
  %157 = vmatmul.mubr.f32.gmra.mrb[0].mxu0 %v57
  %v158 = vpop.f32.mrb[0].mxu0
  %v159 = vadd.f32 %v35, %v158
  %v160 = vpop.f32.mrb[0].mxu0
  %161 = vmatprep.mubr.f32.mxu0 0.0
  %162 = vmatmul.mubr.f32.gmra.mrb[0].mxu0 %v60
  %v163 = vpop.f32.mrb[0].mxu0
  %v164 = vadd.f32 %v35, %v163
  %v165 = vpop.f32.mrb[0].mxu0
  %166 = vdwg.mxu0
  %167 = vst [vmem:[%s3] sm:$0xff] %v129
  %168 = vst [vmem:[%s3 + $0x8] sm:$0xff] %v134
  %169 = vst [vmem:[%s3 + $0x10] sm:$0xff] %v139
  %170 = vst [vmem:[%s3 + $0x18] sm:$0xff] %v144
  %171 = vst [vmem:[%s3 + $0x20] sm:$0xff] %v149
  %172 = vst [vmem:[%s3 + $0x28] sm:$0xff] %v154
  %173 = vst [vmem:[%s3 + $0x30] sm:$0xff] %v159
  %174 = vst [vmem:[%s3 + $0x38] sm:$0xff] %v164
  // Predicated region
  $region14: #{fi_en_translator_forward.23} parent=0 // pred_check
    _
  $region15: #{fi_en_translator_forward.23} parent=0 // pred_check_branch
    %176 = sbr.rel (0) target = $region17
  $region16: #{fi_en_translator_forward.23} parent=0 // pred_region
    _
  $region17: #{fi_en_translator_forward.23} parent=0 // pred_fallthru
    _
  // Predicated region
  $region18: #{fi_en_translator_forward.23} parent=0 // pred_check
    _
  $region19: #{fi_en_translator_forward.23} parent=0 // pred_check_branch
    %178 = sbr.rel (0) target = $region21
  $region20: #{fi_en_translator_forward.23} parent=0 // pred_region
    _
  $region21: #{fi_en_translator_forward.23} parent=0 // pred_fallthru
    _

// kernel: fi_en_translator_forward.17
$region0: #{fi_en_translator_forward.17}
  #allocation0 [shape = 'u32[]', space=smem, size = 0x4, offset = 0x4, fixed_abs, tag = 'smem constant byte address 0x4 - core index']
  #allocation1 [shape = 'u32[144,128]{1,0:T(1,128)}', space=vmem, size = 0x12000, scoped, tag = 'internal scratch']
  #allocation2 [shape = 'f32[8,32]{1,0:T(8,128)}', space=vmem, size = 0x1000, scoped, tag = 'scratch operand']
  #allocation3 [shape = 'f32[8,32]{1,0:T(8,128)}', space=vmem, size = 0x1000, scoped, tag = 'scratch operand']
  %s0 = inlined_call_operand.vmem [shape: f32[2,8,8,128], index: 0, kind: input, shape index: {}]
  %s1 = inlined_call_operand.vmem [shape: f32[2,32,128], index: 1, kind: input, shape index: {}]
  %s2 = inlined_call_operand.vmem [shape: f32[2,8,8,1], index: 2, kind: input, shape index: {}]
  %s3 = inlined_call_operand.vmem [shape: f32[2,8,8,32], index: 3, kind: output, shape index: {}]
  %s4 = sld [smem:[#allocation0]]
  $region45: #{fi_en_translator_forward.17} parent=0
    _
  %s6 = ssub.s32 1, %s4
  %s7 = scalar_select 0, %s6, %s4
  loop: start=0, step=1, limit=4
  $region2: #{fi_en_translator_forward.17} parent=0 // loop_pre_header
    _
  $region3: #{fi_en_translator_forward.17} parent=0 // loop_header
    %s9 = sphi 0, %s13
    %p10 = scmp.ge.s32.totalorder %s9, 4
    %s19 = sphi 0, %s21
    %s22 = sphi 0, %s19
    %s23 = sphi 0, %s22
    %s39 = sphi 0, %s23
    %s45 = sphi 0, %s47
    %s48 = sphi 0, %s45
    %s49 = sphi 0, %s48
    %s65 = sphi 0, %s49
    %s71 = sphi 0, %s73
    %s74 = sphi 0, %s71
    %s75 = sphi 0, %s74
    %s91 = sphi 0, %s75
    %s97 = sphi 0, %s99
    %s100 = sphi 0, %s97
    %s101 = sphi 0, %s100
    %s117 = sphi 0, %s101
  $region4: #{fi_en_translator_forward.17} parent=0 // loop_header_branch
    %12 = sbr.rel (%p10) target = $region8
  $region5: #{fi_en_translator_forward.17} parent=0 // loop_body
    %s14 = ssub.s32 %s9, 1
    %s15 = ssub.s32 %s9, 2
    %s16 = sadd.s32 %s9, 1
    %s17 = ssub.s32 %s9, %s16
    %p18 = scmp.eq.s32.totalorder %s17, 0
    %s20 = sadd.s32 %s19, 1
    %s21 = scalar_select %p18, %s19, %s20
    %p24 = pneg %p18
    %p25 = scmp.eq.s32.totalorder %s9, 1
    %p26 = por %p24, %p25
    %p27 = scmp.ne.s32.totalorder %s19, %s22
    %p28 = scmp.eq.s32.totalorder %s9, 0
    %p29 = por %p27, %p28
    %p30 = scmp.ne.s32.totalorder %s19, %s22
    %p31 = scmp.eq.s32.totalorder %s14, 1
    %p32 = por %p30, %p31
    %p33 = scmp.ne.s32.totalorder %s22, %s23
    %p34 = scmp.eq.s32.totalorder %s14, 0
    %p35 = por %p33, %p34
    %p36 = scmp.ne.s32.totalorder %s22, %s23
    %p37 = scmp.eq.s32.totalorder %s15, 1
    %p38 = por %p36, %p37
    %p40 = scmp.ne.s32.totalorder %s23, %s39
    %p41 = scmp.eq.s32.totalorder %s15, 0
    %p42 = por %p40, %p41
    %s43 = ssub.s32 %s9, %s16
    %p44 = scmp.eq.s32.totalorder %s43, 0
    %s46 = sadd.s32 %s45, 1
    %s47 = scalar_select %p44, %s45, %s46
    %p50 = pneg %p44
    %p51 = scmp.eq.s32.totalorder %s9, 1
    %p52 = por %p50, %p51
    %p53 = scmp.ne.s32.totalorder %s45, %s48
    %p54 = scmp.eq.s32.totalorder %s9, 0
    %p55 = por %p53, %p54
    %p56 = scmp.ne.s32.totalorder %s45, %s48
    %p57 = scmp.eq.s32.totalorder %s14, 1
    %p58 = por %p56, %p57
    %p59 = scmp.ne.s32.totalorder %s48, %s49
    %p60 = scmp.eq.s32.totalorder %s14, 0
    %p61 = por %p59, %p60
    %p62 = scmp.ne.s32.totalorder %s48, %s49
    %p63 = scmp.eq.s32.totalorder %s15, 1
    %p64 = por %p62, %p63
    %p66 = scmp.ne.s32.totalorder %s49, %s65
    %p67 = scmp.eq.s32.totalorder %s15, 0
    %p68 = por %p66, %p67
    %s69 = ssub.s32 %s9, %s16
    %p70 = scmp.eq.s32.totalorder %s69, 0
    %s72 = sadd.s32 %s71, 1
    %s73 = scalar_select %p70, %s71, %s72
    %p76 = pneg %p70
    %p77 = scmp.eq.s32.totalorder %s9, 1
    %p78 = por %p76, %p77
    %p79 = scmp.ne.s32.totalorder %s71, %s74
    %p80 = scmp.eq.s32.totalorder %s9, 0
    %p81 = por %p79, %p80
    %p82 = scmp.ne.s32.totalorder %s71, %s74
    %p83 = scmp.eq.s32.totalorder %s14, 1
    %p84 = por %p82, %p83
    %p85 = scmp.ne.s32.totalorder %s74, %s75
    %p86 = scmp.eq.s32.totalorder %s14, 0
    %p87 = por %p85, %p86
    %p88 = scmp.ne.s32.totalorder %s74, %s75
    %p89 = scmp.eq.s32.totalorder %s15, 1
    %p90 = por %p88, %p89
    %p92 = scmp.ne.s32.totalorder %s75, %s91
    %p93 = scmp.eq.s32.totalorder %s15, 0
    %p94 = por %p92, %p93
    %s95 = ssub.s32 %s9, %s16
    %p96 = scmp.eq.s32.totalorder %s95, 0
    %s98 = sadd.s32 %s97, 1
    %s99 = scalar_select %p96, %s97, %s98
    %p102 = pneg %p96
    %p103 = scmp.eq.s32.totalorder %s9, 1
    %p104 = por %p102, %p103
    %p105 = scmp.ne.s32.totalorder %s97, %s100
    %p106 = scmp.eq.s32.totalorder %s9, 0
    %p107 = por %p105, %p106
    %p108 = scmp.ne.s32.totalorder %s97, %s100
    %p109 = scmp.eq.s32.totalorder %s14, 1
    %p110 = por %p108, %p109
    %p111 = scmp.ne.s32.totalorder %s100, %s101
    %p112 = scmp.eq.s32.totalorder %s14, 0
    %p113 = por %p111, %p112
    %p114 = scmp.ne.s32.totalorder %s100, %s101
    %p115 = scmp.eq.s32.totalorder %s15, 1
    %p116 = por %p114, %p115
    %p118 = scmp.ne.s32.totalorder %s101, %s117
    %p119 = scmp.eq.s32.totalorder %s15, 0
    %p120 = por %p118, %p119
    %p121 = scmp.le.s32.totalorder 1, %s9
    %p122 = scmp.lt.s32.totalorder %s9, 3
    %p123 = pnand %p121, %p122
    %p124 = pneg %p123
    // Predicated region
    $region9: #{fi_en_translator_forward.17} parent=5 // pred_check
      _
    $region10: #{fi_en_translator_forward.17} parent=5 // pred_check_branch
      %126 = sbr.rel (%p123) target = $region12
    $region11: #{fi_en_translator_forward.17} parent=5 // pred_region
      %s127 = ssub.s32 %s9, 1
    $region12: #{fi_en_translator_forward.17} parent=5 // pred_fallthru
      _
    %p128 = scmp.lt.s32.totalorder %s9, 2
    // Predicated region
    $region13: #{fi_en_translator_forward.17} parent=5 // pred_check
      %p129 = pneg %p128
    $region14: #{fi_en_translator_forward.17} parent=5 // pred_check_branch
      %131 = sbr.rel (%p129) target = $region16
    $region15: #{fi_en_translator_forward.17} parent=5 // pred_region
      // Predicated region
      $region17: #{fi_en_translator_forward.17} parent=15 // pred_check
        %p132 = pneg %p29
      $region18: #{fi_en_translator_forward.17} parent=15 // pred_check_branch
        %134 = sbr.rel (%p132) target = $region20
      $region19: #{fi_en_translator_forward.17} parent=15 // pred_region
        %p135 = scmp.lt.s32.totalorder %s9, 1
        %s136 = scalar_select %p135, %s9, 1
        %s137 = smul.addr %s136, 8
        %s138 = smul.addr %s137, 8
        %s139 = scalar_lea.vmem %s0, %s138
      $region20: #{fi_en_translator_forward.17} parent=15 // pred_fallthru
        _
      // Predicated region
      $region21: #{fi_en_translator_forward.17} parent=15 // pred_check
        %p140 = pneg %p55
      $region22: #{fi_en_translator_forward.17} parent=15 // pred_check_branch
        %142 = sbr.rel (%p140) target = $region24
      $region23: #{fi_en_translator_forward.17} parent=15 // pred_region
        %p143 = scmp.lt.s32.totalorder %s9, 1
        %s144 = scalar_select %p143, %s9, 1
        %s145 = smul.addr %s144, 4
        %s146 = smul.addr %s145, 8
        %s147 = scalar_lea.vmem %s1, %s146
      $region24: #{fi_en_translator_forward.17} parent=15 // pred_fallthru
        _
      // Predicated region
      $region25: #{fi_en_translator_forward.17} parent=15 // pred_check
        %p148 = pneg %p81
      $region26: #{fi_en_translator_forward.17} parent=15 // pred_check_branch
        %150 = sbr.rel (%p148) target = $region28
      $region27: #{fi_en_translator_forward.17} parent=15 // pred_region
        %p151 = scmp.lt.s32.totalorder %s9, 1
        %s152 = scalar_select %p151, %s9, 1
        %s153 = smul.addr %s152, 8
        %s154 = smul.addr %s153, 8
        %s155 = scalar_lea.vmem %s2, %s154
      $region28: #{fi_en_translator_forward.17} parent=15 // pred_fallthru
        _
    $region16: #{fi_en_translator_forward.17} parent=5 // pred_fallthru
      _
    %p156 = scmp.le.s32.totalorder 1, %s9
    %p157 = scmp.lt.s32.totalorder %s9, 3
    %p158 = pnand %p156, %p157
    %p159 = pneg %p158
    // Predicated region
    $region29: #{fi_en_translator_forward.17} parent=5 // pred_check
      _
    $region30: #{fi_en_translator_forward.17} parent=5 // pred_check_branch
      %161 = sbr.rel (%p158) target = $region32
    $region31: #{fi_en_translator_forward.17} parent=5 // pred_region
      %s162 = ssub.s32 %s9, 1
      %p163 = scmp.lt.s32.totalorder %s14, 1
      %s164 = scalar_select %p163, %s14, 1
      %s165 = smul.addr %s164, 8
      %s166 = smul.addr %s165, 8
      %s167 = scalar_lea.vmem %s0, %s166
      %p168 = pneg %p35
      %p169 = pneg %p32
      %p170 = scmp.lt.s32.totalorder %s14, 1
      %s171 = scalar_select %p170, %s14, 1
      %s172 = smul.addr %s171, 4
      %s173 = smul.addr %s172, 8
      %s174 = scalar_lea.vmem %s1, %s173
      %p175 = pneg %p61
      %p176 = pneg %p58
      %p177 = scmp.lt.s32.totalorder %s14, 1
      %s178 = scalar_select %p177, %s14, 1
      %s179 = smul.addr %s178, 8
      %s180 = smul.addr %s179, 8
      %s181 = scalar_lea.vmem %s2, %s180
      %p182 = pneg %p87
      %p183 = pneg %p84
      %p184 = pneg %p113
      %p185 = pneg %p110
      %p186 = scmp.lt.s32.totalorder %s14, 1
      %s187 = scalar_select %p186, %s14, 1
      %s188 = smul.addr %s187, 8
      %s189 = smul.addr %s188, 8
      %s190 = scalar_lea.vmem %s3, %s189
      %p191 = scmp.lt.s32.totalorder %s14, 1
      %s192 = scalar_select %p191, %s14, 1
      %s193 = smul.addr %s192, 8
      %s194 = smul.addr %s193, 8
      %s195 = scalar_lea.vmem %s0, %s194
      %p196 = scmp.lt.s32.totalorder %s14, 1
      %s197 = scalar_select %p196, %s14, 1
      %s198 = smul.addr %s197, 4
      %s199 = smul.addr %s198, 8
      %s200 = scalar_lea.vmem %s1, %s199
      %p201 = scmp.lt.s32.totalorder %s14, 1
      %s202 = scalar_select %p201, %s14, 1
      %s203 = smul.addr %s202, 8
      %s204 = smul.addr %s203, 8
      %s205 = scalar_lea.vmem %s2, %s204
      %p206 = scmp.lt.s32.totalorder %s14, 1
      %s207 = scalar_select %p206, %s14, 1
      %s208 = smul.addr %s207, 8
      %s209 = smul.addr %s208, 8
      %s210 = scalar_lea.vmem %s3, %s209
      %vm211 = vcmask 261120
      %212 = vst.msk [vmem:[#allocation2] sm:$0xff] %vm211, 0.0
      %213 = vst.msk [vmem:[#allocation3] sm:$0xff] %vm211, 0.0
      %v214 = vld [vmem:[%s200] sm:$0xff]
      %v215 = vld [vmem:[%s200 + $0x8] sm:$0xff]
      %v216 = vld [vmem:[%s200 + $0x10] sm:$0xff]
      %v217 = vld [vmem:[%s200 + $0x18] sm:$0xff]
      %v218 = vld [vmem:[#allocation2] sm:$0xff]
      %v219 = vld [vmem:[#allocation3] sm:$0xff]
      %v220 = vld [vmem:[%s195] sm:$0xff]
      %v222 = vsel %vm211, %v218, 0
      %224 = vmatprep.subr.mxu0 0.0
      %225 = vmatpush1.msra.mxu0 %v214
      %226 = vmatprep.subr.mxu0 0.0
      %227 = vmatpush1.msra.mxu0 %v215
      %228 = vmatprep.subr.mxu0 0.0
      %229 = vmatpush1.msra.mxu0 %v216
      %230 = vmatprep.subr.mxu0 0.0
      %231 = vmatpush1.msra.mxu0 %v217
      %232 = vmatprep.subr.mxu0 0.0
      %233 = vmatpush1.msra.mxu0 0.0
      %234 = vmatprep.subr.mxu0 0.0
      %235 = vmatpush1.msra.mxu0 0.0
      %236 = vmatprep.subr.mxu0 0.0
      %237 = vmatpush1.msra.mxu0 0.0
      %238 = vmatprep.subr.mxu0 0.0
      %239 = vmatpush1.msra.mxu0 0.0
      %240 = vmatprep.subr.mxu0 0.0
      %241 = vmatpush1.msra.mxu0 0.0
      %242 = vmatprep.subr.mxu0 0.0
      %243 = vmatpush1.msra.mxu0 0.0
      %244 = vmatprep.subr.mxu0 0.0
      %245 = vmatpush1.msra.mxu0 0.0
      %246 = vmatprep.subr.mxu0 0.0
      %247 = vmatpush1.msra.mxu0 0.0
      %248 = vmatprep.subr.mxu0 0.0
      %249 = vmatpush1.msra.mxu0 0.0
      %250 = vmatprep.subr.mxu0 0.0
      %251 = vmatpush1.msra.mxu0 0.0
      %252 = vmatprep.subr.mxu0 0.0
      %253 = vmatpush1.msra.mxu0 0.0
      %254 = vmatprep.subr.mxu0 0.0
      %255 = vmatpush1.msra.mxu0 0.0
      %256 = vmatprep.subr.mxu0 0.0
      %257 = vmatpush1.msra.mxu0 0.0
      %258 = vmatprep.subr.mxu0 0.0
      %259 = vmatpush1.msra.mxu0 0.0
      %260 = vmatprep.subr.mxu0 0.0
      %261 = vmatpush1.msra.mxu0 0.0
      %262 = vmatprep.subr.mxu0 0.0
      %263 = vmatpush1.msra.mxu0 0.0
      %264 = vmatprep.subr.mxu0 0.0
      %265 = vmatpush1.msra.mxu0 0.0
      %266 = vmatprep.subr.mxu0 0.0
      %267 = vmatpush1.msra.mxu0 0.0
      %268 = vmatprep.subr.mxu0 0.0
      %269 = vmatpush1.msra.mxu0 0.0
      %270 = vmatprep.subr.mxu0 0.0
      %271 = vmatpush1.msra.mxu0 0.0
      %272 = vmatprep.subr.mxu0 0.0
      %273 = vmatpush1.msra.mxu0 0.0
      %274 = vmatprep.subr.mxu0 0.0
      %275 = vmatpush1.msra.mxu0 0.0
      %276 = vmatprep.subr.mxu0 0.0
      %277 = vmatpush1.msra.mxu0 0.0
      %278 = vmatprep.subr.mxu0 0.0
      %279 = vmatpush1.msra.mxu0 0.0
      %280 = vmatprep.subr.mxu0 0.0
      %281 = vmatpush1.msra.mxu0 0.0
      %282 = vmatprep.subr.mxu0 0.0
      %283 = vmatpush1.msra.mxu0 0.0
      %284 = vmatprep.subr.mxu0 0.0
      %285 = vmatpush1.msra.mxu0 0.0
      %286 = vmatprep.subr.mxu0 0.0
      %287 = vmatpush1.msra.mxu0 0.0
      %288 = vmatprep.mubr.f32.mxu0 0.0
      %289 = vmatmul.mubr.f32.gmra.mrb[0].mxu0 %v222
      %v290 = vpop.f32.mrb[0].mxu0
      %v291 = vadd.f32 0.0, %v290
      %v292 = vpop.f32.mrb[0].mxu0
      %293 = vdwg.mxu0
      %v294 = vadd.f32 %v220, %v291
      %v295 = vxor.u32 %v294, 2147483648
      %v296 = vmul.f32 %v295, 1.442695
      %v297 = vpow.pop %v296
      %v298 = vadd.f32 %v297, 1.0
      %v299 = vrcp.pop %v298
      %v300 = vmul.f32 1.0, %v299
      %v301 = vtanh.pop %v294
      %303 = vrot.lane.b32.xlu0 %v219, 32
      %v304 = vpop.permute.xlu0 %303
      %v306 = vmul.f32 %v300, %v304
      %308 = vrot.lane.b32.xlu0 %v301, 64
      %v309 = vpop.permute.xlu0 %308
      %v311 = vmul.f32 %v300, %v309
      %313 = vrot.lane.b32.xlu0 %v311, 32
      %v314 = vpop.permute.xlu0 %313
      %v316 = vadd.f32 %v306, %v314
      %v317 = vtanh.pop %v316
      %319 = vrot.lane.b32.xlu0 %v317, 64
      %v320 = vpop.permute.xlu0 %319
      %v322 = vmul.f32 %v300, %v320
      %v323 = vld [vmem:[%s205] sm:$0xff]
      %325 = vset.pattern.permute.xlu0 0
      %326 = vperm.xlu0 %325, %v323
      %v327 = vpop.permute.xlu0 %326
      %v329 = vmul.f32 %v327, %v322
      %v330 = vsub.f32 1.0, %v323
      %332 = vset.pattern.permute.xlu0 0
      %333 = vperm.xlu0 %332, %v330
      %v334 = vpop.permute.xlu0 %333
      %v336 = vmul.f32 %v334, %v218
      %338 = vrot.lane.b32.xlu0 %v336, 96
      %v339 = vpop.permute.xlu0 %338
      %v341 = vadd.f32 %v329, %v339
      %343 = vrot.lane.b32.xlu0 %v341, 32
      %v344 = vpop.permute.xlu0 %343
      %346 = vst.msk [vmem:[#allocation2] sm:$0xff] %vm211, %v344
      %v347 = vmul.f32 %v327, %v316
      %v348 = vmul.f32 %v334, %v219
      %350 = vrot.lane.b32.xlu0 %v348, 32
      %v351 = vpop.permute.xlu0 %350
      %v353 = vadd.f32 %v347, %v351
      %355 = vrot.lane.b32.xlu0 %v353, 96
      %v356 = vpop.permute.xlu0 %355
      %358 = vst.msk [vmem:[#allocation3] sm:$0xff] %vm211, %v356
      %v359 = vmul.f32 %v330, 0.0
      %361 = vset.pattern.permute.xlu0 0
      %362 = vperm.xlu0 %361, %v359
      %v363 = vpop.permute.xlu0 %362
      %v365 = vadd.f32 %v329, %v363
      %367 = vrot.lane.b32.xlu0 %v365, 32
      %v368 = vpop.permute.xlu0 %367
      %370 = vst.msk [vmem:[%s210] sm:$0xff] %vm211, %v368
      %v371 = vld [vmem:[#allocation2] sm:$0xff]
      %v372 = vld [vmem:[#allocation3] sm:$0xff]
      %s373 = scalar_lea.vmem %s195, 8
      %v374 = vld [vmem:[%s373] sm:$0xff]
      %v376 = vsel %vm211, %v371, 0
      %378 = vmatprep.subr.mxu0 0.0
      %379 = vmatpush1.msra.mxu0 %v214
      %380 = vmatprep.subr.mxu0 0.0
      %381 = vmatpush1.msra.mxu0 %v215
      %382 = vmatprep.subr.mxu0 0.0
      %383 = vmatpush1.msra.mxu0 %v216
      %384 = vmatprep.subr.mxu0 0.0
      %385 = vmatpush1.msra.mxu0 %v217
      %386 = vmatprep.subr.mxu0 0.0
      %387 = vmatpush1.msra.mxu0 0.0
      %388 = vmatprep.subr.mxu0 0.0
      %389 = vmatpush1.msra.mxu0 0.0
      %390 = vmatprep.subr.mxu0 0.0
      %391 = vmatpush1.msra.mxu0 0.0
      %392 = vmatprep.subr.mxu0 0.0
      %393 = vmatpush1.msra.mxu0 0.0
      %394 = vmatprep.subr.mxu0 0.0
      %395 = vmatpush1.msra.mxu0 0.0
      %396 = vmatprep.subr.mxu0 0.0
      %397 = vmatpush1.msra.mxu0 0.0
      %398 = vmatprep.subr.mxu0 0.0
      %399 = vmatpush1.msra.mxu0 0.0
      %400 = vmatprep.subr.mxu0 0.0
      %401 = vmatpush1.msra.mxu0 0.0
      %402 = vmatprep.subr.mxu0 0.0
      %403 = vmatpush1.msra.mxu0 0.0
      %404 = vmatprep.subr.mxu0 0.0
      %405 = vmatpush1.msra.mxu0 0.0
      %406 = vmatprep.subr.mxu0 0.0
      %407 = vmatpush1.msra.mxu0 0.0
      %408 = vmatprep.subr.mxu0 0.0
      %409 = vmatpush1.msra.mxu0 0.0
      %410 = vmatprep.subr.mxu0 0.0
      %411 = vmatpush1.msra.mxu0 0.0
      %412 = vmatprep.subr.mxu0 0.0
      %413 = vmatpush1.msra.mxu0 0.0
      %414 = vmatprep.subr.mxu0 0.0
      %415 = vmatpush1.msra.mxu0 0.0
      %416 = vmatprep.subr.mxu0 0.0
      %417 = vmatpush1.msra.mxu0 0.0
      %418 = vmatprep.subr.mxu0 0.0
      %419 = vmatpush1.msra.mxu0 0.0
      %420 = vmatprep.subr.mxu0 0.0
      %421 = vmatpush1.msra.mxu0 0.0
      %422 = vmatprep.subr.mxu0 0.0
      %423 = vmatpush1.msra.mxu0 0.0
      %424 = vmatprep.subr.mxu0 0.0
      %425 = vmatpush1.msra.mxu0 0.0
      %426 = vmatprep.subr.mxu0 0.0
      %427 = vmatpush1.msra.mxu0 0.0
      %428 = vmatprep.subr.mxu0 0.0
      %429 = vmatpush1.msra.mxu0 0.0
      %430 = vmatprep.subr.mxu0 0.0
      %431 = vmatpush1.msra.mxu0 0.0
      %432 = vmatprep.subr.mxu0 0.0
      %433 = vmatpush1.msra.mxu0 0.0
      %434 = vmatprep.subr.mxu0 0.0
      %435 = vmatpush1.msra.mxu0 0.0
      %436 = vmatprep.subr.mxu0 0.0
      %437 = vmatpush1.msra.mxu0 0.0
      %438 = vmatprep.subr.mxu0 0.0
      %439 = vmatpush1.msra.mxu0 0.0
      %440 = vmatprep.subr.mxu0 0.0
      %441 = vmatpush1.msra.mxu0 0.0
      %442 = vmatprep.mubr.f32.mxu0 0.0
      %443 = vmatmul.mubr.f32.gmra.mrb[0].mxu0 %v376
      %v444 = vpop.f32.mrb[0].mxu0
      %v445 = vadd.f32 0.0, %v444
      %v446 = vpop.f32.mrb[0].mxu0
      %447 = vdwg.mxu0
      %v448 = vadd.f32 %v374, %v445
      %v449 = vxor.u32 %v448, 2147483648
      %v450 = vmul.f32 %v449, 1.442695
      %v451 = vpow.pop %v450
      %v452 = vadd.f32 %v451, 1.0
      %v453 = vrcp.pop %v452
      %v454 = vmul.f32 1.0, %v453
      %v455 = vtanh.pop %v448
      %457 = vrot.lane.b32.xlu0 %v372, 32
      %v458 = vpop.permute.xlu0 %457
      %v460 = vmul.f32 %v454, %v458
      %462 = vrot.lane.b32.xlu0 %v455, 64
      %v463 = vpop.permute.xlu0 %462
      %v465 = vmul.f32 %v454, %v463
      %467 = vrot.lane.b32.xlu0 %v465, 32
      %v468 = vpop.permute.xlu0 %467
      %v470 = vadd.f32 %v460, %v468
      %v471 = vtanh.pop %v470
      %473 = vrot.lane.b32.xlu0 %v471, 64
      %v474 = vpop.permute.xlu0 %473
      %v476 = vmul.f32 %v454, %v474
      %s477 = scalar_lea.vmem %s205, 8
      %v478 = vld [vmem:[%s477] sm:$0xff]
      %480 = vset.pattern.permute.xlu0 0
      %481 = vperm.xlu0 %480, %v478
      %v482 = vpop.permute.xlu0 %481
      %v484 = vmul.f32 %v482, %v476
      %v485 = vsub.f32 1.0, %v478
      %487 = vset.pattern.permute.xlu0 0
      %488 = vperm.xlu0 %487, %v485
      %v489 = vpop.permute.xlu0 %488
      %v491 = vmul.f32 %v489, %v371
      %493 = vrot.lane.b32.xlu0 %v491, 96
      %v494 = vpop.permute.xlu0 %493
      %v496 = vadd.f32 %v484, %v494
      %498 = vrot.lane.b32.xlu0 %v496, 32
      %v499 = vpop.permute.xlu0 %498
      %501 = vst.msk [vmem:[#allocation2] sm:$0xff] %vm211, %v499
      %v502 = vmul.f32 %v482, %v470
      %v503 = vmul.f32 %v489, %v372
      %505 = vrot.lane.b32.xlu0 %v503, 32
      %v506 = vpop.permute.xlu0 %505
      %v508 = vadd.f32 %v502, %v506
      %510 = vrot.lane.b32.xlu0 %v508, 96
      %v511 = vpop.permute.xlu0 %510
      %513 = vst.msk [vmem:[#allocation3] sm:$0xff] %vm211, %v511
      %v514 = vmul.f32 %v485, 0.0
      %516 = vset.pattern.permute.xlu0 0
      %517 = vperm.xlu0 %516, %v514
      %v518 = vpop.permute.xlu0 %517
      %v520 = vadd.f32 %v484, %v518
      %522 = vrot.lane.b32.xlu0 %v520, 32
      %v523 = vpop.permute.xlu0 %522
      %s525 = scalar_lea.vmem %s210, 8
      %526 = vst.msk [vmem:[%s525] sm:$0xff] %vm211, %v523
      %v527 = vld [vmem:[#allocation2] sm:$0xff]
      %v528 = vld [vmem:[#allocation3] sm:$0xff]
      %s529 = scalar_lea.vmem %s195, 16
      %v530 = vld [vmem:[%s529] sm:$0xff]
      %v532 = vsel %vm211, %v527, 0
      %534 = vmatprep.subr.mxu0 0.0
      %535 = vmatpush1.msra.mxu0 %v214
      %536 = vmatprep.subr.mxu0 0.0
      %537 = vmatpush1.msra.mxu0 %v215
      %538 = vmatprep.subr.mxu0 0.0
      %539 = vmatpush1.msra.mxu0 %v216
      %540 = vmatprep.subr.mxu0 0.0
      %541 = vmatpush1.msra.mxu0 %v217
      %542 = vmatprep.subr.mxu0 0.0
      %543 = vmatpush1.msra.mxu0 0.0
      %544 = vmatprep.subr.mxu0 0.0
      %545 = vmatpush1.msra.mxu0 0.0
      %546 = vmatprep.subr.mxu0 0.0
      %547 = vmatpush1.msra.mxu0 0.0
      %548 = vmatprep.subr.mxu0 0.0
      %549 = vmatpush1.msra.mxu0 0.0
      %550 = vmatprep.subr.mxu0 0.0
      %551 = vmatpush1.msra.mxu0 0.0
      %552 = vmatprep.subr.mxu0 0.0
      %553 = vmatpush1.msra.mxu0 0.0
      %554 = vmatprep.subr.mxu0 0.0
      %555 = vmatpush1.msra.mxu0 0.0
      %556 = vmatprep.subr.mxu0 0.0
      %557 = vmatpush1.msra.mxu0 0.0
      %558 = vmatprep.subr.mxu0 0.0
      %559 = vmatpush1.msra.mxu0 0.0
      %560 = vmatprep.subr.mxu0 0.0
      %561 = vmatpush1.msra.mxu0 0.0
      %562 = vmatprep.subr.mxu0 0.0
      %563 = vmatpush1.msra.mxu0 0.0
      %564 = vmatprep.subr.mxu0 0.0
      %565 = vmatpush1.msra.mxu0 0.0
      %566 = vmatprep.subr.mxu0 0.0
      %567 = vmatpush1.msra.mxu0 0.0
      %568 = vmatprep.subr.mxu0 0.0
      %569 = vmatpush1.msra.mxu0 0.0
      %570 = vmatprep.subr.mxu0 0.0
      %571 = vmatpush1.msra.mxu0 0.0
      %572 = vmatprep.subr.mxu0 0.0
      %573 = vmatpush1.msra.mxu0 0.0
      %574 = vmatprep.subr.mxu0 0.0
      %575 = vmatpush1.msra.mxu0 0.0
      %576 = vmatprep.subr.mxu0 0.0
      %577 = vmatpush1.msra.mxu0 0.0
      %578 = vmatprep.subr.mxu0 0.0
      %579 = vmatpush1.msra.mxu0 0.0
      %580 = vmatprep.subr.mxu0 0.0
      %581 = vmatpush1.msra.mxu0 0.0
      %582 = vmatprep.subr.mxu0 0.0
      %583 = vmatpush1.msra.mxu0 0.0
      %584 = vmatprep.subr.mxu0 0.0
      %585 = vmatpush1.msra.mxu0 0.0
      %586 = vmatprep.subr.mxu0 0.0
      %587 = vmatpush1.msra.mxu0 0.0
      %588 = vmatprep.subr.mxu0 0.0
      %589 = vmatpush1.msra.mxu0 0.0
      %590 = vmatprep.subr.mxu0 0.0
      %591 = vmatpush1.msra.mxu0 0.0
      %592 = vmatprep.subr.mxu0 0.0
      %593 = vmatpush1.msra.mxu0 0.0
      %594 = vmatprep.subr.mxu0 0.0
      %595 = vmatpush1.msra.mxu0 0.0
      %596 = vmatprep.subr.mxu0 0.0
      %597 = vmatpush1.msra.mxu0 0.0
      %598 = vmatprep.mubr.f32.mxu0 0.0
      %599 = vmatmul.mubr.f32.gmra.mrb[0].mxu0 %v532
      %v600 = vpop.f32.mrb[0].mxu0
      %v601 = vadd.f32 0.0, %v600
      %v602 = vpop.f32.mrb[0].mxu0
      %603 = vdwg.mxu0
      %v604 = vadd.f32 %v530, %v601
      %v605 = vxor.u32 %v604, 2147483648
      %v606 = vmul.f32 %v605, 1.442695
      %v607 = vpow.pop %v606
      %v608 = vadd.f32 %v607, 1.0
      %v609 = vrcp.pop %v608
      %v610 = vmul.f32 1.0, %v609
      %v611 = vtanh.pop %v604
      %613 = vrot.lane.b32.xlu0 %v528, 32
      %v614 = vpop.permute.xlu0 %613
      %v616 = vmul.f32 %v610, %v614
      %618 = vrot.lane.b32.xlu0 %v611, 64
      %v619 = vpop.permute.xlu0 %618
      %v621 = vmul.f32 %v610, %v619
      %623 = vrot.lane.b32.xlu0 %v621, 32
      %v624 = vpop.permute.xlu0 %623
      %v626 = vadd.f32 %v616, %v624
      %v627 = vtanh.pop %v626
      %629 = vrot.lane.b32.xlu0 %v627, 64
      %v630 = vpop.permute.xlu0 %629
      %v632 = vmul.f32 %v610, %v630
      %s633 = scalar_lea.vmem %s205, 16
      %v634 = vld [vmem:[%s633] sm:$0xff]
      %636 = vset.pattern.permute.xlu0 0
      %637 = vperm.xlu0 %636, %v634
      %v638 = vpop.permute.xlu0 %637
      %v640 = vmul.f32 %v638, %v632
      %v641 = vsub.f32 1.0, %v634
      %643 = vset.pattern.permute.xlu0 0
      %644 = vperm.xlu0 %643, %v641
      %v645 = vpop.permute.xlu0 %644
      %v647 = vmul.f32 %v645, %v527
      %649 = vrot.lane.b32.xlu0 %v647, 96
      %v650 = vpop.permute.xlu0 %649
      %v652 = vadd.f32 %v640, %v650
      %654 = vrot.lane.b32.xlu0 %v652, 32
      %v655 = vpop.permute.xlu0 %654
      %657 = vst.msk [vmem:[#allocation2] sm:$0xff] %vm211, %v655
      %v658 = vmul.f32 %v638, %v626
      %v659 = vmul.f32 %v645, %v528
      %661 = vrot.lane.b32.xlu0 %v659, 32
      %v662 = vpop.permute.xlu0 %661
      %v664 = vadd.f32 %v658, %v662
      %666 = vrot.lane.b32.xlu0 %v664, 96
      %v667 = vpop.permute.xlu0 %666
      %669 = vst.msk [vmem:[#allocation3] sm:$0xff] %vm211, %v667
      %v670 = vmul.f32 %v641, 0.0
      %672 = vset.pattern.permute.xlu0 0
      %673 = vperm.xlu0 %672, %v670
      %v674 = vpop.permute.xlu0 %673
      %v676 = vadd.f32 %v640, %v674
      %678 = vrot.lane.b32.xlu0 %v676, 32
      %v679 = vpop.permute.xlu0 %678
      %s681 = scalar_lea.vmem %s210, 16
      %682 = vst.msk [vmem:[%s681] sm:$0xff] %vm211, %v679
      %v683 = vld [vmem:[#allocation2] sm:$0xff]
      %v684 = vld [vmem:[#allocation3] sm:$0xff]
      %s685 = scalar_lea.vmem %s195, 24
      %v686 = vld [vmem:[%s685] sm:$0xff]
      %v688 = vsel %vm211, %v683, 0
      %690 = vmatprep.subr.mxu0 0.0
      %691 = vmatpush1.msra.mxu0 %v214
      %692 = vmatprep.subr.mxu0 0.0
      %693 = vmatpush1.msra.mxu0 %v215
      %694 = vmatprep.subr.mxu0 0.0
      %695 = vmatpush1.msra.mxu0 %v216
      %696 = vmatprep.subr.mxu0 0.0
      %697 = vmatpush1.msra.mxu0 %v217
      %698 = vmatprep.subr.mxu0 0.0
      %699 = vmatpush1.msra.mxu0 0.0
      %700 = vmatprep.subr.mxu0 0.0
      %701 = vmatpush1.msra.mxu0 0.0
      %702 = vmatprep.subr.mxu0 0.0
      %703 = vmatpush1.msra.mxu0 0.0
      %704 = vmatprep.subr.mxu0 0.0
      %705 = vmatpush1.msra.mxu0 0.0
      %706 = vmatprep.subr.mxu0 0.0
      %707 = vmatpush1.msra.mxu0 0.0
      %708 = vmatprep.subr.mxu0 0.0
      %709 = vmatpush1.msra.mxu0 0.0
      %710 = vmatprep.subr.mxu0 0.0
      %711 = vmatpush1.msra.mxu0 0.0
      %712 = vmatprep.subr.mxu0 0.0
      %713 = vmatpush1.msra.mxu0 0.0
      %714 = vmatprep.subr.mxu0 0.0
      %715 = vmatpush1.msra.mxu0 0.0
      %716 = vmatprep.subr.mxu0 0.0
      %717 = vmatpush1.msra.mxu0 0.0
      %718 = vmatprep.subr.mxu0 0.0
      %719 = vmatpush1.msra.mxu0 0.0
      %720 = vmatprep.subr.mxu0 0.0
      %721 = vmatpush1.msra.mxu0 0.0
      %722 = vmatprep.subr.mxu0 0.0
      %723 = vmatpush1.msra.mxu0 0.0
      %724 = vmatprep.subr.mxu0 0.0
      %725 = vmatpush1.msra.mxu0 0.0
      %726 = vmatprep.subr.mxu0 0.0
      %727 = vmatpush1.msra.mxu0 0.0
      %728 = vmatprep.subr.mxu0 0.0
      %729 = vmatpush1.msra.mxu0 0.0
      %730 = vmatprep.subr.mxu0 0.0
      %731 = vmatpush1.msra.mxu0 0.0
      %732 = vmatprep.subr.mxu0 0.0
      %733 = vmatpush1.msra.mxu0 0.0
      %734 = vmatprep.subr.mxu0 0.0
      %735 = vmatpush1.msra.mxu0 0.0
      %736 = vmatprep.subr.mxu0 0.0
      %737 = vmatpush1.msra.mxu0 0.0
      %738 = vmatprep.subr.mxu0 0.0
      %739 = vmatpush1.msra.mxu0 0.0
      %740 = vmatprep.subr.mxu0 0.0
      %741 = vmatpush1.msra.mxu0 0.0
      %742 = vmatprep.subr.mxu0 0.0
      %743 = vmatpush1.msra.mxu0 0.0
      %744 = vmatprep.subr.mxu0 0.0
      %745 = vmatpush1.msra.mxu0 0.0
      %746 = vmatprep.subr.mxu0 0.0
      %747 = vmatpush1.msra.mxu0 0.0
      %748 = vmatprep.subr.mxu0 0.0
      %749 = vmatpush1.msra.mxu0 0.0
      %750 = vmatprep.subr.mxu0 0.0
      %751 = vmatpush1.msra.mxu0 0.0
      %752 = vmatprep.subr.mxu0 0.0
      %753 = vmatpush1.msra.mxu0 0.0
      %754 = vmatprep.mubr.f32.mxu0 0.0
      %755 = vmatmul.mubr.f32.gmra.mrb[0].mxu0 %v688
      %v756 = vpop.f32.mrb[0].mxu0
      %v757 = vadd.f32 0.0, %v756
      %v758 = vpop.f32.mrb[0].mxu0
      %759 = vdwg.mxu0
      %v760 = vadd.f32 %v686, %v757
      %v761 = vxor.u32 %v760, 2147483648
      %v762 = vmul.f32 %v761, 1.442695
      %v763 = vpow.pop %v762
      %v764 = vadd.f32 %v763, 1.0
      %v765 = vrcp.pop %v764
      %v766 = vmul.f32 1.0, %v765
      %v767 = vtanh.pop %v760
      %769 = vrot.lane.b32.xlu0 %v684, 32
      %v770 = vpop.permute.xlu0 %769
      %v772 = vmul.f32 %v766, %v770
      %774 = vrot.lane.b32.xlu0 %v767, 64
      %v775 = vpop.permute.xlu0 %774
      %v777 = vmul.f32 %v766, %v775
      %779 = vrot.lane.b32.xlu0 %v777, 32
      %v780 = vpop.permute.xlu0 %779
      %v782 = vadd.f32 %v772, %v780
      %v783 = vtanh.pop %v782
      %785 = vrot.lane.b32.xlu0 %v783, 64
      %v786 = vpop.permute.xlu0 %785
      %v788 = vmul.f32 %v766, %v786
      %s789 = scalar_lea.vmem %s205, 24
      %v790 = vld [vmem:[%s789] sm:$0xff]
      %792 = vset.pattern.permute.xlu0 0
      %793 = vperm.xlu0 %792, %v790
      %v794 = vpop.permute.xlu0 %793
      %v796 = vmul.f32 %v794, %v788
      %v797 = vsub.f32 1.0, %v790
      %799 = vset.pattern.permute.xlu0 0
      %800 = vperm.xlu0 %799, %v797
      %v801 = vpop.permute.xlu0 %800
      %v803 = vmul.f32 %v801, %v683
      %805 = vrot.lane.b32.xlu0 %v803, 96
      %v806 = vpop.permute.xlu0 %805
      %v808 = vadd.f32 %v796, %v806
      %810 = vrot.lane.b32.xlu0 %v808, 32
      %v811 = vpop.permute.xlu0 %810
      %813 = vst.msk [vmem:[#allocation2] sm:$0xff] %vm211, %v811
      %v814 = vmul.f32 %v794, %v782
      %v815 = vmul.f32 %v801, %v684
      %817 = vrot.lane.b32.xlu0 %v815, 32
      %v818 = vpop.permute.xlu0 %817
      %v820 = vadd.f32 %v814, %v818
      %822 = vrot.lane.b32.xlu0 %v820, 96
      %v823 = vpop.permute.xlu0 %822
      %825 = vst.msk [vmem:[#allocation3] sm:$0xff] %vm211, %v823
      %v826 = vmul.f32 %v797, 0.0
      %828 = vset.pattern.permute.xlu0 0
      %829 = vperm.xlu0 %828, %v826
      %v830 = vpop.permute.xlu0 %829
      %v832 = vadd.f32 %v796, %v830
      %834 = vrot.lane.b32.xlu0 %v832, 32
      %v835 = vpop.permute.xlu0 %834
      %s837 = scalar_lea.vmem %s210, 24
      %838 = vst.msk [vmem:[%s837] sm:$0xff] %vm211, %v835
      %v839 = vld [vmem:[#allocation2] sm:$0xff]
      %v840 = vld [vmem:[#allocation3] sm:$0xff]
      %s841 = scalar_lea.vmem %s195, 32
      %v842 = vld [vmem:[%s841] sm:$0xff]
      %v844 = vsel %vm211, %v839, 0
      %846 = vmatprep.subr.mxu0 0.0
      %847 = vmatpush1.msra.mxu0 %v214
      %848 = vmatprep.subr.mxu0 0.0
      %849 = vmatpush1.msra.mxu0 %v215
      %850 = vmatprep.subr.mxu0 0.0
      %851 = vmatpush1.msra.mxu0 %v216
      %852 = vmatprep.subr.mxu0 0.0
      %853 = vmatpush1.msra.mxu0 %v217
      %854 = vmatprep.subr.mxu0 0.0
      %855 = vmatpush1.msra.mxu0 0.0
      %856 = vmatprep.subr.mxu0 0.0
      %857 = vmatpush1.msra.mxu0 0.0
      %858 = vmatprep.subr.mxu0 0.0
      %859 = vmatpush1.msra.mxu0 0.0
      %860 = vmatprep.subr.mxu0 0.0
      %861 = vmatpush1.msra.mxu0 0.0
      %862 = vmatprep.subr.mxu0 0.0
      %863 = vmatpush1.msra.mxu0 0.0
      %864 = vmatprep.subr.mxu0 0.0
      %865 = vmatpush1.msra.mxu0 0.0
      %866 = vmatprep.subr.mxu0 0.0
      %867 = vmatpush1.msra.mxu0 0.0
      %868 = vmatprep.subr.mxu0 0.0
      %869 = vmatpush1.msra.mxu0 0.0
      %870 = vmatprep.subr.mxu0 0.0
      %871 = vmatpush1.msra.mxu0 0.0
      %872 = vmatprep.subr.mxu0 0.0
      %873 = vmatpush1.msra.mxu0 0.0
      %874 = vmatprep.subr.mxu0 0.0
      %875 = vmatpush1.msra.mxu0 0.0
      %876 = vmatprep.subr.mxu0 0.0
      %877 = vmatpush1.msra.mxu0 0.0
      %878 = vmatprep.subr.mxu0 0.0
      %879 = vmatpush1.msra.mxu0 0.0
      %880 = vmatprep.subr.mxu0 0.0
      %881 = vmatpush1.msra.mxu0 0.0
      %882 = vmatprep.subr.mxu0 0.0
      %883 = vmatpush1.msra.mxu0 0.0
      %884 = vmatprep.subr.mxu0 0.0
      %885 = vmatpush1.msra.mxu0 0.0
      %886 = vmatprep.subr.mxu0 0.0
      %887 = vmatpush1.msra.mxu0 0.0
      %888 = vmatprep.subr.mxu0 0.0
      %889 = vmatpush1.msra.mxu0 0.0
      %890 = vmatprep.subr.mxu0 0.0
      %891 = vmatpush1.msra.mxu0 0.0
      %892 = vmatprep.subr.mxu0 0.0
      %893 = vmatpush1.msra.mxu0 0.0
      %894 = vmatprep.subr.mxu0 0.0
      %895 = vmatpush1.msra.mxu0 0.0
      %896 = vmatprep.subr.mxu0 0.0
      %897 = vmatpush1.msra.mxu0 0.0
      %898 = vmatprep.subr.mxu0 0.0
      %899 = vmatpush1.msra.mxu0 0.0
      %900 = vmatprep.subr.mxu0 0.0
      %901 = vmatpush1.msra.mxu0 0.0
      %902 = vmatprep.subr.mxu0 0.0
      %903 = vmatpush1.msra.mxu0 0.0
      %904 = vmatprep.subr.mxu0 0.0
      %905 = vmatpush1.msra.mxu0 0.0
      %906 = vmatprep.subr.mxu0 0.0
      %907 = vmatpush1.msra.mxu0 0.0
      %908 = vmatprep.subr.mxu0 0.0
      %909 = vmatpush1.msra.mxu0 0.0
      %910 = vmatprep.mubr.f32.mxu0 0.0
      %911 = vmatmul.mubr.f32.gmra.mrb[0].mxu0 %v844
      %v912 = vpop.f32.mrb[0].mxu0
      %v913 = vadd.f32 0.0, %v912
      %v914 = vpop.f32.mrb[0].mxu0
      %915 = vdwg.mxu0
      %v916 = vadd.f32 %v842, %v913
      %v917 = vxor.u32 %v916, 2147483648
      %v918 = vmul.f32 %v917, 1.442695
      %v919 = vpow.pop %v918
      %v920 = vadd.f32 %v919, 1.0
      %v921 = vrcp.pop %v920
      %v922 = vmul.f32 1.0, %v921
      %v923 = vtanh.pop %v916
      %925 = vrot.lane.b32.xlu0 %v840, 32
      %v926 = vpop.permute.xlu0 %925
      %v928 = vmul.f32 %v922, %v926
      %930 = vrot.lane.b32.xlu0 %v923, 64
      %v931 = vpop.permute.xlu0 %930
      %v933 = vmul.f32 %v922, %v931
      %935 = vrot.lane.b32.xlu0 %v933, 32
      %v936 = vpop.permute.xlu0 %935
      %v938 = vadd.f32 %v928, %v936
      %v939 = vtanh.pop %v938
      %941 = vrot.lane.b32.xlu0 %v939, 64
      %v942 = vpop.permute.xlu0 %941
      %v944 = vmul.f32 %v922, %v942
      %s945 = scalar_lea.vmem %s205, 32
      %v946 = vld [vmem:[%s945] sm:$0xff]
      %948 = vset.pattern.permute.xlu0 0
      %949 = vperm.xlu0 %948, %v946
      %v950 = vpop.permute.xlu0 %949
      %v952 = vmul.f32 %v950, %v944
      %v953 = vsub.f32 1.0, %v946
      %955 = vset.pattern.permute.xlu0 0
      %956 = vperm.xlu0 %955, %v953
      %v957 = vpop.permute.xlu0 %956
      %v959 = vmul.f32 %v957, %v839
      %961 = vrot.lane.b32.xlu0 %v959, 96
      %v962 = vpop.permute.xlu0 %961
      %v964 = vadd.f32 %v952, %v962
      %966 = vrot.lane.b32.xlu0 %v964, 32
      %v967 = vpop.permute.xlu0 %966
      %969 = vst.msk [vmem:[#allocation2] sm:$0xff] %vm211, %v967
      %v970 = vmul.f32 %v950, %v938
      %v971 = vmul.f32 %v957, %v840
      %973 = vrot.lane.b32.xlu0 %v971, 32
      %v974 = vpop.permute.xlu0 %973
      %v976 = vadd.f32 %v970, %v974
      %978 = vrot.lane.b32.xlu0 %v976, 96
      %v979 = vpop.permute.xlu0 %978
      %981 = vst.msk [vmem:[#allocation3] sm:$0xff] %vm211, %v979
      %v982 = vmul.f32 %v953, 0.0
      %984 = vset.pattern.permute.xlu0 0
      %985 = vperm.xlu0 %984, %v982
      %v986 = vpop.permute.xlu0 %985
      %v988 = vadd.f32 %v952, %v986
      %990 = vrot.lane.b32.xlu0 %v988, 32
      %v991 = vpop.permute.xlu0 %990
      %s993 = scalar_lea.vmem %s210, 32
      %994 = vst.msk [vmem:[%s993] sm:$0xff] %vm211, %v991
      %v995 = vld [vmem:[#allocation2] sm:$0xff]
      %v996 = vld [vmem:[#allocation3] sm:$0xff]
      %s997 = scalar_lea.vmem %s195, 40
      %v998 = vld [vmem:[%s997] sm:$0xff]
      %v1000 = vsel %vm211, %v995, 0
      %1002 = vmatprep.subr.mxu0 0.0
      %1003 = vmatpush1.msra.mxu0 %v214
      %1004 = vmatprep.subr.mxu0 0.0
      %1005 = vmatpush1.msra.mxu0 %v215
      %1006 = vmatprep.subr.mxu0 0.0
      %1007 = vmatpush1.msra.mxu0 %v216
      %1008 = vmatprep.subr.mxu0 0.0
      %1009 = vmatpush1.msra.mxu0 %v217
      %1010 = vmatprep.subr.mxu0 0.0
      %1011 = vmatpush1.msra.mxu0 0.0
      %1012 = vmatprep.subr.mxu0 0.0
      %1013 = vmatpush1.msra.mxu0 0.0
      %1014 = vmatprep.subr.mxu0 0.0
      %1015 = vmatpush1.msra.mxu0 0.0
      %1016 = vmatprep.subr.mxu0 0.0
      %1017 = vmatpush1.msra.mxu0 0.0
      %1018 = vmatprep.subr.mxu0 0.0
      %1019 = vmatpush1.msra.mxu0 0.0
      %1020 = vmatprep.subr.mxu0 0.0
      %1021 = vmatpush1.msra.mxu0 0.0
      %1022 = vmatprep.subr.mxu0 0.0
      %1023 = vmatpush1.msra.mxu0 0.0
      %1024 = vmatprep.subr.mxu0 0.0
      %1025 = vmatpush1.msra.mxu0 0.0
      %1026 = vmatprep.subr.mxu0 0.0
      %1027 = vmatpush1.msra.mxu0 0.0
      %1028 = vmatprep.subr.mxu0 0.0
      %1029 = vmatpush1.msra.mxu0 0.0
      %1030 = vmatprep.subr.mxu0 0.0
      %1031 = vmatpush1.msra.mxu0 0.0
      %1032 = vmatprep.subr.mxu0 0.0
      %1033 = vmatpush1.msra.mxu0 0.0
      %1034 = vmatprep.subr.mxu0 0.0
      %1035 = vmatpush1.msra.mxu0 0.0
      %1036 = vmatprep.subr.mxu0 0.0
      %1037 = vmatpush1.msra.mxu0 0.0
      %1038 = vmatprep.subr.mxu0 0.0
      %1039 = vmatpush1.msra.mxu0 0.0
      %1040 = vmatprep.subr.mxu0 0.0
      %1041 = vmatpush1.msra.mxu0 0.0
      %1042 = vmatprep.subr.mxu0 0.0
      %1043 = vmatpush1.msra.mxu0 0.0
      %1044 = vmatprep.subr.mxu0 0.0
      %1045 = vmatpush1.msra.mxu0 0.0
      %1046 = vmatprep.subr.mxu0 0.0
      %1047 = vmatpush1.msra.mxu0 0.0
      %1048 = vmatprep.subr.mxu0 0.0
      %1049 = vmatpush1.msra.mxu0 0.0
      %1050 = vmatprep.subr.mxu0 0.0
      %1051 = vmatpush1.msra.mxu0 0.0
      %1052 = vmatprep.subr.mxu0 0.0
      %1053 = vmatpush1.msra.mxu0 0.0
      %1054 = vmatprep.subr.mxu0 0.0
      %1055 = vmatpush1.msra.mxu0 0.0
      %1056 = vmatprep.subr.mxu0 0.0
      %1057 = vmatpush1.msra.mxu0 0.0
      %1058 = vmatprep.subr.mxu0 0.0
      %1059 = vmatpush1.msra.mxu0 0.0
      %1060 = vmatprep.subr.mxu0 0.0
      %1061 = vmatpush1.msra.mxu0 0.0
      %1062 = vmatprep.subr.mxu0 0.0
      %1063 = vmatpush1.msra.mxu0 0.0
      %1064 = vmatprep.subr.mxu0 0.0
      %1065 = vmatpush1.msra.mxu0 0.0
      %1066 = vmatprep.mubr.f32.mxu0 0.0
      %1067 = vmatmul.mubr.f32.gmra.mrb[0].mxu0 %v1000
      %v1068 = vpop.f32.mrb[0].mxu0
      %v1069 = vadd.f32 0.0, %v1068
      %v1070 = vpop.f32.mrb[0].mxu0
      %1071 = vdwg.mxu0
      %v1072 = vadd.f32 %v998, %v1069
      %v1073 = vxor.u32 %v1072, 2147483648
      %v1074 = vmul.f32 %v1073, 1.442695
      %v1075 = vpow.pop %v1074
      %v1076 = vadd.f32 %v1075, 1.0
      %v1077 = vrcp.pop %v1076
      %v1078 = vmul.f32 1.0, %v1077
      %v1079 = vtanh.pop %v1072
      %1081 = vrot.lane.b32.xlu0 %v996, 32
      %v1082 = vpop.permute.xlu0 %1081
      %v1084 = vmul.f32 %v1078, %v1082
      %1086 = vrot.lane.b32.xlu0 %v1079, 64
      %v1087 = vpop.permute.xlu0 %1086
      %v1089 = vmul.f32 %v1078, %v1087
      %1091 = vrot.lane.b32.xlu0 %v1089, 32
      %v1092 = vpop.permute.xlu0 %1091
      %v1094 = vadd.f32 %v1084, %v1092
      %v1095 = vtanh.pop %v1094
      %1097 = vrot.lane.b32.xlu0 %v1095, 64
      %v1098 = vpop.permute.xlu0 %1097
      %v1100 = vmul.f32 %v1078, %v1098
      %s1101 = scalar_lea.vmem %s205, 40
      %v1102 = vld [vmem:[%s1101] sm:$0xff]
      %1104 = vset.pattern.permute.xlu0 0
      %1105 = vperm.xlu0 %1104, %v1102
      %v1106 = vpop.permute.xlu0 %1105
      %v1108 = vmul.f32 %v1106, %v1100
      %v1109 = vsub.f32 1.0, %v1102
      %1111 = vset.pattern.permute.xlu0 0
      %1112 = vperm.xlu0 %1111, %v1109
      %v1113 = vpop.permute.xlu0 %1112
      %v1115 = vmul.f32 %v1113, %v995
      %1117 = vrot.lane.b32.xlu0 %v1115, 96
      %v1118 = vpop.permute.xlu0 %1117
      %v1120 = vadd.f32 %v1108, %v1118
      %1122 = vrot.lane.b32.xlu0 %v1120, 32
      %v1123 = vpop.permute.xlu0 %1122
      %1125 = vst.msk [vmem:[#allocation2] sm:$0xff] %vm211, %v1123
      %v1126 = vmul.f32 %v1106, %v1094
      %v1127 = vmul.f32 %v1113, %v996
      %1129 = vrot.lane.b32.xlu0 %v1127, 32
      %v1130 = vpop.permute.xlu0 %1129
      %v1132 = vadd.f32 %v1126, %v1130
      %1134 = vrot.lane.b32.xlu0 %v1132, 96
      %v1135 = vpop.permute.xlu0 %1134
      %1137 = vst.msk [vmem:[#allocation3] sm:$0xff] %vm211, %v1135
      %v1138 = vmul.f32 %v1109, 0.0
      %1140 = vset.pattern.permute.xlu0 0
      %1141 = vperm.xlu0 %1140, %v1138
      %v1142 = vpop.permute.xlu0 %1141
      %v1144 = vadd.f32 %v1108, %v1142
      %1146 = vrot.lane.b32.xlu0 %v1144, 32
      %v1147 = vpop.permute.xlu0 %1146
      %s1149 = scalar_lea.vmem %s210, 40
      %1150 = vst.msk [vmem:[%s1149] sm:$0xff] %vm211, %v1147
      %v1151 = vld [vmem:[#allocation2] sm:$0xff]
      %v1152 = vld [vmem:[#allocation3] sm:$0xff]
      %s1153 = scalar_lea.vmem %s195, 48
      %v1154 = vld [vmem:[%s1153] sm:$0xff]
      %v1156 = vsel %vm211, %v1151, 0
      %1158 = vmatprep.subr.mxu0 0.0
      %1159 = vmatpush1.msra.mxu0 %v214
      %1160 = vmatprep.subr.mxu0 0.0
      %1161 = vmatpush1.msra.mxu0 %v215
      %1162 = vmatprep.subr.mxu0 0.0
      %1163 = vmatpush1.msra.mxu0 %v216
      %1164 = vmatprep.subr.mxu0 0.0
      %1165 = vmatpush1.msra.mxu0 %v217
      %1166 = vmatprep.subr.mxu0 0.0
      %1167 = vmatpush1.msra.mxu0 0.0
      %1168 = vmatprep.subr.mxu0 0.0
      %1169 = vmatpush1.msra.mxu0 0.0
      %1170 = vmatprep.subr.mxu0 0.0
      %1171 = vmatpush1.msra.mxu0 0.0
      %1172 = vmatprep.subr.mxu0 0.0
      %1173 = vmatpush1.msra.mxu0 0.0
      %1174 = vmatprep.subr.mxu0 0.0
      %1175 = vmatpush1.msra.mxu0 0.0
      %1176 = vmatprep.subr.mxu0 0.0
      %1177 = vmatpush1.msra.mxu0 0.0
      %1178 = vmatprep.subr.mxu0 0.0
      %1179 = vmatpush1.msra.mxu0 0.0
      %1180 = vmatprep.subr.mxu0 0.0
      %1181 = vmatpush1.msra.mxu0 0.0
      %1182 = vmatprep.subr.mxu0 0.0
      %1183 = vmatpush1.msra.mxu0 0.0
      %1184 = vmatprep.subr.mxu0 0.0
      %1185 = vmatpush1.msra.mxu0 0.0
      %1186 = vmatprep.subr.mxu0 0.0
      %1187 = vmatpush1.msra.mxu0 0.0
      %1188 = vmatprep.subr.mxu0 0.0
      %1189 = vmatpush1.msra.mxu0 0.0
      %1190 = vmatprep.subr.mxu0 0.0
      %1191 = vmatpush1.msra.mxu0 0.0
      %1192 = vmatprep.subr.mxu0 0.0
      %1193 = vmatpush1.msra.mxu0 0.0
      %1194 = vmatprep.subr.mxu0 0.0
      %1195 = vmatpush1.msra.mxu0 0.0
      %1196 = vmatprep.subr.mxu0 0.0
      %1197 = vmatpush1.msra.mxu0 0.0
      %1198 = vmatprep.subr.mxu0 0.0
      %1199 = vmatpush1.msra.mxu0 0.0
      %1200 = vmatprep.subr.mxu0 0.0
      %1201 = vmatpush1.msra.mxu0 0.0
      %1202 = vmatprep.subr.mxu0 0.0
      %1203 = vmatpush1.msra.mxu0 0.0
      %1204 = vmatprep.subr.mxu0 0.0
      %1205 = vmatpush1.msra.mxu0 0.0
      %1206 = vmatprep.subr.mxu0 0.0
      %1207 = vmatpush1.msra.mxu0 0.0
      %1208 = vmatprep.subr.mxu0 0.0
      %1209 = vmatpush1.msra.mxu0 0.0
      %1210 = vmatprep.subr.mxu0 0.0
      %1211 = vmatpush1.msra.mxu0 0.0
      %1212 = vmatprep.subr.mxu0 0.0
      %1213 = vmatpush1.msra.mxu0 0.0
      %1214 = vmatprep.subr.mxu0 0.0
      %1215 = vmatpush1.msra.mxu0 0.0
      %1216 = vmatprep.subr.mxu0 0.0
      %1217 = vmatpush1.msra.mxu0 0.0
      %1218 = vmatprep.subr.mxu0 0.0
      %1219 = vmatpush1.msra.mxu0 0.0
      %1220 = vmatprep.subr.mxu0 0.0
      %1221 = vmatpush1.msra.mxu0 0.0
      %1222 = vmatprep.mubr.f32.mxu0 0.0
      %1223 = vmatmul.mubr.f32.gmra.mrb[0].mxu0 %v1156
      %v1224 = vpop.f32.mrb[0].mxu0
      %v1225 = vadd.f32 0.0, %v1224
      %v1226 = vpop.f32.mrb[0].mxu0
      %1227 = vdwg.mxu0
      %v1228 = vadd.f32 %v1154, %v1225
      %v1229 = vxor.u32 %v1228, 2147483648
      %v1230 = vmul.f32 %v1229, 1.442695
      %v1231 = vpow.pop %v1230
      %v1232 = vadd.f32 %v1231, 1.0
      %v1233 = vrcp.pop %v1232
      %v1234 = vmul.f32 1.0, %v1233
      %v1235 = vtanh.pop %v1228
      %1237 = vrot.lane.b32.xlu0 %v1152, 32
      %v1238 = vpop.permute.xlu0 %1237
      %v1240 = vmul.f32 %v1234, %v1238
      %1242 = vrot.lane.b32.xlu0 %v1235, 64
      %v1243 = vpop.permute.xlu0 %1242
      %v1245 = vmul.f32 %v1234, %v1243
      %1247 = vrot.lane.b32.xlu0 %v1245, 32
      %v1248 = vpop.permute.xlu0 %1247
      %v1250 = vadd.f32 %v1240, %v1248
      %v1251 = vtanh.pop %v1250
      %1253 = vrot.lane.b32.xlu0 %v1251, 64
      %v1254 = vpop.permute.xlu0 %1253
      %v1256 = vmul.f32 %v1234, %v1254
      %s1257 = scalar_lea.vmem %s205, 48
      %v1258 = vld [vmem:[%s1257] sm:$0xff]
      %1260 = vset.pattern.permute.xlu0 0
      %1261 = vperm.xlu0 %1260, %v1258
      %v1262 = vpop.permute.xlu0 %1261
      %v1264 = vmul.f32 %v1262, %v1256
      %v1265 = vsub.f32 1.0, %v1258
      %1267 = vset.pattern.permute.xlu0 0
      %1268 = vperm.xlu0 %1267, %v1265
      %v1269 = vpop.permute.xlu0 %1268
      %v1271 = vmul.f32 %v1269, %v1151
      %1273 = vrot.lane.b32.xlu0 %v1271, 96
      %v1274 = vpop.permute.xlu0 %1273
      %v1276 = vadd.f32 %v1264, %v1274
      %1278 = vrot.lane.b32.xlu0 %v1276, 32
      %v1279 = vpop.permute.xlu0 %1278
      %1281 = vst.msk [vmem:[#allocation2] sm:$0xff] %vm211, %v1279
      %v1282 = vmul.f32 %v1262, %v1250
      %v1283 = vmul.f32 %v1269, %v1152
      %1285 = vrot.lane.b32.xlu0 %v1283, 32
      %v1286 = vpop.permute.xlu0 %1285
      %v1288 = vadd.f32 %v1282, %v1286
      %1290 = vrot.lane.b32.xlu0 %v1288, 96
      %v1291 = vpop.permute.xlu0 %1290
      %1293 = vst.msk [vmem:[#allocation3] sm:$0xff] %vm211, %v1291
      %v1294 = vmul.f32 %v1265, 0.0
      %1296 = vset.pattern.permute.xlu0 0
      %1297 = vperm.xlu0 %1296, %v1294
      %v1298 = vpop.permute.xlu0 %1297
      %v1300 = vadd.f32 %v1264, %v1298
      %1302 = vrot.lane.b32.xlu0 %v1300, 32
      %v1303 = vpop.permute.xlu0 %1302
      %s1305 = scalar_lea.vmem %s210, 48
      %1306 = vst.msk [vmem:[%s1305] sm:$0xff] %vm211, %v1303
      %v1307 = vld [vmem:[#allocation2] sm:$0xff]
      %v1308 = vld [vmem:[#allocation3] sm:$0xff]
      %s1309 = scalar_lea.vmem %s195, 56
      %v1310 = vld [vmem:[%s1309] sm:$0xff]
      %v1312 = vsel %vm211, %v1307, 0
      %1314 = vmatprep.subr.mxu0 0.0
      %1315 = vmatpush1.msra.mxu0 %v214
      %1316 = vmatprep.subr.mxu0 0.0
      %1317 = vmatpush1.msra.mxu0 %v215
      %1318 = vmatprep.subr.mxu0 0.0
      %1319 = vmatpush1.msra.mxu0 %v216
      %1320 = vmatprep.subr.mxu0 0.0
      %1321 = vmatpush1.msra.mxu0 %v217
      %1322 = vmatprep.subr.mxu0 0.0
      %1323 = vmatpush1.msra.mxu0 0.0
      %1324 = vmatprep.subr.mxu0 0.0
      %1325 = vmatpush1.msra.mxu0 0.0
      %1326 = vmatprep.subr.mxu0 0.0
      %1327 = vmatpush1.msra.mxu0 0.0
      %1328 = vmatprep.subr.mxu0 0.0
      %1329 = vmatpush1.msra.mxu0 0.0
      %1330 = vmatprep.subr.mxu0 0.0
      %1331 = vmatpush1.msra.mxu0 0.0
      %1332 = vmatprep.subr.mxu0 0.0
      %1333 = vmatpush1.msra.mxu0 0.0
      %1334 = vmatprep.subr.mxu0 0.0
      %1335 = vmatpush1.msra.mxu0 0.0
      %1336 = vmatprep.subr.mxu0 0.0
      %1337 = vmatpush1.msra.mxu0 0.0
      %1338 = vmatprep.subr.mxu0 0.0
      %1339 = vmatpush1.msra.mxu0 0.0
      %1340 = vmatprep.subr.mxu0 0.0
      %1341 = vmatpush1.msra.mxu0 0.0
      %1342 = vmatprep.subr.mxu0 0.0
      %1343 = vmatpush1.msra.mxu0 0.0
      %1344 = vmatprep.subr.mxu0 0.0
      %1345 = vmatpush1.msra.mxu0 0.0
      %1346 = vmatprep.subr.mxu0 0.0
      %1347 = vmatpush1.msra.mxu0 0.0
      %1348 = vmatprep.subr.mxu0 0.0
      %1349 = vmatpush1.msra.mxu0 0.0
      %1350 = vmatprep.subr.mxu0 0.0
      %1351 = vmatpush1.msra.mxu0 0.0
      %1352 = vmatprep.subr.mxu0 0.0
      %1353 = vmatpush1.msra.mxu0 0.0
      %1354 = vmatprep.subr.mxu0 0.0
      %1355 = vmatpush1.msra.mxu0 0.0
      %1356 = vmatprep.subr.mxu0 0.0
      %1357 = vmatpush1.msra.mxu0 0.0
      %1358 = vmatprep.subr.mxu0 0.0
      %1359 = vmatpush1.msra.mxu0 0.0
      %1360 = vmatprep.subr.mxu0 0.0
      %1361 = vmatpush1.msra.mxu0 0.0
      %1362 = vmatprep.subr.mxu0 0.0
      %1363 = vmatpush1.msra.mxu0 0.0
      %1364 = vmatprep.subr.mxu0 0.0
      %1365 = vmatpush1.msra.mxu0 0.0
      %1366 = vmatprep.subr.mxu0 0.0
      %1367 = vmatpush1.msra.mxu0 0.0
      %1368 = vmatprep.subr.mxu0 0.0
      %1369 = vmatpush1.msra.mxu0 0.0
      %1370 = vmatprep.subr.mxu0 0.0
      %1371 = vmatpush1.msra.mxu0 0.0
      %1372 = vmatprep.subr.mxu0 0.0
      %1373 = vmatpush1.msra.mxu0 0.0
      %1374 = vmatprep.subr.mxu0 0.0
      %1375 = vmatpush1.msra.mxu0 0.0
      %1376 = vmatprep.subr.mxu0 0.0
      %1377 = vmatpush1.msra.mxu0 0.0
      %1378 = vmatprep.mubr.f32.mxu0 0.0
      %1379 = vmatmul.mubr.f32.gmra.mrb[0].mxu0 %v1312
      %v1380 = vpop.f32.mrb[0].mxu0
      %v1381 = vadd.f32 0.0, %v1380
      %v1382 = vpop.f32.mrb[0].mxu0
      %1383 = vdwg.mxu0
      %v1384 = vadd.f32 %v1310, %v1381
      %v1385 = vxor.u32 %v1384, 2147483648
      %v1386 = vmul.f32 %v1385, 1.442695
      %v1387 = vpow.pop %v1386
      %v1388 = vadd.f32 %v1387, 1.0
      %v1389 = vrcp.pop %v1388
      %v1390 = vmul.f32 1.0, %v1389
      %v1391 = vtanh.pop %v1384
      %1393 = vrot.lane.b32.xlu0 %v1308, 32
      %v1394 = vpop.permute.xlu0 %1393
      %v1396 = vmul.f32 %v1390, %v1394
      %1398 = vrot.lane.b32.xlu0 %v1391, 64
      %v1399 = vpop.permute.xlu0 %1398
      %v1401 = vmul.f32 %v1390, %v1399
      %1403 = vrot.lane.b32.xlu0 %v1401, 32
      %v1404 = vpop.permute.xlu0 %1403
      %v1406 = vadd.f32 %v1396, %v1404
      %v1407 = vtanh.pop %v1406
      %1409 = vrot.lane.b32.xlu0 %v1407, 64
      %v1410 = vpop.permute.xlu0 %1409
      %v1412 = vmul.f32 %v1390, %v1410
      %s1413 = scalar_lea.vmem %s205, 56
      %v1414 = vld [vmem:[%s1413] sm:$0xff]
      %1416 = vset.pattern.permute.xlu0 0
      %1417 = vperm.xlu0 %1416, %v1414
      %v1418 = vpop.permute.xlu0 %1417
      %v1420 = vmul.f32 %v1418, %v1412
      %v1421 = vsub.f32 1.0, %v1414
      %1423 = vset.pattern.permute.xlu0 0
      %1424 = vperm.xlu0 %1423, %v1421
      %v1425 = vpop.permute.xlu0 %1424
      %v1427 = vmul.f32 %v1425, %v1307
      %1429 = vrot.lane.b32.xlu0 %v1427, 96
      %v1430 = vpop.permute.xlu0 %1429
      %v1432 = vadd.f32 %v1420, %v1430
      %1434 = vrot.lane.b32.xlu0 %v1432, 32
      %v1435 = vpop.permute.xlu0 %1434
      %1437 = vst.msk [vmem:[#allocation2] sm:$0xff] %vm211, %v1435
      %v1438 = vmul.f32 %v1418, %v1406
      %v1439 = vmul.f32 %v1425, %v1308
      %1441 = vrot.lane.b32.xlu0 %v1439, 32
      %v1442 = vpop.permute.xlu0 %1441
      %v1444 = vadd.f32 %v1438, %v1442
      %1446 = vrot.lane.b32.xlu0 %v1444, 96
      %v1447 = vpop.permute.xlu0 %1446
      %1449 = vst.msk [vmem:[#allocation3] sm:$0xff] %vm211, %v1447
      %v1450 = vmul.f32 %v1421, 0.0
      %1452 = vset.pattern.permute.xlu0 0
      %1453 = vperm.xlu0 %1452, %v1450
      %v1454 = vpop.permute.xlu0 %1453
      %v1456 = vadd.f32 %v1420, %v1454
      %1458 = vrot.lane.b32.xlu0 %v1456, 32
      %v1459 = vpop.permute.xlu0 %1458
      %s1461 = scalar_lea.vmem %s210, 56
      %1462 = vst.msk [vmem:[%s1461] sm:$0xff] %vm211, %v1459
      %p1463 = scmp.lt.s32.totalorder %s14, 1
      %s1464 = scalar_select %p1463, %s14, 1
      %s1465 = smul.addr %s1464, 8
      %s1466 = smul.addr %s1465, 8
      %s1467 = scalar_lea.vmem %s3, %s1466
      // Predicated region
      $region33: #{fi_en_translator_forward.17} parent=31 // pred_check
        %p1468 = pneg %p110
      $region34: #{fi_en_translator_forward.17} parent=31 // pred_check_branch
        %1470 = sbr.rel (%p1468) target = $region36
      $region35: #{fi_en_translator_forward.17} parent=31 // pred_region
        _
      $region36: #{fi_en_translator_forward.17} parent=31 // pred_fallthru
        _
    $region32: #{fi_en_translator_forward.17} parent=5 // pred_fallthru
      _
    %p1471 = scmp.le.s32.totalorder 2, %s9
    // Predicated region
    $region37: #{fi_en_translator_forward.17} parent=5 // pred_check
      %p1472 = pneg %p1471
    $region38: #{fi_en_translator_forward.17} parent=5 // pred_check_branch
      %1474 = sbr.rel (%p1472) target = $region40
    $region39: #{fi_en_translator_forward.17} parent=5 // pred_region
      %s1475 = ssub.s32 %s9, 2
      // Predicated region
      $region41: #{fi_en_translator_forward.17} parent=39 // pred_check
        %p1476 = pneg %p116
      $region42: #{fi_en_translator_forward.17} parent=39 // pred_check_branch
        %1478 = sbr.rel (%p1476) target = $region44
      $region43: #{fi_en_translator_forward.17} parent=39 // pred_region
        %p1479 = scmp.lt.s32.totalorder %s15, 1
        %s1480 = scalar_select %p1479, %s15, 1
        %s1481 = smul.addr %s1480, 8
        %s1482 = smul.addr %s1481, 8
        %s1483 = scalar_lea.vmem %s3, %s1482
      $region44: #{fi_en_translator_forward.17} parent=39 // pred_fallthru
        _
    $region40: #{fi_en_translator_forward.17} parent=5 // pred_fallthru
      _
  $region6: #{fi_en_translator_forward.17} parent=0 // loop_footer
    %s13 = sadd.s32 1, %s9
  $region7: #{fi_en_translator_forward.17} parent=0 // loop_footer_branch
    %8 = sbr.rel target = $region3
  $region8: #{fi_en_translator_forward.17} parent=0 // loop_exit
    _

// kernel: fi_en_translator_forward.28
$region0: #{fi_en_translator_forward.28}
  #allocation0 [shape = 'u32[]', space=smem, size = 0x4, offset = 0x4, fixed_abs, tag = 'smem constant byte address 0x4 - core index']
  #allocation1 [shape = 'u32[144,128]{1,0:T(1,128)}', space=vmem, size = 0x12000, scoped, tag = 'internal scratch']
  #allocation2 [shape = 'f32[8,64]{1,0:T(8,128)}', space=vmem, size = 0x1000, scoped, tag = 'scratch operand']
  #allocation3 [shape = 'f32[8,64]{1,0:T(8,128)}', space=vmem, size = 0x1000, scoped, tag = 'scratch operand']
  %s0 = inlined_call_operand.vmem [shape: f32[1,8,8,256], index: 0, kind: input, shape index: {}]
  %s1 = inlined_call_operand.vmem [shape: f32[1,64,256], index: 1, kind: input, shape index: {}]
  %s2 = inlined_call_operand.vmem [shape: f32[1,8,8,1], index: 2, kind: input, shape index: {}]
  %s3 = inlined_call_operand.vmem [shape: f32[1,8,8,64], index: 3, kind: output, shape index: {}]
  %s4 = sld [smem:[#allocation0]]
  $region22: #{fi_en_translator_forward.28} parent=0
    _
  %s6 = ssub.s32 1, %s4
  %s7 = scalar_select 0, %s6, %s4
  // Predicated region
  $region2: #{fi_en_translator_forward.28} parent=0 // pred_check
    _
  $region3: #{fi_en_translator_forward.28} parent=0 // pred_check_branch
    %9 = sbr.rel (0) target = $region5
  $region4: #{fi_en_translator_forward.28} parent=0 // pred_region
    _
  $region5: #{fi_en_translator_forward.28} parent=0 // pred_fallthru
    _
  // Predicated region
  $region6: #{fi_en_translator_forward.28} parent=0 // pred_check
    _
  $region7: #{fi_en_translator_forward.28} parent=0 // pred_check_branch
    %11 = sbr.rel (0) target = $region9
  $region8: #{fi_en_translator_forward.28} parent=0 // pred_region
    _
  $region9: #{fi_en_translator_forward.28} parent=0 // pred_fallthru
    _
  // Predicated region
  $region10: #{fi_en_translator_forward.28} parent=0 // pred_check
    _
  $region11: #{fi_en_translator_forward.28} parent=0 // pred_check_branch
    %13 = sbr.rel (0) target = $region13
  $region12: #{fi_en_translator_forward.28} parent=0 // pred_region
    _
  $region13: #{fi_en_translator_forward.28} parent=0 // pred_fallthru
    _
  %vm14 = vcmask 523264
  %15 = vst.msk [vmem:[#allocation2] sm:$0xff] %vm14, 0.0
  %16 = vst.msk [vmem:[#allocation3] sm:$0xff] %vm14, 0.0
  %v17 = vld [vmem:[%s1] sm:$0xff]
  %v18 = vld [vmem:[%s1 + $0x8] sm:$0xff]
  %v19 = vld [vmem:[%s1 + $0x10] sm:$0xff]
  %v20 = vld [vmem:[%s1 + $0x18] sm:$0xff]
  %v21 = vld [vmem:[%s1 + $0x20] sm:$0xff]
  %v22 = vld [vmem:[%s1 + $0x28] sm:$0xff]
  %v23 = vld [vmem:[%s1 + $0x30] sm:$0xff]
  %v24 = vld [vmem:[%s1 + $0x38] sm:$0xff]
  %v25 = vld [vmem:[%s1 + $0x40] sm:$0xff]
  %v26 = vld [vmem:[%s1 + $0x48] sm:$0xff]
  %v27 = vld [vmem:[%s1 + $0x50] sm:$0xff]
  %v28 = vld [vmem:[%s1 + $0x58] sm:$0xff]
  %v29 = vld [vmem:[%s1 + $0x60] sm:$0xff]
  %v30 = vld [vmem:[%s1 + $0x68] sm:$0xff]
  %v31 = vld [vmem:[%s1 + $0x70] sm:$0xff]
  %v32 = vld [vmem:[%s1 + $0x78] sm:$0xff]
  %v33 = vld [vmem:[#allocation2] sm:$0xff]
  %v34 = vld [vmem:[#allocation3] sm:$0xff]
  %v35 = vld [vmem:[%s0] sm:$0xff]
  %v36 = vld [vmem:[%s0 + $0x8] sm:$0xff]
  %v38 = vsel %vm14, %v33, 0
  %40 = vmatprep.subr.mxu0 %v18
  %41 = vmatpush1.msra.mxu0 %v17
  %42 = vmatprep.subr.mxu0 %v20
  %43 = vmatpush1.msra.mxu0 %v19
  %44 = vmatprep.subr.mxu0 %v22
  %45 = vmatpush1.msra.mxu0 %v21
  %46 = vmatprep.subr.mxu0 %v24
  %47 = vmatpush1.msra.mxu0 %v23
  %48 = vmatprep.subr.mxu0 %v26
  %49 = vmatpush1.msra.mxu0 %v25
  %50 = vmatprep.subr.mxu0 %v28
  %51 = vmatpush1.msra.mxu0 %v27
  %52 = vmatprep.subr.mxu0 %v30
  %53 = vmatpush1.msra.mxu0 %v29
  %54 = vmatprep.subr.mxu0 %v32
  %55 = vmatpush1.msra.mxu0 %v31
  %56 = vmatprep.subr.mxu0 0.0
  %57 = vmatpush1.msra.mxu0 0.0
  %58 = vmatprep.subr.mxu0 0.0
  %59 = vmatpush1.msra.mxu0 0.0
  %60 = vmatprep.subr.mxu0 0.0
  %61 = vmatpush1.msra.mxu0 0.0
  %62 = vmatprep.subr.mxu0 0.0
  %63 = vmatpush1.msra.mxu0 0.0
  %64 = vmatprep.subr.mxu0 0.0
  %65 = vmatpush1.msra.mxu0 0.0
  %66 = vmatprep.subr.mxu0 0.0
  %67 = vmatpush1.msra.mxu0 0.0
  %68 = vmatprep.subr.mxu0 0.0
  %69 = vmatpush1.msra.mxu0 0.0
  %70 = vmatprep.subr.mxu0 0.0
  %71 = vmatpush1.msra.mxu0 0.0
  %72 = vmatprep.subr.mxu0 0.0
  %73 = vmatpush1.msra.mxu0 0.0
  %74 = vmatprep.subr.mxu0 0.0
  %75 = vmatpush1.msra.mxu0 0.0
  %76 = vmatprep.subr.mxu0 0.0
  %77 = vmatpush1.msra.mxu0 0.0
  %78 = vmatprep.subr.mxu0 0.0
  %79 = vmatpush1.msra.mxu0 0.0
  %80 = vmatprep.subr.mxu0 0.0
  %81 = vmatpush1.msra.mxu0 0.0
  %82 = vmatprep.subr.mxu0 0.0
  %83 = vmatpush1.msra.mxu0 0.0
  %84 = vmatprep.subr.mxu0 0.0
  %85 = vmatpush1.msra.mxu0 0.0
  %86 = vmatprep.subr.mxu0 0.0
  %87 = vmatpush1.msra.mxu0 0.0
  %88 = vmatprep.subr.mxu0 0.0
  %89 = vmatpush1.msra.mxu0 0.0
  %90 = vmatprep.subr.mxu0 0.0
  %91 = vmatpush1.msra.mxu0 0.0
  %92 = vmatprep.subr.mxu0 0.0
  %93 = vmatpush1.msra.mxu0 0.0
  %94 = vmatprep.subr.mxu0 0.0
  %95 = vmatpush1.msra.mxu0 0.0
  %96 = vmatprep.subr.mxu0 0.0
  %97 = vmatpush1.msra.mxu0 0.0
  %98 = vmatprep.subr.mxu0 0.0
  %99 = vmatpush1.msra.mxu0 0.0
  %100 = vmatprep.subr.mxu0 0.0
  %101 = vmatpush1.msra.mxu0 0.0
  %102 = vmatprep.subr.mxu0 0.0
  %103 = vmatpush1.msra.mxu0 0.0
  %104 = vmatprep.mubr.f32.mxu0 0.0
  %105 = vmatmul.mubr.f32.gmra.mrb[0].mxu0 %v38
  %v106 = vpop.f32.mrb[0].mxu0
  %v107 = vadd.f32 0.0, %v106
  %v108 = vpop.f32.mrb[0].mxu0
  %v109 = vadd.f32 0.0, %v108
  %110 = vdwg.mxu0
  %v111 = vadd.f32 %v35, %v107
  %v112 = vadd.f32 %v36, %v109
  %v113 = vxor.u32 %v111, 2147483648
  %v114 = vxor.u32 %v112, 2147483648
  %v115 = vmul.f32 %v113, 1.442695
  %v116 = vpow.pop %v115
  %v117 = vmul.f32 %v114, 1.442695
  %v118 = vpow.pop %v117
  %v119 = vadd.f32 %v116, 1.0
  %v120 = vadd.f32 %v118, 1.0
  %v121 = vrcp.pop %v119
  %v122 = vmul.f32 1.0, %v121
  %v123 = vrcp.pop %v120
  %v124 = vmul.f32 1.0, %v123
  %v125 = vtanh.pop %v112
  %127 = vrot.lane.b32.xlu0 %v34, 64
  %v128 = vpop.permute.xlu0 %127
  %v130 = vmul.f32 %v122, %v128
  %v131 = vmul.f32 %v122, %v125
  %133 = vrot.lane.b32.xlu0 %v131, 64
  %v134 = vpop.permute.xlu0 %133
  %v136 = vadd.f32 %v130, %v134
  %v137 = vtanh.pop %v136
  %v138 = vmul.f32 %v124, %v137
  %v139 = vld [vmem:[%s2] sm:$0xff]
  %141 = vset.pattern.permute.xlu0 0
  %142 = vperm.xlu0 %141, %v139
  %v143 = vpop.permute.xlu0 %142
  %v145 = vmul.f32 %v143, %v138
  %v146 = vsub.f32 1.0, %v139
  %148 = vset.pattern.permute.xlu0 0
  %149 = vperm.xlu0 %148, %v146
  %v150 = vpop.permute.xlu0 %149
  %v152 = vmul.f32 %v150, %v33
  %154 = vrot.lane.b32.xlu0 %v152, 64
  %v155 = vpop.permute.xlu0 %154
  %v157 = vadd.f32 %v145, %v155
  %159 = vrot.lane.b32.xlu0 %v157, 64
  %v160 = vpop.permute.xlu0 %159
  %162 = vst.msk [vmem:[#allocation2] sm:$0xff] %vm14, %v160
  %v163 = vmul.f32 %v143, %v136
  %v164 = vmul.f32 %v150, %v34
  %166 = vrot.lane.b32.xlu0 %v164, 64
  %v167 = vpop.permute.xlu0 %166
  %v169 = vadd.f32 %v163, %v167
  %171 = vrot.lane.b32.xlu0 %v169, 64
  %v172 = vpop.permute.xlu0 %171
  %174 = vst.msk [vmem:[#allocation3] sm:$0xff] %vm14, %v172
  %v175 = vmul.f32 %v146, 0.0
  %177 = vset.pattern.permute.xlu0 0
  %178 = vperm.xlu0 %177, %v175
  %v179 = vpop.permute.xlu0 %178
  %v181 = vadd.f32 %v145, %v179
  %183 = vrot.lane.b32.xlu0 %v181, 64
  %v184 = vpop.permute.xlu0 %183
  %186 = vst.msk [vmem:[%s3] sm:$0xff] %vm14, %v184
  %v187 = vld [vmem:[#allocation2] sm:$0xff]
  %v188 = vld [vmem:[#allocation3] sm:$0xff]
  %s189 = scalar_lea.vmem %s0, 16
  %v190 = vld [vmem:[%s189] sm:$0xff]
  %v191 = vld [vmem:[%s189 + $0x8] sm:$0xff]
  %v193 = vsel %vm14, %v187, 0
  %195 = vmatprep.subr.mxu0 %v18
  %196 = vmatpush1.msra.mxu0 %v17
  %197 = vmatprep.subr.mxu0 %v20
  %198 = vmatpush1.msra.mxu0 %v19
  %199 = vmatprep.subr.mxu0 %v22
  %200 = vmatpush1.msra.mxu0 %v21
  %201 = vmatprep.subr.mxu0 %v24
  %202 = vmatpush1.msra.mxu0 %v23
  %203 = vmatprep.subr.mxu0 %v26
  %204 = vmatpush1.msra.mxu0 %v25
  %205 = vmatprep.subr.mxu0 %v28
  %206 = vmatpush1.msra.mxu0 %v27
  %207 = vmatprep.subr.mxu0 %v30
  %208 = vmatpush1.msra.mxu0 %v29
  %209 = vmatprep.subr.mxu0 %v32
  %210 = vmatpush1.msra.mxu0 %v31
  %211 = vmatprep.subr.mxu0 0.0
  %212 = vmatpush1.msra.mxu0 0.0
  %213 = vmatprep.subr.mxu0 0.0
  %214 = vmatpush1.msra.mxu0 0.0
  %215 = vmatprep.subr.mxu0 0.0
  %216 = vmatpush1.msra.mxu0 0.0
  %217 = vmatprep.subr.mxu0 0.0
  %218 = vmatpush1.msra.mxu0 0.0
  %219 = vmatprep.subr.mxu0 0.0
  %220 = vmatpush1.msra.mxu0 0.0
  %221 = vmatprep.subr.mxu0 0.0
  %222 = vmatpush1.msra.mxu0 0.0
  %223 = vmatprep.subr.mxu0 0.0
  %224 = vmatpush1.msra.mxu0 0.0
  %225 = vmatprep.subr.mxu0 0.0
  %226 = vmatpush1.msra.mxu0 0.0
  %227 = vmatprep.subr.mxu0 0.0
  %228 = vmatpush1.msra.mxu0 0.0
  %229 = vmatprep.subr.mxu0 0.0
  %230 = vmatpush1.msra.mxu0 0.0
  %231 = vmatprep.subr.mxu0 0.0
  %232 = vmatpush1.msra.mxu0 0.0
  %233 = vmatprep.subr.mxu0 0.0
  %234 = vmatpush1.msra.mxu0 0.0
  %235 = vmatprep.subr.mxu0 0.0
  %236 = vmatpush1.msra.mxu0 0.0
  %237 = vmatprep.subr.mxu0 0.0
  %238 = vmatpush1.msra.mxu0 0.0
  %239 = vmatprep.subr.mxu0 0.0
  %240 = vmatpush1.msra.mxu0 0.0
  %241 = vmatprep.subr.mxu0 0.0
  %242 = vmatpush1.msra.mxu0 0.0
  %243 = vmatprep.subr.mxu0 0.0
  %244 = vmatpush1.msra.mxu0 0.0
  %245 = vmatprep.subr.mxu0 0.0
  %246 = vmatpush1.msra.mxu0 0.0
  %247 = vmatprep.subr.mxu0 0.0
  %248 = vmatpush1.msra.mxu0 0.0
  %249 = vmatprep.subr.mxu0 0.0
  %250 = vmatpush1.msra.mxu0 0.0
  %251 = vmatprep.subr.mxu0 0.0
  %252 = vmatpush1.msra.mxu0 0.0
  %253 = vmatprep.subr.mxu0 0.0
  %254 = vmatpush1.msra.mxu0 0.0
  %255 = vmatprep.subr.mxu0 0.0
  %256 = vmatpush1.msra.mxu0 0.0
  %257 = vmatprep.subr.mxu0 0.0
  %258 = vmatpush1.msra.mxu0 0.0
  %259 = vmatprep.mubr.f32.mxu0 0.0
  %260 = vmatmul.mubr.f32.gmra.mrb[0].mxu0 %v193
  %v261 = vpop.f32.mrb[0].mxu0
  %v262 = vadd.f32 0.0, %v261
  %v263 = vpop.f32.mrb[0].mxu0
  %v264 = vadd.f32 0.0, %v263
  %265 = vdwg.mxu0
  %v266 = vadd.f32 %v190, %v262
  %v267 = vadd.f32 %v191, %v264
  %v268 = vxor.u32 %v266, 2147483648
  %v269 = vxor.u32 %v267, 2147483648
  %v270 = vmul.f32 %v268, 1.442695
  %v271 = vpow.pop %v270
  %v272 = vmul.f32 %v269, 1.442695
  %v273 = vpow.pop %v272
  %v274 = vadd.f32 %v271, 1.0
  %v275 = vadd.f32 %v273, 1.0
  %v276 = vrcp.pop %v274
  %v277 = vmul.f32 1.0, %v276
  %v278 = vrcp.pop %v275
  %v279 = vmul.f32 1.0, %v278
  %v280 = vtanh.pop %v267
  %282 = vrot.lane.b32.xlu0 %v188, 64
  %v283 = vpop.permute.xlu0 %282
  %v285 = vmul.f32 %v277, %v283
  %v286 = vmul.f32 %v277, %v280
  %288 = vrot.lane.b32.xlu0 %v286, 64
  %v289 = vpop.permute.xlu0 %288
  %v291 = vadd.f32 %v285, %v289
  %v292 = vtanh.pop %v291
  %v293 = vmul.f32 %v279, %v292
  %s294 = scalar_lea.vmem %s2, 8
  %v295 = vld [vmem:[%s294] sm:$0xff]
  %297 = vset.pattern.permute.xlu0 0
  %298 = vperm.xlu0 %297, %v295
  %v299 = vpop.permute.xlu0 %298
  %v301 = vmul.f32 %v299, %v293
  %v302 = vsub.f32 1.0, %v295
  %304 = vset.pattern.permute.xlu0 0
  %305 = vperm.xlu0 %304, %v302
  %v306 = vpop.permute.xlu0 %305
  %v308 = vmul.f32 %v306, %v187
  %310 = vrot.lane.b32.xlu0 %v308, 64
  %v311 = vpop.permute.xlu0 %310
  %v313 = vadd.f32 %v301, %v311
  %315 = vrot.lane.b32.xlu0 %v313, 64
  %v316 = vpop.permute.xlu0 %315
  %318 = vst.msk [vmem:[#allocation2] sm:$0xff] %vm14, %v316
  %v319 = vmul.f32 %v299, %v291
  %v320 = vmul.f32 %v306, %v188
  %322 = vrot.lane.b32.xlu0 %v320, 64
  %v323 = vpop.permute.xlu0 %322
  %v325 = vadd.f32 %v319, %v323
  %327 = vrot.lane.b32.xlu0 %v325, 64
  %v328 = vpop.permute.xlu0 %327
  %330 = vst.msk [vmem:[#allocation3] sm:$0xff] %vm14, %v328
  %v331 = vmul.f32 %v302, 0.0
  %333 = vset.pattern.permute.xlu0 0
  %334 = vperm.xlu0 %333, %v331
  %v335 = vpop.permute.xlu0 %334
  %v337 = vadd.f32 %v301, %v335
  %339 = vrot.lane.b32.xlu0 %v337, 64
  %v340 = vpop.permute.xlu0 %339
  %s342 = scalar_lea.vmem %s3, 8
  %343 = vst.msk [vmem:[%s342] sm:$0xff] %vm14, %v340
  %v344 = vld [vmem:[#allocation2] sm:$0xff]
  %v345 = vld [vmem:[#allocation3] sm:$0xff]
  %s346 = scalar_lea.vmem %s0, 32
  %v347 = vld [vmem:[%s346] sm:$0xff]
  %v348 = vld [vmem:[%s346 + $0x8] sm:$0xff]
  %v350 = vsel %vm14, %v344, 0
  %352 = vmatprep.subr.mxu0 %v18
  %353 = vmatpush1.msra.mxu0 %v17
  %354 = vmatprep.subr.mxu0 %v20
  %355 = vmatpush1.msra.mxu0 %v19
  %356 = vmatprep.subr.mxu0 %v22
  %357 = vmatpush1.msra.mxu0 %v21
  %358 = vmatprep.subr.mxu0 %v24
  %359 = vmatpush1.msra.mxu0 %v23
  %360 = vmatprep.subr.mxu0 %v26
  %361 = vmatpush1.msra.mxu0 %v25
  %362 = vmatprep.subr.mxu0 %v28
  %363 = vmatpush1.msra.mxu0 %v27
  %364 = vmatprep.subr.mxu0 %v30
  %365 = vmatpush1.msra.mxu0 %v29
  %366 = vmatprep.subr.mxu0 %v32
  %367 = vmatpush1.msra.mxu0 %v31
  %368 = vmatprep.subr.mxu0 0.0
  %369 = vmatpush1.msra.mxu0 0.0
  %370 = vmatprep.subr.mxu0 0.0
  %371 = vmatpush1.msra.mxu0 0.0
  %372 = vmatprep.subr.mxu0 0.0
  %373 = vmatpush1.msra.mxu0 0.0
  %374 = vmatprep.subr.mxu0 0.0
  %375 = vmatpush1.msra.mxu0 0.0
  %376 = vmatprep.subr.mxu0 0.0
  %377 = vmatpush1.msra.mxu0 0.0
  %378 = vmatprep.subr.mxu0 0.0
  %379 = vmatpush1.msra.mxu0 0.0
  %380 = vmatprep.subr.mxu0 0.0
  %381 = vmatpush1.msra.mxu0 0.0
  %382 = vmatprep.subr.mxu0 0.0
  %383 = vmatpush1.msra.mxu0 0.0
  %384 = vmatprep.subr.mxu0 0.0
  %385 = vmatpush1.msra.mxu0 0.0
  %386 = vmatprep.subr.mxu0 0.0
  %387 = vmatpush1.msra.mxu0 0.0
  %388 = vmatprep.subr.mxu0 0.0
  %389 = vmatpush1.msra.mxu0 0.0
  %390 = vmatprep.subr.mxu0 0.0
  %391 = vmatpush1.msra.mxu0 0.0
  %392 = vmatprep.subr.mxu0 0.0
  %393 = vmatpush1.msra.mxu0 0.0
  %394 = vmatprep.subr.mxu0 0.0
  %395 = vmatpush1.msra.mxu0 0.0
  %396 = vmatprep.subr.mxu0 0.0
  %397 = vmatpush1.msra.mxu0 0.0
  %398 = vmatprep.subr.mxu0 0.0
  %399 = vmatpush1.msra.mxu0 0.0
  %400 = vmatprep.subr.mxu0 0.0
  %401 = vmatpush1.msra.mxu0 0.0
  %402 = vmatprep.subr.mxu0 0.0
  %403 = vmatpush1.msra.mxu0 0.0
  %404 = vmatprep.subr.mxu0 0.0
  %405 = vmatpush1.msra.mxu0 0.0
  %406 = vmatprep.subr.mxu0 0.0
  %407 = vmatpush1.msra.mxu0 0.0
  %408 = vmatprep.subr.mxu0 0.0
  %409 = vmatpush1.msra.mxu0 0.0
  %410 = vmatprep.subr.mxu0 0.0
  %411 = vmatpush1.msra.mxu0 0.0
  %412 = vmatprep.subr.mxu0 0.0
  %413 = vmatpush1.msra.mxu0 0.0
  %414 = vmatprep.subr.mxu0 0.0
  %415 = vmatpush1.msra.mxu0 0.0
  %416 = vmatprep.mubr.f32.mxu0 0.0
  %417 = vmatmul.mubr.f32.gmra.mrb[0].mxu0 %v350
  %v418 = vpop.f32.mrb[0].mxu0
  %v419 = vadd.f32 0.0, %v418
  %v420 = vpop.f32.mrb[0].mxu0
  %v421 = vadd.f32 0.0, %v420
  %422 = vdwg.mxu0
  %v423 = vadd.f32 %v347, %v419
  %v424 = vadd.f32 %v348, %v421
  %v425 = vxor.u32 %v423, 2147483648
  %v426 = vxor.u32 %v424, 2147483648
  %v427 = vmul.f32 %v425, 1.442695
  %v428 = vpow.pop %v427
  %v429 = vmul.f32 %v426, 1.442695
  %v430 = vpow.pop %v429
  %v431 = vadd.f32 %v428, 1.0
  %v432 = vadd.f32 %v430, 1.0
  %v433 = vrcp.pop %v431
  %v434 = vmul.f32 1.0, %v433
  %v435 = vrcp.pop %v432
  %v436 = vmul.f32 1.0, %v435
  %v437 = vtanh.pop %v424
  %439 = vrot.lane.b32.xlu0 %v345, 64
  %v440 = vpop.permute.xlu0 %439
  %v442 = vmul.f32 %v434, %v440
  %v443 = vmul.f32 %v434, %v437
  %445 = vrot.lane.b32.xlu0 %v443, 64
  %v446 = vpop.permute.xlu0 %445
  %v448 = vadd.f32 %v442, %v446
  %v449 = vtanh.pop %v448
  %v450 = vmul.f32 %v436, %v449
  %s451 = scalar_lea.vmem %s2, 16
  %v452 = vld [vmem:[%s451] sm:$0xff]
  %454 = vset.pattern.permute.xlu0 0
  %455 = vperm.xlu0 %454, %v452
  %v456 = vpop.permute.xlu0 %455
  %v458 = vmul.f32 %v456, %v450
  %v459 = vsub.f32 1.0, %v452
  %461 = vset.pattern.permute.xlu0 0
  %462 = vperm.xlu0 %461, %v459
  %v463 = vpop.permute.xlu0 %462
  %v465 = vmul.f32 %v463, %v344
  %467 = vrot.lane.b32.xlu0 %v465, 64
  %v468 = vpop.permute.xlu0 %467
  %v470 = vadd.f32 %v458, %v468
  %472 = vrot.lane.b32.xlu0 %v470, 64
  %v473 = vpop.permute.xlu0 %472
  %475 = vst.msk [vmem:[#allocation2] sm:$0xff] %vm14, %v473
  %v476 = vmul.f32 %v456, %v448
  %v477 = vmul.f32 %v463, %v345
  %479 = vrot.lane.b32.xlu0 %v477, 64
  %v480 = vpop.permute.xlu0 %479
  %v482 = vadd.f32 %v476, %v480
  %484 = vrot.lane.b32.xlu0 %v482, 64
  %v485 = vpop.permute.xlu0 %484
  %487 = vst.msk [vmem:[#allocation3] sm:$0xff] %vm14, %v485
  %v488 = vmul.f32 %v459, 0.0
  %490 = vset.pattern.permute.xlu0 0
  %491 = vperm.xlu0 %490, %v488
  %v492 = vpop.permute.xlu0 %491
  %v494 = vadd.f32 %v458, %v492
  %496 = vrot.lane.b32.xlu0 %v494, 64
  %v497 = vpop.permute.xlu0 %496
  %s499 = scalar_lea.vmem %s3, 16
  %500 = vst.msk [vmem:[%s499] sm:$0xff] %vm14, %v497
  %v501 = vld [vmem:[#allocation2] sm:$0xff]
  %v502 = vld [vmem:[#allocation3] sm:$0xff]
  %s503 = scalar_lea.vmem %s0, 48
  %v504 = vld [vmem:[%s503] sm:$0xff]
  %v505 = vld [vmem:[%s503 + $0x8] sm:$0xff]
  %v507 = vsel %vm14, %v501, 0
  %509 = vmatprep.subr.mxu0 %v18
  %510 = vmatpush1.msra.mxu0 %v17
  %511 = vmatprep.subr.mxu0 %v20
  %512 = vmatpush1.msra.mxu0 %v19
  %513 = vmatprep.subr.mxu0 %v22
  %514 = vmatpush1.msra.mxu0 %v21
  %515 = vmatprep.subr.mxu0 %v24
  %516 = vmatpush1.msra.mxu0 %v23
  %517 = vmatprep.subr.mxu0 %v26
  %518 = vmatpush1.msra.mxu0 %v25
  %519 = vmatprep.subr.mxu0 %v28
  %520 = vmatpush1.msra.mxu0 %v27
  %521 = vmatprep.subr.mxu0 %v30
  %522 = vmatpush1.msra.mxu0 %v29
  %523 = vmatprep.subr.mxu0 %v32
  %524 = vmatpush1.msra.mxu0 %v31
  %525 = vmatprep.subr.mxu0 0.0
  %526 = vmatpush1.msra.mxu0 0.0
  %527 = vmatprep.subr.mxu0 0.0
  %528 = vmatpush1.msra.mxu0 0.0
  %529 = vmatprep.subr.mxu0 0.0
  %530 = vmatpush1.msra.mxu0 0.0
  %531 = vmatprep.subr.mxu0 0.0
  %532 = vmatpush1.msra.mxu0 0.0
  %533 = vmatprep.subr.mxu0 0.0
  %534 = vmatpush1.msra.mxu0 0.0
  %535 = vmatprep.subr.mxu0 0.0
  %536 = vmatpush1.msra.mxu0 0.0
  %537 = vmatprep.subr.mxu0 0.0
  %538 = vmatpush1.msra.mxu0 0.0
  %539 = vmatprep.subr.mxu0 0.0
  %540 = vmatpush1.msra.mxu0 0.0
  %541 = vmatprep.subr.mxu0 0.0
  %542 = vmatpush1.msra.mxu0 0.0
  %543 = vmatprep.subr.mxu0 0.0
  %544 = vmatpush1.msra.mxu0 0.0
  %545 = vmatprep.subr.mxu0 0.0
  %546 = vmatpush1.msra.mxu0 0.0
  %547 = vmatprep.subr.mxu0 0.0
  %548 = vmatpush1.msra.mxu0 0.0
  %549 = vmatprep.subr.mxu0 0.0
  %550 = vmatpush1.msra.mxu0 0.0
  %551 = vmatprep.subr.mxu0 0.0
  %552 = vmatpush1.msra.mxu0 0.0
  %553 = vmatprep.subr.mxu0 0.0
  %554 = vmatpush1.msra.mxu0 0.0
  %555 = vmatprep.subr.mxu0 0.0
  %556 = vmatpush1.msra.mxu0 0.0
  %557 = vmatprep.subr.mxu0 0.0
  %558 = vmatpush1.msra.mxu0 0.0
  %559 = vmatprep.subr.mxu0 0.0
  %560 = vmatpush1.msra.mxu0 0.0
  %561 = vmatprep.subr.mxu0 0.0
  %562 = vmatpush1.msra.mxu0 0.0
  %563 = vmatprep.subr.mxu0 0.0
  %564 = vmatpush1.msra.mxu0 0.0
  %565 = vmatprep.subr.mxu0 0.0
  %566 = vmatpush1.msra.mxu0 0.0
  %567 = vmatprep.subr.mxu0 0.0
  %568 = vmatpush1.msra.mxu0 0.0
  %569 = vmatprep.subr.mxu0 0.0
  %570 = vmatpush1.msra.mxu0 0.0
  %571 = vmatprep.subr.mxu0 0.0
  %572 = vmatpush1.msra.mxu0 0.0
  %573 = vmatprep.mubr.f32.mxu0 0.0
  %574 = vmatmul.mubr.f32.gmra.mrb[0].mxu0 %v507
  %v575 = vpop.f32.mrb[0].mxu0
  %v576 = vadd.f32 0.0, %v575
  %v577 = vpop.f32.mrb[0].mxu0
  %v578 = vadd.f32 0.0, %v577
  %579 = vdwg.mxu0
  %v580 = vadd.f32 %v504, %v576
  %v581 = vadd.f32 %v505, %v578
  %v582 = vxor.u32 %v580, 2147483648
  %v583 = vxor.u32 %v581, 2147483648
  %v584 = vmul.f32 %v582, 1.442695
  %v585 = vpow.pop %v584
  %v586 = vmul.f32 %v583, 1.442695
  %v587 = vpow.pop %v586
  %v588 = vadd.f32 %v585, 1.0
  %v589 = vadd.f32 %v587, 1.0
  %v590 = vrcp.pop %v588
  %v591 = vmul.f32 1.0, %v590
  %v592 = vrcp.pop %v589
  %v593 = vmul.f32 1.0, %v592
  %v594 = vtanh.pop %v581
  %596 = vrot.lane.b32.xlu0 %v502, 64
  %v597 = vpop.permute.xlu0 %596
  %v599 = vmul.f32 %v591, %v597
  %v600 = vmul.f32 %v591, %v594
  %602 = vrot.lane.b32.xlu0 %v600, 64
  %v603 = vpop.permute.xlu0 %602
  %v605 = vadd.f32 %v599, %v603
  %v606 = vtanh.pop %v605
  %v607 = vmul.f32 %v593, %v606
  %s608 = scalar_lea.vmem %s2, 24
  %v609 = vld [vmem:[%s608] sm:$0xff]
  %611 = vset.pattern.permute.xlu0 0
  %612 = vperm.xlu0 %611, %v609
  %v613 = vpop.permute.xlu0 %612
  %v615 = vmul.f32 %v613, %v607
  %v616 = vsub.f32 1.0, %v609
  %618 = vset.pattern.permute.xlu0 0
  %619 = vperm.xlu0 %618, %v616
  %v620 = vpop.permute.xlu0 %619
  %v622 = vmul.f32 %v620, %v501
  %624 = vrot.lane.b32.xlu0 %v622, 64
  %v625 = vpop.permute.xlu0 %624
  %v627 = vadd.f32 %v615, %v625
  %629 = vrot.lane.b32.xlu0 %v627, 64
  %v630 = vpop.permute.xlu0 %629
  %632 = vst.msk [vmem:[#allocation2] sm:$0xff] %vm14, %v630
  %v633 = vmul.f32 %v613, %v605
  %v634 = vmul.f32 %v620, %v502
  %636 = vrot.lane.b32.xlu0 %v634, 64
  %v637 = vpop.permute.xlu0 %636
  %v639 = vadd.f32 %v633, %v637
  %641 = vrot.lane.b32.xlu0 %v639, 64
  %v642 = vpop.permute.xlu0 %641
  %644 = vst.msk [vmem:[#allocation3] sm:$0xff] %vm14, %v642
  %v645 = vmul.f32 %v616, 0.0
  %647 = vset.pattern.permute.xlu0 0
  %648 = vperm.xlu0 %647, %v645
  %v649 = vpop.permute.xlu0 %648
  %v651 = vadd.f32 %v615, %v649
  %653 = vrot.lane.b32.xlu0 %v651, 64
  %v654 = vpop.permute.xlu0 %653
  %s656 = scalar_lea.vmem %s3, 24
  %657 = vst.msk [vmem:[%s656] sm:$0xff] %vm14, %v654
  %v658 = vld [vmem:[#allocation2] sm:$0xff]
  %v659 = vld [vmem:[#allocation3] sm:$0xff]
  %s660 = scalar_lea.vmem %s0, 64
  %v661 = vld [vmem:[%s660] sm:$0xff]
  %v662 = vld [vmem:[%s660 + $0x8] sm:$0xff]
  %v664 = vsel %vm14, %v658, 0
  %666 = vmatprep.subr.mxu0 %v18
  %667 = vmatpush1.msra.mxu0 %v17
  %668 = vmatprep.subr.mxu0 %v20
  %669 = vmatpush1.msra.mxu0 %v19
  %670 = vmatprep.subr.mxu0 %v22
  %671 = vmatpush1.msra.mxu0 %v21
  %672 = vmatprep.subr.mxu0 %v24
  %673 = vmatpush1.msra.mxu0 %v23
  %674 = vmatprep.subr.mxu0 %v26
  %675 = vmatpush1.msra.mxu0 %v25
  %676 = vmatprep.subr.mxu0 %v28
  %677 = vmatpush1.msra.mxu0 %v27
  %678 = vmatprep.subr.mxu0 %v30
  %679 = vmatpush1.msra.mxu0 %v29
  %680 = vmatprep.subr.mxu0 %v32
  %681 = vmatpush1.msra.mxu0 %v31
  %682 = vmatprep.subr.mxu0 0.0
  %683 = vmatpush1.msra.mxu0 0.0
  %684 = vmatprep.subr.mxu0 0.0
  %685 = vmatpush1.msra.mxu0 0.0
  %686 = vmatprep.subr.mxu0 0.0
  %687 = vmatpush1.msra.mxu0 0.0
  %688 = vmatprep.subr.mxu0 0.0
  %689 = vmatpush1.msra.mxu0 0.0
  %690 = vmatprep.subr.mxu0 0.0
  %691 = vmatpush1.msra.mxu0 0.0
  %692 = vmatprep.subr.mxu0 0.0
  %693 = vmatpush1.msra.mxu0 0.0
  %694 = vmatprep.subr.mxu0 0.0
  %695 = vmatpush1.msra.mxu0 0.0
  %696 = vmatprep.subr.mxu0 0.0
  %697 = vmatpush1.msra.mxu0 0.0
  %698 = vmatprep.subr.mxu0 0.0
  %699 = vmatpush1.msra.mxu0 0.0
  %700 = vmatprep.subr.mxu0 0.0
  %701 = vmatpush1.msra.mxu0 0.0
  %702 = vmatprep.subr.mxu0 0.0
  %703 = vmatpush1.msra.mxu0 0.0
  %704 = vmatprep.subr.mxu0 0.0
  %705 = vmatpush1.msra.mxu0 0.0
  %706 = vmatprep.subr.mxu0 0.0
  %707 = vmatpush1.msra.mxu0 0.0
  %708 = vmatprep.subr.mxu0 0.0
  %709 = vmatpush1.msra.mxu0 0.0
  %710 = vmatprep.subr.mxu0 0.0
  %711 = vmatpush1.msra.mxu0 0.0
  %712 = vmatprep.subr.mxu0 0.0
  %713 = vmatpush1.msra.mxu0 0.0
  %714 = vmatprep.subr.mxu0 0.0
  %715 = vmatpush1.msra.mxu0 0.0
  %716 = vmatprep.subr.mxu0 0.0
  %717 = vmatpush1.msra.mxu0 0.0
  %718 = vmatprep.subr.mxu0 0.0
  %719 = vmatpush1.msra.mxu0 0.0
  %720 = vmatprep.subr.mxu0 0.0
  %721 = vmatpush1.msra.mxu0 0.0
  %722 = vmatprep.subr.mxu0 0.0
  %723 = vmatpush1.msra.mxu0 0.0
  %724 = vmatprep.subr.mxu0 0.0
  %725 = vmatpush1.msra.mxu0 0.0
  %726 = vmatprep.subr.mxu0 0.0
  %727 = vmatpush1.msra.mxu0 0.0
  %728 = vmatprep.subr.mxu0 0.0
  %729 = vmatpush1.msra.mxu0 0.0
  %730 = vmatprep.mubr.f32.mxu0 0.0
  %731 = vmatmul.mubr.f32.gmra.mrb[0].mxu0 %v664
  %v732 = vpop.f32.mrb[0].mxu0
  %v733 = vadd.f32 0.0, %v732
  %v734 = vpop.f32.mrb[0].mxu0
  %v735 = vadd.f32 0.0, %v734
  %736 = vdwg.mxu0
  %v737 = vadd.f32 %v661, %v733
  %v738 = vadd.f32 %v662, %v735
  %v739 = vxor.u32 %v737, 2147483648
  %v740 = vxor.u32 %v738, 2147483648
  %v741 = vmul.f32 %v739, 1.442695
  %v742 = vpow.pop %v741
  %v743 = vmul.f32 %v740, 1.442695
  %v744 = vpow.pop %v743
  %v745 = vadd.f32 %v742, 1.0
  %v746 = vadd.f32 %v744, 1.0
  %v747 = vrcp.pop %v745
  %v748 = vmul.f32 1.0, %v747
  %v749 = vrcp.pop %v746
  %v750 = vmul.f32 1.0, %v749
  %v751 = vtanh.pop %v738
  %753 = vrot.lane.b32.xlu0 %v659, 64
  %v754 = vpop.permute.xlu0 %753
  %v756 = vmul.f32 %v748, %v754
  %v757 = vmul.f32 %v748, %v751
  %759 = vrot.lane.b32.xlu0 %v757, 64
  %v760 = vpop.permute.xlu0 %759
  %v762 = vadd.f32 %v756, %v760
  %v763 = vtanh.pop %v762
  %v764 = vmul.f32 %v750, %v763
  %s765 = scalar_lea.vmem %s2, 32
  %v766 = vld [vmem:[%s765] sm:$0xff]
  %768 = vset.pattern.permute.xlu0 0
  %769 = vperm.xlu0 %768, %v766
  %v770 = vpop.permute.xlu0 %769
  %v772 = vmul.f32 %v770, %v764
  %v773 = vsub.f32 1.0, %v766
  %775 = vset.pattern.permute.xlu0 0
  %776 = vperm.xlu0 %775, %v773
  %v777 = vpop.permute.xlu0 %776
  %v779 = vmul.f32 %v777, %v658
  %781 = vrot.lane.b32.xlu0 %v779, 64
  %v782 = vpop.permute.xlu0 %781
  %v784 = vadd.f32 %v772, %v782
  %786 = vrot.lane.b32.xlu0 %v784, 64
  %v787 = vpop.permute.xlu0 %786
  %789 = vst.msk [vmem:[#allocation2] sm:$0xff] %vm14, %v787
  %v790 = vmul.f32 %v770, %v762
  %v791 = vmul.f32 %v777, %v659
  %793 = vrot.lane.b32.xlu0 %v791, 64
  %v794 = vpop.permute.xlu0 %793
  %v796 = vadd.f32 %v790, %v794
  %798 = vrot.lane.b32.xlu0 %v796, 64
  %v799 = vpop.permute.xlu0 %798
  %801 = vst.msk [vmem:[#allocation3] sm:$0xff] %vm14, %v799
  %v802 = vmul.f32 %v773, 0.0
  %804 = vset.pattern.permute.xlu0 0
  %805 = vperm.xlu0 %804, %v802
  %v806 = vpop.permute.xlu0 %805
  %v808 = vadd.f32 %v772, %v806
  %810 = vrot.lane.b32.xlu0 %v808, 64
  %v811 = vpop.permute.xlu0 %810
  %s813 = scalar_lea.vmem %s3, 32
  %814 = vst.msk [vmem:[%s813] sm:$0xff] %vm14, %v811
  %v815 = vld [vmem:[#allocation2] sm:$0xff]
  %v816 = vld [vmem:[#allocation3] sm:$0xff]
  %s817 = scalar_lea.vmem %s0, 80
  %v818 = vld [vmem:[%s817] sm:$0xff]
  %v819 = vld [vmem:[%s817 + $0x8] sm:$0xff]
  %v821 = vsel %vm14, %v815, 0
  %823 = vmatprep.subr.mxu0 %v18
  %824 = vmatpush1.msra.mxu0 %v17
  %825 = vmatprep.subr.mxu0 %v20
  %826 = vmatpush1.msra.mxu0 %v19
  %827 = vmatprep.subr.mxu0 %v22
  %828 = vmatpush1.msra.mxu0 %v21
  %829 = vmatprep.subr.mxu0 %v24
  %830 = vmatpush1.msra.mxu0 %v23
  %831 = vmatprep.subr.mxu0 %v26
  %832 = vmatpush1.msra.mxu0 %v25
  %833 = vmatprep.subr.mxu0 %v28
  %834 = vmatpush1.msra.mxu0 %v27
  %835 = vmatprep.subr.mxu0 %v30
  %836 = vmatpush1.msra.mxu0 %v29
  %837 = vmatprep.subr.mxu0 %v32
  %838 = vmatpush1.msra.mxu0 %v31
  %839 = vmatprep.subr.mxu0 0.0
  %840 = vmatpush1.msra.mxu0 0.0
  %841 = vmatprep.subr.mxu0 0.0
  %842 = vmatpush1.msra.mxu0 0.0
  %843 = vmatprep.subr.mxu0 0.0
  %844 = vmatpush1.msra.mxu0 0.0
  %845 = vmatprep.subr.mxu0 0.0
  %846 = vmatpush1.msra.mxu0 0.0
  %847 = vmatprep.subr.mxu0 0.0
  %848 = vmatpush1.msra.mxu0 0.0
  %849 = vmatprep.subr.mxu0 0.0
  %850 = vmatpush1.msra.mxu0 0.0
  %851 = vmatprep.subr.mxu0 0.0
  %852 = vmatpush1.msra.mxu0 0.0
  %853 = vmatprep.subr.mxu0 0.0
  %854 = vmatpush1.msra.mxu0 0.0
  %855 = vmatprep.subr.mxu0 0.0
  %856 = vmatpush1.msra.mxu0 0.0
  %857 = vmatprep.subr.mxu0 0.0
  %858 = vmatpush1.msra.mxu0 0.0
  %859 = vmatprep.subr.mxu0 0.0
  %860 = vmatpush1.msra.mxu0 0.0
  %861 = vmatprep.subr.mxu0 0.0
  %862 = vmatpush1.msra.mxu0 0.0
  %863 = vmatprep.subr.mxu0 0.0
  %864 = vmatpush1.msra.mxu0 0.0
  %865 = vmatprep.subr.mxu0 0.0
  %866 = vmatpush1.msra.mxu0 0.0
  %867 = vmatprep.subr.mxu0 0.0
  %868 = vmatpush1.msra.mxu0 0.0
  %869 = vmatprep.subr.mxu0 0.0
  %870 = vmatpush1.msra.mxu0 0.0
  %871 = vmatprep.subr.mxu0 0.0
  %872 = vmatpush1.msra.mxu0 0.0
  %873 = vmatprep.subr.mxu0 0.0
  %874 = vmatpush1.msra.mxu0 0.0
  %875 = vmatprep.subr.mxu0 0.0
  %876 = vmatpush1.msra.mxu0 0.0
  %877 = vmatprep.subr.mxu0 0.0
  %878 = vmatpush1.msra.mxu0 0.0
  %879 = vmatprep.subr.mxu0 0.0
  %880 = vmatpush1.msra.mxu0 0.0
  %881 = vmatprep.subr.mxu0 0.0
  %882 = vmatpush1.msra.mxu0 0.0
  %883 = vmatprep.subr.mxu0 0.0
  %884 = vmatpush1.msra.mxu0 0.0
  %885 = vmatprep.subr.mxu0 0.0
  %886 = vmatpush1.msra.mxu0 0.0
  %887 = vmatprep.mubr.f32.mxu0 0.0
  %888 = vmatmul.mubr.f32.gmra.mrb[0].mxu0 %v821
  %v889 = vpop.f32.mrb[0].mxu0
  %v890 = vadd.f32 0.0, %v889
  %v891 = vpop.f32.mrb[0].mxu0
  %v892 = vadd.f32 0.0, %v891
  %893 = vdwg.mxu0
  %v894 = vadd.f32 %v818, %v890
  %v895 = vadd.f32 %v819, %v892
  %v896 = vxor.u32 %v894, 2147483648
  %v897 = vxor.u32 %v895, 2147483648
  %v898 = vmul.f32 %v896, 1.442695
  %v899 = vpow.pop %v898
  %v900 = vmul.f32 %v897, 1.442695
  %v901 = vpow.pop %v900
  %v902 = vadd.f32 %v899, 1.0
  %v903 = vadd.f32 %v901, 1.0
  %v904 = vrcp.pop %v902
  %v905 = vmul.f32 1.0, %v904
  %v906 = vrcp.pop %v903
  %v907 = vmul.f32 1.0, %v906
  %v908 = vtanh.pop %v895
  %910 = vrot.lane.b32.xlu0 %v816, 64
  %v911 = vpop.permute.xlu0 %910
  %v913 = vmul.f32 %v905, %v911
  %v914 = vmul.f32 %v905, %v908
  %916 = vrot.lane.b32.xlu0 %v914, 64
  %v917 = vpop.permute.xlu0 %916
  %v919 = vadd.f32 %v913, %v917
  %v920 = vtanh.pop %v919
  %v921 = vmul.f32 %v907, %v920
  %s922 = scalar_lea.vmem %s2, 40
  %v923 = vld [vmem:[%s922] sm:$0xff]
  %925 = vset.pattern.permute.xlu0 0
  %926 = vperm.xlu0 %925, %v923
  %v927 = vpop.permute.xlu0 %926
  %v929 = vmul.f32 %v927, %v921
  %v930 = vsub.f32 1.0, %v923
  %932 = vset.pattern.permute.xlu0 0
  %933 = vperm.xlu0 %932, %v930
  %v934 = vpop.permute.xlu0 %933
  %v936 = vmul.f32 %v934, %v815
  %938 = vrot.lane.b32.xlu0 %v936, 64
  %v939 = vpop.permute.xlu0 %938
  %v941 = vadd.f32 %v929, %v939
  %943 = vrot.lane.b32.xlu0 %v941, 64
  %v944 = vpop.permute.xlu0 %943
  %946 = vst.msk [vmem:[#allocation2] sm:$0xff] %vm14, %v944
  %v947 = vmul.f32 %v927, %v919
  %v948 = vmul.f32 %v934, %v816
  %950 = vrot.lane.b32.xlu0 %v948, 64
  %v951 = vpop.permute.xlu0 %950
  %v953 = vadd.f32 %v947, %v951
  %955 = vrot.lane.b32.xlu0 %v953, 64
  %v956 = vpop.permute.xlu0 %955
  %958 = vst.msk [vmem:[#allocation3] sm:$0xff] %vm14, %v956
  %v959 = vmul.f32 %v930, 0.0
  %961 = vset.pattern.permute.xlu0 0
  %962 = vperm.xlu0 %961, %v959
  %v963 = vpop.permute.xlu0 %962
  %v965 = vadd.f32 %v929, %v963
  %967 = vrot.lane.b32.xlu0 %v965, 64
  %v968 = vpop.permute.xlu0 %967
  %s970 = scalar_lea.vmem %s3, 40
  %971 = vst.msk [vmem:[%s970] sm:$0xff] %vm14, %v968
  %v972 = vld [vmem:[#allocation2] sm:$0xff]
  %v973 = vld [vmem:[#allocation3] sm:$0xff]
  %s974 = scalar_lea.vmem %s0, 96
  %v975 = vld [vmem:[%s974] sm:$0xff]
  %v976 = vld [vmem:[%s974 + $0x8] sm:$0xff]
  %v978 = vsel %vm14, %v972, 0
  %980 = vmatprep.subr.mxu0 %v18
  %981 = vmatpush1.msra.mxu0 %v17
  %982 = vmatprep.subr.mxu0 %v20
  %983 = vmatpush1.msra.mxu0 %v19
  %984 = vmatprep.subr.mxu0 %v22
  %985 = vmatpush1.msra.mxu0 %v21
  %986 = vmatprep.subr.mxu0 %v24
  %987 = vmatpush1.msra.mxu0 %v23
  %988 = vmatprep.subr.mxu0 %v26
  %989 = vmatpush1.msra.mxu0 %v25
  %990 = vmatprep.subr.mxu0 %v28
  %991 = vmatpush1.msra.mxu0 %v27
  %992 = vmatprep.subr.mxu0 %v30
  %993 = vmatpush1.msra.mxu0 %v29
  %994 = vmatprep.subr.mxu0 %v32
  %995 = vmatpush1.msra.mxu0 %v31
  %996 = vmatprep.subr.mxu0 0.0
  %997 = vmatpush1.msra.mxu0 0.0
  %998 = vmatprep.subr.mxu0 0.0
  %999 = vmatpush1.msra.mxu0 0.0
  %1000 = vmatprep.subr.mxu0 0.0
  %1001 = vmatpush1.msra.mxu0 0.0
  %1002 = vmatprep.subr.mxu0 0.0
  %1003 = vmatpush1.msra.mxu0 0.0
  %1004 = vmatprep.subr.mxu0 0.0
  %1005 = vmatpush1.msra.mxu0 0.0
  %1006 = vmatprep.subr.mxu0 0.0
  %1007 = vmatpush1.msra.mxu0 0.0
  %1008 = vmatprep.subr.mxu0 0.0
  %1009 = vmatpush1.msra.mxu0 0.0
  %1010 = vmatprep.subr.mxu0 0.0
  %1011 = vmatpush1.msra.mxu0 0.0
  %1012 = vmatprep.subr.mxu0 0.0
  %1013 = vmatpush1.msra.mxu0 0.0
  %1014 = vmatprep.subr.mxu0 0.0
  %1015 = vmatpush1.msra.mxu0 0.0
  %1016 = vmatprep.subr.mxu0 0.0
  %1017 = vmatpush1.msra.mxu0 0.0
  %1018 = vmatprep.subr.mxu0 0.0
  %1019 = vmatpush1.msra.mxu0 0.0
  %1020 = vmatprep.subr.mxu0 0.0
  %1021 = vmatpush1.msra.mxu0 0.0
  %1022 = vmatprep.subr.mxu0 0.0
  %1023 = vmatpush1.msra.mxu0 0.0
  %1024 = vmatprep.subr.mxu0 0.0
  %1025 = vmatpush1.msra.mxu0 0.0
  %1026 = vmatprep.subr.mxu0 0.0
  %1027 = vmatpush1.msra.mxu0 0.0
  %1028 = vmatprep.subr.mxu0 0.0
  %1029 = vmatpush1.msra.mxu0 0.0
  %1030 = vmatprep.subr.mxu0 0.0
  %1031 = vmatpush1.msra.mxu0 0.0
  %1032 = vmatprep.subr.mxu0 0.0
  %1033 = vmatpush1.msra.mxu0 0.0
  %1034 = vmatprep.subr.mxu0 0.0
  %1035 = vmatpush1.msra.mxu0 0.0
  %1036 = vmatprep.subr.mxu0 0.0
  %1037 = vmatpush1.msra.mxu0 0.0
  %1038 = vmatprep.subr.mxu0 0.0
  %1039 = vmatpush1.msra.mxu0 0.0
  %1040 = vmatprep.subr.mxu0 0.0
  %1041 = vmatpush1.msra.mxu0 0.0
  %1042 = vmatprep.subr.mxu0 0.0
  %1043 = vmatpush1.msra.mxu0 0.0
  %1044 = vmatprep.mubr.f32.mxu0 0.0
  %1045 = vmatmul.mubr.f32.gmra.mrb[0].mxu0 %v978
  %v1046 = vpop.f32.mrb[0].mxu0
  %v1047 = vadd.f32 0.0, %v1046
  %v1048 = vpop.f32.mrb[0].mxu0
  %v1049 = vadd.f32 0.0, %v1048
  %1050 = vdwg.mxu0
  %v1051 = vadd.f32 %v975, %v1047
  %v1052 = vadd.f32 %v976, %v1049
  %v1053 = vxor.u32 %v1051, 2147483648
  %v1054 = vxor.u32 %v1052, 2147483648
  %v1055 = vmul.f32 %v1053, 1.442695
  %v1056 = vpow.pop %v1055
  %v1057 = vmul.f32 %v1054, 1.442695
  %v1058 = vpow.pop %v1057
  %v1059 = vadd.f32 %v1056, 1.0
  %v1060 = vadd.f32 %v1058, 1.0
  %v1061 = vrcp.pop %v1059
  %v1062 = vmul.f32 1.0, %v1061
  %v1063 = vrcp.pop %v1060
  %v1064 = vmul.f32 1.0, %v1063
  %v1065 = vtanh.pop %v1052
  %1067 = vrot.lane.b32.xlu0 %v973, 64
  %v1068 = vpop.permute.xlu0 %1067
  %v1070 = vmul.f32 %v1062, %v1068
  %v1071 = vmul.f32 %v1062, %v1065
  %1073 = vrot.lane.b32.xlu0 %v1071, 64
  %v1074 = vpop.permute.xlu0 %1073
  %v1076 = vadd.f32 %v1070, %v1074
  %v1077 = vtanh.pop %v1076
  %v1078 = vmul.f32 %v1064, %v1077
  %s1079 = scalar_lea.vmem %s2, 48
  %v1080 = vld [vmem:[%s1079] sm:$0xff]
  %1082 = vset.pattern.permute.xlu0 0
  %1083 = vperm.xlu0 %1082, %v1080
  %v1084 = vpop.permute.xlu0 %1083
  %v1086 = vmul.f32 %v1084, %v1078
  %v1087 = vsub.f32 1.0, %v1080
  %1089 = vset.pattern.permute.xlu0 0
  %1090 = vperm.xlu0 %1089, %v1087
  %v1091 = vpop.permute.xlu0 %1090
  %v1093 = vmul.f32 %v1091, %v972
  %1095 = vrot.lane.b32.xlu0 %v1093, 64
  %v1096 = vpop.permute.xlu0 %1095
  %v1098 = vadd.f32 %v1086, %v1096
  %1100 = vrot.lane.b32.xlu0 %v1098, 64
  %v1101 = vpop.permute.xlu0 %1100
  %1103 = vst.msk [vmem:[#allocation2] sm:$0xff] %vm14, %v1101
  %v1104 = vmul.f32 %v1084, %v1076
  %v1105 = vmul.f32 %v1091, %v973
  %1107 = vrot.lane.b32.xlu0 %v1105, 64
  %v1108 = vpop.permute.xlu0 %1107
  %v1110 = vadd.f32 %v1104, %v1108
  %1112 = vrot.lane.b32.xlu0 %v1110, 64
  %v1113 = vpop.permute.xlu0 %1112
  %1115 = vst.msk [vmem:[#allocation3] sm:$0xff] %vm14, %v1113
  %v1116 = vmul.f32 %v1087, 0.0
  %1118 = vset.pattern.permute.xlu0 0
  %1119 = vperm.xlu0 %1118, %v1116
  %v1120 = vpop.permute.xlu0 %1119
  %v1122 = vadd.f32 %v1086, %v1120
  %1124 = vrot.lane.b32.xlu0 %v1122, 64
  %v1125 = vpop.permute.xlu0 %1124
  %s1127 = scalar_lea.vmem %s3, 48
  %1128 = vst.msk [vmem:[%s1127] sm:$0xff] %vm14, %v1125
  %v1129 = vld [vmem:[#allocation2] sm:$0xff]
  %v1130 = vld [vmem:[#allocation3] sm:$0xff]
  %s1131 = scalar_lea.vmem %s0, 112
  %v1132 = vld [vmem:[%s1131] sm:$0xff]
  %v1133 = vld [vmem:[%s1131 + $0x8] sm:$0xff]
  %v1135 = vsel %vm14, %v1129, 0
  %1137 = vmatprep.subr.mxu0 %v18
  %1138 = vmatpush1.msra.mxu0 %v17
  %1139 = vmatprep.subr.mxu0 %v20
  %1140 = vmatpush1.msra.mxu0 %v19
  %1141 = vmatprep.subr.mxu0 %v22
  %1142 = vmatpush1.msra.mxu0 %v21
  %1143 = vmatprep.subr.mxu0 %v24
  %1144 = vmatpush1.msra.mxu0 %v23
  %1145 = vmatprep.subr.mxu0 %v26
  %1146 = vmatpush1.msra.mxu0 %v25
  %1147 = vmatprep.subr.mxu0 %v28
  %1148 = vmatpush1.msra.mxu0 %v27
  %1149 = vmatprep.subr.mxu0 %v30
  %1150 = vmatpush1.msra.mxu0 %v29
  %1151 = vmatprep.subr.mxu0 %v32
  %1152 = vmatpush1.msra.mxu0 %v31
  %1153 = vmatprep.subr.mxu0 0.0
  %1154 = vmatpush1.msra.mxu0 0.0
  %1155 = vmatprep.subr.mxu0 0.0
  %1156 = vmatpush1.msra.mxu0 0.0
  %1157 = vmatprep.subr.mxu0 0.0
  %1158 = vmatpush1.msra.mxu0 0.0
  %1159 = vmatprep.subr.mxu0 0.0
  %1160 = vmatpush1.msra.mxu0 0.0
  %1161 = vmatprep.subr.mxu0 0.0
  %1162 = vmatpush1.msra.mxu0 0.0
  %1163 = vmatprep.subr.mxu0 0.0
  %1164 = vmatpush1.msra.mxu0 0.0
  %1165 = vmatprep.subr.mxu0 0.0
  %1166 = vmatpush1.msra.mxu0 0.0
  %1167 = vmatprep.subr.mxu0 0.0
  %1168 = vmatpush1.msra.mxu0 0.0
  %1169 = vmatprep.subr.mxu0 0.0
  %1170 = vmatpush1.msra.mxu0 0.0
  %1171 = vmatprep.subr.mxu0 0.0
  %1172 = vmatpush1.msra.mxu0 0.0
  %1173 = vmatprep.subr.mxu0 0.0
  %1174 = vmatpush1.msra.mxu0 0.0
  %1175 = vmatprep.subr.mxu0 0.0
  %1176 = vmatpush1.msra.mxu0 0.0
  %1177 = vmatprep.subr.mxu0 0.0
  %1178 = vmatpush1.msra.mxu0 0.0
  %1179 = vmatprep.subr.mxu0 0.0
  %1180 = vmatpush1.msra.mxu0 0.0
  %1181 = vmatprep.subr.mxu0 0.0
  %1182 = vmatpush1.msra.mxu0 0.0
  %1183 = vmatprep.subr.mxu0 0.0
  %1184 = vmatpush1.msra.mxu0 0.0
  %1185 = vmatprep.subr.mxu0 0.0
  %1186 = vmatpush1.msra.mxu0 0.0
  %1187 = vmatprep.subr.mxu0 0.0
  %1188 = vmatpush1.msra.mxu0 0.0
  %1189 = vmatprep.subr.mxu0 0.0
  %1190 = vmatpush1.msra.mxu0 0.0
  %1191 = vmatprep.subr.mxu0 0.0
  %1192 = vmatpush1.msra.mxu0 0.0
  %1193 = vmatprep.subr.mxu0 0.0
  %1194 = vmatpush1.msra.mxu0 0.0
  %1195 = vmatprep.subr.mxu0 0.0
  %1196 = vmatpush1.msra.mxu0 0.0
  %1197 = vmatprep.subr.mxu0 0.0
  %1198 = vmatpush1.msra.mxu0 0.0
  %1199 = vmatprep.subr.mxu0 0.0
  %1200 = vmatpush1.msra.mxu0 0.0
  %1201 = vmatprep.mubr.f32.mxu0 0.0
  %1202 = vmatmul.mubr.f32.gmra.mrb[0].mxu0 %v1135
  %v1203 = vpop.f32.mrb[0].mxu0
  %v1204 = vadd.f32 0.0, %v1203
  %v1205 = vpop.f32.mrb[0].mxu0
  %v1206 = vadd.f32 0.0, %v1205
  %1207 = vdwg.mxu0
  %v1208 = vadd.f32 %v1132, %v1204
  %v1209 = vadd.f32 %v1133, %v1206
  %v1210 = vxor.u32 %v1208, 2147483648
  %v1211 = vxor.u32 %v1209, 2147483648
  %v1212 = vmul.f32 %v1210, 1.442695
  %v1213 = vpow.pop %v1212
  %v1214 = vmul.f32 %v1211, 1.442695
  %v1215 = vpow.pop %v1214
  %v1216 = vadd.f32 %v1213, 1.0
  %v1217 = vadd.f32 %v1215, 1.0
  %v1218 = vrcp.pop %v1216
  %v1219 = vmul.f32 1.0, %v1218
  %v1220 = vrcp.pop %v1217
  %v1221 = vmul.f32 1.0, %v1220
  %v1222 = vtanh.pop %v1209
  %1224 = vrot.lane.b32.xlu0 %v1130, 64
  %v1225 = vpop.permute.xlu0 %1224
  %v1227 = vmul.f32 %v1219, %v1225
  %v1228 = vmul.f32 %v1219, %v1222
  %1230 = vrot.lane.b32.xlu0 %v1228, 64
  %v1231 = vpop.permute.xlu0 %1230
  %v1233 = vadd.f32 %v1227, %v1231
  %v1234 = vtanh.pop %v1233
  %v1235 = vmul.f32 %v1221, %v1234
  %s1236 = scalar_lea.vmem %s2, 56
  %v1237 = vld [vmem:[%s1236] sm:$0xff]
  %1239 = vset.pattern.permute.xlu0 0
  %1240 = vperm.xlu0 %1239, %v1237
  %v1241 = vpop.permute.xlu0 %1240
  %v1243 = vmul.f32 %v1241, %v1235
  %v1244 = vsub.f32 1.0, %v1237
  %1246 = vset.pattern.permute.xlu0 0
  %1247 = vperm.xlu0 %1246, %v1244
  %v1248 = vpop.permute.xlu0 %1247
  %v1250 = vmul.f32 %v1248, %v1129
  %1252 = vrot.lane.b32.xlu0 %v1250, 64
  %v1253 = vpop.permute.xlu0 %1252
  %v1255 = vadd.f32 %v1243, %v1253
  %1257 = vrot.lane.b32.xlu0 %v1255, 64
  %v1258 = vpop.permute.xlu0 %1257
  %1260 = vst.msk [vmem:[#allocation2] sm:$0xff] %vm14, %v1258
  %v1261 = vmul.f32 %v1241, %v1233
  %v1262 = vmul.f32 %v1248, %v1130
  %1264 = vrot.lane.b32.xlu0 %v1262, 64
  %v1265 = vpop.permute.xlu0 %1264
  %v1267 = vadd.f32 %v1261, %v1265
  %1269 = vrot.lane.b32.xlu0 %v1267, 64
  %v1270 = vpop.permute.xlu0 %1269
  %1272 = vst.msk [vmem:[#allocation3] sm:$0xff] %vm14, %v1270
  %v1273 = vmul.f32 %v1244, 0.0
  %1275 = vset.pattern.permute.xlu0 0
  %1276 = vperm.xlu0 %1275, %v1273
  %v1277 = vpop.permute.xlu0 %1276
  %v1279 = vadd.f32 %v1243, %v1277
  %1281 = vrot.lane.b32.xlu0 %v1279, 64
  %v1282 = vpop.permute.xlu0 %1281
  %s1284 = scalar_lea.vmem %s3, 56
  %1285 = vst.msk [vmem:[%s1284] sm:$0xff] %vm14, %v1282
  // Predicated region
  $region14: #{fi_en_translator_forward.28} parent=0 // pred_check
    _
  $region15: #{fi_en_translator_forward.28} parent=0 // pred_check_branch
    %1287 = sbr.rel (0) target = $region17
  $region16: #{fi_en_translator_forward.28} parent=0 // pred_region
    _
  $region17: #{fi_en_translator_forward.28} parent=0 // pred_fallthru
    _
  // Predicated region
  $region18: #{fi_en_translator_forward.28} parent=0 // pred_check
    _
  $region19: #{fi_en_translator_forward.28} parent=0 // pred_check_branch
    %1289 = sbr.rel (0) target = $region21
  $region20: #{fi_en_translator_forward.28} parent=0 // pred_region
    _
  $region21: #{fi_en_translator_forward.28} parent=0 // pred_fallthru
    _

// kernel: fi_en_translator_forward.25
$region0: #{fi_en_translator_forward.25}
  #allocation0 [shape = 'u32[]', space=smem, size = 0x4, offset = 0x4, fixed_abs, tag = 'smem constant byte address 0x4 - core index']
  #allocation1 [shape = 'u32[144,128]{1,0:T(1,128)}', space=vmem, size = 0x12000, scoped, tag = 'internal scratch']
  %s0 = inlined_call_operand.vmem [shape: f32[32,8,16], index: 0, kind: input, shape index: {}]
  %s1 = inlined_call_operand.vmem [shape: f32[32,8,16], index: 1, kind: input, shape index: {}]
  %s2 = inlined_call_operand.vmem [shape: f32[32,8,16], index: 2, kind: input, shape index: {}]
  %s3 = inlined_call_operand.vmem [shape: f32[32,8,16], index: 3, kind: output, shape index: {}]
  %s4 = sld [smem:[#allocation0]]
  $region22: #{fi_en_translator_forward.25} parent=0
    _
  %s6 = ssub.s32 1, %s4
  %s7 = scalar_select 0, %s6, %s4
  // Predicated region
  $region2: #{fi_en_translator_forward.25} parent=0 // pred_check
    _
  $region3: #{fi_en_translator_forward.25} parent=0 // pred_check_branch
    %9 = sbr.rel (0) target = $region5
  $region4: #{fi_en_translator_forward.25} parent=0 // pred_region
    _
  $region5: #{fi_en_translator_forward.25} parent=0 // pred_fallthru
    _
  // Predicated region
  $region6: #{fi_en_translator_forward.25} parent=0 // pred_check
    _
  $region7: #{fi_en_translator_forward.25} parent=0 // pred_check_branch
    %11 = sbr.rel (0) target = $region9
  $region8: #{fi_en_translator_forward.25} parent=0 // pred_region
    _
  $region9: #{fi_en_translator_forward.25} parent=0 // pred_fallthru
    _
  // Predicated region
  $region10: #{fi_en_translator_forward.25} parent=0 // pred_check
    _
  $region11: #{fi_en_translator_forward.25} parent=0 // pred_check_branch
    %13 = sbr.rel (0) target = $region13
  $region12: #{fi_en_translator_forward.25} parent=0 // pred_region
    _
  $region13: #{fi_en_translator_forward.25} parent=0 // pred_fallthru
    _
  %v14 = vld [vmem:[%s0] sm:$0xff]
  %v15 = vld [vmem:[%s0 + $0x8] sm:$0xff]
  %v16 = vld [vmem:[%s0 + $0x10] sm:$0xff]
  %v17 = vld [vmem:[%s0 + $0x18] sm:$0xff]
  %v18 = vld [vmem:[%s0 + $0x20] sm:$0xff]
  %v19 = vld [vmem:[%s0 + $0x28] sm:$0xff]
  %v20 = vld [vmem:[%s0 + $0x30] sm:$0xff]
  %v21 = vld [vmem:[%s0 + $0x38] sm:$0xff]
  %v22 = vld [vmem:[%s0 + $0x40] sm:$0xff]
  %v23 = vld [vmem:[%s0 + $0x48] sm:$0xff]
  %v24 = vld [vmem:[%s0 + $0x50] sm:$0xff]
  %v25 = vld [vmem:[%s0 + $0x58] sm:$0xff]
  %v26 = vld [vmem:[%s0 + $0x60] sm:$0xff]
  %v27 = vld [vmem:[%s0 + $0x68] sm:$0xff]
  %v28 = vld [vmem:[%s0 + $0x70] sm:$0xff]
  %v29 = vld [vmem:[%s0 + $0x78] sm:$0xff]
  %v30 = vld [vmem:[%s0 + $0x80] sm:$0xff]
  %v31 = vld [vmem:[%s0 + $0x88] sm:$0xff]
  %v32 = vld [vmem:[%s0 + $0x90] sm:$0xff]
  %v33 = vld [vmem:[%s0 + $0x98] sm:$0xff]
  %v34 = vld [vmem:[%s0 + $0xa0] sm:$0xff]
  %v35 = vld [vmem:[%s0 + $0xa8] sm:$0xff]
  %v36 = vld [vmem:[%s0 + $0xb0] sm:$0xff]
  %v37 = vld [vmem:[%s0 + $0xb8] sm:$0xff]
  %v38 = vld [vmem:[%s0 + $0xc0] sm:$0xff]
  %v39 = vld [vmem:[%s0 + $0xc8] sm:$0xff]
  %v40 = vld [vmem:[%s0 + $0xd0] sm:$0xff]
  %v41 = vld [vmem:[%s0 + $0xd8] sm:$0xff]
  %v42 = vld [vmem:[%s0 + $0xe0] sm:$0xff]
  %v43 = vld [vmem:[%s0 + $0xe8] sm:$0xff]
  %v44 = vld [vmem:[%s0 + $0xf0] sm:$0xff]
  %v45 = vld [vmem:[%s0 + $0xf8] sm:$0xff]
  %v46 = vmul.f32 %v14, 0.25
  %v47 = vmul.f32 %v15, 0.25
  %v48 = vmul.f32 %v16, 0.25
  %v49 = vmul.f32 %v17, 0.25
  %v50 = vmul.f32 %v18, 0.25
  %v51 = vmul.f32 %v19, 0.25
  %v52 = vmul.f32 %v20, 0.25
  %v53 = vmul.f32 %v21, 0.25
  %v54 = vmul.f32 %v22, 0.25
  %v55 = vmul.f32 %v23, 0.25
  %v56 = vmul.f32 %v24, 0.25
  %v57 = vmul.f32 %v25, 0.25
  %v58 = vmul.f32 %v26, 0.25
  %v59 = vmul.f32 %v27, 0.25
  %v60 = vmul.f32 %v28, 0.25
  %v61 = vmul.f32 %v29, 0.25
  %v62 = vmul.f32 %v30, 0.25
  %v63 = vmul.f32 %v31, 0.25
  %v64 = vmul.f32 %v32, 0.25
  %v65 = vmul.f32 %v33, 0.25
  %v66 = vmul.f32 %v34, 0.25
  %v67 = vmul.f32 %v35, 0.25
  %v68 = vmul.f32 %v36, 0.25
  %v69 = vmul.f32 %v37, 0.25
  %v70 = vmul.f32 %v38, 0.25
  %v71 = vmul.f32 %v39, 0.25
  %v72 = vmul.f32 %v40, 0.25
  %v73 = vmul.f32 %v41, 0.25
  %v74 = vmul.f32 %v42, 0.25
  %v75 = vmul.f32 %v43, 0.25
  %v76 = vmul.f32 %v44, 0.25
  %v77 = vmul.f32 %v45, 0.25
  %v78 = vld [vmem:[%s1] sm:$0xff]
  %v79 = vld [vmem:[%s1 + $0x8] sm:$0xff]
  %v80 = vld [vmem:[%s1 + $0x10] sm:$0xff]
  %v81 = vld [vmem:[%s1 + $0x18] sm:$0xff]
  %v82 = vld [vmem:[%s1 + $0x20] sm:$0xff]
  %v83 = vld [vmem:[%s1 + $0x28] sm:$0xff]
  %v84 = vld [vmem:[%s1 + $0x30] sm:$0xff]
  %v85 = vld [vmem:[%s1 + $0x38] sm:$0xff]
  %v86 = vld [vmem:[%s1 + $0x40] sm:$0xff]
  %v87 = vld [vmem:[%s1 + $0x48] sm:$0xff]
  %v88 = vld [vmem:[%s1 + $0x50] sm:$0xff]
  %v89 = vld [vmem:[%s1 + $0x58] sm:$0xff]
  %v90 = vld [vmem:[%s1 + $0x60] sm:$0xff]
  %v91 = vld [vmem:[%s1 + $0x68] sm:$0xff]
  %v92 = vld [vmem:[%s1 + $0x70] sm:$0xff]
  %v93 = vld [vmem:[%s1 + $0x78] sm:$0xff]
  %v94 = vld [vmem:[%s1 + $0x80] sm:$0xff]
  %v95 = vld [vmem:[%s1 + $0x88] sm:$0xff]
  %v96 = vld [vmem:[%s1 + $0x90] sm:$0xff]
  %v97 = vld [vmem:[%s1 + $0x98] sm:$0xff]
  %v98 = vld [vmem:[%s1 + $0xa0] sm:$0xff]
  %v99 = vld [vmem:[%s1 + $0xa8] sm:$0xff]
  %v100 = vld [vmem:[%s1 + $0xb0] sm:$0xff]
  %v101 = vld [vmem:[%s1 + $0xb8] sm:$0xff]
  %v102 = vld [vmem:[%s1 + $0xc0] sm:$0xff]
  %v103 = vld [vmem:[%s1 + $0xc8] sm:$0xff]
  %v104 = vld [vmem:[%s1 + $0xd0] sm:$0xff]
  %v105 = vld [vmem:[%s1 + $0xd8] sm:$0xff]
  %v106 = vld [vmem:[%s1 + $0xe0] sm:$0xff]
  %v107 = vld [vmem:[%s1 + $0xe8] sm:$0xff]
  %v108 = vld [vmem:[%s1 + $0xf0] sm:$0xff]
  %v109 = vld [vmem:[%s1 + $0xf8] sm:$0xff]
  %v110 = vld [vmem:[%s2] sm:$0xff]
  %v111 = vld [vmem:[%s2 + $0x8] sm:$0xff]
  %v112 = vld [vmem:[%s2 + $0x10] sm:$0xff]
  %v113 = vld [vmem:[%s2 + $0x18] sm:$0xff]
  %v114 = vld [vmem:[%s2 + $0x20] sm:$0xff]
  %v115 = vld [vmem:[%s2 + $0x28] sm:$0xff]
  %v116 = vld [vmem:[%s2 + $0x30] sm:$0xff]
  %v117 = vld [vmem:[%s2 + $0x38] sm:$0xff]
  %v118 = vld [vmem:[%s2 + $0x40] sm:$0xff]
  %v119 = vld [vmem:[%s2 + $0x48] sm:$0xff]
  %v120 = vld [vmem:[%s2 + $0x50] sm:$0xff]
  %v121 = vld [vmem:[%s2 + $0x58] sm:$0xff]
  %v122 = vld [vmem:[%s2 + $0x60] sm:$0xff]
  %v123 = vld [vmem:[%s2 + $0x68] sm:$0xff]
  %v124 = vld [vmem:[%s2 + $0x70] sm:$0xff]
  %v125 = vld [vmem:[%s2 + $0x78] sm:$0xff]
  %v126 = vld [vmem:[%s2 + $0x80] sm:$0xff]
  %v127 = vld [vmem:[%s2 + $0x88] sm:$0xff]
  %v128 = vld [vmem:[%s2 + $0x90] sm:$0xff]
  %v129 = vld [vmem:[%s2 + $0x98] sm:$0xff]
  %v130 = vld [vmem:[%s2 + $0xa0] sm:$0xff]
  %v131 = vld [vmem:[%s2 + $0xa8] sm:$0xff]
  %v132 = vld [vmem:[%s2 + $0xb0] sm:$0xff]
  %v133 = vld [vmem:[%s2 + $0xb8] sm:$0xff]
  %v134 = vld [vmem:[%s2 + $0xc0] sm:$0xff]
  %v135 = vld [vmem:[%s2 + $0xc8] sm:$0xff]
  %v136 = vld [vmem:[%s2 + $0xd0] sm:$0xff]
  %v137 = vld [vmem:[%s2 + $0xd8] sm:$0xff]
  %v138 = vld [vmem:[%s2 + $0xe0] sm:$0xff]
  %v139 = vld [vmem:[%s2 + $0xe8] sm:$0xff]
  %v140 = vld [vmem:[%s2 + $0xf0] sm:$0xff]
  %v141 = vld [vmem:[%s2 + $0xf8] sm:$0xff]
  %vm142 = vcmask 130048
  %v144 = vsel %vm142, %v46, 0
  %v147 = vsel %vm142, %v78, 0
  %149 = vmatprep.subr.mxu0 0.0
  %150 = vmatpush1.xpose.msra.mxu0 %v147
  %151 = vmatprep.subr.mxu0 0.0
  %152 = vmatpush1.xpose.msra.mxu0 0.0
  %153 = vmatprep.subr.mxu0 0.0
  %154 = vmatpush1.xpose.msra.mxu0 0.0
  %155 = vmatprep.subr.mxu0 0.0
  %156 = vmatpush1.xpose.msra.mxu0 0.0
  %157 = vmatprep.subr.mxu0 0.0
  %158 = vmatpush1.xpose.msra.mxu0 0.0
  %159 = vmatprep.subr.mxu0 0.0
  %160 = vmatpush1.xpose.msra.mxu0 0.0
  %161 = vmatprep.subr.mxu0 0.0
  %162 = vmatpush1.xpose.msra.mxu0 0.0
  %163 = vmatprep.subr.mxu0 0.0
  %164 = vmatpush1.xpose.msra.mxu0 0.0
  %165 = vmatprep.subr.mxu0 0.0
  %166 = vmatpush1.xpose.msra.mxu0 0.0
  %167 = vmatprep.subr.mxu0 0.0
  %168 = vmatpush1.xpose.msra.mxu0 0.0
  %169 = vmatprep.subr.mxu0 0.0
  %170 = vmatpush1.xpose.msra.mxu0 0.0
  %171 = vmatprep.subr.mxu0 0.0
  %172 = vmatpush1.xpose.msra.mxu0 0.0
  %173 = vmatprep.subr.mxu0 0.0
  %174 = vmatpush1.xpose.msra.mxu0 0.0
  %175 = vmatprep.subr.mxu0 0.0
  %176 = vmatpush1.xpose.msra.mxu0 0.0
  %177 = vmatprep.subr.mxu0 0.0
  %178 = vmatpush1.xpose.msra.mxu0 0.0
  %179 = vmatprep.subr.mxu0 0.0
  %180 = vmatpush1.xpose.msra.mxu0 0.0
  %181 = vmatprep.subr.mxu0 0.0
  %182 = vmatpush1.xpose.msra.mxu0 0.0
  %183 = vmatprep.subr.mxu0 0.0
  %184 = vmatpush1.xpose.msra.mxu0 0.0
  %185 = vmatprep.subr.mxu0 0.0
  %186 = vmatpush1.xpose.msra.mxu0 0.0
  %187 = vmatprep.subr.mxu0 0.0
  %188 = vmatpush1.xpose.msra.mxu0 0.0
  %189 = vmatprep.subr.mxu0 0.0
  %190 = vmatpush1.xpose.msra.mxu0 0.0
  %191 = vmatprep.subr.mxu0 0.0
  %192 = vmatpush1.xpose.msra.mxu0 0.0
  %193 = vmatprep.subr.mxu0 0.0
  %194 = vmatpush1.xpose.msra.mxu0 0.0
  %195 = vmatprep.subr.mxu0 0.0
  %196 = vmatpush1.xpose.msra.mxu0 0.0
  %197 = vmatprep.subr.mxu0 0.0
  %198 = vmatpush1.xpose.msra.mxu0 0.0
  %199 = vmatprep.subr.mxu0 0.0
  %200 = vmatpush1.xpose.msra.mxu0 0.0
  %201 = vmatprep.subr.mxu0 0.0
  %202 = vmatpush1.xpose.msra.mxu0 0.0
  %203 = vmatprep.subr.mxu0 0.0
  %204 = vmatpush1.xpose.msra.mxu0 0.0
  %205 = vmatprep.subr.mxu0 0.0
  %206 = vmatpush1.xpose.msra.mxu0 0.0
  %207 = vmatprep.subr.mxu0 0.0
  %208 = vmatpush1.xpose.msra.mxu0 0.0
  %209 = vmatprep.subr.mxu0 0.0
  %210 = vmatpush1.xpose.msra.mxu0 0.0
  %211 = vmatprep.subr.mxu0 0.0
  %212 = vmatpush1.xpose.msra.mxu0 0.0
  %213 = vmatprep.mubr.f32.mxu0 0.0
  %214 = vmatmul.mubr.f32.gmra.mrb[0].mxu0 %v144
  %v215 = vpop.f32.mrb[0].mxu0
  %v216 = vadd.f32 0.0, %v215
  %v217 = vpop.f32.mrb[0].mxu0
  %218 = vdwg.mxu0
  %v220 = vsel %vm142, %v47, 0
  %v223 = vsel %vm142, %v79, 0
  %225 = vmatprep.subr.mxu0 0.0
  %226 = vmatpush1.xpose.msra.mxu0 %v223
  %227 = vmatprep.subr.mxu0 0.0
  %228 = vmatpush1.xpose.msra.mxu0 0.0
  %229 = vmatprep.subr.mxu0 0.0
  %230 = vmatpush1.xpose.msra.mxu0 0.0
  %231 = vmatprep.subr.mxu0 0.0
  %232 = vmatpush1.xpose.msra.mxu0 0.0
  %233 = vmatprep.subr.mxu0 0.0
  %234 = vmatpush1.xpose.msra.mxu0 0.0
  %235 = vmatprep.subr.mxu0 0.0
  %236 = vmatpush1.xpose.msra.mxu0 0.0
  %237 = vmatprep.subr.mxu0 0.0
  %238 = vmatpush1.xpose.msra.mxu0 0.0
  %239 = vmatprep.subr.mxu0 0.0
  %240 = vmatpush1.xpose.msra.mxu0 0.0
  %241 = vmatprep.subr.mxu0 0.0
  %242 = vmatpush1.xpose.msra.mxu0 0.0
  %243 = vmatprep.subr.mxu0 0.0
  %244 = vmatpush1.xpose.msra.mxu0 0.0
  %245 = vmatprep.subr.mxu0 0.0
  %246 = vmatpush1.xpose.msra.mxu0 0.0
  %247 = vmatprep.subr.mxu0 0.0
  %248 = vmatpush1.xpose.msra.mxu0 0.0
  %249 = vmatprep.subr.mxu0 0.0
  %250 = vmatpush1.xpose.msra.mxu0 0.0
  %251 = vmatprep.subr.mxu0 0.0
  %252 = vmatpush1.xpose.msra.mxu0 0.0
  %253 = vmatprep.subr.mxu0 0.0
  %254 = vmatpush1.xpose.msra.mxu0 0.0
  %255 = vmatprep.subr.mxu0 0.0
  %256 = vmatpush1.xpose.msra.mxu0 0.0
  %257 = vmatprep.subr.mxu0 0.0
  %258 = vmatpush1.xpose.msra.mxu0 0.0
  %259 = vmatprep.subr.mxu0 0.0
  %260 = vmatpush1.xpose.msra.mxu0 0.0
  %261 = vmatprep.subr.mxu0 0.0
  %262 = vmatpush1.xpose.msra.mxu0 0.0
  %263 = vmatprep.subr.mxu0 0.0
  %264 = vmatpush1.xpose.msra.mxu0 0.0
  %265 = vmatprep.subr.mxu0 0.0
  %266 = vmatpush1.xpose.msra.mxu0 0.0
  %267 = vmatprep.subr.mxu0 0.0
  %268 = vmatpush1.xpose.msra.mxu0 0.0
  %269 = vmatprep.subr.mxu0 0.0
  %270 = vmatpush1.xpose.msra.mxu0 0.0
  %271 = vmatprep.subr.mxu0 0.0
  %272 = vmatpush1.xpose.msra.mxu0 0.0
  %273 = vmatprep.subr.mxu0 0.0
  %274 = vmatpush1.xpose.msra.mxu0 0.0
  %275 = vmatprep.subr.mxu0 0.0
  %276 = vmatpush1.xpose.msra.mxu0 0.0
  %277 = vmatprep.subr.mxu0 0.0
  %278 = vmatpush1.xpose.msra.mxu0 0.0
  %279 = vmatprep.subr.mxu0 0.0
  %280 = vmatpush1.xpose.msra.mxu0 0.0
  %281 = vmatprep.subr.mxu0 0.0
  %282 = vmatpush1.xpose.msra.mxu0 0.0
  %283 = vmatprep.subr.mxu0 0.0
  %284 = vmatpush1.xpose.msra.mxu0 0.0
  %285 = vmatprep.subr.mxu0 0.0
  %286 = vmatpush1.xpose.msra.mxu0 0.0
  %287 = vmatprep.subr.mxu0 0.0
  %288 = vmatpush1.xpose.msra.mxu0 0.0
  %289 = vmatprep.mubr.f32.mxu0 0.0
  %290 = vmatmul.mubr.f32.gmra.mrb[0].mxu0 %v220
  %v291 = vpop.f32.mrb[0].mxu0
  %v292 = vadd.f32 0.0, %v291
  %v293 = vpop.f32.mrb[0].mxu0
  %294 = vdwg.mxu0
  %v296 = vsel %vm142, %v48, 0
  %v299 = vsel %vm142, %v80, 0
  %301 = vmatprep.subr.mxu0 0.0
  %302 = vmatpush1.xpose.msra.mxu0 %v299
  %303 = vmatprep.subr.mxu0 0.0
  %304 = vmatpush1.xpose.msra.mxu0 0.0
  %305 = vmatprep.subr.mxu0 0.0
  %306 = vmatpush1.xpose.msra.mxu0 0.0
  %307 = vmatprep.subr.mxu0 0.0
  %308 = vmatpush1.xpose.msra.mxu0 0.0
  %309 = vmatprep.subr.mxu0 0.0
  %310 = vmatpush1.xpose.msra.mxu0 0.0
  %311 = vmatprep.subr.mxu0 0.0
  %312 = vmatpush1.xpose.msra.mxu0 0.0
  %313 = vmatprep.subr.mxu0 0.0
  %314 = vmatpush1.xpose.msra.mxu0 0.0
  %315 = vmatprep.subr.mxu0 0.0
  %316 = vmatpush1.xpose.msra.mxu0 0.0
  %317 = vmatprep.subr.mxu0 0.0
  %318 = vmatpush1.xpose.msra.mxu0 0.0
  %319 = vmatprep.subr.mxu0 0.0
  %320 = vmatpush1.xpose.msra.mxu0 0.0
  %321 = vmatprep.subr.mxu0 0.0
  %322 = vmatpush1.xpose.msra.mxu0 0.0
  %323 = vmatprep.subr.mxu0 0.0
  %324 = vmatpush1.xpose.msra.mxu0 0.0
  %325 = vmatprep.subr.mxu0 0.0
  %326 = vmatpush1.xpose.msra.mxu0 0.0
  %327 = vmatprep.subr.mxu0 0.0
  %328 = vmatpush1.xpose.msra.mxu0 0.0
  %329 = vmatprep.subr.mxu0 0.0
  %330 = vmatpush1.xpose.msra.mxu0 0.0
  %331 = vmatprep.subr.mxu0 0.0
  %332 = vmatpush1.xpose.msra.mxu0 0.0
  %333 = vmatprep.subr.mxu0 0.0
  %334 = vmatpush1.xpose.msra.mxu0 0.0
  %335 = vmatprep.subr.mxu0 0.0
  %336 = vmatpush1.xpose.msra.mxu0 0.0
  %337 = vmatprep.subr.mxu0 0.0
  %338 = vmatpush1.xpose.msra.mxu0 0.0
  %339 = vmatprep.subr.mxu0 0.0
  %340 = vmatpush1.xpose.msra.mxu0 0.0
  %341 = vmatprep.subr.mxu0 0.0
  %342 = vmatpush1.xpose.msra.mxu0 0.0
  %343 = vmatprep.subr.mxu0 0.0
  %344 = vmatpush1.xpose.msra.mxu0 0.0
  %345 = vmatprep.subr.mxu0 0.0
  %346 = vmatpush1.xpose.msra.mxu0 0.0
  %347 = vmatprep.subr.mxu0 0.0
  %348 = vmatpush1.xpose.msra.mxu0 0.0
  %349 = vmatprep.subr.mxu0 0.0
  %350 = vmatpush1.xpose.msra.mxu0 0.0
  %351 = vmatprep.subr.mxu0 0.0
  %352 = vmatpush1.xpose.msra.mxu0 0.0
  %353 = vmatprep.subr.mxu0 0.0
  %354 = vmatpush1.xpose.msra.mxu0 0.0
  %355 = vmatprep.subr.mxu0 0.0
  %356 = vmatpush1.xpose.msra.mxu0 0.0
  %357 = vmatprep.subr.mxu0 0.0
  %358 = vmatpush1.xpose.msra.mxu0 0.0
  %359 = vmatprep.subr.mxu0 0.0
  %360 = vmatpush1.xpose.msra.mxu0 0.0
  %361 = vmatprep.subr.mxu0 0.0
  %362 = vmatpush1.xpose.msra.mxu0 0.0
  %363 = vmatprep.subr.mxu0 0.0
  %364 = vmatpush1.xpose.msra.mxu0 0.0
  %365 = vmatprep.mubr.f32.mxu0 0.0
  %366 = vmatmul.mubr.f32.gmra.mrb[0].mxu0 %v296
  %v367 = vpop.f32.mrb[0].mxu0
  %v368 = vadd.f32 0.0, %v367
  %v369 = vpop.f32.mrb[0].mxu0
  %370 = vdwg.mxu0
  %v372 = vsel %vm142, %v49, 0
  %v375 = vsel %vm142, %v81, 0
  %377 = vmatprep.subr.mxu0 0.0
  %378 = vmatpush1.xpose.msra.mxu0 %v375
  %379 = vmatprep.subr.mxu0 0.0
  %380 = vmatpush1.xpose.msra.mxu0 0.0
  %381 = vmatprep.subr.mxu0 0.0
  %382 = vmatpush1.xpose.msra.mxu0 0.0
  %383 = vmatprep.subr.mxu0 0.0
  %384 = vmatpush1.xpose.msra.mxu0 0.0
  %385 = vmatprep.subr.mxu0 0.0
  %386 = vmatpush1.xpose.msra.mxu0 0.0
  %387 = vmatprep.subr.mxu0 0.0
  %388 = vmatpush1.xpose.msra.mxu0 0.0
  %389 = vmatprep.subr.mxu0 0.0
  %390 = vmatpush1.xpose.msra.mxu0 0.0
  %391 = vmatprep.subr.mxu0 0.0
  %392 = vmatpush1.xpose.msra.mxu0 0.0
  %393 = vmatprep.subr.mxu0 0.0
  %394 = vmatpush1.xpose.msra.mxu0 0.0
  %395 = vmatprep.subr.mxu0 0.0
  %396 = vmatpush1.xpose.msra.mxu0 0.0
  %397 = vmatprep.subr.mxu0 0.0
  %398 = vmatpush1.xpose.msra.mxu0 0.0
  %399 = vmatprep.subr.mxu0 0.0
  %400 = vmatpush1.xpose.msra.mxu0 0.0
  %401 = vmatprep.subr.mxu0 0.0
  %402 = vmatpush1.xpose.msra.mxu0 0.0
  %403 = vmatprep.subr.mxu0 0.0
  %404 = vmatpush1.xpose.msra.mxu0 0.0
  %405 = vmatprep.subr.mxu0 0.0
  %406 = vmatpush1.xpose.msra.mxu0 0.0
  %407 = vmatprep.subr.mxu0 0.0
  %408 = vmatpush1.xpose.msra.mxu0 0.0
  %409 = vmatprep.subr.mxu0 0.0
  %410 = vmatpush1.xpose.msra.mxu0 0.0
  %411 = vmatprep.subr.mxu0 0.0
  %412 = vmatpush1.xpose.msra.mxu0 0.0
  %413 = vmatprep.subr.mxu0 0.0
  %414 = vmatpush1.xpose.msra.mxu0 0.0
  %415 = vmatprep.subr.mxu0 0.0
  %416 = vmatpush1.xpose.msra.mxu0 0.0
  %417 = vmatprep.subr.mxu0 0.0
  %418 = vmatpush1.xpose.msra.mxu0 0.0
  %419 = vmatprep.subr.mxu0 0.0
  %420 = vmatpush1.xpose.msra.mxu0 0.0
  %421 = vmatprep.subr.mxu0 0.0
  %422 = vmatpush1.xpose.msra.mxu0 0.0
  %423 = vmatprep.subr.mxu0 0.0
  %424 = vmatpush1.xpose.msra.mxu0 0.0
  %425 = vmatprep.subr.mxu0 0.0
  %426 = vmatpush1.xpose.msra.mxu0 0.0
  %427 = vmatprep.subr.mxu0 0.0
  %428 = vmatpush1.xpose.msra.mxu0 0.0
  %429 = vmatprep.subr.mxu0 0.0
  %430 = vmatpush1.xpose.msra.mxu0 0.0
  %431 = vmatprep.subr.mxu0 0.0
  %432 = vmatpush1.xpose.msra.mxu0 0.0
  %433 = vmatprep.subr.mxu0 0.0
  %434 = vmatpush1.xpose.msra.mxu0 0.0
  %435 = vmatprep.subr.mxu0 0.0
  %436 = vmatpush1.xpose.msra.mxu0 0.0
  %437 = vmatprep.subr.mxu0 0.0
  %438 = vmatpush1.xpose.msra.mxu0 0.0
  %439 = vmatprep.subr.mxu0 0.0
  %440 = vmatpush1.xpose.msra.mxu0 0.0
  %441 = vmatprep.mubr.f32.mxu0 0.0
  %442 = vmatmul.mubr.f32.gmra.mrb[0].mxu0 %v372
  %v443 = vpop.f32.mrb[0].mxu0
  %v444 = vadd.f32 0.0, %v443
  %v445 = vpop.f32.mrb[0].mxu0
  %446 = vdwg.mxu0
  %v448 = vsel %vm142, %v50, 0
  %v451 = vsel %vm142, %v82, 0
  %453 = vmatprep.subr.mxu0 0.0
  %454 = vmatpush1.xpose.msra.mxu0 %v451
  %455 = vmatprep.subr.mxu0 0.0
  %456 = vmatpush1.xpose.msra.mxu0 0.0
  %457 = vmatprep.subr.mxu0 0.0
  %458 = vmatpush1.xpose.msra.mxu0 0.0
  %459 = vmatprep.subr.mxu0 0.0
  %460 = vmatpush1.xpose.msra.mxu0 0.0
  %461 = vmatprep.subr.mxu0 0.0
  %462 = vmatpush1.xpose.msra.mxu0 0.0
  %463 = vmatprep.subr.mxu0 0.0
  %464 = vmatpush1.xpose.msra.mxu0 0.0
  %465 = vmatprep.subr.mxu0 0.0
  %466 = vmatpush1.xpose.msra.mxu0 0.0
  %467 = vmatprep.subr.mxu0 0.0
  %468 = vmatpush1.xpose.msra.mxu0 0.0
  %469 = vmatprep.subr.mxu0 0.0
  %470 = vmatpush1.xpose.msra.mxu0 0.0
  %471 = vmatprep.subr.mxu0 0.0
  %472 = vmatpush1.xpose.msra.mxu0 0.0
  %473 = vmatprep.subr.mxu0 0.0
  %474 = vmatpush1.xpose.msra.mxu0 0.0
  %475 = vmatprep.subr.mxu0 0.0
  %476 = vmatpush1.xpose.msra.mxu0 0.0
  %477 = vmatprep.subr.mxu0 0.0
  %478 = vmatpush1.xpose.msra.mxu0 0.0
  %479 = vmatprep.subr.mxu0 0.0
  %480 = vmatpush1.xpose.msra.mxu0 0.0
  %481 = vmatprep.subr.mxu0 0.0
  %482 = vmatpush1.xpose.msra.mxu0 0.0
  %483 = vmatprep.subr.mxu0 0.0
  %484 = vmatpush1.xpose.msra.mxu0 0.0
  %485 = vmatprep.subr.mxu0 0.0
  %486 = vmatpush1.xpose.msra.mxu0 0.0
  %487 = vmatprep.subr.mxu0 0.0
  %488 = vmatpush1.xpose.msra.mxu0 0.0
  %489 = vmatprep.subr.mxu0 0.0
  %490 = vmatpush1.xpose.msra.mxu0 0.0
  %491 = vmatprep.subr.mxu0 0.0
  %492 = vmatpush1.xpose.msra.mxu0 0.0
  %493 = vmatprep.subr.mxu0 0.0
  %494 = vmatpush1.xpose.msra.mxu0 0.0
  %495 = vmatprep.subr.mxu0 0.0
  %496 = vmatpush1.xpose.msra.mxu0 0.0
  %497 = vmatprep.subr.mxu0 0.0
  %498 = vmatpush1.xpose.msra.mxu0 0.0
  %499 = vmatprep.subr.mxu0 0.0
  %500 = vmatpush1.xpose.msra.mxu0 0.0
  %501 = vmatprep.subr.mxu0 0.0
  %502 = vmatpush1.xpose.msra.mxu0 0.0
  %503 = vmatprep.subr.mxu0 0.0
  %504 = vmatpush1.xpose.msra.mxu0 0.0
  %505 = vmatprep.subr.mxu0 0.0
  %506 = vmatpush1.xpose.msra.mxu0 0.0
  %507 = vmatprep.subr.mxu0 0.0
  %508 = vmatpush1.xpose.msra.mxu0 0.0
  %509 = vmatprep.subr.mxu0 0.0
  %510 = vmatpush1.xpose.msra.mxu0 0.0
  %511 = vmatprep.subr.mxu0 0.0
  %512 = vmatpush1.xpose.msra.mxu0 0.0
  %513 = vmatprep.subr.mxu0 0.0
  %514 = vmatpush1.xpose.msra.mxu0 0.0
  %515 = vmatprep.subr.mxu0 0.0
  %516 = vmatpush1.xpose.msra.mxu0 0.0
  %517 = vmatprep.mubr.f32.mxu0 0.0
  %518 = vmatmul.mubr.f32.gmra.mrb[0].mxu0 %v448
  %v519 = vpop.f32.mrb[0].mxu0
  %v520 = vadd.f32 0.0, %v519
  %v521 = vpop.f32.mrb[0].mxu0
  %522 = vdwg.mxu0
  %v524 = vsel %vm142, %v51, 0
  %v527 = vsel %vm142, %v83, 0
  %529 = vmatprep.subr.mxu0 0.0
  %530 = vmatpush1.xpose.msra.mxu0 %v527
  %531 = vmatprep.subr.mxu0 0.0
  %532 = vmatpush1.xpose.msra.mxu0 0.0
  %533 = vmatprep.subr.mxu0 0.0
  %534 = vmatpush1.xpose.msra.mxu0 0.0
  %535 = vmatprep.subr.mxu0 0.0
  %536 = vmatpush1.xpose.msra.mxu0 0.0
  %537 = vmatprep.subr.mxu0 0.0
  %538 = vmatpush1.xpose.msra.mxu0 0.0
  %539 = vmatprep.subr.mxu0 0.0
  %540 = vmatpush1.xpose.msra.mxu0 0.0
  %541 = vmatprep.subr.mxu0 0.0
  %542 = vmatpush1.xpose.msra.mxu0 0.0
  %543 = vmatprep.subr.mxu0 0.0
  %544 = vmatpush1.xpose.msra.mxu0 0.0
  %545 = vmatprep.subr.mxu0 0.0
  %546 = vmatpush1.xpose.msra.mxu0 0.0
  %547 = vmatprep.subr.mxu0 0.0
  %548 = vmatpush1.xpose.msra.mxu0 0.0
  %549 = vmatprep.subr.mxu0 0.0
  %550 = vmatpush1.xpose.msra.mxu0 0.0
  %551 = vmatprep.subr.mxu0 0.0
  %552 = vmatpush1.xpose.msra.mxu0 0.0
  %553 = vmatprep.subr.mxu0 0.0
  %554 = vmatpush1.xpose.msra.mxu0 0.0
  %555 = vmatprep.subr.mxu0 0.0
  %556 = vmatpush1.xpose.msra.mxu0 0.0
  %557 = vmatprep.subr.mxu0 0.0
  %558 = vmatpush1.xpose.msra.mxu0 0.0
  %559 = vmatprep.subr.mxu0 0.0
  %560 = vmatpush1.xpose.msra.mxu0 0.0
  %561 = vmatprep.subr.mxu0 0.0
  %562 = vmatpush1.xpose.msra.mxu0 0.0
  %563 = vmatprep.subr.mxu0 0.0
  %564 = vmatpush1.xpose.msra.mxu0 0.0
  %565 = vmatprep.subr.mxu0 0.0
  %566 = vmatpush1.xpose.msra.mxu0 0.0
  %567 = vmatprep.subr.mxu0 0.0
  %568 = vmatpush1.xpose.msra.mxu0 0.0
  %569 = vmatprep.subr.mxu0 0.0
  %570 = vmatpush1.xpose.msra.mxu0 0.0
  %571 = vmatprep.subr.mxu0 0.0
  %572 = vmatpush1.xpose.msra.mxu0 0.0
  %573 = vmatprep.subr.mxu0 0.0
  %574 = vmatpush1.xpose.msra.mxu0 0.0
  %575 = vmatprep.subr.mxu0 0.0
  %576 = vmatpush1.xpose.msra.mxu0 0.0
  %577 = vmatprep.subr.mxu0 0.0
  %578 = vmatpush1.xpose.msra.mxu0 0.0
  %579 = vmatprep.subr.mxu0 0.0
  %580 = vmatpush1.xpose.msra.mxu0 0.0
  %581 = vmatprep.subr.mxu0 0.0
  %582 = vmatpush1.xpose.msra.mxu0 0.0
  %583 = vmatprep.subr.mxu0 0.0
  %584 = vmatpush1.xpose.msra.mxu0 0.0
  %585 = vmatprep.subr.mxu0 0.0
  %586 = vmatpush1.xpose.msra.mxu0 0.0
  %587 = vmatprep.subr.mxu0 0.0
  %588 = vmatpush1.xpose.msra.mxu0 0.0
  %589 = vmatprep.subr.mxu0 0.0
  %590 = vmatpush1.xpose.msra.mxu0 0.0
  %591 = vmatprep.subr.mxu0 0.0
  %592 = vmatpush1.xpose.msra.mxu0 0.0
  %593 = vmatprep.mubr.f32.mxu0 0.0
  %594 = vmatmul.mubr.f32.gmra.mrb[0].mxu0 %v524
  %v595 = vpop.f32.mrb[0].mxu0
  %v596 = vadd.f32 0.0, %v595
  %v597 = vpop.f32.mrb[0].mxu0
  %598 = vdwg.mxu0
  %v600 = vsel %vm142, %v52, 0
  %v603 = vsel %vm142, %v84, 0
  %605 = vmatprep.subr.mxu0 0.0
  %606 = vmatpush1.xpose.msra.mxu0 %v603
  %607 = vmatprep.subr.mxu0 0.0
  %608 = vmatpush1.xpose.msra.mxu0 0.0
  %609 = vmatprep.subr.mxu0 0.0
  %610 = vmatpush1.xpose.msra.mxu0 0.0
  %611 = vmatprep.subr.mxu0 0.0
  %612 = vmatpush1.xpose.msra.mxu0 0.0
  %613 = vmatprep.subr.mxu0 0.0
  %614 = vmatpush1.xpose.msra.mxu0 0.0
  %615 = vmatprep.subr.mxu0 0.0
  %616 = vmatpush1.xpose.msra.mxu0 0.0
  %617 = vmatprep.subr.mxu0 0.0
  %618 = vmatpush1.xpose.msra.mxu0 0.0
  %619 = vmatprep.subr.mxu0 0.0
  %620 = vmatpush1.xpose.msra.mxu0 0.0
  %621 = vmatprep.subr.mxu0 0.0
  %622 = vmatpush1.xpose.msra.mxu0 0.0
  %623 = vmatprep.subr.mxu0 0.0
  %624 = vmatpush1.xpose.msra.mxu0 0.0
  %625 = vmatprep.subr.mxu0 0.0
  %626 = vmatpush1.xpose.msra.mxu0 0.0
  %627 = vmatprep.subr.mxu0 0.0
  %628 = vmatpush1.xpose.msra.mxu0 0.0
  %629 = vmatprep.subr.mxu0 0.0
  %630 = vmatpush1.xpose.msra.mxu0 0.0
  %631 = vmatprep.subr.mxu0 0.0
  %632 = vmatpush1.xpose.msra.mxu0 0.0
  %633 = vmatprep.subr.mxu0 0.0
  %634 = vmatpush1.xpose.msra.mxu0 0.0
  %635 = vmatprep.subr.mxu0 0.0
  %636 = vmatpush1.xpose.msra.mxu0 0.0
  %637 = vmatprep.subr.mxu0 0.0
  %638 = vmatpush1.xpose.msra.mxu0 0.0
  %639 = vmatprep.subr.mxu0 0.0
  %640 = vmatpush1.xpose.msra.mxu0 0.0
  %641 = vmatprep.subr.mxu0 0.0
  %642 = vmatpush1.xpose.msra.mxu0 0.0
  %643 = vmatprep.subr.mxu0 0.0
  %644 = vmatpush1.xpose.msra.mxu0 0.0
  %645 = vmatprep.subr.mxu0 0.0
  %646 = vmatpush1.xpose.msra.mxu0 0.0
  %647 = vmatprep.subr.mxu0 0.0
  %648 = vmatpush1.xpose.msra.mxu0 0.0
  %649 = vmatprep.subr.mxu0 0.0
  %650 = vmatpush1.xpose.msra.mxu0 0.0
  %651 = vmatprep.subr.mxu0 0.0
  %652 = vmatpush1.xpose.msra.mxu0 0.0
  %653 = vmatprep.subr.mxu0 0.0
  %654 = vmatpush1.xpose.msra.mxu0 0.0
  %655 = vmatprep.subr.mxu0 0.0
  %656 = vmatpush1.xpose.msra.mxu0 0.0
  %657 = vmatprep.subr.mxu0 0.0
  %658 = vmatpush1.xpose.msra.mxu0 0.0
  %659 = vmatprep.subr.mxu0 0.0
  %660 = vmatpush1.xpose.msra.mxu0 0.0
  %661 = vmatprep.subr.mxu0 0.0
  %662 = vmatpush1.xpose.msra.mxu0 0.0
  %663 = vmatprep.subr.mxu0 0.0
  %664 = vmatpush1.xpose.msra.mxu0 0.0
  %665 = vmatprep.subr.mxu0 0.0
  %666 = vmatpush1.xpose.msra.mxu0 0.0
  %667 = vmatprep.subr.mxu0 0.0
  %668 = vmatpush1.xpose.msra.mxu0 0.0
  %669 = vmatprep.mubr.f32.mxu0 0.0
  %670 = vmatmul.mubr.f32.gmra.mrb[0].mxu0 %v600
  %v671 = vpop.f32.mrb[0].mxu0
  %v672 = vadd.f32 0.0, %v671
  %v673 = vpop.f32.mrb[0].mxu0
  %674 = vdwg.mxu0
  %v676 = vsel %vm142, %v53, 0
  %v679 = vsel %vm142, %v85, 0
  %681 = vmatprep.subr.mxu0 0.0
  %682 = vmatpush1.xpose.msra.mxu0 %v679
  %683 = vmatprep.subr.mxu0 0.0
  %684 = vmatpush1.xpose.msra.mxu0 0.0
  %685 = vmatprep.subr.mxu0 0.0
  %686 = vmatpush1.xpose.msra.mxu0 0.0
  %687 = vmatprep.subr.mxu0 0.0
  %688 = vmatpush1.xpose.msra.mxu0 0.0
  %689 = vmatprep.subr.mxu0 0.0
  %690 = vmatpush1.xpose.msra.mxu0 0.0
  %691 = vmatprep.subr.mxu0 0.0
  %692 = vmatpush1.xpose.msra.mxu0 0.0
  %693 = vmatprep.subr.mxu0 0.0
  %694 = vmatpush1.xpose.msra.mxu0 0.0
  %695 = vmatprep.subr.mxu0 0.0
  %696 = vmatpush1.xpose.msra.mxu0 0.0
  %697 = vmatprep.subr.mxu0 0.0
  %698 = vmatpush1.xpose.msra.mxu0 0.0
  %699 = vmatprep.subr.mxu0 0.0
  %700 = vmatpush1.xpose.msra.mxu0 0.0
  %701 = vmatprep.subr.mxu0 0.0
  %702 = vmatpush1.xpose.msra.mxu0 0.0
  %703 = vmatprep.subr.mxu0 0.0
  %704 = vmatpush1.xpose.msra.mxu0 0.0
  %705 = vmatprep.subr.mxu0 0.0
  %706 = vmatpush1.xpose.msra.mxu0 0.0
  %707 = vmatprep.subr.mxu0 0.0
  %708 = vmatpush1.xpose.msra.mxu0 0.0
  %709 = vmatprep.subr.mxu0 0.0
  %710 = vmatpush1.xpose.msra.mxu0 0.0
  %711 = vmatprep.subr.mxu0 0.0
  %712 = vmatpush1.xpose.msra.mxu0 0.0
  %713 = vmatprep.subr.mxu0 0.0
  %714 = vmatpush1.xpose.msra.mxu0 0.0
  %715 = vmatprep.subr.mxu0 0.0
  %716 = vmatpush1.xpose.msra.mxu0 0.0
  %717 = vmatprep.subr.mxu0 0.0
  %718 = vmatpush1.xpose.msra.mxu0 0.0
  %719 = vmatprep.subr.mxu0 0.0
  %720 = vmatpush1.xpose.msra.mxu0 0.0
  %721 = vmatprep.subr.mxu0 0.0
  %722 = vmatpush1.xpose.msra.mxu0 0.0
  %723 = vmatprep.subr.mxu0 0.0
  %724 = vmatpush1.xpose.msra.mxu0 0.0
  %725 = vmatprep.subr.mxu0 0.0
  %726 = vmatpush1.xpose.msra.mxu0 0.0
  %727 = vmatprep.subr.mxu0 0.0
  %728 = vmatpush1.xpose.msra.mxu0 0.0
  %729 = vmatprep.subr.mxu0 0.0
  %730 = vmatpush1.xpose.msra.mxu0 0.0
  %731 = vmatprep.subr.mxu0 0.0
  %732 = vmatpush1.xpose.msra.mxu0 0.0
  %733 = vmatprep.subr.mxu0 0.0
  %734 = vmatpush1.xpose.msra.mxu0 0.0
  %735 = vmatprep.subr.mxu0 0.0
  %736 = vmatpush1.xpose.msra.mxu0 0.0
  %737 = vmatprep.subr.mxu0 0.0
  %738 = vmatpush1.xpose.msra.mxu0 0.0
  %739 = vmatprep.subr.mxu0 0.0
  %740 = vmatpush1.xpose.msra.mxu0 0.0
  %741 = vmatprep.subr.mxu0 0.0
  %742 = vmatpush1.xpose.msra.mxu0 0.0
  %743 = vmatprep.subr.mxu0 0.0
  %744 = vmatpush1.xpose.msra.mxu0 0.0
  %745 = vmatprep.mubr.f32.mxu0 0.0
  %746 = vmatmul.mubr.f32.gmra.mrb[0].mxu0 %v676
  %v747 = vpop.f32.mrb[0].mxu0
  %v748 = vadd.f32 0.0, %v747
  %v749 = vpop.f32.mrb[0].mxu0
  %750 = vdwg.mxu0
  %v752 = vsel %vm142, %v54, 0
  %v755 = vsel %vm142, %v86, 0
  %757 = vmatprep.subr.mxu0 0.0
  %758 = vmatpush1.xpose.msra.mxu0 %v755
  %759 = vmatprep.subr.mxu0 0.0
  %760 = vmatpush1.xpose.msra.mxu0 0.0
  %761 = vmatprep.subr.mxu0 0.0
  %762 = vmatpush1.xpose.msra.mxu0 0.0
  %763 = vmatprep.subr.mxu0 0.0
  %764 = vmatpush1.xpose.msra.mxu0 0.0
  %765 = vmatprep.subr.mxu0 0.0
  %766 = vmatpush1.xpose.msra.mxu0 0.0
  %767 = vmatprep.subr.mxu0 0.0
  %768 = vmatpush1.xpose.msra.mxu0 0.0
  %769 = vmatprep.subr.mxu0 0.0
  %770 = vmatpush1.xpose.msra.mxu0 0.0
  %771 = vmatprep.subr.mxu0 0.0
  %772 = vmatpush1.xpose.msra.mxu0 0.0
  %773 = vmatprep.subr.mxu0 0.0
  %774 = vmatpush1.xpose.msra.mxu0 0.0
  %775 = vmatprep.subr.mxu0 0.0
  %776 = vmatpush1.xpose.msra.mxu0 0.0
  %777 = vmatprep.subr.mxu0 0.0
  %778 = vmatpush1.xpose.msra.mxu0 0.0
  %779 = vmatprep.subr.mxu0 0.0
  %780 = vmatpush1.xpose.msra.mxu0 0.0
  %781 = vmatprep.subr.mxu0 0.0
  %782 = vmatpush1.xpose.msra.mxu0 0.0
  %783 = vmatprep.subr.mxu0 0.0
  %784 = vmatpush1.xpose.msra.mxu0 0.0
  %785 = vmatprep.subr.mxu0 0.0
  %786 = vmatpush1.xpose.msra.mxu0 0.0
  %787 = vmatprep.subr.mxu0 0.0
  %788 = vmatpush1.xpose.msra.mxu0 0.0
  %789 = vmatprep.subr.mxu0 0.0
  %790 = vmatpush1.xpose.msra.mxu0 0.0
  %791 = vmatprep.subr.mxu0 0.0
  %792 = vmatpush1.xpose.msra.mxu0 0.0
  %793 = vmatprep.subr.mxu0 0.0
  %794 = vmatpush1.xpose.msra.mxu0 0.0
  %795 = vmatprep.subr.mxu0 0.0
  %796 = vmatpush1.xpose.msra.mxu0 0.0
  %797 = vmatprep.subr.mxu0 0.0
  %798 = vmatpush1.xpose.msra.mxu0 0.0
  %799 = vmatprep.subr.mxu0 0.0
  %800 = vmatpush1.xpose.msra.mxu0 0.0
  %801 = vmatprep.subr.mxu0 0.0
  %802 = vmatpush1.xpose.msra.mxu0 0.0
  %803 = vmatprep.subr.mxu0 0.0
  %804 = vmatpush1.xpose.msra.mxu0 0.0
  %805 = vmatprep.subr.mxu0 0.0
  %806 = vmatpush1.xpose.msra.mxu0 0.0
  %807 = vmatprep.subr.mxu0 0.0
  %808 = vmatpush1.xpose.msra.mxu0 0.0
  %809 = vmatprep.subr.mxu0 0.0
  %810 = vmatpush1.xpose.msra.mxu0 0.0
  %811 = vmatprep.subr.mxu0 0.0
  %812 = vmatpush1.xpose.msra.mxu0 0.0
  %813 = vmatprep.subr.mxu0 0.0
  %814 = vmatpush1.xpose.msra.mxu0 0.0
  %815 = vmatprep.subr.mxu0 0.0
  %816 = vmatpush1.xpose.msra.mxu0 0.0
  %817 = vmatprep.subr.mxu0 0.0
  %818 = vmatpush1.xpose.msra.mxu0 0.0
  %819 = vmatprep.subr.mxu0 0.0
  %820 = vmatpush1.xpose.msra.mxu0 0.0
  %821 = vmatprep.mubr.f32.mxu0 0.0
  %822 = vmatmul.mubr.f32.gmra.mrb[0].mxu0 %v752
  %v823 = vpop.f32.mrb[0].mxu0
  %v824 = vadd.f32 0.0, %v823
  %v825 = vpop.f32.mrb[0].mxu0
  %826 = vdwg.mxu0
  %v828 = vsel %vm142, %v55, 0
  %v831 = vsel %vm142, %v87, 0
  %833 = vmatprep.subr.mxu0 0.0
  %834 = vmatpush1.xpose.msra.mxu0 %v831
  %835 = vmatprep.subr.mxu0 0.0
  %836 = vmatpush1.xpose.msra.mxu0 0.0
  %837 = vmatprep.subr.mxu0 0.0
  %838 = vmatpush1.xpose.msra.mxu0 0.0
  %839 = vmatprep.subr.mxu0 0.0
  %840 = vmatpush1.xpose.msra.mxu0 0.0
  %841 = vmatprep.subr.mxu0 0.0
  %842 = vmatpush1.xpose.msra.mxu0 0.0
  %843 = vmatprep.subr.mxu0 0.0
  %844 = vmatpush1.xpose.msra.mxu0 0.0
  %845 = vmatprep.subr.mxu0 0.0
  %846 = vmatpush1.xpose.msra.mxu0 0.0
  %847 = vmatprep.subr.mxu0 0.0
  %848 = vmatpush1.xpose.msra.mxu0 0.0
  %849 = vmatprep.subr.mxu0 0.0
  %850 = vmatpush1.xpose.msra.mxu0 0.0
  %851 = vmatprep.subr.mxu0 0.0
  %852 = vmatpush1.xpose.msra.mxu0 0.0
  %853 = vmatprep.subr.mxu0 0.0
  %854 = vmatpush1.xpose.msra.mxu0 0.0
  %855 = vmatprep.subr.mxu0 0.0
  %856 = vmatpush1.xpose.msra.mxu0 0.0
  %857 = vmatprep.subr.mxu0 0.0
  %858 = vmatpush1.xpose.msra.mxu0 0.0
  %859 = vmatprep.subr.mxu0 0.0
  %860 = vmatpush1.xpose.msra.mxu0 0.0
  %861 = vmatprep.subr.mxu0 0.0
  %862 = vmatpush1.xpose.msra.mxu0 0.0
  %863 = vmatprep.subr.mxu0 0.0
  %864 = vmatpush1.xpose.msra.mxu0 0.0
  %865 = vmatprep.subr.mxu0 0.0
  %866 = vmatpush1.xpose.msra.mxu0 0.0
  %867 = vmatprep.subr.mxu0 0.0
  %868 = vmatpush1.xpose.msra.mxu0 0.0
  %869 = vmatprep.subr.mxu0 0.0
  %870 = vmatpush1.xpose.msra.mxu0 0.0
  %871 = vmatprep.subr.mxu0 0.0
  %872 = vmatpush1.xpose.msra.mxu0 0.0
  %873 = vmatprep.subr.mxu0 0.0
  %874 = vmatpush1.xpose.msra.mxu0 0.0
  %875 = vmatprep.subr.mxu0 0.0
  %876 = vmatpush1.xpose.msra.mxu0 0.0
  %877 = vmatprep.subr.mxu0 0.0
  %878 = vmatpush1.xpose.msra.mxu0 0.0
  %879 = vmatprep.subr.mxu0 0.0
  %880 = vmatpush1.xpose.msra.mxu0 0.0
  %881 = vmatprep.subr.mxu0 0.0
  %882 = vmatpush1.xpose.msra.mxu0 0.0
  %883 = vmatprep.subr.mxu0 0.0
  %884 = vmatpush1.xpose.msra.mxu0 0.0
  %885 = vmatprep.subr.mxu0 0.0
  %886 = vmatpush1.xpose.msra.mxu0 0.0
  %887 = vmatprep.subr.mxu0 0.0
  %888 = vmatpush1.xpose.msra.mxu0 0.0
  %889 = vmatprep.subr.mxu0 0.0
  %890 = vmatpush1.xpose.msra.mxu0 0.0
  %891 = vmatprep.subr.mxu0 0.0
  %892 = vmatpush1.xpose.msra.mxu0 0.0
  %893 = vmatprep.subr.mxu0 0.0
  %894 = vmatpush1.xpose.msra.mxu0 0.0
  %895 = vmatprep.subr.mxu0 0.0
  %896 = vmatpush1.xpose.msra.mxu0 0.0
  %897 = vmatprep.mubr.f32.mxu0 0.0
  %898 = vmatmul.mubr.f32.gmra.mrb[0].mxu0 %v828
  %v899 = vpop.f32.mrb[0].mxu0
  %v900 = vadd.f32 0.0, %v899
  %v901 = vpop.f32.mrb[0].mxu0
  %902 = vdwg.mxu0
  %v904 = vsel %vm142, %v56, 0
  %v907 = vsel %vm142, %v88, 0
  %909 = vmatprep.subr.mxu0 0.0
  %910 = vmatpush1.xpose.msra.mxu0 %v907
  %911 = vmatprep.subr.mxu0 0.0
  %912 = vmatpush1.xpose.msra.mxu0 0.0
  %913 = vmatprep.subr.mxu0 0.0
  %914 = vmatpush1.xpose.msra.mxu0 0.0
  %915 = vmatprep.subr.mxu0 0.0
  %916 = vmatpush1.xpose.msra.mxu0 0.0
  %917 = vmatprep.subr.mxu0 0.0
  %918 = vmatpush1.xpose.msra.mxu0 0.0
  %919 = vmatprep.subr.mxu0 0.0
  %920 = vmatpush1.xpose.msra.mxu0 0.0
  %921 = vmatprep.subr.mxu0 0.0
  %922 = vmatpush1.xpose.msra.mxu0 0.0
  %923 = vmatprep.subr.mxu0 0.0
  %924 = vmatpush1.xpose.msra.mxu0 0.0
  %925 = vmatprep.subr.mxu0 0.0
  %926 = vmatpush1.xpose.msra.mxu0 0.0
  %927 = vmatprep.subr.mxu0 0.0
  %928 = vmatpush1.xpose.msra.mxu0 0.0
  %929 = vmatprep.subr.mxu0 0.0
  %930 = vmatpush1.xpose.msra.mxu0 0.0
  %931 = vmatprep.subr.mxu0 0.0
  %932 = vmatpush1.xpose.msra.mxu0 0.0
  %933 = vmatprep.subr.mxu0 0.0
  %934 = vmatpush1.xpose.msra.mxu0 0.0
  %935 = vmatprep.subr.mxu0 0.0
  %936 = vmatpush1.xpose.msra.mxu0 0.0
  %937 = vmatprep.subr.mxu0 0.0
  %938 = vmatpush1.xpose.msra.mxu0 0.0
  %939 = vmatprep.subr.mxu0 0.0
  %940 = vmatpush1.xpose.msra.mxu0 0.0
  %941 = vmatprep.subr.mxu0 0.0
  %942 = vmatpush1.xpose.msra.mxu0 0.0
  %943 = vmatprep.subr.mxu0 0.0
  %944 = vmatpush1.xpose.msra.mxu0 0.0
  %945 = vmatprep.subr.mxu0 0.0
  %946 = vmatpush1.xpose.msra.mxu0 0.0
  %947 = vmatprep.subr.mxu0 0.0
  %948 = vmatpush1.xpose.msra.mxu0 0.0
  %949 = vmatprep.subr.mxu0 0.0
  %950 = vmatpush1.xpose.msra.mxu0 0.0
  %951 = vmatprep.subr.mxu0 0.0
  %952 = vmatpush1.xpose.msra.mxu0 0.0
  %953 = vmatprep.subr.mxu0 0.0
  %954 = vmatpush1.xpose.msra.mxu0 0.0
  %955 = vmatprep.subr.mxu0 0.0
  %956 = vmatpush1.xpose.msra.mxu0 0.0
  %957 = vmatprep.subr.mxu0 0.0
  %958 = vmatpush1.xpose.msra.mxu0 0.0
  %959 = vmatprep.subr.mxu0 0.0
  %960 = vmatpush1.xpose.msra.mxu0 0.0
  %961 = vmatprep.subr.mxu0 0.0
  %962 = vmatpush1.xpose.msra.mxu0 0.0
  %963 = vmatprep.subr.mxu0 0.0
  %964 = vmatpush1.xpose.msra.mxu0 0.0
  %965 = vmatprep.subr.mxu0 0.0
  %966 = vmatpush1.xpose.msra.mxu0 0.0
  %967 = vmatprep.subr.mxu0 0.0
  %968 = vmatpush1.xpose.msra.mxu0 0.0
  %969 = vmatprep.subr.mxu0 0.0
  %970 = vmatpush1.xpose.msra.mxu0 0.0
  %971 = vmatprep.subr.mxu0 0.0
  %972 = vmatpush1.xpose.msra.mxu0 0.0
  %973 = vmatprep.mubr.f32.mxu0 0.0
  %974 = vmatmul.mubr.f32.gmra.mrb[0].mxu0 %v904
  %v975 = vpop.f32.mrb[0].mxu0
  %v976 = vadd.f32 0.0, %v975
  %v977 = vpop.f32.mrb[0].mxu0
  %978 = vdwg.mxu0
  %v980 = vsel %vm142, %v57, 0
  %v983 = vsel %vm142, %v89, 0
  %985 = vmatprep.subr.mxu0 0.0
  %986 = vmatpush1.xpose.msra.mxu0 %v983
  %987 = vmatprep.subr.mxu0 0.0
  %988 = vmatpush1.xpose.msra.mxu0 0.0
  %989 = vmatprep.subr.mxu0 0.0
  %990 = vmatpush1.xpose.msra.mxu0 0.0
  %991 = vmatprep.subr.mxu0 0.0
  %992 = vmatpush1.xpose.msra.mxu0 0.0
  %993 = vmatprep.subr.mxu0 0.0
  %994 = vmatpush1.xpose.msra.mxu0 0.0
  %995 = vmatprep.subr.mxu0 0.0
  %996 = vmatpush1.xpose.msra.mxu0 0.0
  %997 = vmatprep.subr.mxu0 0.0
  %998 = vmatpush1.xpose.msra.mxu0 0.0
  %999 = vmatprep.subr.mxu0 0.0
  %1000 = vmatpush1.xpose.msra.mxu0 0.0
  %1001 = vmatprep.subr.mxu0 0.0
  %1002 = vmatpush1.xpose.msra.mxu0 0.0
  %1003 = vmatprep.subr.mxu0 0.0
  %1004 = vmatpush1.xpose.msra.mxu0 0.0
  %1005 = vmatprep.subr.mxu0 0.0
  %1006 = vmatpush1.xpose.msra.mxu0 0.0
  %1007 = vmatprep.subr.mxu0 0.0
  %1008 = vmatpush1.xpose.msra.mxu0 0.0
  %1009 = vmatprep.subr.mxu0 0.0
  %1010 = vmatpush1.xpose.msra.mxu0 0.0
  %1011 = vmatprep.subr.mxu0 0.0
  %1012 = vmatpush1.xpose.msra.mxu0 0.0
  %1013 = vmatprep.subr.mxu0 0.0
  %1014 = vmatpush1.xpose.msra.mxu0 0.0
  %1015 = vmatprep.subr.mxu0 0.0
  %1016 = vmatpush1.xpose.msra.mxu0 0.0
  %1017 = vmatprep.subr.mxu0 0.0
  %1018 = vmatpush1.xpose.msra.mxu0 0.0
  %1019 = vmatprep.subr.mxu0 0.0
  %1020 = vmatpush1.xpose.msra.mxu0 0.0
  %1021 = vmatprep.subr.mxu0 0.0
  %1022 = vmatpush1.xpose.msra.mxu0 0.0
  %1023 = vmatprep.subr.mxu0 0.0
  %1024 = vmatpush1.xpose.msra.mxu0 0.0
  %1025 = vmatprep.subr.mxu0 0.0
  %1026 = vmatpush1.xpose.msra.mxu0 0.0
  %1027 = vmatprep.subr.mxu0 0.0
  %1028 = vmatpush1.xpose.msra.mxu0 0.0
  %1029 = vmatprep.subr.mxu0 0.0
  %1030 = vmatpush1.xpose.msra.mxu0 0.0
  %1031 = vmatprep.subr.mxu0 0.0
  %1032 = vmatpush1.xpose.msra.mxu0 0.0
  %1033 = vmatprep.subr.mxu0 0.0
  %1034 = vmatpush1.xpose.msra.mxu0 0.0
  %1035 = vmatprep.subr.mxu0 0.0
  %1036 = vmatpush1.xpose.msra.mxu0 0.0
  %1037 = vmatprep.subr.mxu0 0.0
  %1038 = vmatpush1.xpose.msra.mxu0 0.0
  %1039 = vmatprep.subr.mxu0 0.0
  %1040 = vmatpush1.xpose.msra.mxu0 0.0
  %1041 = vmatprep.subr.mxu0 0.0
  %1042 = vmatpush1.xpose.msra.mxu0 0.0
  %1043 = vmatprep.subr.mxu0 0.0
  %1044 = vmatpush1.xpose.msra.mxu0 0.0
  %1045 = vmatprep.subr.mxu0 0.0
  %1046 = vmatpush1.xpose.msra.mxu0 0.0
  %1047 = vmatprep.subr.mxu0 0.0
  %1048 = vmatpush1.xpose.msra.mxu0 0.0
  %1049 = vmatprep.mubr.f32.mxu0 0.0
  %1050 = vmatmul.mubr.f32.gmra.mrb[0].mxu0 %v980
  %v1051 = vpop.f32.mrb[0].mxu0
  %v1052 = vadd.f32 0.0, %v1051
  %v1053 = vpop.f32.mrb[0].mxu0
  %1054 = vdwg.mxu0
  %v1056 = vsel %vm142, %v58, 0
  %v1059 = vsel %vm142, %v90, 0
  %1061 = vmatprep.subr.mxu0 0.0
  %1062 = vmatpush1.xpose.msra.mxu0 %v1059
  %1063 = vmatprep.subr.mxu0 0.0
  %1064 = vmatpush1.xpose.msra.mxu0 0.0
  %1065 = vmatprep.subr.mxu0 0.0
  %1066 = vmatpush1.xpose.msra.mxu0 0.0
  %1067 = vmatprep.subr.mxu0 0.0
  %1068 = vmatpush1.xpose.msra.mxu0 0.0
  %1069 = vmatprep.subr.mxu0 0.0
  %1070 = vmatpush1.xpose.msra.mxu0 0.0
  %1071 = vmatprep.subr.mxu0 0.0
  %1072 = vmatpush1.xpose.msra.mxu0 0.0
  %1073 = vmatprep.subr.mxu0 0.0
  %1074 = vmatpush1.xpose.msra.mxu0 0.0
  %1075 = vmatprep.subr.mxu0 0.0
  %1076 = vmatpush1.xpose.msra.mxu0 0.0
  %1077 = vmatprep.subr.mxu0 0.0
  %1078 = vmatpush1.xpose.msra.mxu0 0.0
  %1079 = vmatprep.subr.mxu0 0.0
  %1080 = vmatpush1.xpose.msra.mxu0 0.0
  %1081 = vmatprep.subr.mxu0 0.0
  %1082 = vmatpush1.xpose.msra.mxu0 0.0
  %1083 = vmatprep.subr.mxu0 0.0
  %1084 = vmatpush1.xpose.msra.mxu0 0.0
  %1085 = vmatprep.subr.mxu0 0.0
  %1086 = vmatpush1.xpose.msra.mxu0 0.0
  %1087 = vmatprep.subr.mxu0 0.0
  %1088 = vmatpush1.xpose.msra.mxu0 0.0
  %1089 = vmatprep.subr.mxu0 0.0
  %1090 = vmatpush1.xpose.msra.mxu0 0.0
  %1091 = vmatprep.subr.mxu0 0.0
  %1092 = vmatpush1.xpose.msra.mxu0 0.0
  %1093 = vmatprep.subr.mxu0 0.0
  %1094 = vmatpush1.xpose.msra.mxu0 0.0
  %1095 = vmatprep.subr.mxu0 0.0
  %1096 = vmatpush1.xpose.msra.mxu0 0.0
  %1097 = vmatprep.subr.mxu0 0.0
  %1098 = vmatpush1.xpose.msra.mxu0 0.0
  %1099 = vmatprep.subr.mxu0 0.0
  %1100 = vmatpush1.xpose.msra.mxu0 0.0
  %1101 = vmatprep.subr.mxu0 0.0
  %1102 = vmatpush1.xpose.msra.mxu0 0.0
  %1103 = vmatprep.subr.mxu0 0.0
  %1104 = vmatpush1.xpose.msra.mxu0 0.0
  %1105 = vmatprep.subr.mxu0 0.0
  %1106 = vmatpush1.xpose.msra.mxu0 0.0
  %1107 = vmatprep.subr.mxu0 0.0
  %1108 = vmatpush1.xpose.msra.mxu0 0.0
  %1109 = vmatprep.subr.mxu0 0.0
  %1110 = vmatpush1.xpose.msra.mxu0 0.0
  %1111 = vmatprep.subr.mxu0 0.0
  %1112 = vmatpush1.xpose.msra.mxu0 0.0
  %1113 = vmatprep.subr.mxu0 0.0
  %1114 = vmatpush1.xpose.msra.mxu0 0.0
  %1115 = vmatprep.subr.mxu0 0.0
  %1116 = vmatpush1.xpose.msra.mxu0 0.0
  %1117 = vmatprep.subr.mxu0 0.0
  %1118 = vmatpush1.xpose.msra.mxu0 0.0
  %1119 = vmatprep.subr.mxu0 0.0
  %1120 = vmatpush1.xpose.msra.mxu0 0.0
  %1121 = vmatprep.subr.mxu0 0.0
  %1122 = vmatpush1.xpose.msra.mxu0 0.0
  %1123 = vmatprep.subr.mxu0 0.0
  %1124 = vmatpush1.xpose.msra.mxu0 0.0
  %1125 = vmatprep.mubr.f32.mxu0 0.0
  %1126 = vmatmul.mubr.f32.gmra.mrb[0].mxu0 %v1056
  %v1127 = vpop.f32.mrb[0].mxu0
  %v1128 = vadd.f32 0.0, %v1127
  %v1129 = vpop.f32.mrb[0].mxu0
  %1130 = vdwg.mxu0
  %v1132 = vsel %vm142, %v59, 0
  %v1135 = vsel %vm142, %v91, 0
  %1137 = vmatprep.subr.mxu0 0.0
  %1138 = vmatpush1.xpose.msra.mxu0 %v1135
  %1139 = vmatprep.subr.mxu0 0.0
  %1140 = vmatpush1.xpose.msra.mxu0 0.0
  %1141 = vmatprep.subr.mxu0 0.0
  %1142 = vmatpush1.xpose.msra.mxu0 0.0
  %1143 = vmatprep.subr.mxu0 0.0
  %1144 = vmatpush1.xpose.msra.mxu0 0.0
  %1145 = vmatprep.subr.mxu0 0.0
  %1146 = vmatpush1.xpose.msra.mxu0 0.0
  %1147 = vmatprep.subr.mxu0 0.0
  %1148 = vmatpush1.xpose.msra.mxu0 0.0
  %1149 = vmatprep.subr.mxu0 0.0
  %1150 = vmatpush1.xpose.msra.mxu0 0.0
  %1151 = vmatprep.subr.mxu0 0.0
  %1152 = vmatpush1.xpose.msra.mxu0 0.0
  %1153 = vmatprep.subr.mxu0 0.0
  %1154 = vmatpush1.xpose.msra.mxu0 0.0
  %1155 = vmatprep.subr.mxu0 0.0
  %1156 = vmatpush1.xpose.msra.mxu0 0.0
  %1157 = vmatprep.subr.mxu0 0.0
  %1158 = vmatpush1.xpose.msra.mxu0 0.0
  %1159 = vmatprep.subr.mxu0 0.0
  %1160 = vmatpush1.xpose.msra.mxu0 0.0
  %1161 = vmatprep.subr.mxu0 0.0
  %1162 = vmatpush1.xpose.msra.mxu0 0.0
  %1163 = vmatprep.subr.mxu0 0.0
  %1164 = vmatpush1.xpose.msra.mxu0 0.0
  %1165 = vmatprep.subr.mxu0 0.0
  %1166 = vmatpush1.xpose.msra.mxu0 0.0
  %1167 = vmatprep.subr.mxu0 0.0
  %1168 = vmatpush1.xpose.msra.mxu0 0.0
  %1169 = vmatprep.subr.mxu0 0.0
  %1170 = vmatpush1.xpose.msra.mxu0 0.0
  %1171 = vmatprep.subr.mxu0 0.0
  %1172 = vmatpush1.xpose.msra.mxu0 0.0
  %1173 = vmatprep.subr.mxu0 0.0
  %1174 = vmatpush1.xpose.msra.mxu0 0.0
  %1175 = vmatprep.subr.mxu0 0.0
  %1176 = vmatpush1.xpose.msra.mxu0 0.0
  %1177 = vmatprep.subr.mxu0 0.0
  %1178 = vmatpush1.xpose.msra.mxu0 0.0
  %1179 = vmatprep.subr.mxu0 0.0
  %1180 = vmatpush1.xpose.msra.mxu0 0.0
  %1181 = vmatprep.subr.mxu0 0.0
  %1182 = vmatpush1.xpose.msra.mxu0 0.0
  %1183 = vmatprep.subr.mxu0 0.0
  %1184 = vmatpush1.xpose.msra.mxu0 0.0
  %1185 = vmatprep.subr.mxu0 0.0
  %1186 = vmatpush1.xpose.msra.mxu0 0.0
  %1187 = vmatprep.subr.mxu0 0.0
  %1188 = vmatpush1.xpose.msra.mxu0 0.0
  %1189 = vmatprep.subr.mxu0 0.0
  %1190 = vmatpush1.xpose.msra.mxu0 0.0
  %1191 = vmatprep.subr.mxu0 0.0
  %1192 = vmatpush1.xpose.msra.mxu0 0.0
  %1193 = vmatprep.subr.mxu0 0.0
  %1194 = vmatpush1.xpose.msra.mxu0 0.0
  %1195 = vmatprep.subr.mxu0 0.0
  %1196 = vmatpush1.xpose.msra.mxu0 0.0
  %1197 = vmatprep.subr.mxu0 0.0
  %1198 = vmatpush1.xpose.msra.mxu0 0.0
  %1199 = vmatprep.subr.mxu0 0.0
  %1200 = vmatpush1.xpose.msra.mxu0 0.0
  %1201 = vmatprep.mubr.f32.mxu0 0.0
  %1202 = vmatmul.mubr.f32.gmra.mrb[0].mxu0 %v1132
  %v1203 = vpop.f32.mrb[0].mxu0
  %v1204 = vadd.f32 0.0, %v1203
  %v1205 = vpop.f32.mrb[0].mxu0
  %1206 = vdwg.mxu0
  %v1208 = vsel %vm142, %v60, 0
  %v1211 = vsel %vm142, %v92, 0
  %1213 = vmatprep.subr.mxu0 0.0
  %1214 = vmatpush1.xpose.msra.mxu0 %v1211
  %1215 = vmatprep.subr.mxu0 0.0
  %1216 = vmatpush1.xpose.msra.mxu0 0.0
  %1217 = vmatprep.subr.mxu0 0.0
  %1218 = vmatpush1.xpose.msra.mxu0 0.0
  %1219 = vmatprep.subr.mxu0 0.0
  %1220 = vmatpush1.xpose.msra.mxu0 0.0
  %1221 = vmatprep.subr.mxu0 0.0
  %1222 = vmatpush1.xpose.msra.mxu0 0.0
  %1223 = vmatprep.subr.mxu0 0.0
  %1224 = vmatpush1.xpose.msra.mxu0 0.0
  %1225 = vmatprep.subr.mxu0 0.0
  %1226 = vmatpush1.xpose.msra.mxu0 0.0
  %1227 = vmatprep.subr.mxu0 0.0
  %1228 = vmatpush1.xpose.msra.mxu0 0.0
  %1229 = vmatprep.subr.mxu0 0.0
  %1230 = vmatpush1.xpose.msra.mxu0 0.0
  %1231 = vmatprep.subr.mxu0 0.0
  %1232 = vmatpush1.xpose.msra.mxu0 0.0
  %1233 = vmatprep.subr.mxu0 0.0
  %1234 = vmatpush1.xpose.msra.mxu0 0.0
  %1235 = vmatprep.subr.mxu0 0.0
  %1236 = vmatpush1.xpose.msra.mxu0 0.0
  %1237 = vmatprep.subr.mxu0 0.0
  %1238 = vmatpush1.xpose.msra.mxu0 0.0
  %1239 = vmatprep.subr.mxu0 0.0
  %1240 = vmatpush1.xpose.msra.mxu0 0.0
  %1241 = vmatprep.subr.mxu0 0.0
  %1242 = vmatpush1.xpose.msra.mxu0 0.0
  %1243 = vmatprep.subr.mxu0 0.0
  %1244 = vmatpush1.xpose.msra.mxu0 0.0
  %1245 = vmatprep.subr.mxu0 0.0
  %1246 = vmatpush1.xpose.msra.mxu0 0.0
  %1247 = vmatprep.subr.mxu0 0.0
  %1248 = vmatpush1.xpose.msra.mxu0 0.0
  %1249 = vmatprep.subr.mxu0 0.0
  %1250 = vmatpush1.xpose.msra.mxu0 0.0
  %1251 = vmatprep.subr.mxu0 0.0
  %1252 = vmatpush1.xpose.msra.mxu0 0.0
  %1253 = vmatprep.subr.mxu0 0.0
  %1254 = vmatpush1.xpose.msra.mxu0 0.0
  %1255 = vmatprep.subr.mxu0 0.0
  %1256 = vmatpush1.xpose.msra.mxu0 0.0
  %1257 = vmatprep.subr.mxu0 0.0
  %1258 = vmatpush1.xpose.msra.mxu0 0.0
  %1259 = vmatprep.subr.mxu0 0.0
  %1260 = vmatpush1.xpose.msra.mxu0 0.0
  %1261 = vmatprep.subr.mxu0 0.0
  %1262 = vmatpush1.xpose.msra.mxu0 0.0
  %1263 = vmatprep.subr.mxu0 0.0
  %1264 = vmatpush1.xpose.msra.mxu0 0.0
  %1265 = vmatprep.subr.mxu0 0.0
  %1266 = vmatpush1.xpose.msra.mxu0 0.0
  %1267 = vmatprep.subr.mxu0 0.0
  %1268 = vmatpush1.xpose.msra.mxu0 0.0
  %1269 = vmatprep.subr.mxu0 0.0
  %1270 = vmatpush1.xpose.msra.mxu0 0.0
  %1271 = vmatprep.subr.mxu0 0.0
  %1272 = vmatpush1.xpose.msra.mxu0 0.0
  %1273 = vmatprep.subr.mxu0 0.0
  %1274 = vmatpush1.xpose.msra.mxu0 0.0
  %1275 = vmatprep.subr.mxu0 0.0
  %1276 = vmatpush1.xpose.msra.mxu0 0.0
  %1277 = vmatprep.mubr.f32.mxu0 0.0
  %1278 = vmatmul.mubr.f32.gmra.mrb[0].mxu0 %v1208
  %v1279 = vpop.f32.mrb[0].mxu0
  %v1280 = vadd.f32 0.0, %v1279
  %v1281 = vpop.f32.mrb[0].mxu0
  %1282 = vdwg.mxu0
  %v1284 = vsel %vm142, %v61, 0
  %v1287 = vsel %vm142, %v93, 0
  %1289 = vmatprep.subr.mxu0 0.0
  %1290 = vmatpush1.xpose.msra.mxu0 %v1287
  %1291 = vmatprep.subr.mxu0 0.0
  %1292 = vmatpush1.xpose.msra.mxu0 0.0
  %1293 = vmatprep.subr.mxu0 0.0
  %1294 = vmatpush1.xpose.msra.mxu0 0.0
  %1295 = vmatprep.subr.mxu0 0.0
  %1296 = vmatpush1.xpose.msra.mxu0 0.0
  %1297 = vmatprep.subr.mxu0 0.0
  %1298 = vmatpush1.xpose.msra.mxu0 0.0
  %1299 = vmatprep.subr.mxu0 0.0
  %1300 = vmatpush1.xpose.msra.mxu0 0.0
  %1301 = vmatprep.subr.mxu0 0.0
  %1302 = vmatpush1.xpose.msra.mxu0 0.0
  %1303 = vmatprep.subr.mxu0 0.0
  %1304 = vmatpush1.xpose.msra.mxu0 0.0
  %1305 = vmatprep.subr.mxu0 0.0
  %1306 = vmatpush1.xpose.msra.mxu0 0.0
  %1307 = vmatprep.subr.mxu0 0.0
  %1308 = vmatpush1.xpose.msra.mxu0 0.0
  %1309 = vmatprep.subr.mxu0 0.0
  %1310 = vmatpush1.xpose.msra.mxu0 0.0
  %1311 = vmatprep.subr.mxu0 0.0
  %1312 = vmatpush1.xpose.msra.mxu0 0.0
  %1313 = vmatprep.subr.mxu0 0.0
  %1314 = vmatpush1.xpose.msra.mxu0 0.0
  %1315 = vmatprep.subr.mxu0 0.0
  %1316 = vmatpush1.xpose.msra.mxu0 0.0
  %1317 = vmatprep.subr.mxu0 0.0
  %1318 = vmatpush1.xpose.msra.mxu0 0.0
  %1319 = vmatprep.subr.mxu0 0.0
  %1320 = vmatpush1.xpose.msra.mxu0 0.0
  %1321 = vmatprep.subr.mxu0 0.0
  %1322 = vmatpush1.xpose.msra.mxu0 0.0
  %1323 = vmatprep.subr.mxu0 0.0
  %1324 = vmatpush1.xpose.msra.mxu0 0.0
  %1325 = vmatprep.subr.mxu0 0.0
  %1326 = vmatpush1.xpose.msra.mxu0 0.0
  %1327 = vmatprep.subr.mxu0 0.0
  %1328 = vmatpush1.xpose.msra.mxu0 0.0
  %1329 = vmatprep.subr.mxu0 0.0
  %1330 = vmatpush1.xpose.msra.mxu0 0.0
  %1331 = vmatprep.subr.mxu0 0.0
  %1332 = vmatpush1.xpose.msra.mxu0 0.0
  %1333 = vmatprep.subr.mxu0 0.0
  %1334 = vmatpush1.xpose.msra.mxu0 0.0
  %1335 = vmatprep.subr.mxu0 0.0
  %1336 = vmatpush1.xpose.msra.mxu0 0.0
  %1337 = vmatprep.subr.mxu0 0.0
  %1338 = vmatpush1.xpose.msra.mxu0 0.0
  %1339 = vmatprep.subr.mxu0 0.0
  %1340 = vmatpush1.xpose.msra.mxu0 0.0
  %1341 = vmatprep.subr.mxu0 0.0
  %1342 = vmatpush1.xpose.msra.mxu0 0.0
  %1343 = vmatprep.subr.mxu0 0.0
  %1344 = vmatpush1.xpose.msra.mxu0 0.0
  %1345 = vmatprep.subr.mxu0 0.0
  %1346 = vmatpush1.xpose.msra.mxu0 0.0
  %1347 = vmatprep.subr.mxu0 0.0
  %1348 = vmatpush1.xpose.msra.mxu0 0.0
  %1349 = vmatprep.subr.mxu0 0.0
  %1350 = vmatpush1.xpose.msra.mxu0 0.0
  %1351 = vmatprep.subr.mxu0 0.0
  %1352 = vmatpush1.xpose.msra.mxu0 0.0
  %1353 = vmatprep.mubr.f32.mxu0 0.0
  %1354 = vmatmul.mubr.f32.gmra.mrb[0].mxu0 %v1284
  %v1355 = vpop.f32.mrb[0].mxu0
  %v1356 = vadd.f32 0.0, %v1355
  %v1357 = vpop.f32.mrb[0].mxu0
  %1358 = vdwg.mxu0
  %v1360 = vsel %vm142, %v62, 0
  %v1363 = vsel %vm142, %v94, 0
  %1365 = vmatprep.subr.mxu0 0.0
  %1366 = vmatpush1.xpose.msra.mxu0 %v1363
  %1367 = vmatprep.subr.mxu0 0.0
  %1368 = vmatpush1.xpose.msra.mxu0 0.0
  %1369 = vmatprep.subr.mxu0 0.0
  %1370 = vmatpush1.xpose.msra.mxu0 0.0
  %1371 = vmatprep.subr.mxu0 0.0
  %1372 = vmatpush1.xpose.msra.mxu0 0.0
  %1373 = vmatprep.subr.mxu0 0.0
  %1374 = vmatpush1.xpose.msra.mxu0 0.0
  %1375 = vmatprep.subr.mxu0 0.0
  %1376 = vmatpush1.xpose.msra.mxu0 0.0
  %1377 = vmatprep.subr.mxu0 0.0
  %1378 = vmatpush1.xpose.msra.mxu0 0.0
  %1379 = vmatprep.subr.mxu0 0.0
  %1380 = vmatpush1.xpose.msra.mxu0 0.0
  %1381 = vmatprep.subr.mxu0 0.0
  %1382 = vmatpush1.xpose.msra.mxu0 0.0
  %1383 = vmatprep.subr.mxu0 0.0
  %1384 = vmatpush1.xpose.msra.mxu0 0.0
  %1385 = vmatprep.subr.mxu0 0.0
  %1386 = vmatpush1.xpose.msra.mxu0 0.0
  %1387 = vmatprep.subr.mxu0 0.0
  %1388 = vmatpush1.xpose.msra.mxu0 0.0
  %1389 = vmatprep.subr.mxu0 0.0
  %1390 = vmatpush1.xpose.msra.mxu0 0.0
  %1391 = vmatprep.subr.mxu0 0.0
  %1392 = vmatpush1.xpose.msra.mxu0 0.0
  %1393 = vmatprep.subr.mxu0 0.0
  %1394 = vmatpush1.xpose.msra.mxu0 0.0
  %1395 = vmatprep.subr.mxu0 0.0
  %1396 = vmatpush1.xpose.msra.mxu0 0.0
  %1397 = vmatprep.subr.mxu0 0.0
  %1398 = vmatpush1.xpose.msra.mxu0 0.0
  %1399 = vmatprep.subr.mxu0 0.0
  %1400 = vmatpush1.xpose.msra.mxu0 0.0
  %1401 = vmatprep.subr.mxu0 0.0
  %1402 = vmatpush1.xpose.msra.mxu0 0.0
  %1403 = vmatprep.subr.mxu0 0.0
  %1404 = vmatpush1.xpose.msra.mxu0 0.0
  %1405 = vmatprep.subr.mxu0 0.0
  %1406 = vmatpush1.xpose.msra.mxu0 0.0
  %1407 = vmatprep.subr.mxu0 0.0
  %1408 = vmatpush1.xpose.msra.mxu0 0.0
  %1409 = vmatprep.subr.mxu0 0.0
  %1410 = vmatpush1.xpose.msra.mxu0 0.0
  %1411 = vmatprep.subr.mxu0 0.0
  %1412 = vmatpush1.xpose.msra.mxu0 0.0
  %1413 = vmatprep.subr.mxu0 0.0
  %1414 = vmatpush1.xpose.msra.mxu0 0.0
  %1415 = vmatprep.subr.mxu0 0.0
  %1416 = vmatpush1.xpose.msra.mxu0 0.0
  %1417 = vmatprep.subr.mxu0 0.0
  %1418 = vmatpush1.xpose.msra.mxu0 0.0
  %1419 = vmatprep.subr.mxu0 0.0
  %1420 = vmatpush1.xpose.msra.mxu0 0.0
  %1421 = vmatprep.subr.mxu0 0.0
  %1422 = vmatpush1.xpose.msra.mxu0 0.0
  %1423 = vmatprep.subr.mxu0 0.0
  %1424 = vmatpush1.xpose.msra.mxu0 0.0
  %1425 = vmatprep.subr.mxu0 0.0
  %1426 = vmatpush1.xpose.msra.mxu0 0.0
  %1427 = vmatprep.subr.mxu0 0.0
  %1428 = vmatpush1.xpose.msra.mxu0 0.0
  %1429 = vmatprep.mubr.f32.mxu0 0.0
  %1430 = vmatmul.mubr.f32.gmra.mrb[0].mxu0 %v1360
  %v1431 = vpop.f32.mrb[0].mxu0
  %v1432 = vadd.f32 0.0, %v1431
  %v1433 = vpop.f32.mrb[0].mxu0
  %1434 = vdwg.mxu0
  %v1436 = vsel %vm142, %v63, 0
  %v1439 = vsel %vm142, %v95, 0
  %1441 = vmatprep.subr.mxu0 0.0
  %1442 = vmatpush1.xpose.msra.mxu0 %v1439
  %1443 = vmatprep.subr.mxu0 0.0
  %1444 = vmatpush1.xpose.msra.mxu0 0.0
  %1445 = vmatprep.subr.mxu0 0.0
  %1446 = vmatpush1.xpose.msra.mxu0 0.0
  %1447 = vmatprep.subr.mxu0 0.0
  %1448 = vmatpush1.xpose.msra.mxu0 0.0
  %1449 = vmatprep.subr.mxu0 0.0
  %1450 = vmatpush1.xpose.msra.mxu0 0.0
  %1451 = vmatprep.subr.mxu0 0.0
  %1452 = vmatpush1.xpose.msra.mxu0 0.0
  %1453 = vmatprep.subr.mxu0 0.0
  %1454 = vmatpush1.xpose.msra.mxu0 0.0
  %1455 = vmatprep.subr.mxu0 0.0
  %1456 = vmatpush1.xpose.msra.mxu0 0.0
  %1457 = vmatprep.subr.mxu0 0.0
  %1458 = vmatpush1.xpose.msra.mxu0 0.0
  %1459 = vmatprep.subr.mxu0 0.0
  %1460 = vmatpush1.xpose.msra.mxu0 0.0
  %1461 = vmatprep.subr.mxu0 0.0
  %1462 = vmatpush1.xpose.msra.mxu0 0.0
  %1463 = vmatprep.subr.mxu0 0.0
  %1464 = vmatpush1.xpose.msra.mxu0 0.0
  %1465 = vmatprep.subr.mxu0 0.0
  %1466 = vmatpush1.xpose.msra.mxu0 0.0
  %1467 = vmatprep.subr.mxu0 0.0
  %1468 = vmatpush1.xpose.msra.mxu0 0.0
  %1469 = vmatprep.subr.mxu0 0.0
  %1470 = vmatpush1.xpose.msra.mxu0 0.0
  %1471 = vmatprep.subr.mxu0 0.0
  %1472 = vmatpush1.xpose.msra.mxu0 0.0
  %1473 = vmatprep.subr.mxu0 0.0
  %1474 = vmatpush1.xpose.msra.mxu0 0.0
  %1475 = vmatprep.subr.mxu0 0.0
  %1476 = vmatpush1.xpose.msra.mxu0 0.0
  %1477 = vmatprep.subr.mxu0 0.0
  %1478 = vmatpush1.xpose.msra.mxu0 0.0
  %1479 = vmatprep.subr.mxu0 0.0
  %1480 = vmatpush1.xpose.msra.mxu0 0.0
  %1481 = vmatprep.subr.mxu0 0.0
  %1482 = vmatpush1.xpose.msra.mxu0 0.0
  %1483 = vmatprep.subr.mxu0 0.0
  %1484 = vmatpush1.xpose.msra.mxu0 0.0
  %1485 = vmatprep.subr.mxu0 0.0
  %1486 = vmatpush1.xpose.msra.mxu0 0.0
  %1487 = vmatprep.subr.mxu0 0.0
  %1488 = vmatpush1.xpose.msra.mxu0 0.0
  %1489 = vmatprep.subr.mxu0 0.0
  %1490 = vmatpush1.xpose.msra.mxu0 0.0
  %1491 = vmatprep.subr.mxu0 0.0
  %1492 = vmatpush1.xpose.msra.mxu0 0.0
  %1493 = vmatprep.subr.mxu0 0.0
  %1494 = vmatpush1.xpose.msra.mxu0 0.0
  %1495 = vmatprep.subr.mxu0 0.0
  %1496 = vmatpush1.xpose.msra.mxu0 0.0
  %1497 = vmatprep.subr.mxu0 0.0
  %1498 = vmatpush1.xpose.msra.mxu0 0.0
  %1499 = vmatprep.subr.mxu0 0.0
  %1500 = vmatpush1.xpose.msra.mxu0 0.0
  %1501 = vmatprep.subr.mxu0 0.0
  %1502 = vmatpush1.xpose.msra.mxu0 0.0
  %1503 = vmatprep.subr.mxu0 0.0
  %1504 = vmatpush1.xpose.msra.mxu0 0.0
  %1505 = vmatprep.mubr.f32.mxu0 0.0
  %1506 = vmatmul.mubr.f32.gmra.mrb[0].mxu0 %v1436
  %v1507 = vpop.f32.mrb[0].mxu0
  %v1508 = vadd.f32 0.0, %v1507
  %v1509 = vpop.f32.mrb[0].mxu0
  %1510 = vdwg.mxu0
  %v1512 = vsel %vm142, %v64, 0
  %v1515 = vsel %vm142, %v96, 0
  %1517 = vmatprep.subr.mxu0 0.0
  %1518 = vmatpush1.xpose.msra.mxu0 %v1515
  %1519 = vmatprep.subr.mxu0 0.0
  %1520 = vmatpush1.xpose.msra.mxu0 0.0
  %1521 = vmatprep.subr.mxu0 0.0
  %1522 = vmatpush1.xpose.msra.mxu0 0.0
  %1523 = vmatprep.subr.mxu0 0.0
  %1524 = vmatpush1.xpose.msra.mxu0 0.0
  %1525 = vmatprep.subr.mxu0 0.0
  %1526 = vmatpush1.xpose.msra.mxu0 0.0
  %1527 = vmatprep.subr.mxu0 0.0
  %1528 = vmatpush1.xpose.msra.mxu0 0.0
  %1529 = vmatprep.subr.mxu0 0.0
  %1530 = vmatpush1.xpose.msra.mxu0 0.0
  %1531 = vmatprep.subr.mxu0 0.0
  %1532 = vmatpush1.xpose.msra.mxu0 0.0
  %1533 = vmatprep.subr.mxu0 0.0
  %1534 = vmatpush1.xpose.msra.mxu0 0.0
  %1535 = vmatprep.subr.mxu0 0.0
  %1536 = vmatpush1.xpose.msra.mxu0 0.0
  %1537 = vmatprep.subr.mxu0 0.0
  %1538 = vmatpush1.xpose.msra.mxu0 0.0
  %1539 = vmatprep.subr.mxu0 0.0
  %1540 = vmatpush1.xpose.msra.mxu0 0.0
  %1541 = vmatprep.subr.mxu0 0.0
  %1542 = vmatpush1.xpose.msra.mxu0 0.0
  %1543 = vmatprep.subr.mxu0 0.0
  %1544 = vmatpush1.xpose.msra.mxu0 0.0
  %1545 = vmatprep.subr.mxu0 0.0
  %1546 = vmatpush1.xpose.msra.mxu0 0.0
  %1547 = vmatprep.subr.mxu0 0.0
  %1548 = vmatpush1.xpose.msra.mxu0 0.0
  %1549 = vmatprep.subr.mxu0 0.0
  %1550 = vmatpush1.xpose.msra.mxu0 0.0
  %1551 = vmatprep.subr.mxu0 0.0
  %1552 = vmatpush1.xpose.msra.mxu0 0.0
  %1553 = vmatprep.subr.mxu0 0.0
  %1554 = vmatpush1.xpose.msra.mxu0 0.0
  %1555 = vmatprep.subr.mxu0 0.0
  %1556 = vmatpush1.xpose.msra.mxu0 0.0
  %1557 = vmatprep.subr.mxu0 0.0
  %1558 = vmatpush1.xpose.msra.mxu0 0.0
  %1559 = vmatprep.subr.mxu0 0.0
  %1560 = vmatpush1.xpose.msra.mxu0 0.0
  %1561 = vmatprep.subr.mxu0 0.0
  %1562 = vmatpush1.xpose.msra.mxu0 0.0
  %1563 = vmatprep.subr.mxu0 0.0
  %1564 = vmatpush1.xpose.msra.mxu0 0.0
  %1565 = vmatprep.subr.mxu0 0.0
  %1566 = vmatpush1.xpose.msra.mxu0 0.0
  %1567 = vmatprep.subr.mxu0 0.0
  %1568 = vmatpush1.xpose.msra.mxu0 0.0
  %1569 = vmatprep.subr.mxu0 0.0
  %1570 = vmatpush1.xpose.msra.mxu0 0.0
  %1571 = vmatprep.subr.mxu0 0.0
  %1572 = vmatpush1.xpose.msra.mxu0 0.0
  %1573 = vmatprep.subr.mxu0 0.0
  %1574 = vmatpush1.xpose.msra.mxu0 0.0
  %1575 = vmatprep.subr.mxu0 0.0
  %1576 = vmatpush1.xpose.msra.mxu0 0.0
  %1577 = vmatprep.subr.mxu0 0.0
  %1578 = vmatpush1.xpose.msra.mxu0 0.0
  %1579 = vmatprep.subr.mxu0 0.0
  %1580 = vmatpush1.xpose.msra.mxu0 0.0
  %1581 = vmatprep.mubr.f32.mxu0 0.0
  %1582 = vmatmul.mubr.f32.gmra.mrb[0].mxu0 %v1512
  %v1583 = vpop.f32.mrb[0].mxu0
  %v1584 = vadd.f32 0.0, %v1583
  %v1585 = vpop.f32.mrb[0].mxu0
  %1586 = vdwg.mxu0
  %v1588 = vsel %vm142, %v65, 0
  %v1591 = vsel %vm142, %v97, 0
  %1593 = vmatprep.subr.mxu0 0.0
  %1594 = vmatpush1.xpose.msra.mxu0 %v1591
  %1595 = vmatprep.subr.mxu0 0.0
  %1596 = vmatpush1.xpose.msra.mxu0 0.0
  %1597 = vmatprep.subr.mxu0 0.0
  %1598 = vmatpush1.xpose.msra.mxu0 0.0
  %1599 = vmatprep.subr.mxu0 0.0
  %1600 = vmatpush1.xpose.msra.mxu0 0.0
  %1601 = vmatprep.subr.mxu0 0.0
  %1602 = vmatpush1.xpose.msra.mxu0 0.0
  %1603 = vmatprep.subr.mxu0 0.0
  %1604 = vmatpush1.xpose.msra.mxu0 0.0
  %1605 = vmatprep.subr.mxu0 0.0
  %1606 = vmatpush1.xpose.msra.mxu0 0.0
  %1607 = vmatprep.subr.mxu0 0.0
  %1608 = vmatpush1.xpose.msra.mxu0 0.0
  %1609 = vmatprep.subr.mxu0 0.0
  %1610 = vmatpush1.xpose.msra.mxu0 0.0
  %1611 = vmatprep.subr.mxu0 0.0
  %1612 = vmatpush1.xpose.msra.mxu0 0.0
  %1613 = vmatprep.subr.mxu0 0.0
  %1614 = vmatpush1.xpose.msra.mxu0 0.0
  %1615 = vmatprep.subr.mxu0 0.0
  %1616 = vmatpush1.xpose.msra.mxu0 0.0
  %1617 = vmatprep.subr.mxu0 0.0
  %1618 = vmatpush1.xpose.msra.mxu0 0.0
  %1619 = vmatprep.subr.mxu0 0.0
  %1620 = vmatpush1.xpose.msra.mxu0 0.0
  %1621 = vmatprep.subr.mxu0 0.0
  %1622 = vmatpush1.xpose.msra.mxu0 0.0
  %1623 = vmatprep.subr.mxu0 0.0
  %1624 = vmatpush1.xpose.msra.mxu0 0.0
  %1625 = vmatprep.subr.mxu0 0.0
  %1626 = vmatpush1.xpose.msra.mxu0 0.0
  %1627 = vmatprep.subr.mxu0 0.0
  %1628 = vmatpush1.xpose.msra.mxu0 0.0
  %1629 = vmatprep.subr.mxu0 0.0
  %1630 = vmatpush1.xpose.msra.mxu0 0.0
  %1631 = vmatprep.subr.mxu0 0.0
  %1632 = vmatpush1.xpose.msra.mxu0 0.0
  %1633 = vmatprep.subr.mxu0 0.0
  %1634 = vmatpush1.xpose.msra.mxu0 0.0
  %1635 = vmatprep.subr.mxu0 0.0
  %1636 = vmatpush1.xpose.msra.mxu0 0.0
  %1637 = vmatprep.subr.mxu0 0.0
  %1638 = vmatpush1.xpose.msra.mxu0 0.0
  %1639 = vmatprep.subr.mxu0 0.0
  %1640 = vmatpush1.xpose.msra.mxu0 0.0
  %1641 = vmatprep.subr.mxu0 0.0
  %1642 = vmatpush1.xpose.msra.mxu0 0.0
  %1643 = vmatprep.subr.mxu0 0.0
  %1644 = vmatpush1.xpose.msra.mxu0 0.0
  %1645 = vmatprep.subr.mxu0 0.0
  %1646 = vmatpush1.xpose.msra.mxu0 0.0
  %1647 = vmatprep.subr.mxu0 0.0
  %1648 = vmatpush1.xpose.msra.mxu0 0.0
  %1649 = vmatprep.subr.mxu0 0.0
  %1650 = vmatpush1.xpose.msra.mxu0 0.0
  %1651 = vmatprep.subr.mxu0 0.0
  %1652 = vmatpush1.xpose.msra.mxu0 0.0
  %1653 = vmatprep.subr.mxu0 0.0
  %1654 = vmatpush1.xpose.msra.mxu0 0.0
  %1655 = vmatprep.subr.mxu0 0.0
  %1656 = vmatpush1.xpose.msra.mxu0 0.0
  %1657 = vmatprep.mubr.f32.mxu0 0.0
  %1658 = vmatmul.mubr.f32.gmra.mrb[0].mxu0 %v1588
  %v1659 = vpop.f32.mrb[0].mxu0
  %v1660 = vadd.f32 0.0, %v1659
  %v1661 = vpop.f32.mrb[0].mxu0
  %1662 = vdwg.mxu0
  %v1664 = vsel %vm142, %v66, 0
  %v1667 = vsel %vm142, %v98, 0
  %1669 = vmatprep.subr.mxu0 0.0
  %1670 = vmatpush1.xpose.msra.mxu0 %v1667
  %1671 = vmatprep.subr.mxu0 0.0
  %1672 = vmatpush1.xpose.msra.mxu0 0.0
  %1673 = vmatprep.subr.mxu0 0.0
  %1674 = vmatpush1.xpose.msra.mxu0 0.0
  %1675 = vmatprep.subr.mxu0 0.0
  %1676 = vmatpush1.xpose.msra.mxu0 0.0
  %1677 = vmatprep.subr.mxu0 0.0
  %1678 = vmatpush1.xpose.msra.mxu0 0.0
  %1679 = vmatprep.subr.mxu0 0.0
  %1680 = vmatpush1.xpose.msra.mxu0 0.0
  %1681 = vmatprep.subr.mxu0 0.0
  %1682 = vmatpush1.xpose.msra.mxu0 0.0
  %1683 = vmatprep.subr.mxu0 0.0
  %1684 = vmatpush1.xpose.msra.mxu0 0.0
  %1685 = vmatprep.subr.mxu0 0.0
  %1686 = vmatpush1.xpose.msra.mxu0 0.0
  %1687 = vmatprep.subr.mxu0 0.0
  %1688 = vmatpush1.xpose.msra.mxu0 0.0
  %1689 = vmatprep.subr.mxu0 0.0
  %1690 = vmatpush1.xpose.msra.mxu0 0.0
  %1691 = vmatprep.subr.mxu0 0.0
  %1692 = vmatpush1.xpose.msra.mxu0 0.0
  %1693 = vmatprep.subr.mxu0 0.0
  %1694 = vmatpush1.xpose.msra.mxu0 0.0
  %1695 = vmatprep.subr.mxu0 0.0
  %1696 = vmatpush1.xpose.msra.mxu0 0.0
  %1697 = vmatprep.subr.mxu0 0.0
  %1698 = vmatpush1.xpose.msra.mxu0 0.0
  %1699 = vmatprep.subr.mxu0 0.0
  %1700 = vmatpush1.xpose.msra.mxu0 0.0
  %1701 = vmatprep.subr.mxu0 0.0
  %1702 = vmatpush1.xpose.msra.mxu0 0.0
  %1703 = vmatprep.subr.mxu0 0.0
  %1704 = vmatpush1.xpose.msra.mxu0 0.0
  %1705 = vmatprep.subr.mxu0 0.0
  %1706 = vmatpush1.xpose.msra.mxu0 0.0
  %1707 = vmatprep.subr.mxu0 0.0
  %1708 = vmatpush1.xpose.msra.mxu0 0.0
  %1709 = vmatprep.subr.mxu0 0.0
  %1710 = vmatpush1.xpose.msra.mxu0 0.0
  %1711 = vmatprep.subr.mxu0 0.0
  %1712 = vmatpush1.xpose.msra.mxu0 0.0
  %1713 = vmatprep.subr.mxu0 0.0
  %1714 = vmatpush1.xpose.msra.mxu0 0.0
  %1715 = vmatprep.subr.mxu0 0.0
  %1716 = vmatpush1.xpose.msra.mxu0 0.0
  %1717 = vmatprep.subr.mxu0 0.0
  %1718 = vmatpush1.xpose.msra.mxu0 0.0
  %1719 = vmatprep.subr.mxu0 0.0
  %1720 = vmatpush1.xpose.msra.mxu0 0.0
  %1721 = vmatprep.subr.mxu0 0.0
  %1722 = vmatpush1.xpose.msra.mxu0 0.0
  %1723 = vmatprep.subr.mxu0 0.0
  %1724 = vmatpush1.xpose.msra.mxu0 0.0
  %1725 = vmatprep.subr.mxu0 0.0
  %1726 = vmatpush1.xpose.msra.mxu0 0.0
  %1727 = vmatprep.subr.mxu0 0.0
  %1728 = vmatpush1.xpose.msra.mxu0 0.0
  %1729 = vmatprep.subr.mxu0 0.0
  %1730 = vmatpush1.xpose.msra.mxu0 0.0
  %1731 = vmatprep.subr.mxu0 0.0
  %1732 = vmatpush1.xpose.msra.mxu0 0.0
  %1733 = vmatprep.mubr.f32.mxu0 0.0
  %1734 = vmatmul.mubr.f32.gmra.mrb[0].mxu0 %v1664
  %v1735 = vpop.f32.mrb[0].mxu0
  %v1736 = vadd.f32 0.0, %v1735
  %v1737 = vpop.f32.mrb[0].mxu0
  %1738 = vdwg.mxu0
  %v1740 = vsel %vm142, %v67, 0
  %v1743 = vsel %vm142, %v99, 0
  %1745 = vmatprep.subr.mxu0 0.0
  %1746 = vmatpush1.xpose.msra.mxu0 %v1743
  %1747 = vmatprep.subr.mxu0 0.0
  %1748 = vmatpush1.xpose.msra.mxu0 0.0
  %1749 = vmatprep.subr.mxu0 0.0
  %1750 = vmatpush1.xpose.msra.mxu0 0.0
  %1751 = vmatprep.subr.mxu0 0.0
  %1752 = vmatpush1.xpose.msra.mxu0 0.0
  %1753 = vmatprep.subr.mxu0 0.0
  %1754 = vmatpush1.xpose.msra.mxu0 0.0
  %1755 = vmatprep.subr.mxu0 0.0
  %1756 = vmatpush1.xpose.msra.mxu0 0.0
  %1757 = vmatprep.subr.mxu0 0.0
  %1758 = vmatpush1.xpose.msra.mxu0 0.0
  %1759 = vmatprep.subr.mxu0 0.0
  %1760 = vmatpush1.xpose.msra.mxu0 0.0
  %1761 = vmatprep.subr.mxu0 0.0
  %1762 = vmatpush1.xpose.msra.mxu0 0.0
  %1763 = vmatprep.subr.mxu0 0.0
  %1764 = vmatpush1.xpose.msra.mxu0 0.0
  %1765 = vmatprep.subr.mxu0 0.0
  %1766 = vmatpush1.xpose.msra.mxu0 0.0
  %1767 = vmatprep.subr.mxu0 0.0
  %1768 = vmatpush1.xpose.msra.mxu0 0.0
  %1769 = vmatprep.subr.mxu0 0.0
  %1770 = vmatpush1.xpose.msra.mxu0 0.0
  %1771 = vmatprep.subr.mxu0 0.0
  %1772 = vmatpush1.xpose.msra.mxu0 0.0
  %1773 = vmatprep.subr.mxu0 0.0
  %1774 = vmatpush1.xpose.msra.mxu0 0.0
  %1775 = vmatprep.subr.mxu0 0.0
  %1776 = vmatpush1.xpose.msra.mxu0 0.0
  %1777 = vmatprep.subr.mxu0 0.0
  %1778 = vmatpush1.xpose.msra.mxu0 0.0
  %1779 = vmatprep.subr.mxu0 0.0
  %1780 = vmatpush1.xpose.msra.mxu0 0.0
  %1781 = vmatprep.subr.mxu0 0.0
  %1782 = vmatpush1.xpose.msra.mxu0 0.0
  %1783 = vmatprep.subr.mxu0 0.0
  %1784 = vmatpush1.xpose.msra.mxu0 0.0
  %1785 = vmatprep.subr.mxu0 0.0
  %1786 = vmatpush1.xpose.msra.mxu0 0.0
  %1787 = vmatprep.subr.mxu0 0.0
  %1788 = vmatpush1.xpose.msra.mxu0 0.0
  %1789 = vmatprep.subr.mxu0 0.0
  %1790 = vmatpush1.xpose.msra.mxu0 0.0
  %1791 = vmatprep.subr.mxu0 0.0
  %1792 = vmatpush1.xpose.msra.mxu0 0.0
  %1793 = vmatprep.subr.mxu0 0.0
  %1794 = vmatpush1.xpose.msra.mxu0 0.0
  %1795 = vmatprep.subr.mxu0 0.0
  %1796 = vmatpush1.xpose.msra.mxu0 0.0
  %1797 = vmatprep.subr.mxu0 0.0
  %1798 = vmatpush1.xpose.msra.mxu0 0.0
  %1799 = vmatprep.subr.mxu0 0.0
  %1800 = vmatpush1.xpose.msra.mxu0 0.0
  %1801 = vmatprep.subr.mxu0 0.0
  %1802 = vmatpush1.xpose.msra.mxu0 0.0
  %1803 = vmatprep.subr.mxu0 0.0
  %1804 = vmatpush1.xpose.msra.mxu0 0.0
  %1805 = vmatprep.subr.mxu0 0.0
  %1806 = vmatpush1.xpose.msra.mxu0 0.0
  %1807 = vmatprep.subr.mxu0 0.0
  %1808 = vmatpush1.xpose.msra.mxu0 0.0
  %1809 = vmatprep.mubr.f32.mxu0 0.0
  %1810 = vmatmul.mubr.f32.gmra.mrb[0].mxu0 %v1740
  %v1811 = vpop.f32.mrb[0].mxu0
  %v1812 = vadd.f32 0.0, %v1811
  %v1813 = vpop.f32.mrb[0].mxu0
  %1814 = vdwg.mxu0
  %v1816 = vsel %vm142, %v68, 0
  %v1819 = vsel %vm142, %v100, 0
  %1821 = vmatprep.subr.mxu0 0.0
  %1822 = vmatpush1.xpose.msra.mxu0 %v1819
  %1823 = vmatprep.subr.mxu0 0.0
  %1824 = vmatpush1.xpose.msra.mxu0 0.0
  %1825 = vmatprep.subr.mxu0 0.0
  %1826 = vmatpush1.xpose.msra.mxu0 0.0
  %1827 = vmatprep.subr.mxu0 0.0
  %1828 = vmatpush1.xpose.msra.mxu0 0.0
  %1829 = vmatprep.subr.mxu0 0.0
  %1830 = vmatpush1.xpose.msra.mxu0 0.0
  %1831 = vmatprep.subr.mxu0 0.0
  %1832 = vmatpush1.xpose.msra.mxu0 0.0
  %1833 = vmatprep.subr.mxu0 0.0
  %1834 = vmatpush1.xpose.msra.mxu0 0.0
  %1835 = vmatprep.subr.mxu0 0.0
  %1836 = vmatpush1.xpose.msra.mxu0 0.0
  %1837 = vmatprep.subr.mxu0 0.0
  %1838 = vmatpush1.xpose.msra.mxu0 0.0
  %1839 = vmatprep.subr.mxu0 0.0
  %1840 = vmatpush1.xpose.msra.mxu0 0.0
  %1841 = vmatprep.subr.mxu0 0.0
  %1842 = vmatpush1.xpose.msra.mxu0 0.0
  %1843 = vmatprep.subr.mxu0 0.0
  %1844 = vmatpush1.xpose.msra.mxu0 0.0
  %1845 = vmatprep.subr.mxu0 0.0
  %1846 = vmatpush1.xpose.msra.mxu0 0.0
  %1847 = vmatprep.subr.mxu0 0.0
  %1848 = vmatpush1.xpose.msra.mxu0 0.0
  %1849 = vmatprep.subr.mxu0 0.0
  %1850 = vmatpush1.xpose.msra.mxu0 0.0
  %1851 = vmatprep.subr.mxu0 0.0
  %1852 = vmatpush1.xpose.msra.mxu0 0.0
  %1853 = vmatprep.subr.mxu0 0.0
  %1854 = vmatpush1.xpose.msra.mxu0 0.0
  %1855 = vmatprep.subr.mxu0 0.0
  %1856 = vmatpush1.xpose.msra.mxu0 0.0
  %1857 = vmatprep.subr.mxu0 0.0
  %1858 = vmatpush1.xpose.msra.mxu0 0.0
  %1859 = vmatprep.subr.mxu0 0.0
  %1860 = vmatpush1.xpose.msra.mxu0 0.0
  %1861 = vmatprep.subr.mxu0 0.0
  %1862 = vmatpush1.xpose.msra.mxu0 0.0
  %1863 = vmatprep.subr.mxu0 0.0
  %1864 = vmatpush1.xpose.msra.mxu0 0.0
  %1865 = vmatprep.subr.mxu0 0.0
  %1866 = vmatpush1.xpose.msra.mxu0 0.0
  %1867 = vmatprep.subr.mxu0 0.0
  %1868 = vmatpush1.xpose.msra.mxu0 0.0
  %1869 = vmatprep.subr.mxu0 0.0
  %1870 = vmatpush1.xpose.msra.mxu0 0.0
  %1871 = vmatprep.subr.mxu0 0.0
  %1872 = vmatpush1.xpose.msra.mxu0 0.0
  %1873 = vmatprep.subr.mxu0 0.0
  %1874 = vmatpush1.xpose.msra.mxu0 0.0
  %1875 = vmatprep.subr.mxu0 0.0
  %1876 = vmatpush1.xpose.msra.mxu0 0.0
  %1877 = vmatprep.subr.mxu0 0.0
  %1878 = vmatpush1.xpose.msra.mxu0 0.0
  %1879 = vmatprep.subr.mxu0 0.0
  %1880 = vmatpush1.xpose.msra.mxu0 0.0
  %1881 = vmatprep.subr.mxu0 0.0
  %1882 = vmatpush1.xpose.msra.mxu0 0.0
  %1883 = vmatprep.subr.mxu0 0.0
  %1884 = vmatpush1.xpose.msra.mxu0 0.0
  %1885 = vmatprep.mubr.f32.mxu0 0.0
  %1886 = vmatmul.mubr.f32.gmra.mrb[0].mxu0 %v1816
  %v1887 = vpop.f32.mrb[0].mxu0
  %v1888 = vadd.f32 0.0, %v1887
  %v1889 = vpop.f32.mrb[0].mxu0
  %1890 = vdwg.mxu0
  %v1892 = vsel %vm142, %v69, 0
  %v1895 = vsel %vm142, %v101, 0
  %1897 = vmatprep.subr.mxu0 0.0
  %1898 = vmatpush1.xpose.msra.mxu0 %v1895
  %1899 = vmatprep.subr.mxu0 0.0
  %1900 = vmatpush1.xpose.msra.mxu0 0.0
  %1901 = vmatprep.subr.mxu0 0.0
  %1902 = vmatpush1.xpose.msra.mxu0 0.0
  %1903 = vmatprep.subr.mxu0 0.0
  %1904 = vmatpush1.xpose.msra.mxu0 0.0
  %1905 = vmatprep.subr.mxu0 0.0
  %1906 = vmatpush1.xpose.msra.mxu0 0.0
  %1907 = vmatprep.subr.mxu0 0.0
  %1908 = vmatpush1.xpose.msra.mxu0 0.0
  %1909 = vmatprep.subr.mxu0 0.0
  %1910 = vmatpush1.xpose.msra.mxu0 0.0
  %1911 = vmatprep.subr.mxu0 0.0
  %1912 = vmatpush1.xpose.msra.mxu0 0.0
  %1913 = vmatprep.subr.mxu0 0.0
  %1914 = vmatpush1.xpose.msra.mxu0 0.0
  %1915 = vmatprep.subr.mxu0 0.0
  %1916 = vmatpush1.xpose.msra.mxu0 0.0
  %1917 = vmatprep.subr.mxu0 0.0
  %1918 = vmatpush1.xpose.msra.mxu0 0.0
  %1919 = vmatprep.subr.mxu0 0.0
  %1920 = vmatpush1.xpose.msra.mxu0 0.0
  %1921 = vmatprep.subr.mxu0 0.0
  %1922 = vmatpush1.xpose.msra.mxu0 0.0
  %1923 = vmatprep.subr.mxu0 0.0
  %1924 = vmatpush1.xpose.msra.mxu0 0.0
  %1925 = vmatprep.subr.mxu0 0.0
  %1926 = vmatpush1.xpose.msra.mxu0 0.0
  %1927 = vmatprep.subr.mxu0 0.0
  %1928 = vmatpush1.xpose.msra.mxu0 0.0
  %1929 = vmatprep.subr.mxu0 0.0
  %1930 = vmatpush1.xpose.msra.mxu0 0.0
  %1931 = vmatprep.subr.mxu0 0.0
  %1932 = vmatpush1.xpose.msra.mxu0 0.0
  %1933 = vmatprep.subr.mxu0 0.0
  %1934 = vmatpush1.xpose.msra.mxu0 0.0
  %1935 = vmatprep.subr.mxu0 0.0
  %1936 = vmatpush1.xpose.msra.mxu0 0.0
  %1937 = vmatprep.subr.mxu0 0.0
  %1938 = vmatpush1.xpose.msra.mxu0 0.0
  %1939 = vmatprep.subr.mxu0 0.0
  %1940 = vmatpush1.xpose.msra.mxu0 0.0
  %1941 = vmatprep.subr.mxu0 0.0
  %1942 = vmatpush1.xpose.msra.mxu0 0.0
  %1943 = vmatprep.subr.mxu0 0.0
  %1944 = vmatpush1.xpose.msra.mxu0 0.0
  %1945 = vmatprep.subr.mxu0 0.0
  %1946 = vmatpush1.xpose.msra.mxu0 0.0
  %1947 = vmatprep.subr.mxu0 0.0
  %1948 = vmatpush1.xpose.msra.mxu0 0.0
  %1949 = vmatprep.subr.mxu0 0.0
  %1950 = vmatpush1.xpose.msra.mxu0 0.0
  %1951 = vmatprep.subr.mxu0 0.0
  %1952 = vmatpush1.xpose.msra.mxu0 0.0
  %1953 = vmatprep.subr.mxu0 0.0
  %1954 = vmatpush1.xpose.msra.mxu0 0.0
  %1955 = vmatprep.subr.mxu0 0.0
  %1956 = vmatpush1.xpose.msra.mxu0 0.0
  %1957 = vmatprep.subr.mxu0 0.0
  %1958 = vmatpush1.xpose.msra.mxu0 0.0
  %1959 = vmatprep.subr.mxu0 0.0
  %1960 = vmatpush1.xpose.msra.mxu0 0.0
  %1961 = vmatprep.mubr.f32.mxu0 0.0
  %1962 = vmatmul.mubr.f32.gmra.mrb[0].mxu0 %v1892
  %v1963 = vpop.f32.mrb[0].mxu0
  %v1964 = vadd.f32 0.0, %v1963
  %v1965 = vpop.f32.mrb[0].mxu0
  %1966 = vdwg.mxu0
  %v1968 = vsel %vm142, %v70, 0
  %v1971 = vsel %vm142, %v102, 0
  %1973 = vmatprep.subr.mxu0 0.0
  %1974 = vmatpush1.xpose.msra.mxu0 %v1971
  %1975 = vmatprep.subr.mxu0 0.0
  %1976 = vmatpush1.xpose.msra.mxu0 0.0
  %1977 = vmatprep.subr.mxu0 0.0
  %1978 = vmatpush1.xpose.msra.mxu0 0.0
  %1979 = vmatprep.subr.mxu0 0.0
  %1980 = vmatpush1.xpose.msra.mxu0 0.0
  %1981 = vmatprep.subr.mxu0 0.0
  %1982 = vmatpush1.xpose.msra.mxu0 0.0
  %1983 = vmatprep.subr.mxu0 0.0
  %1984 = vmatpush1.xpose.msra.mxu0 0.0
  %1985 = vmatprep.subr.mxu0 0.0
  %1986 = vmatpush1.xpose.msra.mxu0 0.0
  %1987 = vmatprep.subr.mxu0 0.0
  %1988 = vmatpush1.xpose.msra.mxu0 0.0
  %1989 = vmatprep.subr.mxu0 0.0
  %1990 = vmatpush1.xpose.msra.mxu0 0.0
  %1991 = vmatprep.subr.mxu0 0.0
  %1992 = vmatpush1.xpose.msra.mxu0 0.0
  %1993 = vmatprep.subr.mxu0 0.0
  %1994 = vmatpush1.xpose.msra.mxu0 0.0
  %1995 = vmatprep.subr.mxu0 0.0
  %1996 = vmatpush1.xpose.msra.mxu0 0.0
  %1997 = vmatprep.subr.mxu0 0.0
  %1998 = vmatpush1.xpose.msra.mxu0 0.0
  %1999 = vmatprep.subr.mxu0 0.0
  %2000 = vmatpush1.xpose.msra.mxu0 0.0
  %2001 = vmatprep.subr.mxu0 0.0
  %2002 = vmatpush1.xpose.msra.mxu0 0.0
  %2003 = vmatprep.subr.mxu0 0.0
  %2004 = vmatpush1.xpose.msra.mxu0 0.0
  %2005 = vmatprep.subr.mxu0 0.0
  %2006 = vmatpush1.xpose.msra.mxu0 0.0
  %2007 = vmatprep.subr.mxu0 0.0
  %2008 = vmatpush1.xpose.msra.mxu0 0.0
  %2009 = vmatprep.subr.mxu0 0.0
  %2010 = vmatpush1.xpose.msra.mxu0 0.0
  %2011 = vmatprep.subr.mxu0 0.0
  %2012 = vmatpush1.xpose.msra.mxu0 0.0
  %2013 = vmatprep.subr.mxu0 0.0
  %2014 = vmatpush1.xpose.msra.mxu0 0.0
  %2015 = vmatprep.subr.mxu0 0.0
  %2016 = vmatpush1.xpose.msra.mxu0 0.0
  %2017 = vmatprep.subr.mxu0 0.0
  %2018 = vmatpush1.xpose.msra.mxu0 0.0
  %2019 = vmatprep.subr.mxu0 0.0
  %2020 = vmatpush1.xpose.msra.mxu0 0.0
  %2021 = vmatprep.subr.mxu0 0.0
  %2022 = vmatpush1.xpose.msra.mxu0 0.0
  %2023 = vmatprep.subr.mxu0 0.0
  %2024 = vmatpush1.xpose.msra.mxu0 0.0
  %2025 = vmatprep.subr.mxu0 0.0
  %2026 = vmatpush1.xpose.msra.mxu0 0.0
  %2027 = vmatprep.subr.mxu0 0.0
  %2028 = vmatpush1.xpose.msra.mxu0 0.0
  %2029 = vmatprep.subr.mxu0 0.0
  %2030 = vmatpush1.xpose.msra.mxu0 0.0
  %2031 = vmatprep.subr.mxu0 0.0
  %2032 = vmatpush1.xpose.msra.mxu0 0.0
  %2033 = vmatprep.subr.mxu0 0.0
  %2034 = vmatpush1.xpose.msra.mxu0 0.0
  %2035 = vmatprep.subr.mxu0 0.0
  %2036 = vmatpush1.xpose.msra.mxu0 0.0
  %2037 = vmatprep.mubr.f32.mxu0 0.0
  %2038 = vmatmul.mubr.f32.gmra.mrb[0].mxu0 %v1968
  %v2039 = vpop.f32.mrb[0].mxu0
  %v2040 = vadd.f32 0.0, %v2039
  %v2041 = vpop.f32.mrb[0].mxu0
  %2042 = vdwg.mxu0
  %v2044 = vsel %vm142, %v71, 0
  %v2047 = vsel %vm142, %v103, 0
  %2049 = vmatprep.subr.mxu0 0.0
  %2050 = vmatpush1.xpose.msra.mxu0 %v2047
  %2051 = vmatprep.subr.mxu0 0.0
  %2052 = vmatpush1.xpose.msra.mxu0 0.0
  %2053 = vmatprep.subr.mxu0 0.0
  %2054 = vmatpush1.xpose.msra.mxu0 0.0
  %2055 = vmatprep.subr.mxu0 0.0
  %2056 = vmatpush1.xpose.msra.mxu0 0.0
  %2057 = vmatprep.subr.mxu0 0.0
  %2058 = vmatpush1.xpose.msra.mxu0 0.0
  %2059 = vmatprep.subr.mxu0 0.0
  %2060 = vmatpush1.xpose.msra.mxu0 0.0
  %2061 = vmatprep.subr.mxu0 0.0
  %2062 = vmatpush1.xpose.msra.mxu0 0.0
  %2063 = vmatprep.subr.mxu0 0.0
  %2064 = vmatpush1.xpose.msra.mxu0 0.0
  %2065 = vmatprep.subr.mxu0 0.0
  %2066 = vmatpush1.xpose.msra.mxu0 0.0
  %2067 = vmatprep.subr.mxu0 0.0
  %2068 = vmatpush1.xpose.msra.mxu0 0.0
  %2069 = vmatprep.subr.mxu0 0.0
  %2070 = vmatpush1.xpose.msra.mxu0 0.0
  %2071 = vmatprep.subr.mxu0 0.0
  %2072 = vmatpush1.xpose.msra.mxu0 0.0
  %2073 = vmatprep.subr.mxu0 0.0
  %2074 = vmatpush1.xpose.msra.mxu0 0.0
  %2075 = vmatprep.subr.mxu0 0.0
  %2076 = vmatpush1.xpose.msra.mxu0 0.0
  %2077 = vmatprep.subr.mxu0 0.0
  %2078 = vmatpush1.xpose.msra.mxu0 0.0
  %2079 = vmatprep.subr.mxu0 0.0
  %2080 = vmatpush1.xpose.msra.mxu0 0.0
  %2081 = vmatprep.subr.mxu0 0.0
  %2082 = vmatpush1.xpose.msra.mxu0 0.0
  %2083 = vmatprep.subr.mxu0 0.0
  %2084 = vmatpush1.xpose.msra.mxu0 0.0
  %2085 = vmatprep.subr.mxu0 0.0
  %2086 = vmatpush1.xpose.msra.mxu0 0.0
  %2087 = vmatprep.subr.mxu0 0.0
  %2088 = vmatpush1.xpose.msra.mxu0 0.0
  %2089 = vmatprep.subr.mxu0 0.0
  %2090 = vmatpush1.xpose.msra.mxu0 0.0
  %2091 = vmatprep.subr.mxu0 0.0
  %2092 = vmatpush1.xpose.msra.mxu0 0.0
  %2093 = vmatprep.subr.mxu0 0.0
  %2094 = vmatpush1.xpose.msra.mxu0 0.0
  %2095 = vmatprep.subr.mxu0 0.0
  %2096 = vmatpush1.xpose.msra.mxu0 0.0
  %2097 = vmatprep.subr.mxu0 0.0
  %2098 = vmatpush1.xpose.msra.mxu0 0.0
  %2099 = vmatprep.subr.mxu0 0.0
  %2100 = vmatpush1.xpose.msra.mxu0 0.0
  %2101 = vmatprep.subr.mxu0 0.0
  %2102 = vmatpush1.xpose.msra.mxu0 0.0
  %2103 = vmatprep.subr.mxu0 0.0
  %2104 = vmatpush1.xpose.msra.mxu0 0.0
  %2105 = vmatprep.subr.mxu0 0.0
  %2106 = vmatpush1.xpose.msra.mxu0 0.0
  %2107 = vmatprep.subr.mxu0 0.0
  %2108 = vmatpush1.xpose.msra.mxu0 0.0
  %2109 = vmatprep.subr.mxu0 0.0
  %2110 = vmatpush1.xpose.msra.mxu0 0.0
  %2111 = vmatprep.subr.mxu0 0.0
  %2112 = vmatpush1.xpose.msra.mxu0 0.0
  %2113 = vmatprep.mubr.f32.mxu0 0.0
  %2114 = vmatmul.mubr.f32.gmra.mrb[0].mxu0 %v2044
  %v2115 = vpop.f32.mrb[0].mxu0
  %v2116 = vadd.f32 0.0, %v2115
  %v2117 = vpop.f32.mrb[0].mxu0
  %2118 = vdwg.mxu0
  %v2120 = vsel %vm142, %v72, 0
  %v2123 = vsel %vm142, %v104, 0
  %2125 = vmatprep.subr.mxu0 0.0
  %2126 = vmatpush1.xpose.msra.mxu0 %v2123
  %2127 = vmatprep.subr.mxu0 0.0
  %2128 = vmatpush1.xpose.msra.mxu0 0.0
  %2129 = vmatprep.subr.mxu0 0.0
  %2130 = vmatpush1.xpose.msra.mxu0 0.0
  %2131 = vmatprep.subr.mxu0 0.0
  %2132 = vmatpush1.xpose.msra.mxu0 0.0
  %2133 = vmatprep.subr.mxu0 0.0
  %2134 = vmatpush1.xpose.msra.mxu0 0.0
  %2135 = vmatprep.subr.mxu0 0.0
  %2136 = vmatpush1.xpose.msra.mxu0 0.0
  %2137 = vmatprep.subr.mxu0 0.0
  %2138 = vmatpush1.xpose.msra.mxu0 0.0
  %2139 = vmatprep.subr.mxu0 0.0
  %2140 = vmatpush1.xpose.msra.mxu0 0.0
  %2141 = vmatprep.subr.mxu0 0.0
  %2142 = vmatpush1.xpose.msra.mxu0 0.0
  %2143 = vmatprep.subr.mxu0 0.0
  %2144 = vmatpush1.xpose.msra.mxu0 0.0
  %2145 = vmatprep.subr.mxu0 0.0
  %2146 = vmatpush1.xpose.msra.mxu0 0.0
  %2147 = vmatprep.subr.mxu0 0.0
  %2148 = vmatpush1.xpose.msra.mxu0 0.0
  %2149 = vmatprep.subr.mxu0 0.0
  %2150 = vmatpush1.xpose.msra.mxu0 0.0
  %2151 = vmatprep.subr.mxu0 0.0
  %2152 = vmatpush1.xpose.msra.mxu0 0.0
  %2153 = vmatprep.subr.mxu0 0.0
  %2154 = vmatpush1.xpose.msra.mxu0 0.0
  %2155 = vmatprep.subr.mxu0 0.0
  %2156 = vmatpush1.xpose.msra.mxu0 0.0
  %2157 = vmatprep.subr.mxu0 0.0
  %2158 = vmatpush1.xpose.msra.mxu0 0.0
  %2159 = vmatprep.subr.mxu0 0.0
  %2160 = vmatpush1.xpose.msra.mxu0 0.0
  %2161 = vmatprep.subr.mxu0 0.0
  %2162 = vmatpush1.xpose.msra.mxu0 0.0
  %2163 = vmatprep.subr.mxu0 0.0
  %2164 = vmatpush1.xpose.msra.mxu0 0.0
  %2165 = vmatprep.subr.mxu0 0.0
  %2166 = vmatpush1.xpose.msra.mxu0 0.0
  %2167 = vmatprep.subr.mxu0 0.0
  %2168 = vmatpush1.xpose.msra.mxu0 0.0
  %2169 = vmatprep.subr.mxu0 0.0
  %2170 = vmatpush1.xpose.msra.mxu0 0.0
  %2171 = vmatprep.subr.mxu0 0.0
  %2172 = vmatpush1.xpose.msra.mxu0 0.0
  %2173 = vmatprep.subr.mxu0 0.0
  %2174 = vmatpush1.xpose.msra.mxu0 0.0
  %2175 = vmatprep.subr.mxu0 0.0
  %2176 = vmatpush1.xpose.msra.mxu0 0.0
  %2177 = vmatprep.subr.mxu0 0.0
  %2178 = vmatpush1.xpose.msra.mxu0 0.0
  %2179 = vmatprep.subr.mxu0 0.0
  %2180 = vmatpush1.xpose.msra.mxu0 0.0
  %2181 = vmatprep.subr.mxu0 0.0
  %2182 = vmatpush1.xpose.msra.mxu0 0.0
  %2183 = vmatprep.subr.mxu0 0.0
  %2184 = vmatpush1.xpose.msra.mxu0 0.0
  %2185 = vmatprep.subr.mxu0 0.0
  %2186 = vmatpush1.xpose.msra.mxu0 0.0
  %2187 = vmatprep.subr.mxu0 0.0
  %2188 = vmatpush1.xpose.msra.mxu0 0.0
  %2189 = vmatprep.mubr.f32.mxu0 0.0
  %2190 = vmatmul.mubr.f32.gmra.mrb[0].mxu0 %v2120
  %v2191 = vpop.f32.mrb[0].mxu0
  %v2192 = vadd.f32 0.0, %v2191
  %v2193 = vpop.f32.mrb[0].mxu0
  %2194 = vdwg.mxu0
  %v2196 = vsel %vm142, %v73, 0
  %v2199 = vsel %vm142, %v105, 0
  %2201 = vmatprep.subr.mxu0 0.0
  %2202 = vmatpush1.xpose.msra.mxu0 %v2199
  %2203 = vmatprep.subr.mxu0 0.0
  %2204 = vmatpush1.xpose.msra.mxu0 0.0
  %2205 = vmatprep.subr.mxu0 0.0
  %2206 = vmatpush1.xpose.msra.mxu0 0.0
  %2207 = vmatprep.subr.mxu0 0.0
  %2208 = vmatpush1.xpose.msra.mxu0 0.0
  %2209 = vmatprep.subr.mxu0 0.0
  %2210 = vmatpush1.xpose.msra.mxu0 0.0
  %2211 = vmatprep.subr.mxu0 0.0
  %2212 = vmatpush1.xpose.msra.mxu0 0.0
  %2213 = vmatprep.subr.mxu0 0.0
  %2214 = vmatpush1.xpose.msra.mxu0 0.0
  %2215 = vmatprep.subr.mxu0 0.0
  %2216 = vmatpush1.xpose.msra.mxu0 0.0
  %2217 = vmatprep.subr.mxu0 0.0
  %2218 = vmatpush1.xpose.msra.mxu0 0.0
  %2219 = vmatprep.subr.mxu0 0.0
  %2220 = vmatpush1.xpose.msra.mxu0 0.0
  %2221 = vmatprep.subr.mxu0 0.0
  %2222 = vmatpush1.xpose.msra.mxu0 0.0
  %2223 = vmatprep.subr.mxu0 0.0
  %2224 = vmatpush1.xpose.msra.mxu0 0.0
  %2225 = vmatprep.subr.mxu0 0.0
  %2226 = vmatpush1.xpose.msra.mxu0 0.0
  %2227 = vmatprep.subr.mxu0 0.0
  %2228 = vmatpush1.xpose.msra.mxu0 0.0
  %2229 = vmatprep.subr.mxu0 0.0
  %2230 = vmatpush1.xpose.msra.mxu0 0.0
  %2231 = vmatprep.subr.mxu0 0.0
  %2232 = vmatpush1.xpose.msra.mxu0 0.0
  %2233 = vmatprep.subr.mxu0 0.0
  %2234 = vmatpush1.xpose.msra.mxu0 0.0
  %2235 = vmatprep.subr.mxu0 0.0
  %2236 = vmatpush1.xpose.msra.mxu0 0.0
  %2237 = vmatprep.subr.mxu0 0.0
  %2238 = vmatpush1.xpose.msra.mxu0 0.0
  %2239 = vmatprep.subr.mxu0 0.0
  %2240 = vmatpush1.xpose.msra.mxu0 0.0
  %2241 = vmatprep.subr.mxu0 0.0
  %2242 = vmatpush1.xpose.msra.mxu0 0.0
  %2243 = vmatprep.subr.mxu0 0.0
  %2244 = vmatpush1.xpose.msra.mxu0 0.0
  %2245 = vmatprep.subr.mxu0 0.0
  %2246 = vmatpush1.xpose.msra.mxu0 0.0
  %2247 = vmatprep.subr.mxu0 0.0
  %2248 = vmatpush1.xpose.msra.mxu0 0.0
  %2249 = vmatprep.subr.mxu0 0.0
  %2250 = vmatpush1.xpose.msra.mxu0 0.0
  %2251 = vmatprep.subr.mxu0 0.0
  %2252 = vmatpush1.xpose.msra.mxu0 0.0
  %2253 = vmatprep.subr.mxu0 0.0
  %2254 = vmatpush1.xpose.msra.mxu0 0.0
  %2255 = vmatprep.subr.mxu0 0.0
  %2256 = vmatpush1.xpose.msra.mxu0 0.0
  %2257 = vmatprep.subr.mxu0 0.0
  %2258 = vmatpush1.xpose.msra.mxu0 0.0
  %2259 = vmatprep.subr.mxu0 0.0
  %2260 = vmatpush1.xpose.msra.mxu0 0.0
  %2261 = vmatprep.subr.mxu0 0.0
  %2262 = vmatpush1.xpose.msra.mxu0 0.0
  %2263 = vmatprep.subr.mxu0 0.0
  %2264 = vmatpush1.xpose.msra.mxu0 0.0
  %2265 = vmatprep.mubr.f32.mxu0 0.0
  %2266 = vmatmul.mubr.f32.gmra.mrb[0].mxu0 %v2196
  %v2267 = vpop.f32.mrb[0].mxu0
  %v2268 = vadd.f32 0.0, %v2267
  %v2269 = vpop.f32.mrb[0].mxu0
  %2270 = vdwg.mxu0
  %v2272 = vsel %vm142, %v74, 0
  %v2275 = vsel %vm142, %v106, 0
  %2277 = vmatprep.subr.mxu0 0.0
  %2278 = vmatpush1.xpose.msra.mxu0 %v2275
  %2279 = vmatprep.subr.mxu0 0.0
  %2280 = vmatpush1.xpose.msra.mxu0 0.0
  %2281 = vmatprep.subr.mxu0 0.0
  %2282 = vmatpush1.xpose.msra.mxu0 0.0
  %2283 = vmatprep.subr.mxu0 0.0
  %2284 = vmatpush1.xpose.msra.mxu0 0.0
  %2285 = vmatprep.subr.mxu0 0.0
  %2286 = vmatpush1.xpose.msra.mxu0 0.0
  %2287 = vmatprep.subr.mxu0 0.0
  %2288 = vmatpush1.xpose.msra.mxu0 0.0
  %2289 = vmatprep.subr.mxu0 0.0
  %2290 = vmatpush1.xpose.msra.mxu0 0.0
  %2291 = vmatprep.subr.mxu0 0.0
  %2292 = vmatpush1.xpose.msra.mxu0 0.0
  %2293 = vmatprep.subr.mxu0 0.0
  %2294 = vmatpush1.xpose.msra.mxu0 0.0
  %2295 = vmatprep.subr.mxu0 0.0
  %2296 = vmatpush1.xpose.msra.mxu0 0.0
  %2297 = vmatprep.subr.mxu0 0.0
  %2298 = vmatpush1.xpose.msra.mxu0 0.0
  %2299 = vmatprep.subr.mxu0 0.0
  %2300 = vmatpush1.xpose.msra.mxu0 0.0
  %2301 = vmatprep.subr.mxu0 0.0
  %2302 = vmatpush1.xpose.msra.mxu0 0.0
  %2303 = vmatprep.subr.mxu0 0.0
  %2304 = vmatpush1.xpose.msra.mxu0 0.0
  %2305 = vmatprep.subr.mxu0 0.0
  %2306 = vmatpush1.xpose.msra.mxu0 0.0
  %2307 = vmatprep.subr.mxu0 0.0
  %2308 = vmatpush1.xpose.msra.mxu0 0.0
  %2309 = vmatprep.subr.mxu0 0.0
  %2310 = vmatpush1.xpose.msra.mxu0 0.0
  %2311 = vmatprep.subr.mxu0 0.0
  %2312 = vmatpush1.xpose.msra.mxu0 0.0
  %2313 = vmatprep.subr.mxu0 0.0
  %2314 = vmatpush1.xpose.msra.mxu0 0.0
  %2315 = vmatprep.subr.mxu0 0.0
  %2316 = vmatpush1.xpose.msra.mxu0 0.0
  %2317 = vmatprep.subr.mxu0 0.0
  %2318 = vmatpush1.xpose.msra.mxu0 0.0
  %2319 = vmatprep.subr.mxu0 0.0
  %2320 = vmatpush1.xpose.msra.mxu0 0.0
  %2321 = vmatprep.subr.mxu0 0.0
  %2322 = vmatpush1.xpose.msra.mxu0 0.0
  %2323 = vmatprep.subr.mxu0 0.0
  %2324 = vmatpush1.xpose.msra.mxu0 0.0
  %2325 = vmatprep.subr.mxu0 0.0
  %2326 = vmatpush1.xpose.msra.mxu0 0.0
  %2327 = vmatprep.subr.mxu0 0.0
  %2328 = vmatpush1.xpose.msra.mxu0 0.0
  %2329 = vmatprep.subr.mxu0 0.0
  %2330 = vmatpush1.xpose.msra.mxu0 0.0
  %2331 = vmatprep.subr.mxu0 0.0
  %2332 = vmatpush1.xpose.msra.mxu0 0.0
  %2333 = vmatprep.subr.mxu0 0.0
  %2334 = vmatpush1.xpose.msra.mxu0 0.0
  %2335 = vmatprep.subr.mxu0 0.0
  %2336 = vmatpush1.xpose.msra.mxu0 0.0
  %2337 = vmatprep.subr.mxu0 0.0
  %2338 = vmatpush1.xpose.msra.mxu0 0.0
  %2339 = vmatprep.subr.mxu0 0.0
  %2340 = vmatpush1.xpose.msra.mxu0 0.0
  %2341 = vmatprep.mubr.f32.mxu0 0.0
  %2342 = vmatmul.mubr.f32.gmra.mrb[0].mxu0 %v2272
  %v2343 = vpop.f32.mrb[0].mxu0
  %v2344 = vadd.f32 0.0, %v2343
  %v2345 = vpop.f32.mrb[0].mxu0
  %2346 = vdwg.mxu0
  %v2348 = vsel %vm142, %v75, 0
  %v2351 = vsel %vm142, %v107, 0
  %2353 = vmatprep.subr.mxu0 0.0
  %2354 = vmatpush1.xpose.msra.mxu0 %v2351
  %2355 = vmatprep.subr.mxu0 0.0
  %2356 = vmatpush1.xpose.msra.mxu0 0.0
  %2357 = vmatprep.subr.mxu0 0.0
  %2358 = vmatpush1.xpose.msra.mxu0 0.0
  %2359 = vmatprep.subr.mxu0 0.0
  %2360 = vmatpush1.xpose.msra.mxu0 0.0
  %2361 = vmatprep.subr.mxu0 0.0
  %2362 = vmatpush1.xpose.msra.mxu0 0.0
  %2363 = vmatprep.subr.mxu0 0.0
  %2364 = vmatpush1.xpose.msra.mxu0 0.0
  %2365 = vmatprep.subr.mxu0 0.0
  %2366 = vmatpush1.xpose.msra.mxu0 0.0
  %2367 = vmatprep.subr.mxu0 0.0
  %2368 = vmatpush1.xpose.msra.mxu0 0.0
  %2369 = vmatprep.subr.mxu0 0.0
  %2370 = vmatpush1.xpose.msra.mxu0 0.0
  %2371 = vmatprep.subr.mxu0 0.0
  %2372 = vmatpush1.xpose.msra.mxu0 0.0
  %2373 = vmatprep.subr.mxu0 0.0
  %2374 = vmatpush1.xpose.msra.mxu0 0.0
  %2375 = vmatprep.subr.mxu0 0.0
  %2376 = vmatpush1.xpose.msra.mxu0 0.0
  %2377 = vmatprep.subr.mxu0 0.0
  %2378 = vmatpush1.xpose.msra.mxu0 0.0
  %2379 = vmatprep.subr.mxu0 0.0
  %2380 = vmatpush1.xpose.msra.mxu0 0.0
  %2381 = vmatprep.subr.mxu0 0.0
  %2382 = vmatpush1.xpose.msra.mxu0 0.0
  %2383 = vmatprep.subr.mxu0 0.0
  %2384 = vmatpush1.xpose.msra.mxu0 0.0
  %2385 = vmatprep.subr.mxu0 0.0
  %2386 = vmatpush1.xpose.msra.mxu0 0.0
  %2387 = vmatprep.subr.mxu0 0.0
  %2388 = vmatpush1.xpose.msra.mxu0 0.0
  %2389 = vmatprep.subr.mxu0 0.0
  %2390 = vmatpush1.xpose.msra.mxu0 0.0
  %2391 = vmatprep.subr.mxu0 0.0
  %2392 = vmatpush1.xpose.msra.mxu0 0.0
  %2393 = vmatprep.subr.mxu0 0.0
  %2394 = vmatpush1.xpose.msra.mxu0 0.0
  %2395 = vmatprep.subr.mxu0 0.0
  %2396 = vmatpush1.xpose.msra.mxu0 0.0
  %2397 = vmatprep.subr.mxu0 0.0
  %2398 = vmatpush1.xpose.msra.mxu0 0.0
  %2399 = vmatprep.subr.mxu0 0.0
  %2400 = vmatpush1.xpose.msra.mxu0 0.0
  %2401 = vmatprep.subr.mxu0 0.0
  %2402 = vmatpush1.xpose.msra.mxu0 0.0
  %2403 = vmatprep.subr.mxu0 0.0
  %2404 = vmatpush1.xpose.msra.mxu0 0.0
  %2405 = vmatprep.subr.mxu0 0.0
  %2406 = vmatpush1.xpose.msra.mxu0 0.0
  %2407 = vmatprep.subr.mxu0 0.0
  %2408 = vmatpush1.xpose.msra.mxu0 0.0
  %2409 = vmatprep.subr.mxu0 0.0
  %2410 = vmatpush1.xpose.msra.mxu0 0.0
  %2411 = vmatprep.subr.mxu0 0.0
  %2412 = vmatpush1.xpose.msra.mxu0 0.0
  %2413 = vmatprep.subr.mxu0 0.0
  %2414 = vmatpush1.xpose.msra.mxu0 0.0
  %2415 = vmatprep.subr.mxu0 0.0
  %2416 = vmatpush1.xpose.msra.mxu0 0.0
  %2417 = vmatprep.mubr.f32.mxu0 0.0
  %2418 = vmatmul.mubr.f32.gmra.mrb[0].mxu0 %v2348
  %v2419 = vpop.f32.mrb[0].mxu0
  %v2420 = vadd.f32 0.0, %v2419
  %v2421 = vpop.f32.mrb[0].mxu0
  %2422 = vdwg.mxu0
  %v2424 = vsel %vm142, %v76, 0
  %v2427 = vsel %vm142, %v108, 0
  %2429 = vmatprep.subr.mxu0 0.0
  %2430 = vmatpush1.xpose.msra.mxu0 %v2427
  %2431 = vmatprep.subr.mxu0 0.0
  %2432 = vmatpush1.xpose.msra.mxu0 0.0
  %2433 = vmatprep.subr.mxu0 0.0
  %2434 = vmatpush1.xpose.msra.mxu0 0.0
  %2435 = vmatprep.subr.mxu0 0.0
  %2436 = vmatpush1.xpose.msra.mxu0 0.0
  %2437 = vmatprep.subr.mxu0 0.0
  %2438 = vmatpush1.xpose.msra.mxu0 0.0
  %2439 = vmatprep.subr.mxu0 0.0
  %2440 = vmatpush1.xpose.msra.mxu0 0.0
  %2441 = vmatprep.subr.mxu0 0.0
  %2442 = vmatpush1.xpose.msra.mxu0 0.0
  %2443 = vmatprep.subr.mxu0 0.0
  %2444 = vmatpush1.xpose.msra.mxu0 0.0
  %2445 = vmatprep.subr.mxu0 0.0
  %2446 = vmatpush1.xpose.msra.mxu0 0.0
  %2447 = vmatprep.subr.mxu0 0.0
  %2448 = vmatpush1.xpose.msra.mxu0 0.0
  %2449 = vmatprep.subr.mxu0 0.0
  %2450 = vmatpush1.xpose.msra.mxu0 0.0
  %2451 = vmatprep.subr.mxu0 0.0
  %2452 = vmatpush1.xpose.msra.mxu0 0.0
  %2453 = vmatprep.subr.mxu0 0.0
  %2454 = vmatpush1.xpose.msra.mxu0 0.0
  %2455 = vmatprep.subr.mxu0 0.0
  %2456 = vmatpush1.xpose.msra.mxu0 0.0
  %2457 = vmatprep.subr.mxu0 0.0
  %2458 = vmatpush1.xpose.msra.mxu0 0.0
  %2459 = vmatprep.subr.mxu0 0.0
  %2460 = vmatpush1.xpose.msra.mxu0 0.0
  %2461 = vmatprep.subr.mxu0 0.0
  %2462 = vmatpush1.xpose.msra.mxu0 0.0
  %2463 = vmatprep.subr.mxu0 0.0
  %2464 = vmatpush1.xpose.msra.mxu0 0.0
  %2465 = vmatprep.subr.mxu0 0.0
  %2466 = vmatpush1.xpose.msra.mxu0 0.0
  %2467 = vmatprep.subr.mxu0 0.0
  %2468 = vmatpush1.xpose.msra.mxu0 0.0
  %2469 = vmatprep.subr.mxu0 0.0
  %2470 = vmatpush1.xpose.msra.mxu0 0.0
  %2471 = vmatprep.subr.mxu0 0.0
  %2472 = vmatpush1.xpose.msra.mxu0 0.0
  %2473 = vmatprep.subr.mxu0 0.0
  %2474 = vmatpush1.xpose.msra.mxu0 0.0
  %2475 = vmatprep.subr.mxu0 0.0
  %2476 = vmatpush1.xpose.msra.mxu0 0.0
  %2477 = vmatprep.subr.mxu0 0.0
  %2478 = vmatpush1.xpose.msra.mxu0 0.0
  %2479 = vmatprep.subr.mxu0 0.0
  %2480 = vmatpush1.xpose.msra.mxu0 0.0
  %2481 = vmatprep.subr.mxu0 0.0
  %2482 = vmatpush1.xpose.msra.mxu0 0.0
  %2483 = vmatprep.subr.mxu0 0.0
  %2484 = vmatpush1.xpose.msra.mxu0 0.0
  %2485 = vmatprep.subr.mxu0 0.0
  %2486 = vmatpush1.xpose.msra.mxu0 0.0
  %2487 = vmatprep.subr.mxu0 0.0
  %2488 = vmatpush1.xpose.msra.mxu0 0.0
  %2489 = vmatprep.subr.mxu0 0.0
  %2490 = vmatpush1.xpose.msra.mxu0 0.0
  %2491 = vmatprep.subr.mxu0 0.0
  %2492 = vmatpush1.xpose.msra.mxu0 0.0
  %2493 = vmatprep.mubr.f32.mxu0 0.0
  %2494 = vmatmul.mubr.f32.gmra.mrb[0].mxu0 %v2424
  %v2495 = vpop.f32.mrb[0].mxu0
  %v2496 = vadd.f32 0.0, %v2495
  %v2497 = vpop.f32.mrb[0].mxu0
  %2498 = vdwg.mxu0
  %v2500 = vsel %vm142, %v77, 0
  %v2503 = vsel %vm142, %v109, 0
  %2505 = vmatprep.subr.mxu0 0.0
  %2506 = vmatpush1.xpose.msra.mxu0 %v2503
  %2507 = vmatprep.subr.mxu0 0.0
  %2508 = vmatpush1.xpose.msra.mxu0 0.0
  %2509 = vmatprep.subr.mxu0 0.0
  %2510 = vmatpush1.xpose.msra.mxu0 0.0
  %2511 = vmatprep.subr.mxu0 0.0
  %2512 = vmatpush1.xpose.msra.mxu0 0.0
  %2513 = vmatprep.subr.mxu0 0.0
  %2514 = vmatpush1.xpose.msra.mxu0 0.0
  %2515 = vmatprep.subr.mxu0 0.0
  %2516 = vmatpush1.xpose.msra.mxu0 0.0
  %2517 = vmatprep.subr.mxu0 0.0
  %2518 = vmatpush1.xpose.msra.mxu0 0.0
  %2519 = vmatprep.subr.mxu0 0.0
  %2520 = vmatpush1.xpose.msra.mxu0 0.0
  %2521 = vmatprep.subr.mxu0 0.0
  %2522 = vmatpush1.xpose.msra.mxu0 0.0
  %2523 = vmatprep.subr.mxu0 0.0
  %2524 = vmatpush1.xpose.msra.mxu0 0.0
  %2525 = vmatprep.subr.mxu0 0.0
  %2526 = vmatpush1.xpose.msra.mxu0 0.0
  %2527 = vmatprep.subr.mxu0 0.0
  %2528 = vmatpush1.xpose.msra.mxu0 0.0
  %2529 = vmatprep.subr.mxu0 0.0
  %2530 = vmatpush1.xpose.msra.mxu0 0.0
  %2531 = vmatprep.subr.mxu0 0.0
  %2532 = vmatpush1.xpose.msra.mxu0 0.0
  %2533 = vmatprep.subr.mxu0 0.0
  %2534 = vmatpush1.xpose.msra.mxu0 0.0
  %2535 = vmatprep.subr.mxu0 0.0
  %2536 = vmatpush1.xpose.msra.mxu0 0.0
  %2537 = vmatprep.subr.mxu0 0.0
  %2538 = vmatpush1.xpose.msra.mxu0 0.0
  %2539 = vmatprep.subr.mxu0 0.0
  %2540 = vmatpush1.xpose.msra.mxu0 0.0
  %2541 = vmatprep.subr.mxu0 0.0
  %2542 = vmatpush1.xpose.msra.mxu0 0.0
  %2543 = vmatprep.subr.mxu0 0.0
  %2544 = vmatpush1.xpose.msra.mxu0 0.0
  %2545 = vmatprep.subr.mxu0 0.0
  %2546 = vmatpush1.xpose.msra.mxu0 0.0
  %2547 = vmatprep.subr.mxu0 0.0
  %2548 = vmatpush1.xpose.msra.mxu0 0.0
  %2549 = vmatprep.subr.mxu0 0.0
  %2550 = vmatpush1.xpose.msra.mxu0 0.0
  %2551 = vmatprep.subr.mxu0 0.0
  %2552 = vmatpush1.xpose.msra.mxu0 0.0
  %2553 = vmatprep.subr.mxu0 0.0
  %2554 = vmatpush1.xpose.msra.mxu0 0.0
  %2555 = vmatprep.subr.mxu0 0.0
  %2556 = vmatpush1.xpose.msra.mxu0 0.0
  %2557 = vmatprep.subr.mxu0 0.0
  %2558 = vmatpush1.xpose.msra.mxu0 0.0
  %2559 = vmatprep.subr.mxu0 0.0
  %2560 = vmatpush1.xpose.msra.mxu0 0.0
  %2561 = vmatprep.subr.mxu0 0.0
  %2562 = vmatpush1.xpose.msra.mxu0 0.0
  %2563 = vmatprep.subr.mxu0 0.0
  %2564 = vmatpush1.xpose.msra.mxu0 0.0
  %2565 = vmatprep.subr.mxu0 0.0
  %2566 = vmatpush1.xpose.msra.mxu0 0.0
  %2567 = vmatprep.subr.mxu0 0.0
  %2568 = vmatpush1.xpose.msra.mxu0 0.0
  %2569 = vmatprep.mubr.f32.mxu0 0.0
  %2570 = vmatmul.mubr.f32.gmra.mrb[0].mxu0 %v2500
  %v2571 = vpop.f32.mrb[0].mxu0
  %v2572 = vadd.f32 0.0, %v2571
  %v2573 = vpop.f32.mrb[0].mxu0
  %2574 = vdwg.mxu0
  %vm2575 = vcmask 64512
  %v2576 = vsel %vm2575, %v216, -inf
  %2577 = vmax.xlane.f32.xlu0 %v2576
  %v2578 = vpop.xlane.xlu0 %2577
  %v2579 = vsel %vm2575, %v292, -inf
  %2580 = vmax.xlane.f32.xlu0 %v2579
  %v2581 = vpop.xlane.xlu0 %2580
  %v2582 = vsel %vm2575, %v368, -inf
  %2583 = vmax.xlane.f32.xlu0 %v2582
  %v2584 = vpop.xlane.xlu0 %2583
  %v2585 = vsel %vm2575, %v444, -inf
  %2586 = vmax.xlane.f32.xlu0 %v2585
  %v2587 = vpop.xlane.xlu0 %2586
  %v2588 = vsel %vm2575, %v520, -inf
  %2589 = vmax.xlane.f32.xlu0 %v2588
  %v2590 = vpop.xlane.xlu0 %2589
  %v2591 = vsel %vm2575, %v596, -inf
  %2592 = vmax.xlane.f32.xlu0 %v2591
  %v2593 = vpop.xlane.xlu0 %2592
  %v2594 = vsel %vm2575, %v672, -inf
  %2595 = vmax.xlane.f32.xlu0 %v2594
  %v2596 = vpop.xlane.xlu0 %2595
  %v2597 = vsel %vm2575, %v748, -inf
  %2598 = vmax.xlane.f32.xlu0 %v2597
  %v2599 = vpop.xlane.xlu0 %2598
  %v2600 = vsel %vm2575, %v824, -inf
  %2601 = vmax.xlane.f32.xlu0 %v2600
  %v2602 = vpop.xlane.xlu0 %2601
  %v2603 = vsel %vm2575, %v900, -inf
  %2604 = vmax.xlane.f32.xlu0 %v2603
  %v2605 = vpop.xlane.xlu0 %2604
  %v2606 = vsel %vm2575, %v976, -inf
  %2607 = vmax.xlane.f32.xlu0 %v2606
  %v2608 = vpop.xlane.xlu0 %2607
  %v2609 = vsel %vm2575, %v1052, -inf
  %2610 = vmax.xlane.f32.xlu0 %v2609
  %v2611 = vpop.xlane.xlu0 %2610
  %v2612 = vsel %vm2575, %v1128, -inf
  %2613 = vmax.xlane.f32.xlu0 %v2612
  %v2614 = vpop.xlane.xlu0 %2613
  %v2615 = vsel %vm2575, %v1204, -inf
  %2616 = vmax.xlane.f32.xlu0 %v2615
  %v2617 = vpop.xlane.xlu0 %2616
  %v2618 = vsel %vm2575, %v1280, -inf
  %2619 = vmax.xlane.f32.xlu0 %v2618
  %v2620 = vpop.xlane.xlu0 %2619
  %v2621 = vsel %vm2575, %v1356, -inf
  %2622 = vmax.xlane.f32.xlu0 %v2621
  %v2623 = vpop.xlane.xlu0 %2622
  %v2624 = vsel %vm2575, %v1432, -inf
  %2625 = vmax.xlane.f32.xlu0 %v2624
  %v2626 = vpop.xlane.xlu0 %2625
  %v2627 = vsel %vm2575, %v1508, -inf
  %2628 = vmax.xlane.f32.xlu0 %v2627
  %v2629 = vpop.xlane.xlu0 %2628
  %v2630 = vsel %vm2575, %v1584, -inf
  %2631 = vmax.xlane.f32.xlu0 %v2630
  %v2632 = vpop.xlane.xlu0 %2631
  %v2633 = vsel %vm2575, %v1660, -inf
  %2634 = vmax.xlane.f32.xlu0 %v2633
  %v2635 = vpop.xlane.xlu0 %2634
  %v2636 = vsel %vm2575, %v1736, -inf
  %2637 = vmax.xlane.f32.xlu0 %v2636
  %v2638 = vpop.xlane.xlu0 %2637
  %v2639 = vsel %vm2575, %v1812, -inf
  %2640 = vmax.xlane.f32.xlu0 %v2639
  %v2641 = vpop.xlane.xlu0 %2640
  %v2642 = vsel %vm2575, %v1888, -inf
  %2643 = vmax.xlane.f32.xlu0 %v2642
  %v2644 = vpop.xlane.xlu0 %2643
  %v2645 = vsel %vm2575, %v1964, -inf
  %2646 = vmax.xlane.f32.xlu0 %v2645
  %v2647 = vpop.xlane.xlu0 %2646
  %v2648 = vsel %vm2575, %v2040, -inf
  %2649 = vmax.xlane.f32.xlu0 %v2648
  %v2650 = vpop.xlane.xlu0 %2649
  %v2651 = vsel %vm2575, %v2116, -inf
  %2652 = vmax.xlane.f32.xlu0 %v2651
  %v2653 = vpop.xlane.xlu0 %2652
  %v2654 = vsel %vm2575, %v2192, -inf
  %2655 = vmax.xlane.f32.xlu0 %v2654
  %v2656 = vpop.xlane.xlu0 %2655
  %v2657 = vsel %vm2575, %v2268, -inf
  %2658 = vmax.xlane.f32.xlu0 %v2657
  %v2659 = vpop.xlane.xlu0 %2658
  %v2660 = vsel %vm2575, %v2344, -inf
  %2661 = vmax.xlane.f32.xlu0 %v2660
  %v2662 = vpop.xlane.xlu0 %2661
  %v2663 = vsel %vm2575, %v2420, -inf
  %2664 = vmax.xlane.f32.xlu0 %v2663
  %v2665 = vpop.xlane.xlu0 %2664
  %v2666 = vsel %vm2575, %v2496, -inf
  %2667 = vmax.xlane.f32.xlu0 %v2666
  %v2668 = vpop.xlane.xlu0 %2667
  %v2669 = vsel %vm2575, %v2572, -inf
  %2670 = vmax.xlane.f32.xlu0 %v2669
  %v2671 = vpop.xlane.xlu0 %2670
  %v2672 = vsub.f32 %v216, %v2578
  %v2673 = vsub.f32 %v292, %v2581
  %v2674 = vsub.f32 %v368, %v2584
  %v2675 = vsub.f32 %v444, %v2587
  %v2676 = vsub.f32 %v520, %v2590
  %v2677 = vsub.f32 %v596, %v2593
  %v2678 = vsub.f32 %v672, %v2596
  %v2679 = vsub.f32 %v748, %v2599
  %v2680 = vsub.f32 %v824, %v2602
  %v2681 = vsub.f32 %v900, %v2605
  %v2682 = vsub.f32 %v976, %v2608
  %v2683 = vsub.f32 %v1052, %v2611
  %v2684 = vsub.f32 %v1128, %v2614
  %v2685 = vsub.f32 %v1204, %v2617
  %v2686 = vsub.f32 %v1280, %v2620
  %v2687 = vsub.f32 %v1356, %v2623
  %v2688 = vsub.f32 %v1432, %v2626
  %v2689 = vsub.f32 %v1508, %v2629
  %v2690 = vsub.f32 %v1584, %v2632
  %v2691 = vsub.f32 %v1660, %v2635
  %v2692 = vsub.f32 %v1736, %v2638
  %v2693 = vsub.f32 %v1812, %v2641
  %v2694 = vsub.f32 %v1888, %v2644
  %v2695 = vsub.f32 %v1964, %v2647
  %v2696 = vsub.f32 %v2040, %v2650
  %v2697 = vsub.f32 %v2116, %v2653
  %v2698 = vsub.f32 %v2192, %v2656
  %v2699 = vsub.f32 %v2268, %v2659
  %v2700 = vsub.f32 %v2344, %v2662
  %v2701 = vsub.f32 %v2420, %v2665
  %v2702 = vsub.f32 %v2496, %v2668
  %v2703 = vsub.f32 %v2572, %v2671
  %v2704 = vmul.f32 %v2672, 1.442695
  %v2705 = vpow.pop %v2704
  %v2706 = vmul.f32 %v2673, 1.442695
  %v2707 = vpow.pop %v2706
  %v2708 = vmul.f32 %v2674, 1.442695
  %v2709 = vpow.pop %v2708
  %v2710 = vmul.f32 %v2675, 1.442695
  %v2711 = vpow.pop %v2710
  %v2712 = vmul.f32 %v2676, 1.442695
  %v2713 = vpow.pop %v2712
  %v2714 = vmul.f32 %v2677, 1.442695
  %v2715 = vpow.pop %v2714
  %v2716 = vmul.f32 %v2678, 1.442695
  %v2717 = vpow.pop %v2716
  %v2718 = vmul.f32 %v2679, 1.442695
  %v2719 = vpow.pop %v2718
  %v2720 = vmul.f32 %v2680, 1.442695
  %v2721 = vpow.pop %v2720
  %v2722 = vmul.f32 %v2681, 1.442695
  %v2723 = vpow.pop %v2722
  %v2724 = vmul.f32 %v2682, 1.442695
  %v2725 = vpow.pop %v2724
  %v2726 = vmul.f32 %v2683, 1.442695
  %v2727 = vpow.pop %v2726
  %v2728 = vmul.f32 %v2684, 1.442695
  %v2729 = vpow.pop %v2728
  %v2730 = vmul.f32 %v2685, 1.442695
  %v2731 = vpow.pop %v2730
  %v2732 = vmul.f32 %v2686, 1.442695
  %v2733 = vpow.pop %v2732
  %v2734 = vmul.f32 %v2687, 1.442695
  %v2735 = vpow.pop %v2734
  %v2736 = vmul.f32 %v2688, 1.442695
  %v2737 = vpow.pop %v2736
  %v2738 = vmul.f32 %v2689, 1.442695
  %v2739 = vpow.pop %v2738
  %v2740 = vmul.f32 %v2690, 1.442695
  %v2741 = vpow.pop %v2740
  %v2742 = vmul.f32 %v2691, 1.442695
  %v2743 = vpow.pop %v2742
  %v2744 = vmul.f32 %v2692, 1.442695
  %v2745 = vpow.pop %v2744
  %v2746 = vmul.f32 %v2693, 1.442695
  %v2747 = vpow.pop %v2746
  %v2748 = vmul.f32 %v2694, 1.442695
  %v2749 = vpow.pop %v2748
  %v2750 = vmul.f32 %v2695, 1.442695
  %v2751 = vpow.pop %v2750
  %v2752 = vmul.f32 %v2696, 1.442695
  %v2753 = vpow.pop %v2752
  %v2754 = vmul.f32 %v2697, 1.442695
  %v2755 = vpow.pop %v2754
  %v2756 = vmul.f32 %v2698, 1.442695
  %v2757 = vpow.pop %v2756
  %v2758 = vmul.f32 %v2699, 1.442695
  %v2759 = vpow.pop %v2758
  %v2760 = vmul.f32 %v2700, 1.442695
  %v2761 = vpow.pop %v2760
  %v2762 = vmul.f32 %v2701, 1.442695
  %v2763 = vpow.pop %v2762
  %v2764 = vmul.f32 %v2702, 1.442695
  %v2765 = vpow.pop %v2764
  %v2766 = vmul.f32 %v2703, 1.442695
  %v2767 = vpow.pop %v2766
  %v2768 = vsel %vm2575, %v2705, 0.0
  %2769 = vadd.xlane.f32.xlu0 %v2768
  %v2770 = vpop.xlane.xlu0 %2769
  %v2771 = vsel %vm2575, %v2707, 0.0
  %2772 = vadd.xlane.f32.xlu0 %v2771
  %v2773 = vpop.xlane.xlu0 %2772
  %v2774 = vsel %vm2575, %v2709, 0.0
  %2775 = vadd.xlane.f32.xlu0 %v2774
  %v2776 = vpop.xlane.xlu0 %2775
  %v2777 = vsel %vm2575, %v2711, 0.0
  %2778 = vadd.xlane.f32.xlu0 %v2777
  %v2779 = vpop.xlane.xlu0 %2778
  %v2780 = vsel %vm2575, %v2713, 0.0
  %2781 = vadd.xlane.f32.xlu0 %v2780
  %v2782 = vpop.xlane.xlu0 %2781
  %v2783 = vsel %vm2575, %v2715, 0.0
  %2784 = vadd.xlane.f32.xlu0 %v2783
  %v2785 = vpop.xlane.xlu0 %2784
  %v2786 = vsel %vm2575, %v2717, 0.0
  %2787 = vadd.xlane.f32.xlu0 %v2786
  %v2788 = vpop.xlane.xlu0 %2787
  %v2789 = vsel %vm2575, %v2719, 0.0
  %2790 = vadd.xlane.f32.xlu0 %v2789
  %v2791 = vpop.xlane.xlu0 %2790
  %v2792 = vsel %vm2575, %v2721, 0.0
  %2793 = vadd.xlane.f32.xlu0 %v2792
  %v2794 = vpop.xlane.xlu0 %2793
  %v2795 = vsel %vm2575, %v2723, 0.0
  %2796 = vadd.xlane.f32.xlu0 %v2795
  %v2797 = vpop.xlane.xlu0 %2796
  %v2798 = vsel %vm2575, %v2725, 0.0
  %2799 = vadd.xlane.f32.xlu0 %v2798
  %v2800 = vpop.xlane.xlu0 %2799
  %v2801 = vsel %vm2575, %v2727, 0.0
  %2802 = vadd.xlane.f32.xlu0 %v2801
  %v2803 = vpop.xlane.xlu0 %2802
  %v2804 = vsel %vm2575, %v2729, 0.0
  %2805 = vadd.xlane.f32.xlu0 %v2804
  %v2806 = vpop.xlane.xlu0 %2805
  %v2807 = vsel %vm2575, %v2731, 0.0
  %2808 = vadd.xlane.f32.xlu0 %v2807
  %v2809 = vpop.xlane.xlu0 %2808
  %v2810 = vsel %vm2575, %v2733, 0.0
  %2811 = vadd.xlane.f32.xlu0 %v2810
  %v2812 = vpop.xlane.xlu0 %2811
  %v2813 = vsel %vm2575, %v2735, 0.0
  %2814 = vadd.xlane.f32.xlu0 %v2813
  %v2815 = vpop.xlane.xlu0 %2814
  %v2816 = vsel %vm2575, %v2737, 0.0
  %2817 = vadd.xlane.f32.xlu0 %v2816
  %v2818 = vpop.xlane.xlu0 %2817
  %v2819 = vsel %vm2575, %v2739, 0.0
  %2820 = vadd.xlane.f32.xlu0 %v2819
  %v2821 = vpop.xlane.xlu0 %2820
  %v2822 = vsel %vm2575, %v2741, 0.0
  %2823 = vadd.xlane.f32.xlu0 %v2822
  %v2824 = vpop.xlane.xlu0 %2823
  %v2825 = vsel %vm2575, %v2743, 0.0
  %2826 = vadd.xlane.f32.xlu0 %v2825
  %v2827 = vpop.xlane.xlu0 %2826
  %v2828 = vsel %vm2575, %v2745, 0.0
  %2829 = vadd.xlane.f32.xlu0 %v2828
  %v2830 = vpop.xlane.xlu0 %2829
  %v2831 = vsel %vm2575, %v2747, 0.0
  %2832 = vadd.xlane.f32.xlu0 %v2831
  %v2833 = vpop.xlane.xlu0 %2832
  %v2834 = vsel %vm2575, %v2749, 0.0
  %2835 = vadd.xlane.f32.xlu0 %v2834
  %v2836 = vpop.xlane.xlu0 %2835
  %v2837 = vsel %vm2575, %v2751, 0.0
  %2838 = vadd.xlane.f32.xlu0 %v2837
  %v2839 = vpop.xlane.xlu0 %2838
  %v2840 = vsel %vm2575, %v2753, 0.0
  %2841 = vadd.xlane.f32.xlu0 %v2840
  %v2842 = vpop.xlane.xlu0 %2841
  %v2843 = vsel %vm2575, %v2755, 0.0
  %2844 = vadd.xlane.f32.xlu0 %v2843
  %v2845 = vpop.xlane.xlu0 %2844
  %v2846 = vsel %vm2575, %v2757, 0.0
  %2847 = vadd.xlane.f32.xlu0 %v2846
  %v2848 = vpop.xlane.xlu0 %2847
  %v2849 = vsel %vm2575, %v2759, 0.0
  %2850 = vadd.xlane.f32.xlu0 %v2849
  %v2851 = vpop.xlane.xlu0 %2850
  %v2852 = vsel %vm2575, %v2761, 0.0
  %2853 = vadd.xlane.f32.xlu0 %v2852
  %v2854 = vpop.xlane.xlu0 %2853
  %v2855 = vsel %vm2575, %v2763, 0.0
  %2856 = vadd.xlane.f32.xlu0 %v2855
  %v2857 = vpop.xlane.xlu0 %2856
  %v2858 = vsel %vm2575, %v2765, 0.0
  %2859 = vadd.xlane.f32.xlu0 %v2858
  %v2860 = vpop.xlane.xlu0 %2859
  %v2861 = vsel %vm2575, %v2767, 0.0
  %2862 = vadd.xlane.f32.xlu0 %v2861
  %v2863 = vpop.xlane.xlu0 %2862
  %v2864 = vrcp.pop %v2770
  %v2865 = vrcp.pop %v2773
  %v2866 = vrcp.pop %v2776
  %v2867 = vrcp.pop %v2779
  %v2868 = vrcp.pop %v2782
  %v2869 = vrcp.pop %v2785
  %v2870 = vrcp.pop %v2788
  %v2871 = vrcp.pop %v2791
  %v2872 = vrcp.pop %v2794
  %v2873 = vrcp.pop %v2797
  %v2874 = vrcp.pop %v2800
  %v2875 = vrcp.pop %v2803
  %v2876 = vrcp.pop %v2806
  %v2877 = vrcp.pop %v2809
  %v2878 = vrcp.pop %v2812
  %v2879 = vrcp.pop %v2815
  %v2880 = vrcp.pop %v2818
  %v2881 = vrcp.pop %v2821
  %v2882 = vrcp.pop %v2824
  %v2883 = vrcp.pop %v2827
  %v2884 = vrcp.pop %v2830
  %v2885 = vrcp.pop %v2833
  %v2886 = vrcp.pop %v2836
  %v2887 = vrcp.pop %v2839
  %v2888 = vrcp.pop %v2842
  %v2889 = vrcp.pop %v2845
  %v2890 = vrcp.pop %v2848
  %v2891 = vrcp.pop %v2851
  %v2892 = vrcp.pop %v2854
  %v2893 = vrcp.pop %v2857
  %v2894 = vrcp.pop %v2860
  %v2895 = vrcp.pop %v2863
  %v2896 = vmul.f32 %v2705, %v2864
  %v2897 = vmul.f32 %v2707, %v2865
  %v2898 = vmul.f32 %v2709, %v2866
  %v2899 = vmul.f32 %v2711, %v2867
  %v2900 = vmul.f32 %v2713, %v2868
  %v2901 = vmul.f32 %v2715, %v2869
  %v2902 = vmul.f32 %v2717, %v2870
  %v2903 = vmul.f32 %v2719, %v2871
  %v2904 = vmul.f32 %v2721, %v2872
  %v2905 = vmul.f32 %v2723, %v2873
  %v2906 = vmul.f32 %v2725, %v2874
  %v2907 = vmul.f32 %v2727, %v2875
  %v2908 = vmul.f32 %v2729, %v2876
  %v2909 = vmul.f32 %v2731, %v2877
  %v2910 = vmul.f32 %v2733, %v2878
  %v2911 = vmul.f32 %v2735, %v2879
  %v2912 = vmul.f32 %v2737, %v2880
  %v2913 = vmul.f32 %v2739, %v2881
  %v2914 = vmul.f32 %v2741, %v2882
  %v2915 = vmul.f32 %v2743, %v2883
  %v2916 = vmul.f32 %v2745, %v2884
  %v2917 = vmul.f32 %v2747, %v2885
  %v2918 = vmul.f32 %v2749, %v2886
  %v2919 = vmul.f32 %v2751, %v2887
  %v2920 = vmul.f32 %v2753, %v2888
  %v2921 = vmul.f32 %v2755, %v2889
  %v2922 = vmul.f32 %v2757, %v2890
  %v2923 = vmul.f32 %v2759, %v2891
  %v2924 = vmul.f32 %v2761, %v2892
  %v2925 = vmul.f32 %v2763, %v2893
  %v2926 = vmul.f32 %v2765, %v2894
  %v2927 = vmul.f32 %v2767, %v2895
  %v2929 = vsel %vm2575, %v2896, 0
  %2931 = vmatprep.subr.mxu0 0.0
  %2932 = vmatpush1.msra.mxu0 %v110
  %2933 = vmatprep.subr.mxu0 0.0
  %2934 = vmatpush1.msra.mxu0 0.0
  %2935 = vmatprep.subr.mxu0 0.0
  %2936 = vmatpush1.msra.mxu0 0.0
  %2937 = vmatprep.subr.mxu0 0.0
  %2938 = vmatpush1.msra.mxu0 0.0
  %2939 = vmatprep.subr.mxu0 0.0
  %2940 = vmatpush1.msra.mxu0 0.0
  %2941 = vmatprep.subr.mxu0 0.0
  %2942 = vmatpush1.msra.mxu0 0.0
  %2943 = vmatprep.subr.mxu0 0.0
  %2944 = vmatpush1.msra.mxu0 0.0
  %2945 = vmatprep.subr.mxu0 0.0
  %2946 = vmatpush1.msra.mxu0 0.0
  %2947 = vmatprep.subr.mxu0 0.0
  %2948 = vmatpush1.msra.mxu0 0.0
  %2949 = vmatprep.subr.mxu0 0.0
  %2950 = vmatpush1.msra.mxu0 0.0
  %2951 = vmatprep.subr.mxu0 0.0
  %2952 = vmatpush1.msra.mxu0 0.0
  %2953 = vmatprep.subr.mxu0 0.0
  %2954 = vmatpush1.msra.mxu0 0.0
  %2955 = vmatprep.subr.mxu0 0.0
  %2956 = vmatpush1.msra.mxu0 0.0
  %2957 = vmatprep.subr.mxu0 0.0
  %2958 = vmatpush1.msra.mxu0 0.0
  %2959 = vmatprep.subr.mxu0 0.0
  %2960 = vmatpush1.msra.mxu0 0.0
  %2961 = vmatprep.subr.mxu0 0.0
  %2962 = vmatpush1.msra.mxu0 0.0
  %2963 = vmatprep.subr.mxu0 0.0
  %2964 = vmatpush1.msra.mxu0 0.0
  %2965 = vmatprep.subr.mxu0 0.0
  %2966 = vmatpush1.msra.mxu0 0.0
  %2967 = vmatprep.subr.mxu0 0.0
  %2968 = vmatpush1.msra.mxu0 0.0
  %2969 = vmatprep.subr.mxu0 0.0
  %2970 = vmatpush1.msra.mxu0 0.0
  %2971 = vmatprep.subr.mxu0 0.0
  %2972 = vmatpush1.msra.mxu0 0.0
  %2973 = vmatprep.subr.mxu0 0.0
  %2974 = vmatpush1.msra.mxu0 0.0
  %2975 = vmatprep.subr.mxu0 0.0
  %2976 = vmatpush1.msra.mxu0 0.0
  %2977 = vmatprep.subr.mxu0 0.0
  %2978 = vmatpush1.msra.mxu0 0.0
  %2979 = vmatprep.subr.mxu0 0.0
  %2980 = vmatpush1.msra.mxu0 0.0
  %2981 = vmatprep.subr.mxu0 0.0
  %2982 = vmatpush1.msra.mxu0 0.0
  %2983 = vmatprep.subr.mxu0 0.0
  %2984 = vmatpush1.msra.mxu0 0.0
  %2985 = vmatprep.subr.mxu0 0.0
  %2986 = vmatpush1.msra.mxu0 0.0
  %2987 = vmatprep.subr.mxu0 0.0
  %2988 = vmatpush1.msra.mxu0 0.0
  %2989 = vmatprep.subr.mxu0 0.0
  %2990 = vmatpush1.msra.mxu0 0.0
  %2991 = vmatprep.subr.mxu0 0.0
  %2992 = vmatpush1.msra.mxu0 0.0
  %2993 = vmatprep.subr.mxu0 0.0
  %2994 = vmatpush1.msra.mxu0 0.0
  %2995 = vmatprep.mubr.f32.mxu0 0.0
  %2996 = vmatmul.mubr.f32.gmra.mrb[0].mxu0 %v2929
  %v2997 = vpop.f32.mrb[0].mxu0
  %v2998 = vadd.f32 0.0, %v2997
  %v2999 = vpop.f32.mrb[0].mxu0
  %3000 = vdwg.mxu0
  %v3002 = vsel %vm2575, %v2897, 0
  %3004 = vmatprep.subr.mxu0 0.0
  %3005 = vmatpush1.msra.mxu0 %v111
  %3006 = vmatprep.subr.mxu0 0.0
  %3007 = vmatpush1.msra.mxu0 0.0
  %3008 = vmatprep.subr.mxu0 0.0
  %3009 = vmatpush1.msra.mxu0 0.0
  %3010 = vmatprep.subr.mxu0 0.0
  %3011 = vmatpush1.msra.mxu0 0.0
  %3012 = vmatprep.subr.mxu0 0.0
  %3013 = vmatpush1.msra.mxu0 0.0
  %3014 = vmatprep.subr.mxu0 0.0
  %3015 = vmatpush1.msra.mxu0 0.0
  %3016 = vmatprep.subr.mxu0 0.0
  %3017 = vmatpush1.msra.mxu0 0.0
  %3018 = vmatprep.subr.mxu0 0.0
  %3019 = vmatpush1.msra.mxu0 0.0
  %3020 = vmatprep.subr.mxu0 0.0
  %3021 = vmatpush1.msra.mxu0 0.0
  %3022 = vmatprep.subr.mxu0 0.0
  %3023 = vmatpush1.msra.mxu0 0.0
  %3024 = vmatprep.subr.mxu0 0.0
  %3025 = vmatpush1.msra.mxu0 0.0
  %3026 = vmatprep.subr.mxu0 0.0
  %3027 = vmatpush1.msra.mxu0 0.0
  %3028 = vmatprep.subr.mxu0 0.0
  %3029 = vmatpush1.msra.mxu0 0.0
  %3030 = vmatprep.subr.mxu0 0.0
  %3031 = vmatpush1.msra.mxu0 0.0
  %3032 = vmatprep.subr.mxu0 0.0
  %3033 = vmatpush1.msra.mxu0 0.0
  %3034 = vmatprep.subr.mxu0 0.0
  %3035 = vmatpush1.msra.mxu0 0.0
  %3036 = vmatprep.subr.mxu0 0.0
  %3037 = vmatpush1.msra.mxu0 0.0
  %3038 = vmatprep.subr.mxu0 0.0
  %3039 = vmatpush1.msra.mxu0 0.0
  %3040 = vmatprep.subr.mxu0 0.0
  %3041 = vmatpush1.msra.mxu0 0.0
  %3042 = vmatprep.subr.mxu0 0.0
  %3043 = vmatpush1.msra.mxu0 0.0
  %3044 = vmatprep.subr.mxu0 0.0
  %3045 = vmatpush1.msra.mxu0 0.0
  %3046 = vmatprep.subr.mxu0 0.0
  %3047 = vmatpush1.msra.mxu0 0.0
  %3048 = vmatprep.subr.mxu0 0.0
  %3049 = vmatpush1.msra.mxu0 0.0
  %3050 = vmatprep.subr.mxu0 0.0
  %3051 = vmatpush1.msra.mxu0 0.0
  %3052 = vmatprep.subr.mxu0 0.0
  %3053 = vmatpush1.msra.mxu0 0.0
  %3054 = vmatprep.subr.mxu0 0.0
  %3055 = vmatpush1.msra.mxu0 0.0
  %3056 = vmatprep.subr.mxu0 0.0
  %3057 = vmatpush1.msra.mxu0 0.0
  %3058 = vmatprep.subr.mxu0 0.0
  %3059 = vmatpush1.msra.mxu0 0.0
  %3060 = vmatprep.subr.mxu0 0.0
  %3061 = vmatpush1.msra.mxu0 0.0
  %3062 = vmatprep.subr.mxu0 0.0
  %3063 = vmatpush1.msra.mxu0 0.0
  %3064 = vmatprep.subr.mxu0 0.0
  %3065 = vmatpush1.msra.mxu0 0.0
  %3066 = vmatprep.subr.mxu0 0.0
  %3067 = vmatpush1.msra.mxu0 0.0
  %3068 = vmatprep.mubr.f32.mxu0 0.0
  %3069 = vmatmul.mubr.f32.gmra.mrb[0].mxu0 %v3002
  %v3070 = vpop.f32.mrb[0].mxu0
  %v3071 = vadd.f32 0.0, %v3070
  %v3072 = vpop.f32.mrb[0].mxu0
  %3073 = vdwg.mxu0
  %v3075 = vsel %vm2575, %v2898, 0
  %3077 = vmatprep.subr.mxu0 0.0
  %3078 = vmatpush1.msra.mxu0 %v112
  %3079 = vmatprep.subr.mxu0 0.0
  %3080 = vmatpush1.msra.mxu0 0.0
  %3081 = vmatprep.subr.mxu0 0.0
  %3082 = vmatpush1.msra.mxu0 0.0
  %3083 = vmatprep.subr.mxu0 0.0
  %3084 = vmatpush1.msra.mxu0 0.0
  %3085 = vmatprep.subr.mxu0 0.0
  %3086 = vmatpush1.msra.mxu0 0.0
  %3087 = vmatprep.subr.mxu0 0.0
  %3088 = vmatpush1.msra.mxu0 0.0
  %3089 = vmatprep.subr.mxu0 0.0
  %3090 = vmatpush1.msra.mxu0 0.0
  %3091 = vmatprep.subr.mxu0 0.0
  %3092 = vmatpush1.msra.mxu0 0.0
  %3093 = vmatprep.subr.mxu0 0.0
  %3094 = vmatpush1.msra.mxu0 0.0
  %3095 = vmatprep.subr.mxu0 0.0
  %3096 = vmatpush1.msra.mxu0 0.0
  %3097 = vmatprep.subr.mxu0 0.0
  %3098 = vmatpush1.msra.mxu0 0.0
  %3099 = vmatprep.subr.mxu0 0.0
  %3100 = vmatpush1.msra.mxu0 0.0
  %3101 = vmatprep.subr.mxu0 0.0
  %3102 = vmatpush1.msra.mxu0 0.0
  %3103 = vmatprep.subr.mxu0 0.0
  %3104 = vmatpush1.msra.mxu0 0.0
  %3105 = vmatprep.subr.mxu0 0.0
  %3106 = vmatpush1.msra.mxu0 0.0
  %3107 = vmatprep.subr.mxu0 0.0
  %3108 = vmatpush1.msra.mxu0 0.0
  %3109 = vmatprep.subr.mxu0 0.0
  %3110 = vmatpush1.msra.mxu0 0.0
  %3111 = vmatprep.subr.mxu0 0.0
  %3112 = vmatpush1.msra.mxu0 0.0
  %3113 = vmatprep.subr.mxu0 0.0
  %3114 = vmatpush1.msra.mxu0 0.0
  %3115 = vmatprep.subr.mxu0 0.0
  %3116 = vmatpush1.msra.mxu0 0.0
  %3117 = vmatprep.subr.mxu0 0.0
  %3118 = vmatpush1.msra.mxu0 0.0
  %3119 = vmatprep.subr.mxu0 0.0
  %3120 = vmatpush1.msra.mxu0 0.0
  %3121 = vmatprep.subr.mxu0 0.0
  %3122 = vmatpush1.msra.mxu0 0.0
  %3123 = vmatprep.subr.mxu0 0.0
  %3124 = vmatpush1.msra.mxu0 0.0
  %3125 = vmatprep.subr.mxu0 0.0
  %3126 = vmatpush1.msra.mxu0 0.0
  %3127 = vmatprep.subr.mxu0 0.0
  %3128 = vmatpush1.msra.mxu0 0.0
  %3129 = vmatprep.subr.mxu0 0.0
  %3130 = vmatpush1.msra.mxu0 0.0
  %3131 = vmatprep.subr.mxu0 0.0
  %3132 = vmatpush1.msra.mxu0 0.0
  %3133 = vmatprep.subr.mxu0 0.0
  %3134 = vmatpush1.msra.mxu0 0.0
  %3135 = vmatprep.subr.mxu0 0.0
  %3136 = vmatpush1.msra.mxu0 0.0
  %3137 = vmatprep.subr.mxu0 0.0
  %3138 = vmatpush1.msra.mxu0 0.0
  %3139 = vmatprep.subr.mxu0 0.0
  %3140 = vmatpush1.msra.mxu0 0.0
  %3141 = vmatprep.mubr.f32.mxu0 0.0
  %3142 = vmatmul.mubr.f32.gmra.mrb[0].mxu0 %v3075
  %v3143 = vpop.f32.mrb[0].mxu0
  %v3144 = vadd.f32 0.0, %v3143
  %v3145 = vpop.f32.mrb[0].mxu0
  %3146 = vdwg.mxu0
  %v3148 = vsel %vm2575, %v2899, 0
  %3150 = vmatprep.subr.mxu0 0.0
  %3151 = vmatpush1.msra.mxu0 %v113
  %3152 = vmatprep.subr.mxu0 0.0
  %3153 = vmatpush1.msra.mxu0 0.0
  %3154 = vmatprep.subr.mxu0 0.0
  %3155 = vmatpush1.msra.mxu0 0.0
  %3156 = vmatprep.subr.mxu0 0.0
  %3157 = vmatpush1.msra.mxu0 0.0
  %3158 = vmatprep.subr.mxu0 0.0
  %3159 = vmatpush1.msra.mxu0 0.0
  %3160 = vmatprep.subr.mxu0 0.0
  %3161 = vmatpush1.msra.mxu0 0.0
  %3162 = vmatprep.subr.mxu0 0.0
  %3163 = vmatpush1.msra.mxu0 0.0
  %3164 = vmatprep.subr.mxu0 0.0
  %3165 = vmatpush1.msra.mxu0 0.0
  %3166 = vmatprep.subr.mxu0 0.0
  %3167 = vmatpush1.msra.mxu0 0.0
  %3168 = vmatprep.subr.mxu0 0.0
  %3169 = vmatpush1.msra.mxu0 0.0
  %3170 = vmatprep.subr.mxu0 0.0
  %3171 = vmatpush1.msra.mxu0 0.0
  %3172 = vmatprep.subr.mxu0 0.0
  %3173 = vmatpush1.msra.mxu0 0.0
  %3174 = vmatprep.subr.mxu0 0.0
  %3175 = vmatpush1.msra.mxu0 0.0
  %3176 = vmatprep.subr.mxu0 0.0
  %3177 = vmatpush1.msra.mxu0 0.0
  %3178 = vmatprep.subr.mxu0 0.0
  %3179 = vmatpush1.msra.mxu0 0.0
  %3180 = vmatprep.subr.mxu0 0.0
  %3181 = vmatpush1.msra.mxu0 0.0
  %3182 = vmatprep.subr.mxu0 0.0
  %3183 = vmatpush1.msra.mxu0 0.0
  %3184 = vmatprep.subr.mxu0 0.0
  %3185 = vmatpush1.msra.mxu0 0.0
  %3186 = vmatprep.subr.mxu0 0.0
  %3187 = vmatpush1.msra.mxu0 0.0
  %3188 = vmatprep.subr.mxu0 0.0
  %3189 = vmatpush1.msra.mxu0 0.0
  %3190 = vmatprep.subr.mxu0 0.0
  %3191 = vmatpush1.msra.mxu0 0.0
  %3192 = vmatprep.subr.mxu0 0.0
  %3193 = vmatpush1.msra.mxu0 0.0
  %3194 = vmatprep.subr.mxu0 0.0
  %3195 = vmatpush1.msra.mxu0 0.0
  %3196 = vmatprep.subr.mxu0 0.0
  %3197 = vmatpush1.msra.mxu0 0.0
  %3198 = vmatprep.subr.mxu0 0.0
  %3199 = vmatpush1.msra.mxu0 0.0
  %3200 = vmatprep.subr.mxu0 0.0
  %3201 = vmatpush1.msra.mxu0 0.0
  %3202 = vmatprep.subr.mxu0 0.0
  %3203 = vmatpush1.msra.mxu0 0.0
  %3204 = vmatprep.subr.mxu0 0.0
  %3205 = vmatpush1.msra.mxu0 0.0
  %3206 = vmatprep.subr.mxu0 0.0
  %3207 = vmatpush1.msra.mxu0 0.0
  %3208 = vmatprep.subr.mxu0 0.0
  %3209 = vmatpush1.msra.mxu0 0.0
  %3210 = vmatprep.subr.mxu0 0.0
  %3211 = vmatpush1.msra.mxu0 0.0
  %3212 = vmatprep.subr.mxu0 0.0
  %3213 = vmatpush1.msra.mxu0 0.0
  %3214 = vmatprep.mubr.f32.mxu0 0.0
  %3215 = vmatmul.mubr.f32.gmra.mrb[0].mxu0 %v3148
  %v3216 = vpop.f32.mrb[0].mxu0
  %v3217 = vadd.f32 0.0, %v3216
  %v3218 = vpop.f32.mrb[0].mxu0
  %3219 = vdwg.mxu0
  %v3221 = vsel %vm2575, %v2900, 0
  %3223 = vmatprep.subr.mxu0 0.0
  %3224 = vmatpush1.msra.mxu0 %v114
  %3225 = vmatprep.subr.mxu0 0.0
  %3226 = vmatpush1.msra.mxu0 0.0
  %3227 = vmatprep.subr.mxu0 0.0
  %3228 = vmatpush1.msra.mxu0 0.0
  %3229 = vmatprep.subr.mxu0 0.0
  %3230 = vmatpush1.msra.mxu0 0.0
  %3231 = vmatprep.subr.mxu0 0.0
  %3232 = vmatpush1.msra.mxu0 0.0
  %3233 = vmatprep.subr.mxu0 0.0
  %3234 = vmatpush1.msra.mxu0 0.0
  %3235 = vmatprep.subr.mxu0 0.0
  %3236 = vmatpush1.msra.mxu0 0.0
  %3237 = vmatprep.subr.mxu0 0.0
  %3238 = vmatpush1.msra.mxu0 0.0
  %3239 = vmatprep.subr.mxu0 0.0
  %3240 = vmatpush1.msra.mxu0 0.0
  %3241 = vmatprep.subr.mxu0 0.0
  %3242 = vmatpush1.msra.mxu0 0.0
  %3243 = vmatprep.subr.mxu0 0.0
  %3244 = vmatpush1.msra.mxu0 0.0
  %3245 = vmatprep.subr.mxu0 0.0
  %3246 = vmatpush1.msra.mxu0 0.0
  %3247 = vmatprep.subr.mxu0 0.0
  %3248 = vmatpush1.msra.mxu0 0.0
  %3249 = vmatprep.subr.mxu0 0.0
  %3250 = vmatpush1.msra.mxu0 0.0
  %3251 = vmatprep.subr.mxu0 0.0
  %3252 = vmatpush1.msra.mxu0 0.0
  %3253 = vmatprep.subr.mxu0 0.0
  %3254 = vmatpush1.msra.mxu0 0.0
  %3255 = vmatprep.subr.mxu0 0.0
  %3256 = vmatpush1.msra.mxu0 0.0
  %3257 = vmatprep.subr.mxu0 0.0
  %3258 = vmatpush1.msra.mxu0 0.0
  %3259 = vmatprep.subr.mxu0 0.0
  %3260 = vmatpush1.msra.mxu0 0.0
  %3261 = vmatprep.subr.mxu0 0.0
  %3262 = vmatpush1.msra.mxu0 0.0
  %3263 = vmatprep.subr.mxu0 0.0
  %3264 = vmatpush1.msra.mxu0 0.0
  %3265 = vmatprep.subr.mxu0 0.0
  %3266 = vmatpush1.msra.mxu0 0.0
  %3267 = vmatprep.subr.mxu0 0.0
  %3268 = vmatpush1.msra.mxu0 0.0
  %3269 = vmatprep.subr.mxu0 0.0
  %3270 = vmatpush1.msra.mxu0 0.0
  %3271 = vmatprep.subr.mxu0 0.0
  %3272 = vmatpush1.msra.mxu0 0.0
  %3273 = vmatprep.subr.mxu0 0.0
  %3274 = vmatpush1.msra.mxu0 0.0
  %3275 = vmatprep.subr.mxu0 0.0
  %3276 = vmatpush1.msra.mxu0 0.0
  %3277 = vmatprep.subr.mxu0 0.0
  %3278 = vmatpush1.msra.mxu0 0.0
  %3279 = vmatprep.subr.mxu0 0.0
  %3280 = vmatpush1.msra.mxu0 0.0
  %3281 = vmatprep.subr.mxu0 0.0
  %3282 = vmatpush1.msra.mxu0 0.0
  %3283 = vmatprep.subr.mxu0 0.0
  %3284 = vmatpush1.msra.mxu0 0.0
  %3285 = vmatprep.subr.mxu0 0.0
  %3286 = vmatpush1.msra.mxu0 0.0
  %3287 = vmatprep.mubr.f32.mxu0 0.0
  %3288 = vmatmul.mubr.f32.gmra.mrb[0].mxu0 %v3221
  %v3289 = vpop.f32.mrb[0].mxu0
  %v3290 = vadd.f32 0.0, %v3289
  %v3291 = vpop.f32.mrb[0].mxu0
  %3292 = vdwg.mxu0
  %v3294 = vsel %vm2575, %v2901, 0
  %3296 = vmatprep.subr.mxu0 0.0
  %3297 = vmatpush1.msra.mxu0 %v115
  %3298 = vmatprep.subr.mxu0 0.0
  %3299 = vmatpush1.msra.mxu0 0.0
  %3300 = vmatprep.subr.mxu0 0.0
  %3301 = vmatpush1.msra.mxu0 0.0
  %3302 = vmatprep.subr.mxu0 0.0
  %3303 = vmatpush1.msra.mxu0 0.0
  %3304 = vmatprep.subr.mxu0 0.0
  %3305 = vmatpush1.msra.mxu0 0.0
  %3306 = vmatprep.subr.mxu0 0.0
  %3307 = vmatpush1.msra.mxu0 0.0
  %3308 = vmatprep.subr.mxu0 0.0
  %3309 = vmatpush1.msra.mxu0 0.0
  %3310 = vmatprep.subr.mxu0 0.0
  %3311 = vmatpush1.msra.mxu0 0.0
  %3312 = vmatprep.subr.mxu0 0.0
  %3313 = vmatpush1.msra.mxu0 0.0
  %3314 = vmatprep.subr.mxu0 0.0
  %3315 = vmatpush1.msra.mxu0 0.0
  %3316 = vmatprep.subr.mxu0 0.0
  %3317 = vmatpush1.msra.mxu0 0.0
  %3318 = vmatprep.subr.mxu0 0.0
  %3319 = vmatpush1.msra.mxu0 0.0
  %3320 = vmatprep.subr.mxu0 0.0
  %3321 = vmatpush1.msra.mxu0 0.0
  %3322 = vmatprep.subr.mxu0 0.0
  %3323 = vmatpush1.msra.mxu0 0.0
  %3324 = vmatprep.subr.mxu0 0.0
  %3325 = vmatpush1.msra.mxu0 0.0
  %3326 = vmatprep.subr.mxu0 0.0
  %3327 = vmatpush1.msra.mxu0 0.0
  %3328 = vmatprep.subr.mxu0 0.0
  %3329 = vmatpush1.msra.mxu0 0.0
  %3330 = vmatprep.subr.mxu0 0.0
  %3331 = vmatpush1.msra.mxu0 0.0
  %3332 = vmatprep.subr.mxu0 0.0
  %3333 = vmatpush1.msra.mxu0 0.0
  %3334 = vmatprep.subr.mxu0 0.0
  %3335 = vmatpush1.msra.mxu0 0.0
  %3336 = vmatprep.subr.mxu0 0.0
  %3337 = vmatpush1.msra.mxu0 0.0
  %3338 = vmatprep.subr.mxu0 0.0
  %3339 = vmatpush1.msra.mxu0 0.0
  %3340 = vmatprep.subr.mxu0 0.0
  %3341 = vmatpush1.msra.mxu0 0.0
  %3342 = vmatprep.subr.mxu0 0.0
  %3343 = vmatpush1.msra.mxu0 0.0
  %3344 = vmatprep.subr.mxu0 0.0
  %3345 = vmatpush1.msra.mxu0 0.0
  %3346 = vmatprep.subr.mxu0 0.0
  %3347 = vmatpush1.msra.mxu0 0.0
  %3348 = vmatprep.subr.mxu0 0.0
  %3349 = vmatpush1.msra.mxu0 0.0
  %3350 = vmatprep.subr.mxu0 0.0
  %3351 = vmatpush1.msra.mxu0 0.0
  %3352 = vmatprep.subr.mxu0 0.0
  %3353 = vmatpush1.msra.mxu0 0.0
  %3354 = vmatprep.subr.mxu0 0.0
  %3355 = vmatpush1.msra.mxu0 0.0
  %3356 = vmatprep.subr.mxu0 0.0
  %3357 = vmatpush1.msra.mxu0 0.0
  %3358 = vmatprep.subr.mxu0 0.0
  %3359 = vmatpush1.msra.mxu0 0.0
  %3360 = vmatprep.mubr.f32.mxu0 0.0
  %3361 = vmatmul.mubr.f32.gmra.mrb[0].mxu0 %v3294
  %v3362 = vpop.f32.mrb[0].mxu0
  %v3363 = vadd.f32 0.0, %v3362
  %v3364 = vpop.f32.mrb[0].mxu0
  %3365 = vdwg.mxu0
  %v3367 = vsel %vm2575, %v2902, 0
  %3369 = vmatprep.subr.mxu0 0.0
  %3370 = vmatpush1.msra.mxu0 %v116
  %3371 = vmatprep.subr.mxu0 0.0
  %3372 = vmatpush1.msra.mxu0 0.0
  %3373 = vmatprep.subr.mxu0 0.0
  %3374 = vmatpush1.msra.mxu0 0.0
  %3375 = vmatprep.subr.mxu0 0.0
  %3376 = vmatpush1.msra.mxu0 0.0
  %3377 = vmatprep.subr.mxu0 0.0
  %3378 = vmatpush1.msra.mxu0 0.0
  %3379 = vmatprep.subr.mxu0 0.0
  %3380 = vmatpush1.msra.mxu0 0.0
  %3381 = vmatprep.subr.mxu0 0.0
  %3382 = vmatpush1.msra.mxu0 0.0
  %3383 = vmatprep.subr.mxu0 0.0
  %3384 = vmatpush1.msra.mxu0 0.0
  %3385 = vmatprep.subr.mxu0 0.0
  %3386 = vmatpush1.msra.mxu0 0.0
  %3387 = vmatprep.subr.mxu0 0.0
  %3388 = vmatpush1.msra.mxu0 0.0
  %3389 = vmatprep.subr.mxu0 0.0
  %3390 = vmatpush1.msra.mxu0 0.0
  %3391 = vmatprep.subr.mxu0 0.0
  %3392 = vmatpush1.msra.mxu0 0.0
  %3393 = vmatprep.subr.mxu0 0.0
  %3394 = vmatpush1.msra.mxu0 0.0
  %3395 = vmatprep.subr.mxu0 0.0
  %3396 = vmatpush1.msra.mxu0 0.0
  %3397 = vmatprep.subr.mxu0 0.0
  %3398 = vmatpush1.msra.mxu0 0.0
  %3399 = vmatprep.subr.mxu0 0.0
  %3400 = vmatpush1.msra.mxu0 0.0
  %3401 = vmatprep.subr.mxu0 0.0
  %3402 = vmatpush1.msra.mxu0 0.0
  %3403 = vmatprep.subr.mxu0 0.0
  %3404 = vmatpush1.msra.mxu0 0.0
  %3405 = vmatprep.subr.mxu0 0.0
  %3406 = vmatpush1.msra.mxu0 0.0
  %3407 = vmatprep.subr.mxu0 0.0
  %3408 = vmatpush1.msra.mxu0 0.0
  %3409 = vmatprep.subr.mxu0 0.0
  %3410 = vmatpush1.msra.mxu0 0.0
  %3411 = vmatprep.subr.mxu0 0.0
  %3412 = vmatpush1.msra.mxu0 0.0
  %3413 = vmatprep.subr.mxu0 0.0
  %3414 = vmatpush1.msra.mxu0 0.0
  %3415 = vmatprep.subr.mxu0 0.0
  %3416 = vmatpush1.msra.mxu0 0.0
  %3417 = vmatprep.subr.mxu0 0.0
  %3418 = vmatpush1.msra.mxu0 0.0
  %3419 = vmatprep.subr.mxu0 0.0
  %3420 = vmatpush1.msra.mxu0 0.0
  %3421 = vmatprep.subr.mxu0 0.0
  %3422 = vmatpush1.msra.mxu0 0.0
  %3423 = vmatprep.subr.mxu0 0.0
  %3424 = vmatpush1.msra.mxu0 0.0
  %3425 = vmatprep.subr.mxu0 0.0
  %3426 = vmatpush1.msra.mxu0 0.0
  %3427 = vmatprep.subr.mxu0 0.0
  %3428 = vmatpush1.msra.mxu0 0.0
  %3429 = vmatprep.subr.mxu0 0.0
  %3430 = vmatpush1.msra.mxu0 0.0
  %3431 = vmatprep.subr.mxu0 0.0
  %3432 = vmatpush1.msra.mxu0 0.0
  %3433 = vmatprep.mubr.f32.mxu0 0.0
  %3434 = vmatmul.mubr.f32.gmra.mrb[0].mxu0 %v3367
  %v3435 = vpop.f32.mrb[0].mxu0
  %v3436 = vadd.f32 0.0, %v3435
  %v3437 = vpop.f32.mrb[0].mxu0
  %3438 = vdwg.mxu0
  %v3440 = vsel %vm2575, %v2903, 0
  %3442 = vmatprep.subr.mxu0 0.0
  %3443 = vmatpush1.msra.mxu0 %v117
  %3444 = vmatprep.subr.mxu0 0.0
  %3445 = vmatpush1.msra.mxu0 0.0
  %3446 = vmatprep.subr.mxu0 0.0
  %3447 = vmatpush1.msra.mxu0 0.0
  %3448 = vmatprep.subr.mxu0 0.0
  %3449 = vmatpush1.msra.mxu0 0.0
  %3450 = vmatprep.subr.mxu0 0.0
  %3451 = vmatpush1.msra.mxu0 0.0
  %3452 = vmatprep.subr.mxu0 0.0
  %3453 = vmatpush1.msra.mxu0 0.0
  %3454 = vmatprep.subr.mxu0 0.0
  %3455 = vmatpush1.msra.mxu0 0.0
  %3456 = vmatprep.subr.mxu0 0.0
  %3457 = vmatpush1.msra.mxu0 0.0
  %3458 = vmatprep.subr.mxu0 0.0
  %3459 = vmatpush1.msra.mxu0 0.0
  %3460 = vmatprep.subr.mxu0 0.0
  %3461 = vmatpush1.msra.mxu0 0.0
  %3462 = vmatprep.subr.mxu0 0.0
  %3463 = vmatpush1.msra.mxu0 0.0
  %3464 = vmatprep.subr.mxu0 0.0
  %3465 = vmatpush1.msra.mxu0 0.0
  %3466 = vmatprep.subr.mxu0 0.0
  %3467 = vmatpush1.msra.mxu0 0.0
  %3468 = vmatprep.subr.mxu0 0.0
  %3469 = vmatpush1.msra.mxu0 0.0
  %3470 = vmatprep.subr.mxu0 0.0
  %3471 = vmatpush1.msra.mxu0 0.0
  %3472 = vmatprep.subr.mxu0 0.0
  %3473 = vmatpush1.msra.mxu0 0.0
  %3474 = vmatprep.subr.mxu0 0.0
  %3475 = vmatpush1.msra.mxu0 0.0
  %3476 = vmatprep.subr.mxu0 0.0
  %3477 = vmatpush1.msra.mxu0 0.0
  %3478 = vmatprep.subr.mxu0 0.0
  %3479 = vmatpush1.msra.mxu0 0.0
  %3480 = vmatprep.subr.mxu0 0.0
  %3481 = vmatpush1.msra.mxu0 0.0
  %3482 = vmatprep.subr.mxu0 0.0
  %3483 = vmatpush1.msra.mxu0 0.0
  %3484 = vmatprep.subr.mxu0 0.0
  %3485 = vmatpush1.msra.mxu0 0.0
  %3486 = vmatprep.subr.mxu0 0.0
  %3487 = vmatpush1.msra.mxu0 0.0
  %3488 = vmatprep.subr.mxu0 0.0
  %3489 = vmatpush1.msra.mxu0 0.0
  %3490 = vmatprep.subr.mxu0 0.0
  %3491 = vmatpush1.msra.mxu0 0.0
  %3492 = vmatprep.subr.mxu0 0.0
  %3493 = vmatpush1.msra.mxu0 0.0
  %3494 = vmatprep.subr.mxu0 0.0
  %3495 = vmatpush1.msra.mxu0 0.0
  %3496 = vmatprep.subr.mxu0 0.0
  %3497 = vmatpush1.msra.mxu0 0.0
  %3498 = vmatprep.subr.mxu0 0.0
  %3499 = vmatpush1.msra.mxu0 0.0
  %3500 = vmatprep.subr.mxu0 0.0
  %3501 = vmatpush1.msra.mxu0 0.0
  %3502 = vmatprep.subr.mxu0 0.0
  %3503 = vmatpush1.msra.mxu0 0.0
  %3504 = vmatprep.subr.mxu0 0.0
  %3505 = vmatpush1.msra.mxu0 0.0
  %3506 = vmatprep.mubr.f32.mxu0 0.0
  %3507 = vmatmul.mubr.f32.gmra.mrb[0].mxu0 %v3440
  %v3508 = vpop.f32.mrb[0].mxu0
  %v3509 = vadd.f32 0.0, %v3508
  %v3510 = vpop.f32.mrb[0].mxu0
  %3511 = vdwg.mxu0
  %v3513 = vsel %vm2575, %v2904, 0
  %3515 = vmatprep.subr.mxu0 0.0
  %3516 = vmatpush1.msra.mxu0 %v118
  %3517 = vmatprep.subr.mxu0 0.0
  %3518 = vmatpush1.msra.mxu0 0.0
  %3519 = vmatprep.subr.mxu0 0.0
  %3520 = vmatpush1.msra.mxu0 0.0
  %3521 = vmatprep.subr.mxu0 0.0
  %3522 = vmatpush1.msra.mxu0 0.0
  %3523 = vmatprep.subr.mxu0 0.0
  %3524 = vmatpush1.msra.mxu0 0.0
  %3525 = vmatprep.subr.mxu0 0.0
  %3526 = vmatpush1.msra.mxu0 0.0
  %3527 = vmatprep.subr.mxu0 0.0
  %3528 = vmatpush1.msra.mxu0 0.0
  %3529 = vmatprep.subr.mxu0 0.0
  %3530 = vmatpush1.msra.mxu0 0.0
  %3531 = vmatprep.subr.mxu0 0.0
  %3532 = vmatpush1.msra.mxu0 0.0
  %3533 = vmatprep.subr.mxu0 0.0
  %3534 = vmatpush1.msra.mxu0 0.0
  %3535 = vmatprep.subr.mxu0 0.0
  %3536 = vmatpush1.msra.mxu0 0.0
  %3537 = vmatprep.subr.mxu0 0.0
  %3538 = vmatpush1.msra.mxu0 0.0
  %3539 = vmatprep.subr.mxu0 0.0
  %3540 = vmatpush1.msra.mxu0 0.0
  %3541 = vmatprep.subr.mxu0 0.0
  %3542 = vmatpush1.msra.mxu0 0.0
  %3543 = vmatprep.subr.mxu0 0.0
  %3544 = vmatpush1.msra.mxu0 0.0
  %3545 = vmatprep.subr.mxu0 0.0
  %3546 = vmatpush1.msra.mxu0 0.0
  %3547 = vmatprep.subr.mxu0 0.0
  %3548 = vmatpush1.msra.mxu0 0.0
  %3549 = vmatprep.subr.mxu0 0.0
  %3550 = vmatpush1.msra.mxu0 0.0
  %3551 = vmatprep.subr.mxu0 0.0
  %3552 = vmatpush1.msra.mxu0 0.0
  %3553 = vmatprep.subr.mxu0 0.0
  %3554 = vmatpush1.msra.mxu0 0.0
  %3555 = vmatprep.subr.mxu0 0.0
  %3556 = vmatpush1.msra.mxu0 0.0
  %3557 = vmatprep.subr.mxu0 0.0
  %3558 = vmatpush1.msra.mxu0 0.0
  %3559 = vmatprep.subr.mxu0 0.0
  %3560 = vmatpush1.msra.mxu0 0.0
  %3561 = vmatprep.subr.mxu0 0.0
  %3562 = vmatpush1.msra.mxu0 0.0
  %3563 = vmatprep.subr.mxu0 0.0
  %3564 = vmatpush1.msra.mxu0 0.0
  %3565 = vmatprep.subr.mxu0 0.0
  %3566 = vmatpush1.msra.mxu0 0.0
  %3567 = vmatprep.subr.mxu0 0.0
  %3568 = vmatpush1.msra.mxu0 0.0
  %3569 = vmatprep.subr.mxu0 0.0
  %3570 = vmatpush1.msra.mxu0 0.0
  %3571 = vmatprep.subr.mxu0 0.0
  %3572 = vmatpush1.msra.mxu0 0.0
  %3573 = vmatprep.subr.mxu0 0.0
  %3574 = vmatpush1.msra.mxu0 0.0
  %3575 = vmatprep.subr.mxu0 0.0
  %3576 = vmatpush1.msra.mxu0 0.0
  %3577 = vmatprep.subr.mxu0 0.0
  %3578 = vmatpush1.msra.mxu0 0.0
  %3579 = vmatprep.mubr.f32.mxu0 0.0
  %3580 = vmatmul.mubr.f32.gmra.mrb[0].mxu0 %v3513
  %v3581 = vpop.f32.mrb[0].mxu0
  %v3582 = vadd.f32 0.0, %v3581
  %v3583 = vpop.f32.mrb[0].mxu0
  %3584 = vdwg.mxu0
  %v3586 = vsel %vm2575, %v2905, 0
  %3588 = vmatprep.subr.mxu0 0.0
  %3589 = vmatpush1.msra.mxu0 %v119
  %3590 = vmatprep.subr.mxu0 0.0
  %3591 = vmatpush1.msra.mxu0 0.0
  %3592 = vmatprep.subr.mxu0 0.0
  %3593 = vmatpush1.msra.mxu0 0.0
  %3594 = vmatprep.subr.mxu0 0.0
  %3595 = vmatpush1.msra.mxu0 0.0
  %3596 = vmatprep.subr.mxu0 0.0
  %3597 = vmatpush1.msra.mxu0 0.0
  %3598 = vmatprep.subr.mxu0 0.0
  %3599 = vmatpush1.msra.mxu0 0.0
  %3600 = vmatprep.subr.mxu0 0.0
  %3601 = vmatpush1.msra.mxu0 0.0
  %3602 = vmatprep.subr.mxu0 0.0
  %3603 = vmatpush1.msra.mxu0 0.0
  %3604 = vmatprep.subr.mxu0 0.0
  %3605 = vmatpush1.msra.mxu0 0.0
  %3606 = vmatprep.subr.mxu0 0.0
  %3607 = vmatpush1.msra.mxu0 0.0
  %3608 = vmatprep.subr.mxu0 0.0
  %3609 = vmatpush1.msra.mxu0 0.0
  %3610 = vmatprep.subr.mxu0 0.0
  %3611 = vmatpush1.msra.mxu0 0.0
  %3612 = vmatprep.subr.mxu0 0.0
  %3613 = vmatpush1.msra.mxu0 0.0
  %3614 = vmatprep.subr.mxu0 0.0
  %3615 = vmatpush1.msra.mxu0 0.0
  %3616 = vmatprep.subr.mxu0 0.0
  %3617 = vmatpush1.msra.mxu0 0.0
  %3618 = vmatprep.subr.mxu0 0.0
  %3619 = vmatpush1.msra.mxu0 0.0
  %3620 = vmatprep.subr.mxu0 0.0
  %3621 = vmatpush1.msra.mxu0 0.0
  %3622 = vmatprep.subr.mxu0 0.0
  %3623 = vmatpush1.msra.mxu0 0.0
  %3624 = vmatprep.subr.mxu0 0.0
  %3625 = vmatpush1.msra.mxu0 0.0
  %3626 = vmatprep.subr.mxu0 0.0
  %3627 = vmatpush1.msra.mxu0 0.0
  %3628 = vmatprep.subr.mxu0 0.0
  %3629 = vmatpush1.msra.mxu0 0.0
  %3630 = vmatprep.subr.mxu0 0.0
  %3631 = vmatpush1.msra.mxu0 0.0
  %3632 = vmatprep.subr.mxu0 0.0
  %3633 = vmatpush1.msra.mxu0 0.0
  %3634 = vmatprep.subr.mxu0 0.0
  %3635 = vmatpush1.msra.mxu0 0.0
  %3636 = vmatprep.subr.mxu0 0.0
  %3637 = vmatpush1.msra.mxu0 0.0
  %3638 = vmatprep.subr.mxu0 0.0
  %3639 = vmatpush1.msra.mxu0 0.0
  %3640 = vmatprep.subr.mxu0 0.0
  %3641 = vmatpush1.msra.mxu0 0.0
  %3642 = vmatprep.subr.mxu0 0.0
  %3643 = vmatpush1.msra.mxu0 0.0
  %3644 = vmatprep.subr.mxu0 0.0
  %3645 = vmatpush1.msra.mxu0 0.0
  %3646 = vmatprep.subr.mxu0 0.0
  %3647 = vmatpush1.msra.mxu0 0.0
  %3648 = vmatprep.subr.mxu0 0.0
  %3649 = vmatpush1.msra.mxu0 0.0
  %3650 = vmatprep.subr.mxu0 0.0
  %3651 = vmatpush1.msra.mxu0 0.0
  %3652 = vmatprep.mubr.f32.mxu0 0.0
  %3653 = vmatmul.mubr.f32.gmra.mrb[0].mxu0 %v3586
  %v3654 = vpop.f32.mrb[0].mxu0
  %v3655 = vadd.f32 0.0, %v3654
  %v3656 = vpop.f32.mrb[0].mxu0
  %3657 = vdwg.mxu0
  %v3659 = vsel %vm2575, %v2906, 0
  %3661 = vmatprep.subr.mxu0 0.0
  %3662 = vmatpush1.msra.mxu0 %v120
  %3663 = vmatprep.subr.mxu0 0.0
  %3664 = vmatpush1.msra.mxu0 0.0
  %3665 = vmatprep.subr.mxu0 0.0
  %3666 = vmatpush1.msra.mxu0 0.0
  %3667 = vmatprep.subr.mxu0 0.0
  %3668 = vmatpush1.msra.mxu0 0.0
  %3669 = vmatprep.subr.mxu0 0.0
  %3670 = vmatpush1.msra.mxu0 0.0
  %3671 = vmatprep.subr.mxu0 0.0
  %3672 = vmatpush1.msra.mxu0 0.0
  %3673 = vmatprep.subr.mxu0 0.0
  %3674 = vmatpush1.msra.mxu0 0.0
  %3675 = vmatprep.subr.mxu0 0.0
  %3676 = vmatpush1.msra.mxu0 0.0
  %3677 = vmatprep.subr.mxu0 0.0
  %3678 = vmatpush1.msra.mxu0 0.0
  %3679 = vmatprep.subr.mxu0 0.0
  %3680 = vmatpush1.msra.mxu0 0.0
  %3681 = vmatprep.subr.mxu0 0.0
  %3682 = vmatpush1.msra.mxu0 0.0
  %3683 = vmatprep.subr.mxu0 0.0
  %3684 = vmatpush1.msra.mxu0 0.0
  %3685 = vmatprep.subr.mxu0 0.0
  %3686 = vmatpush1.msra.mxu0 0.0
  %3687 = vmatprep.subr.mxu0 0.0
  %3688 = vmatpush1.msra.mxu0 0.0
  %3689 = vmatprep.subr.mxu0 0.0
  %3690 = vmatpush1.msra.mxu0 0.0
  %3691 = vmatprep.subr.mxu0 0.0
  %3692 = vmatpush1.msra.mxu0 0.0
  %3693 = vmatprep.subr.mxu0 0.0
  %3694 = vmatpush1.msra.mxu0 0.0
  %3695 = vmatprep.subr.mxu0 0.0
  %3696 = vmatpush1.msra.mxu0 0.0
  %3697 = vmatprep.subr.mxu0 0.0
  %3698 = vmatpush1.msra.mxu0 0.0
  %3699 = vmatprep.subr.mxu0 0.0
  %3700 = vmatpush1.msra.mxu0 0.0
  %3701 = vmatprep.subr.mxu0 0.0
  %3702 = vmatpush1.msra.mxu0 0.0
  %3703 = vmatprep.subr.mxu0 0.0
  %3704 = vmatpush1.msra.mxu0 0.0
  %3705 = vmatprep.subr.mxu0 0.0
  %3706 = vmatpush1.msra.mxu0 0.0
  %3707 = vmatprep.subr.mxu0 0.0
  %3708 = vmatpush1.msra.mxu0 0.0
  %3709 = vmatprep.subr.mxu0 0.0
  %3710 = vmatpush1.msra.mxu0 0.0
  %3711 = vmatprep.subr.mxu0 0.0
  %3712 = vmatpush1.msra.mxu0 0.0
  %3713 = vmatprep.subr.mxu0 0.0
  %3714 = vmatpush1.msra.mxu0 0.0
  %3715 = vmatprep.subr.mxu0 0.0
  %3716 = vmatpush1.msra.mxu0 0.0
  %3717 = vmatprep.subr.mxu0 0.0
  %3718 = vmatpush1.msra.mxu0 0.0
  %3719 = vmatprep.subr.mxu0 0.0
  %3720 = vmatpush1.msra.mxu0 0.0
  %3721 = vmatprep.subr.mxu0 0.0
  %3722 = vmatpush1.msra.mxu0 0.0
  %3723 = vmatprep.subr.mxu0 0.0
  %3724 = vmatpush1.msra.mxu0 0.0
  %3725 = vmatprep.mubr.f32.mxu0 0.0
  %3726 = vmatmul.mubr.f32.gmra.mrb[0].mxu0 %v3659
  %v3727 = vpop.f32.mrb[0].mxu0
  %v3728 = vadd.f32 0.0, %v3727
  %v3729 = vpop.f32.mrb[0].mxu0
  %3730 = vdwg.mxu0
  %v3732 = vsel %vm2575, %v2907, 0
  %3734 = vmatprep.subr.mxu0 0.0
  %3735 = vmatpush1.msra.mxu0 %v121
  %3736 = vmatprep.subr.mxu0 0.0
  %3737 = vmatpush1.msra.mxu0 0.0
  %3738 = vmatprep.subr.mxu0 0.0
  %3739 = vmatpush1.msra.mxu0 0.0
  %3740 = vmatprep.subr.mxu0 0.0
  %3741 = vmatpush1.msra.mxu0 0.0
  %3742 = vmatprep.subr.mxu0 0.0
  %3743 = vmatpush1.msra.mxu0 0.0
  %3744 = vmatprep.subr.mxu0 0.0
  %3745 = vmatpush1.msra.mxu0 0.0
  %3746 = vmatprep.subr.mxu0 0.0
  %3747 = vmatpush1.msra.mxu0 0.0
  %3748 = vmatprep.subr.mxu0 0.0
  %3749 = vmatpush1.msra.mxu0 0.0
  %3750 = vmatprep.subr.mxu0 0.0
  %3751 = vmatpush1.msra.mxu0 0.0
  %3752 = vmatprep.subr.mxu0 0.0
  %3753 = vmatpush1.msra.mxu0 0.0
  %3754 = vmatprep.subr.mxu0 0.0
  %3755 = vmatpush1.msra.mxu0 0.0
  %3756 = vmatprep.subr.mxu0 0.0
  %3757 = vmatpush1.msra.mxu0 0.0
  %3758 = vmatprep.subr.mxu0 0.0
  %3759 = vmatpush1.msra.mxu0 0.0
  %3760 = vmatprep.subr.mxu0 0.0
  %3761 = vmatpush1.msra.mxu0 0.0
  %3762 = vmatprep.subr.mxu0 0.0
  %3763 = vmatpush1.msra.mxu0 0.0
  %3764 = vmatprep.subr.mxu0 0.0
  %3765 = vmatpush1.msra.mxu0 0.0
  %3766 = vmatprep.subr.mxu0 0.0
  %3767 = vmatpush1.msra.mxu0 0.0
  %3768 = vmatprep.subr.mxu0 0.0
  %3769 = vmatpush1.msra.mxu0 0.0
  %3770 = vmatprep.subr.mxu0 0.0
  %3771 = vmatpush1.msra.mxu0 0.0
  %3772 = vmatprep.subr.mxu0 0.0
  %3773 = vmatpush1.msra.mxu0 0.0
  %3774 = vmatprep.subr.mxu0 0.0
  %3775 = vmatpush1.msra.mxu0 0.0
  %3776 = vmatprep.subr.mxu0 0.0
  %3777 = vmatpush1.msra.mxu0 0.0
  %3778 = vmatprep.subr.mxu0 0.0
  %3779 = vmatpush1.msra.mxu0 0.0
  %3780 = vmatprep.subr.mxu0 0.0
  %3781 = vmatpush1.msra.mxu0 0.0
  %3782 = vmatprep.subr.mxu0 0.0
  %3783 = vmatpush1.msra.mxu0 0.0
  %3784 = vmatprep.subr.mxu0 0.0
  %3785 = vmatpush1.msra.mxu0 0.0
  %3786 = vmatprep.subr.mxu0 0.0
  %3787 = vmatpush1.msra.mxu0 0.0
  %3788 = vmatprep.subr.mxu0 0.0
  %3789 = vmatpush1.msra.mxu0 0.0
  %3790 = vmatprep.subr.mxu0 0.0
  %3791 = vmatpush1.msra.mxu0 0.0
  %3792 = vmatprep.subr.mxu0 0.0
  %3793 = vmatpush1.msra.mxu0 0.0
  %3794 = vmatprep.subr.mxu0 0.0
  %3795 = vmatpush1.msra.mxu0 0.0
  %3796 = vmatprep.subr.mxu0 0.0
  %3797 = vmatpush1.msra.mxu0 0.0
  %3798 = vmatprep.mubr.f32.mxu0 0.0
  %3799 = vmatmul.mubr.f32.gmra.mrb[0].mxu0 %v3732
  %v3800 = vpop.f32.mrb[0].mxu0
  %v3801 = vadd.f32 0.0, %v3800
  %v3802 = vpop.f32.mrb[0].mxu0
  %3803 = vdwg.mxu0
  %v3805 = vsel %vm2575, %v2908, 0
  %3807 = vmatprep.subr.mxu0 0.0
  %3808 = vmatpush1.msra.mxu0 %v122
  %3809 = vmatprep.subr.mxu0 0.0
  %3810 = vmatpush1.msra.mxu0 0.0
  %3811 = vmatprep.subr.mxu0 0.0
  %3812 = vmatpush1.msra.mxu0 0.0
  %3813 = vmatprep.subr.mxu0 0.0
  %3814 = vmatpush1.msra.mxu0 0.0
  %3815 = vmatprep.subr.mxu0 0.0
  %3816 = vmatpush1.msra.mxu0 0.0
  %3817 = vmatprep.subr.mxu0 0.0
  %3818 = vmatpush1.msra.mxu0 0.0
  %3819 = vmatprep.subr.mxu0 0.0
  %3820 = vmatpush1.msra.mxu0 0.0
  %3821 = vmatprep.subr.mxu0 0.0
  %3822 = vmatpush1.msra.mxu0 0.0
  %3823 = vmatprep.subr.mxu0 0.0
  %3824 = vmatpush1.msra.mxu0 0.0
  %3825 = vmatprep.subr.mxu0 0.0
  %3826 = vmatpush1.msra.mxu0 0.0
  %3827 = vmatprep.subr.mxu0 0.0
  %3828 = vmatpush1.msra.mxu0 0.0
  %3829 = vmatprep.subr.mxu0 0.0
  %3830 = vmatpush1.msra.mxu0 0.0
  %3831 = vmatprep.subr.mxu0 0.0
  %3832 = vmatpush1.msra.mxu0 0.0
  %3833 = vmatprep.subr.mxu0 0.0
  %3834 = vmatpush1.msra.mxu0 0.0
  %3835 = vmatprep.subr.mxu0 0.0
  %3836 = vmatpush1.msra.mxu0 0.0
  %3837 = vmatprep.subr.mxu0 0.0
  %3838 = vmatpush1.msra.mxu0 0.0
  %3839 = vmatprep.subr.mxu0 0.0
  %3840 = vmatpush1.msra.mxu0 0.0
  %3841 = vmatprep.subr.mxu0 0.0
  %3842 = vmatpush1.msra.mxu0 0.0
  %3843 = vmatprep.subr.mxu0 0.0
  %3844 = vmatpush1.msra.mxu0 0.0
  %3845 = vmatprep.subr.mxu0 0.0
  %3846 = vmatpush1.msra.mxu0 0.0
  %3847 = vmatprep.subr.mxu0 0.0
  %3848 = vmatpush1.msra.mxu0 0.0
  %3849 = vmatprep.subr.mxu0 0.0
  %3850 = vmatpush1.msra.mxu0 0.0
  %3851 = vmatprep.subr.mxu0 0.0
  %3852 = vmatpush1.msra.mxu0 0.0
  %3853 = vmatprep.subr.mxu0 0.0
  %3854 = vmatpush1.msra.mxu0 0.0
  %3855 = vmatprep.subr.mxu0 0.0
  %3856 = vmatpush1.msra.mxu0 0.0
  %3857 = vmatprep.subr.mxu0 0.0
  %3858 = vmatpush1.msra.mxu0 0.0
  %3859 = vmatprep.subr.mxu0 0.0
  %3860 = vmatpush1.msra.mxu0 0.0
  %3861 = vmatprep.subr.mxu0 0.0
  %3862 = vmatpush1.msra.mxu0 0.0
  %3863 = vmatprep.subr.mxu0 0.0
  %3864 = vmatpush1.msra.mxu0 0.0
  %3865 = vmatprep.subr.mxu0 0.0
  %3866 = vmatpush1.msra.mxu0 0.0
  %3867 = vmatprep.subr.mxu0 0.0
  %3868 = vmatpush1.msra.mxu0 0.0
  %3869 = vmatprep.subr.mxu0 0.0
  %3870 = vmatpush1.msra.mxu0 0.0
  %3871 = vmatprep.mubr.f32.mxu0 0.0
  %3872 = vmatmul.mubr.f32.gmra.mrb[0].mxu0 %v3805
  %v3873 = vpop.f32.mrb[0].mxu0
  %v3874 = vadd.f32 0.0, %v3873
  %v3875 = vpop.f32.mrb[0].mxu0
  %3876 = vdwg.mxu0
  %v3878 = vsel %vm2575, %v2909, 0
  %3880 = vmatprep.subr.mxu0 0.0
  %3881 = vmatpush1.msra.mxu0 %v123
  %3882 = vmatprep.subr.mxu0 0.0
  %3883 = vmatpush1.msra.mxu0 0.0
  %3884 = vmatprep.subr.mxu0 0.0
  %3885 = vmatpush1.msra.mxu0 0.0
  %3886 = vmatprep.subr.mxu0 0.0
  %3887 = vmatpush1.msra.mxu0 0.0
  %3888 = vmatprep.subr.mxu0 0.0
  %3889 = vmatpush1.msra.mxu0 0.0
  %3890 = vmatprep.subr.mxu0 0.0
  %3891 = vmatpush1.msra.mxu0 0.0
  %3892 = vmatprep.subr.mxu0 0.0
  %3893 = vmatpush1.msra.mxu0 0.0
  %3894 = vmatprep.subr.mxu0 0.0
  %3895 = vmatpush1.msra.mxu0 0.0
  %3896 = vmatprep.subr.mxu0 0.0
  %3897 = vmatpush1.msra.mxu0 0.0
  %3898 = vmatprep.subr.mxu0 0.0
  %3899 = vmatpush1.msra.mxu0 0.0
  %3900 = vmatprep.subr.mxu0 0.0
  %3901 = vmatpush1.msra.mxu0 0.0
  %3902 = vmatprep.subr.mxu0 0.0
  %3903 = vmatpush1.msra.mxu0 0.0
  %3904 = vmatprep.subr.mxu0 0.0
  %3905 = vmatpush1.msra.mxu0 0.0
  %3906 = vmatprep.subr.mxu0 0.0
  %3907 = vmatpush1.msra.mxu0 0.0
  %3908 = vmatprep.subr.mxu0 0.0
  %3909 = vmatpush1.msra.mxu0 0.0
  %3910 = vmatprep.subr.mxu0 0.0
  %3911 = vmatpush1.msra.mxu0 0.0
  %3912 = vmatprep.subr.mxu0 0.0
  %3913 = vmatpush1.msra.mxu0 0.0
  %3914 = vmatprep.subr.mxu0 0.0
  %3915 = vmatpush1.msra.mxu0 0.0
  %3916 = vmatprep.subr.mxu0 0.0
  %3917 = vmatpush1.msra.mxu0 0.0
  %3918 = vmatprep.subr.mxu0 0.0
  %3919 = vmatpush1.msra.mxu0 0.0
  %3920 = vmatprep.subr.mxu0 0.0
  %3921 = vmatpush1.msra.mxu0 0.0
  %3922 = vmatprep.subr.mxu0 0.0
  %3923 = vmatpush1.msra.mxu0 0.0
  %3924 = vmatprep.subr.mxu0 0.0
  %3925 = vmatpush1.msra.mxu0 0.0
  %3926 = vmatprep.subr.mxu0 0.0
  %3927 = vmatpush1.msra.mxu0 0.0
  %3928 = vmatprep.subr.mxu0 0.0
  %3929 = vmatpush1.msra.mxu0 0.0
  %3930 = vmatprep.subr.mxu0 0.0
  %3931 = vmatpush1.msra.mxu0 0.0
  %3932 = vmatprep.subr.mxu0 0.0
  %3933 = vmatpush1.msra.mxu0 0.0
  %3934 = vmatprep.subr.mxu0 0.0
  %3935 = vmatpush1.msra.mxu0 0.0
  %3936 = vmatprep.subr.mxu0 0.0
  %3937 = vmatpush1.msra.mxu0 0.0
  %3938 = vmatprep.subr.mxu0 0.0
  %3939 = vmatpush1.msra.mxu0 0.0
  %3940 = vmatprep.subr.mxu0 0.0
  %3941 = vmatpush1.msra.mxu0 0.0
  %3942 = vmatprep.subr.mxu0 0.0
  %3943 = vmatpush1.msra.mxu0 0.0
  %3944 = vmatprep.mubr.f32.mxu0 0.0
  %3945 = vmatmul.mubr.f32.gmra.mrb[0].mxu0 %v3878
  %v3946 = vpop.f32.mrb[0].mxu0
  %v3947 = vadd.f32 0.0, %v3946
  %v3948 = vpop.f32.mrb[0].mxu0
  %3949 = vdwg.mxu0
  %v3951 = vsel %vm2575, %v2910, 0
  %3953 = vmatprep.subr.mxu0 0.0
  %3954 = vmatpush1.msra.mxu0 %v124
  %3955 = vmatprep.subr.mxu0 0.0
  %3956 = vmatpush1.msra.mxu0 0.0
  %3957 = vmatprep.subr.mxu0 0.0
  %3958 = vmatpush1.msra.mxu0 0.0
  %3959 = vmatprep.subr.mxu0 0.0
  %3960 = vmatpush1.msra.mxu0 0.0
  %3961 = vmatprep.subr.mxu0 0.0
  %3962 = vmatpush1.msra.mxu0 0.0
  %3963 = vmatprep.subr.mxu0 0.0
  %3964 = vmatpush1.msra.mxu0 0.0
  %3965 = vmatprep.subr.mxu0 0.0
  %3966 = vmatpush1.msra.mxu0 0.0
  %3967 = vmatprep.subr.mxu0 0.0
  %3968 = vmatpush1.msra.mxu0 0.0
  %3969 = vmatprep.subr.mxu0 0.0
  %3970 = vmatpush1.msra.mxu0 0.0
  %3971 = vmatprep.subr.mxu0 0.0
  %3972 = vmatpush1.msra.mxu0 0.0
  %3973 = vmatprep.subr.mxu0 0.0
  %3974 = vmatpush1.msra.mxu0 0.0
  %3975 = vmatprep.subr.mxu0 0.0
  %3976 = vmatpush1.msra.mxu0 0.0
  %3977 = vmatprep.subr.mxu0 0.0
  %3978 = vmatpush1.msra.mxu0 0.0
  %3979 = vmatprep.subr.mxu0 0.0
  %3980 = vmatpush1.msra.mxu0 0.0
  %3981 = vmatprep.subr.mxu0 0.0
  %3982 = vmatpush1.msra.mxu0 0.0
  %3983 = vmatprep.subr.mxu0 0.0
  %3984 = vmatpush1.msra.mxu0 0.0
  %3985 = vmatprep.subr.mxu0 0.0
  %3986 = vmatpush1.msra.mxu0 0.0
  %3987 = vmatprep.subr.mxu0 0.0
  %3988 = vmatpush1.msra.mxu0 0.0
  %3989 = vmatprep.subr.mxu0 0.0
  %3990 = vmatpush1.msra.mxu0 0.0
  %3991 = vmatprep.subr.mxu0 0.0
  %3992 = vmatpush1.msra.mxu0 0.0
  %3993 = vmatprep.subr.mxu0 0.0
  %3994 = vmatpush1.msra.mxu0 0.0
  %3995 = vmatprep.subr.mxu0 0.0
  %3996 = vmatpush1.msra.mxu0 0.0
  %3997 = vmatprep.subr.mxu0 0.0
  %3998 = vmatpush1.msra.mxu0 0.0
  %3999 = vmatprep.subr.mxu0 0.0
  %4000 = vmatpush1.msra.mxu0 0.0
  %4001 = vmatprep.subr.mxu0 0.0
  %4002 = vmatpush1.msra.mxu0 0.0
  %4003 = vmatprep.subr.mxu0 0.0
  %4004 = vmatpush1.msra.mxu0 0.0
  %4005 = vmatprep.subr.mxu0 0.0
  %4006 = vmatpush1.msra.mxu0 0.0
  %4007 = vmatprep.subr.mxu0 0.0
  %4008 = vmatpush1.msra.mxu0 0.0
  %4009 = vmatprep.subr.mxu0 0.0
  %4010 = vmatpush1.msra.mxu0 0.0
  %4011 = vmatprep.subr.mxu0 0.0
  %4012 = vmatpush1.msra.mxu0 0.0
  %4013 = vmatprep.subr.mxu0 0.0
  %4014 = vmatpush1.msra.mxu0 0.0
  %4015 = vmatprep.subr.mxu0 0.0
  %4016 = vmatpush1.msra.mxu0 0.0
  %4017 = vmatprep.mubr.f32.mxu0 0.0
  %4018 = vmatmul.mubr.f32.gmra.mrb[0].mxu0 %v3951
  %v4019 = vpop.f32.mrb[0].mxu0
  %v4020 = vadd.f32 0.0, %v4019
  %v4021 = vpop.f32.mrb[0].mxu0
  %4022 = vdwg.mxu0
  %v4024 = vsel %vm2575, %v2911, 0
  %4026 = vmatprep.subr.mxu0 0.0
  %4027 = vmatpush1.msra.mxu0 %v125
  %4028 = vmatprep.subr.mxu0 0.0
  %4029 = vmatpush1.msra.mxu0 0.0
  %4030 = vmatprep.subr.mxu0 0.0
  %4031 = vmatpush1.msra.mxu0 0.0
  %4032 = vmatprep.subr.mxu0 0.0
  %4033 = vmatpush1.msra.mxu0 0.0
  %4034 = vmatprep.subr.mxu0 0.0
  %4035 = vmatpush1.msra.mxu0 0.0
  %4036 = vmatprep.subr.mxu0 0.0
  %4037 = vmatpush1.msra.mxu0 0.0
  %4038 = vmatprep.subr.mxu0 0.0
  %4039 = vmatpush1.msra.mxu0 0.0
  %4040 = vmatprep.subr.mxu0 0.0
  %4041 = vmatpush1.msra.mxu0 0.0
  %4042 = vmatprep.subr.mxu0 0.0
  %4043 = vmatpush1.msra.mxu0 0.0
  %4044 = vmatprep.subr.mxu0 0.0
  %4045 = vmatpush1.msra.mxu0 0.0
  %4046 = vmatprep.subr.mxu0 0.0
  %4047 = vmatpush1.msra.mxu0 0.0
  %4048 = vmatprep.subr.mxu0 0.0
  %4049 = vmatpush1.msra.mxu0 0.0
  %4050 = vmatprep.subr.mxu0 0.0
  %4051 = vmatpush1.msra.mxu0 0.0
  %4052 = vmatprep.subr.mxu0 0.0
  %4053 = vmatpush1.msra.mxu0 0.0
  %4054 = vmatprep.subr.mxu0 0.0
  %4055 = vmatpush1.msra.mxu0 0.0
  %4056 = vmatprep.subr.mxu0 0.0
  %4057 = vmatpush1.msra.mxu0 0.0
  %4058 = vmatprep.subr.mxu0 0.0
  %4059 = vmatpush1.msra.mxu0 0.0
  %4060 = vmatprep.subr.mxu0 0.0
  %4061 = vmatpush1.msra.mxu0 0.0
  %4062 = vmatprep.subr.mxu0 0.0
  %4063 = vmatpush1.msra.mxu0 0.0
  %4064 = vmatprep.subr.mxu0 0.0
  %4065 = vmatpush1.msra.mxu0 0.0
  %4066 = vmatprep.subr.mxu0 0.0
  %4067 = vmatpush1.msra.mxu0 0.0
  %4068 = vmatprep.subr.mxu0 0.0
  %4069 = vmatpush1.msra.mxu0 0.0
  %4070 = vmatprep.subr.mxu0 0.0
  %4071 = vmatpush1.msra.mxu0 0.0
  %4072 = vmatprep.subr.mxu0 0.0
  %4073 = vmatpush1.msra.mxu0 0.0
  %4074 = vmatprep.subr.mxu0 0.0
  %4075 = vmatpush1.msra.mxu0 0.0
  %4076 = vmatprep.subr.mxu0 0.0
  %4077 = vmatpush1.msra.mxu0 0.0
  %4078 = vmatprep.subr.mxu0 0.0
  %4079 = vmatpush1.msra.mxu0 0.0
  %4080 = vmatprep.subr.mxu0 0.0
  %4081 = vmatpush1.msra.mxu0 0.0
  %4082 = vmatprep.subr.mxu0 0.0
  %4083 = vmatpush1.msra.mxu0 0.0
  %4084 = vmatprep.subr.mxu0 0.0
  %4085 = vmatpush1.msra.mxu0 0.0
  %4086 = vmatprep.subr.mxu0 0.0
  %4087 = vmatpush1.msra.mxu0 0.0
  %4088 = vmatprep.subr.mxu0 0.0
  %4089 = vmatpush1.msra.mxu0 0.0
  %4090 = vmatprep.mubr.f32.mxu0 0.0
  %4091 = vmatmul.mubr.f32.gmra.mrb[0].mxu0 %v4024
  %v4092 = vpop.f32.mrb[0].mxu0
  %v4093 = vadd.f32 0.0, %v4092
  %v4094 = vpop.f32.mrb[0].mxu0
  %4095 = vdwg.mxu0
  %v4097 = vsel %vm2575, %v2912, 0
  %4099 = vmatprep.subr.mxu0 0.0
  %4100 = vmatpush1.msra.mxu0 %v126
  %4101 = vmatprep.subr.mxu0 0.0
  %4102 = vmatpush1.msra.mxu0 0.0
  %4103 = vmatprep.subr.mxu0 0.0
  %4104 = vmatpush1.msra.mxu0 0.0
  %4105 = vmatprep.subr.mxu0 0.0
  %4106 = vmatpush1.msra.mxu0 0.0
  %4107 = vmatprep.subr.mxu0 0.0
  %4108 = vmatpush1.msra.mxu0 0.0
  %4109 = vmatprep.subr.mxu0 0.0
  %4110 = vmatpush1.msra.mxu0 0.0
  %4111 = vmatprep.subr.mxu0 0.0
  %4112 = vmatpush1.msra.mxu0 0.0
  %4113 = vmatprep.subr.mxu0 0.0
  %4114 = vmatpush1.msra.mxu0 0.0
  %4115 = vmatprep.subr.mxu0 0.0
  %4116 = vmatpush1.msra.mxu0 0.0
  %4117 = vmatprep.subr.mxu0 0.0
  %4118 = vmatpush1.msra.mxu0 0.0
  %4119 = vmatprep.subr.mxu0 0.0
  %4120 = vmatpush1.msra.mxu0 0.0
  %4121 = vmatprep.subr.mxu0 0.0
  %4122 = vmatpush1.msra.mxu0 0.0
  %4123 = vmatprep.subr.mxu0 0.0
  %4124 = vmatpush1.msra.mxu0 0.0
  %4125 = vmatprep.subr.mxu0 0.0
  %4126 = vmatpush1.msra.mxu0 0.0
  %4127 = vmatprep.subr.mxu0 0.0
  %4128 = vmatpush1.msra.mxu0 0.0
  %4129 = vmatprep.subr.mxu0 0.0
  %4130 = vmatpush1.msra.mxu0 0.0
  %4131 = vmatprep.subr.mxu0 0.0
  %4132 = vmatpush1.msra.mxu0 0.0
  %4133 = vmatprep.subr.mxu0 0.0
  %4134 = vmatpush1.msra.mxu0 0.0
  %4135 = vmatprep.subr.mxu0 0.0
  %4136 = vmatpush1.msra.mxu0 0.0
  %4137 = vmatprep.subr.mxu0 0.0
  %4138 = vmatpush1.msra.mxu0 0.0
  %4139 = vmatprep.subr.mxu0 0.0
  %4140 = vmatpush1.msra.mxu0 0.0
  %4141 = vmatprep.subr.mxu0 0.0
  %4142 = vmatpush1.msra.mxu0 0.0
  %4143 = vmatprep.subr.mxu0 0.0
  %4144 = vmatpush1.msra.mxu0 0.0
  %4145 = vmatprep.subr.mxu0 0.0
  %4146 = vmatpush1.msra.mxu0 0.0
  %4147 = vmatprep.subr.mxu0 0.0
  %4148 = vmatpush1.msra.mxu0 0.0
  %4149 = vmatprep.subr.mxu0 0.0
  %4150 = vmatpush1.msra.mxu0 0.0
  %4151 = vmatprep.subr.mxu0 0.0
  %4152 = vmatpush1.msra.mxu0 0.0
  %4153 = vmatprep.subr.mxu0 0.0
  %4154 = vmatpush1.msra.mxu0 0.0
  %4155 = vmatprep.subr.mxu0 0.0
  %4156 = vmatpush1.msra.mxu0 0.0
  %4157 = vmatprep.subr.mxu0 0.0
  %4158 = vmatpush1.msra.mxu0 0.0
  %4159 = vmatprep.subr.mxu0 0.0
  %4160 = vmatpush1.msra.mxu0 0.0
  %4161 = vmatprep.subr.mxu0 0.0
  %4162 = vmatpush1.msra.mxu0 0.0
  %4163 = vmatprep.mubr.f32.mxu0 0.0
  %4164 = vmatmul.mubr.f32.gmra.mrb[0].mxu0 %v4097
  %v4165 = vpop.f32.mrb[0].mxu0
  %v4166 = vadd.f32 0.0, %v4165
  %v4167 = vpop.f32.mrb[0].mxu0
  %4168 = vdwg.mxu0
  %v4170 = vsel %vm2575, %v2913, 0
  %4172 = vmatprep.subr.mxu0 0.0
  %4173 = vmatpush1.msra.mxu0 %v127
  %4174 = vmatprep.subr.mxu0 0.0
  %4175 = vmatpush1.msra.mxu0 0.0
  %4176 = vmatprep.subr.mxu0 0.0
  %4177 = vmatpush1.msra.mxu0 0.0
  %4178 = vmatprep.subr.mxu0 0.0
  %4179 = vmatpush1.msra.mxu0 0.0
  %4180 = vmatprep.subr.mxu0 0.0
  %4181 = vmatpush1.msra.mxu0 0.0
  %4182 = vmatprep.subr.mxu0 0.0
  %4183 = vmatpush1.msra.mxu0 0.0
  %4184 = vmatprep.subr.mxu0 0.0
  %4185 = vmatpush1.msra.mxu0 0.0
  %4186 = vmatprep.subr.mxu0 0.0
  %4187 = vmatpush1.msra.mxu0 0.0
  %4188 = vmatprep.subr.mxu0 0.0
  %4189 = vmatpush1.msra.mxu0 0.0
  %4190 = vmatprep.subr.mxu0 0.0
  %4191 = vmatpush1.msra.mxu0 0.0
  %4192 = vmatprep.subr.mxu0 0.0
  %4193 = vmatpush1.msra.mxu0 0.0
  %4194 = vmatprep.subr.mxu0 0.0
  %4195 = vmatpush1.msra.mxu0 0.0
  %4196 = vmatprep.subr.mxu0 0.0
  %4197 = vmatpush1.msra.mxu0 0.0
  %4198 = vmatprep.subr.mxu0 0.0
  %4199 = vmatpush1.msra.mxu0 0.0
  %4200 = vmatprep.subr.mxu0 0.0
  %4201 = vmatpush1.msra.mxu0 0.0
  %4202 = vmatprep.subr.mxu0 0.0
  %4203 = vmatpush1.msra.mxu0 0.0
  %4204 = vmatprep.subr.mxu0 0.0
  %4205 = vmatpush1.msra.mxu0 0.0
  %4206 = vmatprep.subr.mxu0 0.0
  %4207 = vmatpush1.msra.mxu0 0.0
  %4208 = vmatprep.subr.mxu0 0.0
  %4209 = vmatpush1.msra.mxu0 0.0
  %4210 = vmatprep.subr.mxu0 0.0
  %4211 = vmatpush1.msra.mxu0 0.0
  %4212 = vmatprep.subr.mxu0 0.0
  %4213 = vmatpush1.msra.mxu0 0.0
  %4214 = vmatprep.subr.mxu0 0.0
  %4215 = vmatpush1.msra.mxu0 0.0
  %4216 = vmatprep.subr.mxu0 0.0
  %4217 = vmatpush1.msra.mxu0 0.0
  %4218 = vmatprep.subr.mxu0 0.0
  %4219 = vmatpush1.msra.mxu0 0.0
  %4220 = vmatprep.subr.mxu0 0.0
  %4221 = vmatpush1.msra.mxu0 0.0
  %4222 = vmatprep.subr.mxu0 0.0
  %4223 = vmatpush1.msra.mxu0 0.0
  %4224 = vmatprep.subr.mxu0 0.0
  %4225 = vmatpush1.msra.mxu0 0.0
  %4226 = vmatprep.subr.mxu0 0.0
  %4227 = vmatpush1.msra.mxu0 0.0
  %4228 = vmatprep.subr.mxu0 0.0
  %4229 = vmatpush1.msra.mxu0 0.0
  %4230 = vmatprep.subr.mxu0 0.0
  %4231 = vmatpush1.msra.mxu0 0.0
  %4232 = vmatprep.subr.mxu0 0.0
  %4233 = vmatpush1.msra.mxu0 0.0
  %4234 = vmatprep.subr.mxu0 0.0
  %4235 = vmatpush1.msra.mxu0 0.0
  %4236 = vmatprep.mubr.f32.mxu0 0.0
  %4237 = vmatmul.mubr.f32.gmra.mrb[0].mxu0 %v4170
  %v4238 = vpop.f32.mrb[0].mxu0
  %v4239 = vadd.f32 0.0, %v4238
  %v4240 = vpop.f32.mrb[0].mxu0
  %4241 = vdwg.mxu0
  %v4243 = vsel %vm2575, %v2914, 0
  %4245 = vmatprep.subr.mxu0 0.0
  %4246 = vmatpush1.msra.mxu0 %v128
  %4247 = vmatprep.subr.mxu0 0.0
  %4248 = vmatpush1.msra.mxu0 0.0
  %4249 = vmatprep.subr.mxu0 0.0
  %4250 = vmatpush1.msra.mxu0 0.0
  %4251 = vmatprep.subr.mxu0 0.0
  %4252 = vmatpush1.msra.mxu0 0.0
  %4253 = vmatprep.subr.mxu0 0.0
  %4254 = vmatpush1.msra.mxu0 0.0
  %4255 = vmatprep.subr.mxu0 0.0
  %4256 = vmatpush1.msra.mxu0 0.0
  %4257 = vmatprep.subr.mxu0 0.0
  %4258 = vmatpush1.msra.mxu0 0.0
  %4259 = vmatprep.subr.mxu0 0.0
  %4260 = vmatpush1.msra.mxu0 0.0
  %4261 = vmatprep.subr.mxu0 0.0
  %4262 = vmatpush1.msra.mxu0 0.0
  %4263 = vmatprep.subr.mxu0 0.0
  %4264 = vmatpush1.msra.mxu0 0.0
  %4265 = vmatprep.subr.mxu0 0.0
  %4266 = vmatpush1.msra.mxu0 0.0
  %4267 = vmatprep.subr.mxu0 0.0
  %4268 = vmatpush1.msra.mxu0 0.0
  %4269 = vmatprep.subr.mxu0 0.0
  %4270 = vmatpush1.msra.mxu0 0.0
  %4271 = vmatprep.subr.mxu0 0.0
  %4272 = vmatpush1.msra.mxu0 0.0
  %4273 = vmatprep.subr.mxu0 0.0
  %4274 = vmatpush1.msra.mxu0 0.0
  %4275 = vmatprep.subr.mxu0 0.0
  %4276 = vmatpush1.msra.mxu0 0.0
  %4277 = vmatprep.subr.mxu0 0.0
  %4278 = vmatpush1.msra.mxu0 0.0
  %4279 = vmatprep.subr.mxu0 0.0
  %4280 = vmatpush1.msra.mxu0 0.0
  %4281 = vmatprep.subr.mxu0 0.0
  %4282 = vmatpush1.msra.mxu0 0.0
  %4283 = vmatprep.subr.mxu0 0.0
  %4284 = vmatpush1.msra.mxu0 0.0
  %4285 = vmatprep.subr.mxu0 0.0
  %4286 = vmatpush1.msra.mxu0 0.0
  %4287 = vmatprep.subr.mxu0 0.0
  %4288 = vmatpush1.msra.mxu0 0.0
  %4289 = vmatprep.subr.mxu0 0.0
  %4290 = vmatpush1.msra.mxu0 0.0
  %4291 = vmatprep.subr.mxu0 0.0
  %4292 = vmatpush1.msra.mxu0 0.0
  %4293 = vmatprep.subr.mxu0 0.0
  %4294 = vmatpush1.msra.mxu0 0.0
  %4295 = vmatprep.subr.mxu0 0.0
  %4296 = vmatpush1.msra.mxu0 0.0
  %4297 = vmatprep.subr.mxu0 0.0
  %4298 = vmatpush1.msra.mxu0 0.0
  %4299 = vmatprep.subr.mxu0 0.0
  %4300 = vmatpush1.msra.mxu0 0.0
  %4301 = vmatprep.subr.mxu0 0.0
  %4302 = vmatpush1.msra.mxu0 0.0
  %4303 = vmatprep.subr.mxu0 0.0
  %4304 = vmatpush1.msra.mxu0 0.0
  %4305 = vmatprep.subr.mxu0 0.0
  %4306 = vmatpush1.msra.mxu0 0.0
  %4307 = vmatprep.subr.mxu0 0.0
  %4308 = vmatpush1.msra.mxu0 0.0
  %4309 = vmatprep.mubr.f32.mxu0 0.0
  %4310 = vmatmul.mubr.f32.gmra.mrb[0].mxu0 %v4243
  %v4311 = vpop.f32.mrb[0].mxu0
  %v4312 = vadd.f32 0.0, %v4311
  %v4313 = vpop.f32.mrb[0].mxu0
  %4314 = vdwg.mxu0
  %v4316 = vsel %vm2575, %v2915, 0
  %4318 = vmatprep.subr.mxu0 0.0
  %4319 = vmatpush1.msra.mxu0 %v129
  %4320 = vmatprep.subr.mxu0 0.0
  %4321 = vmatpush1.msra.mxu0 0.0
  %4322 = vmatprep.subr.mxu0 0.0
  %4323 = vmatpush1.msra.mxu0 0.0
  %4324 = vmatprep.subr.mxu0 0.0
  %4325 = vmatpush1.msra.mxu0 0.0
  %4326 = vmatprep.subr.mxu0 0.0
  %4327 = vmatpush1.msra.mxu0 0.0
  %4328 = vmatprep.subr.mxu0 0.0
  %4329 = vmatpush1.msra.mxu0 0.0
  %4330 = vmatprep.subr.mxu0 0.0
  %4331 = vmatpush1.msra.mxu0 0.0
  %4332 = vmatprep.subr.mxu0 0.0
  %4333 = vmatpush1.msra.mxu0 0.0
  %4334 = vmatprep.subr.mxu0 0.0
  %4335 = vmatpush1.msra.mxu0 0.0
  %4336 = vmatprep.subr.mxu0 0.0
  %4337 = vmatpush1.msra.mxu0 0.0
  %4338 = vmatprep.subr.mxu0 0.0
  %4339 = vmatpush1.msra.mxu0 0.0
  %4340 = vmatprep.subr.mxu0 0.0
  %4341 = vmatpush1.msra.mxu0 0.0
  %4342 = vmatprep.subr.mxu0 0.0
  %4343 = vmatpush1.msra.mxu0 0.0
  %4344 = vmatprep.subr.mxu0 0.0
  %4345 = vmatpush1.msra.mxu0 0.0
  %4346 = vmatprep.subr.mxu0 0.0
  %4347 = vmatpush1.msra.mxu0 0.0
  %4348 = vmatprep.subr.mxu0 0.0
  %4349 = vmatpush1.msra.mxu0 0.0
  %4350 = vmatprep.subr.mxu0 0.0
  %4351 = vmatpush1.msra.mxu0 0.0
  %4352 = vmatprep.subr.mxu0 0.0
  %4353 = vmatpush1.msra.mxu0 0.0
  %4354 = vmatprep.subr.mxu0 0.0
  %4355 = vmatpush1.msra.mxu0 0.0
  %4356 = vmatprep.subr.mxu0 0.0
  %4357 = vmatpush1.msra.mxu0 0.0
  %4358 = vmatprep.subr.mxu0 0.0
  %4359 = vmatpush1.msra.mxu0 0.0
  %4360 = vmatprep.subr.mxu0 0.0
  %4361 = vmatpush1.msra.mxu0 0.0
  %4362 = vmatprep.subr.mxu0 0.0
  %4363 = vmatpush1.msra.mxu0 0.0
  %4364 = vmatprep.subr.mxu0 0.0
  %4365 = vmatpush1.msra.mxu0 0.0
  %4366 = vmatprep.subr.mxu0 0.0
  %4367 = vmatpush1.msra.mxu0 0.0
  %4368 = vmatprep.subr.mxu0 0.0
  %4369 = vmatpush1.msra.mxu0 0.0
  %4370 = vmatprep.subr.mxu0 0.0
  %4371 = vmatpush1.msra.mxu0 0.0
  %4372 = vmatprep.subr.mxu0 0.0
  %4373 = vmatpush1.msra.mxu0 0.0
  %4374 = vmatprep.subr.mxu0 0.0
  %4375 = vmatpush1.msra.mxu0 0.0
  %4376 = vmatprep.subr.mxu0 0.0
  %4377 = vmatpush1.msra.mxu0 0.0
  %4378 = vmatprep.subr.mxu0 0.0
  %4379 = vmatpush1.msra.mxu0 0.0
  %4380 = vmatprep.subr.mxu0 0.0
  %4381 = vmatpush1.msra.mxu0 0.0
  %4382 = vmatprep.mubr.f32.mxu0 0.0
  %4383 = vmatmul.mubr.f32.gmra.mrb[0].mxu0 %v4316
  %v4384 = vpop.f32.mrb[0].mxu0
  %v4385 = vadd.f32 0.0, %v4384
  %v4386 = vpop.f32.mrb[0].mxu0
  %4387 = vdwg.mxu0
  %v4389 = vsel %vm2575, %v2916, 0
  %4391 = vmatprep.subr.mxu0 0.0
  %4392 = vmatpush1.msra.mxu0 %v130
  %4393 = vmatprep.subr.mxu0 0.0
  %4394 = vmatpush1.msra.mxu0 0.0
  %4395 = vmatprep.subr.mxu0 0.0
  %4396 = vmatpush1.msra.mxu0 0.0
  %4397 = vmatprep.subr.mxu0 0.0
  %4398 = vmatpush1.msra.mxu0 0.0
  %4399 = vmatprep.subr.mxu0 0.0
  %4400 = vmatpush1.msra.mxu0 0.0
  %4401 = vmatprep.subr.mxu0 0.0
  %4402 = vmatpush1.msra.mxu0 0.0
  %4403 = vmatprep.subr.mxu0 0.0
  %4404 = vmatpush1.msra.mxu0 0.0
  %4405 = vmatprep.subr.mxu0 0.0
  %4406 = vmatpush1.msra.mxu0 0.0
  %4407 = vmatprep.subr.mxu0 0.0
  %4408 = vmatpush1.msra.mxu0 0.0
  %4409 = vmatprep.subr.mxu0 0.0
  %4410 = vmatpush1.msra.mxu0 0.0
  %4411 = vmatprep.subr.mxu0 0.0
  %4412 = vmatpush1.msra.mxu0 0.0
  %4413 = vmatprep.subr.mxu0 0.0
  %4414 = vmatpush1.msra.mxu0 0.0
  %4415 = vmatprep.subr.mxu0 0.0
  %4416 = vmatpush1.msra.mxu0 0.0
  %4417 = vmatprep.subr.mxu0 0.0
  %4418 = vmatpush1.msra.mxu0 0.0
  %4419 = vmatprep.subr.mxu0 0.0
  %4420 = vmatpush1.msra.mxu0 0.0
  %4421 = vmatprep.subr.mxu0 0.0
  %4422 = vmatpush1.msra.mxu0 0.0
  %4423 = vmatprep.subr.mxu0 0.0
  %4424 = vmatpush1.msra.mxu0 0.0
  %4425 = vmatprep.subr.mxu0 0.0
  %4426 = vmatpush1.msra.mxu0 0.0
  %4427 = vmatprep.subr.mxu0 0.0
  %4428 = vmatpush1.msra.mxu0 0.0
  %4429 = vmatprep.subr.mxu0 0.0
  %4430 = vmatpush1.msra.mxu0 0.0
  %4431 = vmatprep.subr.mxu0 0.0
  %4432 = vmatpush1.msra.mxu0 0.0
  %4433 = vmatprep.subr.mxu0 0.0
  %4434 = vmatpush1.msra.mxu0 0.0
  %4435 = vmatprep.subr.mxu0 0.0
  %4436 = vmatpush1.msra.mxu0 0.0
  %4437 = vmatprep.subr.mxu0 0.0
  %4438 = vmatpush1.msra.mxu0 0.0
  %4439 = vmatprep.subr.mxu0 0.0
  %4440 = vmatpush1.msra.mxu0 0.0
  %4441 = vmatprep.subr.mxu0 0.0
  %4442 = vmatpush1.msra.mxu0 0.0
  %4443 = vmatprep.subr.mxu0 0.0
  %4444 = vmatpush1.msra.mxu0 0.0
  %4445 = vmatprep.subr.mxu0 0.0
  %4446 = vmatpush1.msra.mxu0 0.0
  %4447 = vmatprep.subr.mxu0 0.0
  %4448 = vmatpush1.msra.mxu0 0.0
  %4449 = vmatprep.subr.mxu0 0.0
  %4450 = vmatpush1.msra.mxu0 0.0
  %4451 = vmatprep.subr.mxu0 0.0
  %4452 = vmatpush1.msra.mxu0 0.0
  %4453 = vmatprep.subr.mxu0 0.0
  %4454 = vmatpush1.msra.mxu0 0.0
  %4455 = vmatprep.mubr.f32.mxu0 0.0
  %4456 = vmatmul.mubr.f32.gmra.mrb[0].mxu0 %v4389
  %v4457 = vpop.f32.mrb[0].mxu0
  %v4458 = vadd.f32 0.0, %v4457
  %v4459 = vpop.f32.mrb[0].mxu0
  %4460 = vdwg.mxu0
  %v4462 = vsel %vm2575, %v2917, 0
  %4464 = vmatprep.subr.mxu0 0.0
  %4465 = vmatpush1.msra.mxu0 %v131
  %4466 = vmatprep.subr.mxu0 0.0
  %4467 = vmatpush1.msra.mxu0 0.0
  %4468 = vmatprep.subr.mxu0 0.0
  %4469 = vmatpush1.msra.mxu0 0.0
  %4470 = vmatprep.subr.mxu0 0.0
  %4471 = vmatpush1.msra.mxu0 0.0
  %4472 = vmatprep.subr.mxu0 0.0
  %4473 = vmatpush1.msra.mxu0 0.0
  %4474 = vmatprep.subr.mxu0 0.0
  %4475 = vmatpush1.msra.mxu0 0.0
  %4476 = vmatprep.subr.mxu0 0.0
  %4477 = vmatpush1.msra.mxu0 0.0
  %4478 = vmatprep.subr.mxu0 0.0
  %4479 = vmatpush1.msra.mxu0 0.0
  %4480 = vmatprep.subr.mxu0 0.0
  %4481 = vmatpush1.msra.mxu0 0.0
  %4482 = vmatprep.subr.mxu0 0.0
  %4483 = vmatpush1.msra.mxu0 0.0
  %4484 = vmatprep.subr.mxu0 0.0
  %4485 = vmatpush1.msra.mxu0 0.0
  %4486 = vmatprep.subr.mxu0 0.0
  %4487 = vmatpush1.msra.mxu0 0.0
  %4488 = vmatprep.subr.mxu0 0.0
  %4489 = vmatpush1.msra.mxu0 0.0
  %4490 = vmatprep.subr.mxu0 0.0
  %4491 = vmatpush1.msra.mxu0 0.0
  %4492 = vmatprep.subr.mxu0 0.0
  %4493 = vmatpush1.msra.mxu0 0.0
  %4494 = vmatprep.subr.mxu0 0.0
  %4495 = vmatpush1.msra.mxu0 0.0
  %4496 = vmatprep.subr.mxu0 0.0
  %4497 = vmatpush1.msra.mxu0 0.0
  %4498 = vmatprep.subr.mxu0 0.0
  %4499 = vmatpush1.msra.mxu0 0.0
  %4500 = vmatprep.subr.mxu0 0.0
  %4501 = vmatpush1.msra.mxu0 0.0
  %4502 = vmatprep.subr.mxu0 0.0
  %4503 = vmatpush1.msra.mxu0 0.0
  %4504 = vmatprep.subr.mxu0 0.0
  %4505 = vmatpush1.msra.mxu0 0.0
  %4506 = vmatprep.subr.mxu0 0.0
  %4507 = vmatpush1.msra.mxu0 0.0
  %4508 = vmatprep.subr.mxu0 0.0
  %4509 = vmatpush1.msra.mxu0 0.0
  %4510 = vmatprep.subr.mxu0 0.0
  %4511 = vmatpush1.msra.mxu0 0.0
  %4512 = vmatprep.subr.mxu0 0.0
  %4513 = vmatpush1.msra.mxu0 0.0
  %4514 = vmatprep.subr.mxu0 0.0
  %4515 = vmatpush1.msra.mxu0 0.0
  %4516 = vmatprep.subr.mxu0 0.0
  %4517 = vmatpush1.msra.mxu0 0.0
  %4518 = vmatprep.subr.mxu0 0.0
  %4519 = vmatpush1.msra.mxu0 0.0
  %4520 = vmatprep.subr.mxu0 0.0
  %4521 = vmatpush1.msra.mxu0 0.0
  %4522 = vmatprep.subr.mxu0 0.0
  %4523 = vmatpush1.msra.mxu0 0.0
  %4524 = vmatprep.subr.mxu0 0.0
  %4525 = vmatpush1.msra.mxu0 0.0
  %4526 = vmatprep.subr.mxu0 0.0
  %4527 = vmatpush1.msra.mxu0 0.0
  %4528 = vmatprep.mubr.f32.mxu0 0.0
  %4529 = vmatmul.mubr.f32.gmra.mrb[0].mxu0 %v4462
  %v4530 = vpop.f32.mrb[0].mxu0
  %v4531 = vadd.f32 0.0, %v4530
  %v4532 = vpop.f32.mrb[0].mxu0
  %4533 = vdwg.mxu0
  %v4535 = vsel %vm2575, %v2918, 0
  %4537 = vmatprep.subr.mxu0 0.0
  %4538 = vmatpush1.msra.mxu0 %v132
  %4539 = vmatprep.subr.mxu0 0.0
  %4540 = vmatpush1.msra.mxu0 0.0
  %4541 = vmatprep.subr.mxu0 0.0
  %4542 = vmatpush1.msra.mxu0 0.0
  %4543 = vmatprep.subr.mxu0 0.0
  %4544 = vmatpush1.msra.mxu0 0.0
  %4545 = vmatprep.subr.mxu0 0.0
  %4546 = vmatpush1.msra.mxu0 0.0
  %4547 = vmatprep.subr.mxu0 0.0
  %4548 = vmatpush1.msra.mxu0 0.0
  %4549 = vmatprep.subr.mxu0 0.0
  %4550 = vmatpush1.msra.mxu0 0.0
  %4551 = vmatprep.subr.mxu0 0.0
  %4552 = vmatpush1.msra.mxu0 0.0
  %4553 = vmatprep.subr.mxu0 0.0
  %4554 = vmatpush1.msra.mxu0 0.0
  %4555 = vmatprep.subr.mxu0 0.0
  %4556 = vmatpush1.msra.mxu0 0.0
  %4557 = vmatprep.subr.mxu0 0.0
  %4558 = vmatpush1.msra.mxu0 0.0
  %4559 = vmatprep.subr.mxu0 0.0
  %4560 = vmatpush1.msra.mxu0 0.0
  %4561 = vmatprep.subr.mxu0 0.0
  %4562 = vmatpush1.msra.mxu0 0.0
  %4563 = vmatprep.subr.mxu0 0.0
  %4564 = vmatpush1.msra.mxu0 0.0
  %4565 = vmatprep.subr.mxu0 0.0
  %4566 = vmatpush1.msra.mxu0 0.0
  %4567 = vmatprep.subr.mxu0 0.0
  %4568 = vmatpush1.msra.mxu0 0.0
  %4569 = vmatprep.subr.mxu0 0.0
  %4570 = vmatpush1.msra.mxu0 0.0
  %4571 = vmatprep.subr.mxu0 0.0
  %4572 = vmatpush1.msra.mxu0 0.0
  %4573 = vmatprep.subr.mxu0 0.0
  %4574 = vmatpush1.msra.mxu0 0.0
  %4575 = vmatprep.subr.mxu0 0.0
  %4576 = vmatpush1.msra.mxu0 0.0
  %4577 = vmatprep.subr.mxu0 0.0
  %4578 = vmatpush1.msra.mxu0 0.0
  %4579 = vmatprep.subr.mxu0 0.0
  %4580 = vmatpush1.msra.mxu0 0.0
  %4581 = vmatprep.subr.mxu0 0.0
  %4582 = vmatpush1.msra.mxu0 0.0
  %4583 = vmatprep.subr.mxu0 0.0
  %4584 = vmatpush1.msra.mxu0 0.0
  %4585 = vmatprep.subr.mxu0 0.0
  %4586 = vmatpush1.msra.mxu0 0.0
  %4587 = vmatprep.subr.mxu0 0.0
  %4588 = vmatpush1.msra.mxu0 0.0
  %4589 = vmatprep.subr.mxu0 0.0
  %4590 = vmatpush1.msra.mxu0 0.0
  %4591 = vmatprep.subr.mxu0 0.0
  %4592 = vmatpush1.msra.mxu0 0.0
  %4593 = vmatprep.subr.mxu0 0.0
  %4594 = vmatpush1.msra.mxu0 0.0
  %4595 = vmatprep.subr.mxu0 0.0
  %4596 = vmatpush1.msra.mxu0 0.0
  %4597 = vmatprep.subr.mxu0 0.0
  %4598 = vmatpush1.msra.mxu0 0.0
  %4599 = vmatprep.subr.mxu0 0.0
  %4600 = vmatpush1.msra.mxu0 0.0
  %4601 = vmatprep.mubr.f32.mxu0 0.0
  %4602 = vmatmul.mubr.f32.gmra.mrb[0].mxu0 %v4535
  %v4603 = vpop.f32.mrb[0].mxu0
  %v4604 = vadd.f32 0.0, %v4603
  %v4605 = vpop.f32.mrb[0].mxu0
  %4606 = vdwg.mxu0
  %v4608 = vsel %vm2575, %v2919, 0
  %4610 = vmatprep.subr.mxu0 0.0
  %4611 = vmatpush1.msra.mxu0 %v133
  %4612 = vmatprep.subr.mxu0 0.0
  %4613 = vmatpush1.msra.mxu0 0.0
  %4614 = vmatprep.subr.mxu0 0.0
  %4615 = vmatpush1.msra.mxu0 0.0
  %4616 = vmatprep.subr.mxu0 0.0
  %4617 = vmatpush1.msra.mxu0 0.0
  %4618 = vmatprep.subr.mxu0 0.0
  %4619 = vmatpush1.msra.mxu0 0.0
  %4620 = vmatprep.subr.mxu0 0.0
  %4621 = vmatpush1.msra.mxu0 0.0
  %4622 = vmatprep.subr.mxu0 0.0
  %4623 = vmatpush1.msra.mxu0 0.0
  %4624 = vmatprep.subr.mxu0 0.0
  %4625 = vmatpush1.msra.mxu0 0.0
  %4626 = vmatprep.subr.mxu0 0.0
  %4627 = vmatpush1.msra.mxu0 0.0
  %4628 = vmatprep.subr.mxu0 0.0
  %4629 = vmatpush1.msra.mxu0 0.0
  %4630 = vmatprep.subr.mxu0 0.0
  %4631 = vmatpush1.msra.mxu0 0.0
  %4632 = vmatprep.subr.mxu0 0.0
  %4633 = vmatpush1.msra.mxu0 0.0
  %4634 = vmatprep.subr.mxu0 0.0
  %4635 = vmatpush1.msra.mxu0 0.0
  %4636 = vmatprep.subr.mxu0 0.0
  %4637 = vmatpush1.msra.mxu0 0.0
  %4638 = vmatprep.subr.mxu0 0.0
  %4639 = vmatpush1.msra.mxu0 0.0
  %4640 = vmatprep.subr.mxu0 0.0
  %4641 = vmatpush1.msra.mxu0 0.0
  %4642 = vmatprep.subr.mxu0 0.0
  %4643 = vmatpush1.msra.mxu0 0.0
  %4644 = vmatprep.subr.mxu0 0.0
  %4645 = vmatpush1.msra.mxu0 0.0
  %4646 = vmatprep.subr.mxu0 0.0
  %4647 = vmatpush1.msra.mxu0 0.0
  %4648 = vmatprep.subr.mxu0 0.0
  %4649 = vmatpush1.msra.mxu0 0.0
  %4650 = vmatprep.subr.mxu0 0.0
  %4651 = vmatpush1.msra.mxu0 0.0
  %4652 = vmatprep.subr.mxu0 0.0
  %4653 = vmatpush1.msra.mxu0 0.0
  %4654 = vmatprep.subr.mxu0 0.0
  %4655 = vmatpush1.msra.mxu0 0.0
  %4656 = vmatprep.subr.mxu0 0.0
  %4657 = vmatpush1.msra.mxu0 0.0
  %4658 = vmatprep.subr.mxu0 0.0
  %4659 = vmatpush1.msra.mxu0 0.0
  %4660 = vmatprep.subr.mxu0 0.0
  %4661 = vmatpush1.msra.mxu0 0.0
  %4662 = vmatprep.subr.mxu0 0.0
  %4663 = vmatpush1.msra.mxu0 0.0
  %4664 = vmatprep.subr.mxu0 0.0
  %4665 = vmatpush1.msra.mxu0 0.0
  %4666 = vmatprep.subr.mxu0 0.0
  %4667 = vmatpush1.msra.mxu0 0.0
  %4668 = vmatprep.subr.mxu0 0.0
  %4669 = vmatpush1.msra.mxu0 0.0
  %4670 = vmatprep.subr.mxu0 0.0
  %4671 = vmatpush1.msra.mxu0 0.0
  %4672 = vmatprep.subr.mxu0 0.0
  %4673 = vmatpush1.msra.mxu0 0.0
  %4674 = vmatprep.mubr.f32.mxu0 0.0
  %4675 = vmatmul.mubr.f32.gmra.mrb[0].mxu0 %v4608
  %v4676 = vpop.f32.mrb[0].mxu0
  %v4677 = vadd.f32 0.0, %v4676
  %v4678 = vpop.f32.mrb[0].mxu0
  %4679 = vdwg.mxu0
  %v4681 = vsel %vm2575, %v2920, 0
  %4683 = vmatprep.subr.mxu0 0.0
  %4684 = vmatpush1.msra.mxu0 %v134
  %4685 = vmatprep.subr.mxu0 0.0
  %4686 = vmatpush1.msra.mxu0 0.0
  %4687 = vmatprep.subr.mxu0 0.0
  %4688 = vmatpush1.msra.mxu0 0.0
  %4689 = vmatprep.subr.mxu0 0.0
  %4690 = vmatpush1.msra.mxu0 0.0
  %4691 = vmatprep.subr.mxu0 0.0
  %4692 = vmatpush1.msra.mxu0 0.0
  %4693 = vmatprep.subr.mxu0 0.0
  %4694 = vmatpush1.msra.mxu0 0.0
  %4695 = vmatprep.subr.mxu0 0.0
  %4696 = vmatpush1.msra.mxu0 0.0
  %4697 = vmatprep.subr.mxu0 0.0
  %4698 = vmatpush1.msra.mxu0 0.0
  %4699 = vmatprep.subr.mxu0 0.0
  %4700 = vmatpush1.msra.mxu0 0.0
  %4701 = vmatprep.subr.mxu0 0.0
  %4702 = vmatpush1.msra.mxu0 0.0
  %4703 = vmatprep.subr.mxu0 0.0
  %4704 = vmatpush1.msra.mxu0 0.0
  %4705 = vmatprep.subr.mxu0 0.0
  %4706 = vmatpush1.msra.mxu0 0.0
  %4707 = vmatprep.subr.mxu0 0.0
  %4708 = vmatpush1.msra.mxu0 0.0
  %4709 = vmatprep.subr.mxu0 0.0
  %4710 = vmatpush1.msra.mxu0 0.0
  %4711 = vmatprep.subr.mxu0 0.0
  %4712 = vmatpush1.msra.mxu0 0.0
  %4713 = vmatprep.subr.mxu0 0.0
  %4714 = vmatpush1.msra.mxu0 0.0
  %4715 = vmatprep.subr.mxu0 0.0
  %4716 = vmatpush1.msra.mxu0 0.0
  %4717 = vmatprep.subr.mxu0 0.0
  %4718 = vmatpush1.msra.mxu0 0.0
  %4719 = vmatprep.subr.mxu0 0.0
  %4720 = vmatpush1.msra.mxu0 0.0
  %4721 = vmatprep.subr.mxu0 0.0
  %4722 = vmatpush1.msra.mxu0 0.0
  %4723 = vmatprep.subr.mxu0 0.0
  %4724 = vmatpush1.msra.mxu0 0.0
  %4725 = vmatprep.subr.mxu0 0.0
  %4726 = vmatpush1.msra.mxu0 0.0
  %4727 = vmatprep.subr.mxu0 0.0
  %4728 = vmatpush1.msra.mxu0 0.0
  %4729 = vmatprep.subr.mxu0 0.0
  %4730 = vmatpush1.msra.mxu0 0.0
  %4731 = vmatprep.subr.mxu0 0.0
  %4732 = vmatpush1.msra.mxu0 0.0
  %4733 = vmatprep.subr.mxu0 0.0
  %4734 = vmatpush1.msra.mxu0 0.0
  %4735 = vmatprep.subr.mxu0 0.0
  %4736 = vmatpush1.msra.mxu0 0.0
  %4737 = vmatprep.subr.mxu0 0.0
  %4738 = vmatpush1.msra.mxu0 0.0
  %4739 = vmatprep.subr.mxu0 0.0
  %4740 = vmatpush1.msra.mxu0 0.0
  %4741 = vmatprep.subr.mxu0 0.0
  %4742 = vmatpush1.msra.mxu0 0.0
  %4743 = vmatprep.subr.mxu0 0.0
  %4744 = vmatpush1.msra.mxu0 0.0
  %4745 = vmatprep.subr.mxu0 0.0
  %4746 = vmatpush1.msra.mxu0 0.0
  %4747 = vmatprep.mubr.f32.mxu0 0.0
  %4748 = vmatmul.mubr.f32.gmra.mrb[0].mxu0 %v4681
  %v4749 = vpop.f32.mrb[0].mxu0
  %v4750 = vadd.f32 0.0, %v4749
  %v4751 = vpop.f32.mrb[0].mxu0
  %4752 = vdwg.mxu0
  %v4754 = vsel %vm2575, %v2921, 0
  %4756 = vmatprep.subr.mxu0 0.0
  %4757 = vmatpush1.msra.mxu0 %v135
  %4758 = vmatprep.subr.mxu0 0.0
  %4759 = vmatpush1.msra.mxu0 0.0
  %4760 = vmatprep.subr.mxu0 0.0
  %4761 = vmatpush1.msra.mxu0 0.0
  %4762 = vmatprep.subr.mxu0 0.0
  %4763 = vmatpush1.msra.mxu0 0.0
  %4764 = vmatprep.subr.mxu0 0.0
  %4765 = vmatpush1.msra.mxu0 0.0
  %4766 = vmatprep.subr.mxu0 0.0
  %4767 = vmatpush1.msra.mxu0 0.0
  %4768 = vmatprep.subr.mxu0 0.0
  %4769 = vmatpush1.msra.mxu0 0.0
  %4770 = vmatprep.subr.mxu0 0.0
  %4771 = vmatpush1.msra.mxu0 0.0
  %4772 = vmatprep.subr.mxu0 0.0
  %4773 = vmatpush1.msra.mxu0 0.0
  %4774 = vmatprep.subr.mxu0 0.0
  %4775 = vmatpush1.msra.mxu0 0.0
  %4776 = vmatprep.subr.mxu0 0.0
  %4777 = vmatpush1.msra.mxu0 0.0
  %4778 = vmatprep.subr.mxu0 0.0
  %4779 = vmatpush1.msra.mxu0 0.0
  %4780 = vmatprep.subr.mxu0 0.0
  %4781 = vmatpush1.msra.mxu0 0.0
  %4782 = vmatprep.subr.mxu0 0.0
  %4783 = vmatpush1.msra.mxu0 0.0
  %4784 = vmatprep.subr.mxu0 0.0
  %4785 = vmatpush1.msra.mxu0 0.0
  %4786 = vmatprep.subr.mxu0 0.0
  %4787 = vmatpush1.msra.mxu0 0.0
  %4788 = vmatprep.subr.mxu0 0.0
  %4789 = vmatpush1.msra.mxu0 0.0
  %4790 = vmatprep.subr.mxu0 0.0
  %4791 = vmatpush1.msra.mxu0 0.0
  %4792 = vmatprep.subr.mxu0 0.0
  %4793 = vmatpush1.msra.mxu0 0.0
  %4794 = vmatprep.subr.mxu0 0.0
  %4795 = vmatpush1.msra.mxu0 0.0
  %4796 = vmatprep.subr.mxu0 0.0
  %4797 = vmatpush1.msra.mxu0 0.0
  %4798 = vmatprep.subr.mxu0 0.0
  %4799 = vmatpush1.msra.mxu0 0.0
  %4800 = vmatprep.subr.mxu0 0.0
  %4801 = vmatpush1.msra.mxu0 0.0
  %4802 = vmatprep.subr.mxu0 0.0
  %4803 = vmatpush1.msra.mxu0 0.0
  %4804 = vmatprep.subr.mxu0 0.0
  %4805 = vmatpush1.msra.mxu0 0.0
  %4806 = vmatprep.subr.mxu0 0.0
  %4807 = vmatpush1.msra.mxu0 0.0
  %4808 = vmatprep.subr.mxu0 0.0
  %4809 = vmatpush1.msra.mxu0 0.0
  %4810 = vmatprep.subr.mxu0 0.0
  %4811 = vmatpush1.msra.mxu0 0.0
  %4812 = vmatprep.subr.mxu0 0.0
  %4813 = vmatpush1.msra.mxu0 0.0
  %4814 = vmatprep.subr.mxu0 0.0
  %4815 = vmatpush1.msra.mxu0 0.0
  %4816 = vmatprep.subr.mxu0 0.0
  %4817 = vmatpush1.msra.mxu0 0.0
  %4818 = vmatprep.subr.mxu0 0.0
  %4819 = vmatpush1.msra.mxu0 0.0
  %4820 = vmatprep.mubr.f32.mxu0 0.0
  %4821 = vmatmul.mubr.f32.gmra.mrb[0].mxu0 %v4754
  %v4822 = vpop.f32.mrb[0].mxu0
  %v4823 = vadd.f32 0.0, %v4822
  %v4824 = vpop.f32.mrb[0].mxu0
  %4825 = vdwg.mxu0
  %v4827 = vsel %vm2575, %v2922, 0
  %4829 = vmatprep.subr.mxu0 0.0
  %4830 = vmatpush1.msra.mxu0 %v136
  %4831 = vmatprep.subr.mxu0 0.0
  %4832 = vmatpush1.msra.mxu0 0.0
  %4833 = vmatprep.subr.mxu0 0.0
  %4834 = vmatpush1.msra.mxu0 0.0
  %4835 = vmatprep.subr.mxu0 0.0
  %4836 = vmatpush1.msra.mxu0 0.0
  %4837 = vmatprep.subr.mxu0 0.0
  %4838 = vmatpush1.msra.mxu0 0.0
  %4839 = vmatprep.subr.mxu0 0.0
  %4840 = vmatpush1.msra.mxu0 0.0
  %4841 = vmatprep.subr.mxu0 0.0
  %4842 = vmatpush1.msra.mxu0 0.0
  %4843 = vmatprep.subr.mxu0 0.0
  %4844 = vmatpush1.msra.mxu0 0.0
  %4845 = vmatprep.subr.mxu0 0.0
  %4846 = vmatpush1.msra.mxu0 0.0
  %4847 = vmatprep.subr.mxu0 0.0
  %4848 = vmatpush1.msra.mxu0 0.0
  %4849 = vmatprep.subr.mxu0 0.0
  %4850 = vmatpush1.msra.mxu0 0.0
  %4851 = vmatprep.subr.mxu0 0.0
  %4852 = vmatpush1.msra.mxu0 0.0
  %4853 = vmatprep.subr.mxu0 0.0
  %4854 = vmatpush1.msra.mxu0 0.0
  %4855 = vmatprep.subr.mxu0 0.0
  %4856 = vmatpush1.msra.mxu0 0.0
  %4857 = vmatprep.subr.mxu0 0.0
  %4858 = vmatpush1.msra.mxu0 0.0
  %4859 = vmatprep.subr.mxu0 0.0
  %4860 = vmatpush1.msra.mxu0 0.0
  %4861 = vmatprep.subr.mxu0 0.0
  %4862 = vmatpush1.msra.mxu0 0.0
  %4863 = vmatprep.subr.mxu0 0.0
  %4864 = vmatpush1.msra.mxu0 0.0
  %4865 = vmatprep.subr.mxu0 0.0
  %4866 = vmatpush1.msra.mxu0 0.0
  %4867 = vmatprep.subr.mxu0 0.0
  %4868 = vmatpush1.msra.mxu0 0.0
  %4869 = vmatprep.subr.mxu0 0.0
  %4870 = vmatpush1.msra.mxu0 0.0
  %4871 = vmatprep.subr.mxu0 0.0
  %4872 = vmatpush1.msra.mxu0 0.0
  %4873 = vmatprep.subr.mxu0 0.0
  %4874 = vmatpush1.msra.mxu0 0.0
  %4875 = vmatprep.subr.mxu0 0.0
  %4876 = vmatpush1.msra.mxu0 0.0
  %4877 = vmatprep.subr.mxu0 0.0
  %4878 = vmatpush1.msra.mxu0 0.0
  %4879 = vmatprep.subr.mxu0 0.0
  %4880 = vmatpush1.msra.mxu0 0.0
  %4881 = vmatprep.subr.mxu0 0.0
  %4882 = vmatpush1.msra.mxu0 0.0
  %4883 = vmatprep.subr.mxu0 0.0
  %4884 = vmatpush1.msra.mxu0 0.0
  %4885 = vmatprep.subr.mxu0 0.0
  %4886 = vmatpush1.msra.mxu0 0.0
  %4887 = vmatprep.subr.mxu0 0.0
  %4888 = vmatpush1.msra.mxu0 0.0
  %4889 = vmatprep.subr.mxu0 0.0
  %4890 = vmatpush1.msra.mxu0 0.0
  %4891 = vmatprep.subr.mxu0 0.0
  %4892 = vmatpush1.msra.mxu0 0.0
  %4893 = vmatprep.mubr.f32.mxu0 0.0
  %4894 = vmatmul.mubr.f32.gmra.mrb[0].mxu0 %v4827
  %v4895 = vpop.f32.mrb[0].mxu0
  %v4896 = vadd.f32 0.0, %v4895
  %v4897 = vpop.f32.mrb[0].mxu0
  %4898 = vdwg.mxu0
  %v4900 = vsel %vm2575, %v2923, 0
  %4902 = vmatprep.subr.mxu0 0.0
  %4903 = vmatpush1.msra.mxu0 %v137
  %4904 = vmatprep.subr.mxu0 0.0
  %4905 = vmatpush1.msra.mxu0 0.0
  %4906 = vmatprep.subr.mxu0 0.0
  %4907 = vmatpush1.msra.mxu0 0.0
  %4908 = vmatprep.subr.mxu0 0.0
  %4909 = vmatpush1.msra.mxu0 0.0
  %4910 = vmatprep.subr.mxu0 0.0
  %4911 = vmatpush1.msra.mxu0 0.0
  %4912 = vmatprep.subr.mxu0 0.0
  %4913 = vmatpush1.msra.mxu0 0.0
  %4914 = vmatprep.subr.mxu0 0.0
  %4915 = vmatpush1.msra.mxu0 0.0
  %4916 = vmatprep.subr.mxu0 0.0
  %4917 = vmatpush1.msra.mxu0 0.0
  %4918 = vmatprep.subr.mxu0 0.0
  %4919 = vmatpush1.msra.mxu0 0.0
  %4920 = vmatprep.subr.mxu0 0.0
  %4921 = vmatpush1.msra.mxu0 0.0
  %4922 = vmatprep.subr.mxu0 0.0
  %4923 = vmatpush1.msra.mxu0 0.0
  %4924 = vmatprep.subr.mxu0 0.0
  %4925 = vmatpush1.msra.mxu0 0.0
  %4926 = vmatprep.subr.mxu0 0.0
  %4927 = vmatpush1.msra.mxu0 0.0
  %4928 = vmatprep.subr.mxu0 0.0
  %4929 = vmatpush1.msra.mxu0 0.0
  %4930 = vmatprep.subr.mxu0 0.0
  %4931 = vmatpush1.msra.mxu0 0.0
  %4932 = vmatprep.subr.mxu0 0.0
  %4933 = vmatpush1.msra.mxu0 0.0
  %4934 = vmatprep.subr.mxu0 0.0
  %4935 = vmatpush1.msra.mxu0 0.0
  %4936 = vmatprep.subr.mxu0 0.0
  %4937 = vmatpush1.msra.mxu0 0.0
  %4938 = vmatprep.subr.mxu0 0.0
  %4939 = vmatpush1.msra.mxu0 0.0
  %4940 = vmatprep.subr.mxu0 0.0
  %4941 = vmatpush1.msra.mxu0 0.0
  %4942 = vmatprep.subr.mxu0 0.0
  %4943 = vmatpush1.msra.mxu0 0.0
  %4944 = vmatprep.subr.mxu0 0.0
  %4945 = vmatpush1.msra.mxu0 0.0
  %4946 = vmatprep.subr.mxu0 0.0
  %4947 = vmatpush1.msra.mxu0 0.0
  %4948 = vmatprep.subr.mxu0 0.0
  %4949 = vmatpush1.msra.mxu0 0.0
  %4950 = vmatprep.subr.mxu0 0.0
  %4951 = vmatpush1.msra.mxu0 0.0
  %4952 = vmatprep.subr.mxu0 0.0
  %4953 = vmatpush1.msra.mxu0 0.0
  %4954 = vmatprep.subr.mxu0 0.0
  %4955 = vmatpush1.msra.mxu0 0.0
  %4956 = vmatprep.subr.mxu0 0.0
  %4957 = vmatpush1.msra.mxu0 0.0
  %4958 = vmatprep.subr.mxu0 0.0
  %4959 = vmatpush1.msra.mxu0 0.0
  %4960 = vmatprep.subr.mxu0 0.0
  %4961 = vmatpush1.msra.mxu0 0.0
  %4962 = vmatprep.subr.mxu0 0.0
  %4963 = vmatpush1.msra.mxu0 0.0
  %4964 = vmatprep.subr.mxu0 0.0
  %4965 = vmatpush1.msra.mxu0 0.0
  %4966 = vmatprep.mubr.f32.mxu0 0.0
  %4967 = vmatmul.mubr.f32.gmra.mrb[0].mxu0 %v4900
  %v4968 = vpop.f32.mrb[0].mxu0
  %v4969 = vadd.f32 0.0, %v4968
  %v4970 = vpop.f32.mrb[0].mxu0
  %4971 = vdwg.mxu0
  %v4973 = vsel %vm2575, %v2924, 0
  %4975 = vmatprep.subr.mxu0 0.0
  %4976 = vmatpush1.msra.mxu0 %v138
  %4977 = vmatprep.subr.mxu0 0.0
  %4978 = vmatpush1.msra.mxu0 0.0
  %4979 = vmatprep.subr.mxu0 0.0
  %4980 = vmatpush1.msra.mxu0 0.0
  %4981 = vmatprep.subr.mxu0 0.0
  %4982 = vmatpush1.msra.mxu0 0.0
  %4983 = vmatprep.subr.mxu0 0.0
  %4984 = vmatpush1.msra.mxu0 0.0
  %4985 = vmatprep.subr.mxu0 0.0
  %4986 = vmatpush1.msra.mxu0 0.0
  %4987 = vmatprep.subr.mxu0 0.0
  %4988 = vmatpush1.msra.mxu0 0.0
  %4989 = vmatprep.subr.mxu0 0.0
  %4990 = vmatpush1.msra.mxu0 0.0
  %4991 = vmatprep.subr.mxu0 0.0
  %4992 = vmatpush1.msra.mxu0 0.0
  %4993 = vmatprep.subr.mxu0 0.0
  %4994 = vmatpush1.msra.mxu0 0.0
  %4995 = vmatprep.subr.mxu0 0.0
  %4996 = vmatpush1.msra.mxu0 0.0
  %4997 = vmatprep.subr.mxu0 0.0
  %4998 = vmatpush1.msra.mxu0 0.0
  %4999 = vmatprep.subr.mxu0 0.0
  %5000 = vmatpush1.msra.mxu0 0.0
  %5001 = vmatprep.subr.mxu0 0.0
  %5002 = vmatpush1.msra.mxu0 0.0
  %5003 = vmatprep.subr.mxu0 0.0
  %5004 = vmatpush1.msra.mxu0 0.0
  %5005 = vmatprep.subr.mxu0 0.0
  %5006 = vmatpush1.msra.mxu0 0.0
  %5007 = vmatprep.subr.mxu0 0.0
  %5008 = vmatpush1.msra.mxu0 0.0
  %5009 = vmatprep.subr.mxu0 0.0
  %5010 = vmatpush1.msra.mxu0 0.0
  %5011 = vmatprep.subr.mxu0 0.0
  %5012 = vmatpush1.msra.mxu0 0.0
  %5013 = vmatprep.subr.mxu0 0.0
  %5014 = vmatpush1.msra.mxu0 0.0
  %5015 = vmatprep.subr.mxu0 0.0
  %5016 = vmatpush1.msra.mxu0 0.0
  %5017 = vmatprep.subr.mxu0 0.0
  %5018 = vmatpush1.msra.mxu0 0.0
  %5019 = vmatprep.subr.mxu0 0.0
  %5020 = vmatpush1.msra.mxu0 0.0
  %5021 = vmatprep.subr.mxu0 0.0
  %5022 = vmatpush1.msra.mxu0 0.0
  %5023 = vmatprep.subr.mxu0 0.0
  %5024 = vmatpush1.msra.mxu0 0.0
  %5025 = vmatprep.subr.mxu0 0.0
  %5026 = vmatpush1.msra.mxu0 0.0
  %5027 = vmatprep.subr.mxu0 0.0
  %5028 = vmatpush1.msra.mxu0 0.0
  %5029 = vmatprep.subr.mxu0 0.0
  %5030 = vmatpush1.msra.mxu0 0.0
  %5031 = vmatprep.subr.mxu0 0.0
  %5032 = vmatpush1.msra.mxu0 0.0
  %5033 = vmatprep.subr.mxu0 0.0
  %5034 = vmatpush1.msra.mxu0 0.0
  %5035 = vmatprep.subr.mxu0 0.0
  %5036 = vmatpush1.msra.mxu0 0.0
  %5037 = vmatprep.subr.mxu0 0.0
  %5038 = vmatpush1.msra.mxu0 0.0
  %5039 = vmatprep.mubr.f32.mxu0 0.0
  %5040 = vmatmul.mubr.f32.gmra.mrb[0].mxu0 %v4973
  %v5041 = vpop.f32.mrb[0].mxu0
  %v5042 = vadd.f32 0.0, %v5041
  %v5043 = vpop.f32.mrb[0].mxu0
  %5044 = vdwg.mxu0
  %v5046 = vsel %vm2575, %v2925, 0
  %5048 = vmatprep.subr.mxu0 0.0
  %5049 = vmatpush1.msra.mxu0 %v139
  %5050 = vmatprep.subr.mxu0 0.0
  %5051 = vmatpush1.msra.mxu0 0.0
  %5052 = vmatprep.subr.mxu0 0.0
  %5053 = vmatpush1.msra.mxu0 0.0
  %5054 = vmatprep.subr.mxu0 0.0
  %5055 = vmatpush1.msra.mxu0 0.0
  %5056 = vmatprep.subr.mxu0 0.0
  %5057 = vmatpush1.msra.mxu0 0.0
  %5058 = vmatprep.subr.mxu0 0.0
  %5059 = vmatpush1.msra.mxu0 0.0
  %5060 = vmatprep.subr.mxu0 0.0
  %5061 = vmatpush1.msra.mxu0 0.0
  %5062 = vmatprep.subr.mxu0 0.0
  %5063 = vmatpush1.msra.mxu0 0.0
  %5064 = vmatprep.subr.mxu0 0.0
  %5065 = vmatpush1.msra.mxu0 0.0
  %5066 = vmatprep.subr.mxu0 0.0
  %5067 = vmatpush1.msra.mxu0 0.0
  %5068 = vmatprep.subr.mxu0 0.0
  %5069 = vmatpush1.msra.mxu0 0.0
  %5070 = vmatprep.subr.mxu0 0.0
  %5071 = vmatpush1.msra.mxu0 0.0
  %5072 = vmatprep.subr.mxu0 0.0
  %5073 = vmatpush1.msra.mxu0 0.0
  %5074 = vmatprep.subr.mxu0 0.0
  %5075 = vmatpush1.msra.mxu0 0.0
  %5076 = vmatprep.subr.mxu0 0.0
  %5077 = vmatpush1.msra.mxu0 0.0
  %5078 = vmatprep.subr.mxu0 0.0
  %5079 = vmatpush1.msra.mxu0 0.0
  %5080 = vmatprep.subr.mxu0 0.0
  %5081 = vmatpush1.msra.mxu0 0.0
  %5082 = vmatprep.subr.mxu0 0.0
  %5083 = vmatpush1.msra.mxu0 0.0
  %5084 = vmatprep.subr.mxu0 0.0
  %5085 = vmatpush1.msra.mxu0 0.0
  %5086 = vmatprep.subr.mxu0 0.0
  %5087 = vmatpush1.msra.mxu0 0.0
  %5088 = vmatprep.subr.mxu0 0.0
  %5089 = vmatpush1.msra.mxu0 0.0
  %5090 = vmatprep.subr.mxu0 0.0
  %5091 = vmatpush1.msra.mxu0 0.0
  %5092 = vmatprep.subr.mxu0 0.0
  %5093 = vmatpush1.msra.mxu0 0.0
  %5094 = vmatprep.subr.mxu0 0.0
  %5095 = vmatpush1.msra.mxu0 0.0
  %5096 = vmatprep.subr.mxu0 0.0
  %5097 = vmatpush1.msra.mxu0 0.0
  %5098 = vmatprep.subr.mxu0 0.0
  %5099 = vmatpush1.msra.mxu0 0.0
  %5100 = vmatprep.subr.mxu0 0.0
  %5101 = vmatpush1.msra.mxu0 0.0
  %5102 = vmatprep.subr.mxu0 0.0
  %5103 = vmatpush1.msra.mxu0 0.0
  %5104 = vmatprep.subr.mxu0 0.0
  %5105 = vmatpush1.msra.mxu0 0.0
  %5106 = vmatprep.subr.mxu0 0.0
  %5107 = vmatpush1.msra.mxu0 0.0
  %5108 = vmatprep.subr.mxu0 0.0
  %5109 = vmatpush1.msra.mxu0 0.0
  %5110 = vmatprep.subr.mxu0 0.0
  %5111 = vmatpush1.msra.mxu0 0.0
  %5112 = vmatprep.mubr.f32.mxu0 0.0
  %5113 = vmatmul.mubr.f32.gmra.mrb[0].mxu0 %v5046
  %v5114 = vpop.f32.mrb[0].mxu0
  %v5115 = vadd.f32 0.0, %v5114
  %v5116 = vpop.f32.mrb[0].mxu0
  %5117 = vdwg.mxu0
  %v5119 = vsel %vm2575, %v2926, 0
  %5121 = vmatprep.subr.mxu0 0.0
  %5122 = vmatpush1.msra.mxu0 %v140
  %5123 = vmatprep.subr.mxu0 0.0
  %5124 = vmatpush1.msra.mxu0 0.0
  %5125 = vmatprep.subr.mxu0 0.0
  %5126 = vmatpush1.msra.mxu0 0.0
  %5127 = vmatprep.subr.mxu0 0.0
  %5128 = vmatpush1.msra.mxu0 0.0
  %5129 = vmatprep.subr.mxu0 0.0
  %5130 = vmatpush1.msra.mxu0 0.0
  %5131 = vmatprep.subr.mxu0 0.0
  %5132 = vmatpush1.msra.mxu0 0.0
  %5133 = vmatprep.subr.mxu0 0.0
  %5134 = vmatpush1.msra.mxu0 0.0
  %5135 = vmatprep.subr.mxu0 0.0
  %5136 = vmatpush1.msra.mxu0 0.0
  %5137 = vmatprep.subr.mxu0 0.0
  %5138 = vmatpush1.msra.mxu0 0.0
  %5139 = vmatprep.subr.mxu0 0.0
  %5140 = vmatpush1.msra.mxu0 0.0
  %5141 = vmatprep.subr.mxu0 0.0
  %5142 = vmatpush1.msra.mxu0 0.0
  %5143 = vmatprep.subr.mxu0 0.0
  %5144 = vmatpush1.msra.mxu0 0.0
  %5145 = vmatprep.subr.mxu0 0.0
  %5146 = vmatpush1.msra.mxu0 0.0
  %5147 = vmatprep.subr.mxu0 0.0
  %5148 = vmatpush1.msra.mxu0 0.0
  %5149 = vmatprep.subr.mxu0 0.0
  %5150 = vmatpush1.msra.mxu0 0.0
  %5151 = vmatprep.subr.mxu0 0.0
  %5152 = vmatpush1.msra.mxu0 0.0
  %5153 = vmatprep.subr.mxu0 0.0
  %5154 = vmatpush1.msra.mxu0 0.0
  %5155 = vmatprep.subr.mxu0 0.0
  %5156 = vmatpush1.msra.mxu0 0.0
  %5157 = vmatprep.subr.mxu0 0.0
  %5158 = vmatpush1.msra.mxu0 0.0
  %5159 = vmatprep.subr.mxu0 0.0
  %5160 = vmatpush1.msra.mxu0 0.0
  %5161 = vmatprep.subr.mxu0 0.0
  %5162 = vmatpush1.msra.mxu0 0.0
  %5163 = vmatprep.subr.mxu0 0.0
  %5164 = vmatpush1.msra.mxu0 0.0
  %5165 = vmatprep.subr.mxu0 0.0
  %5166 = vmatpush1.msra.mxu0 0.0
  %5167 = vmatprep.subr.mxu0 0.0
  %5168 = vmatpush1.msra.mxu0 0.0
  %5169 = vmatprep.subr.mxu0 0.0
  %5170 = vmatpush1.msra.mxu0 0.0
  %5171 = vmatprep.subr.mxu0 0.0
  %5172 = vmatpush1.msra.mxu0 0.0
  %5173 = vmatprep.subr.mxu0 0.0
  %5174 = vmatpush1.msra.mxu0 0.0
  %5175 = vmatprep.subr.mxu0 0.0
  %5176 = vmatpush1.msra.mxu0 0.0
  %5177 = vmatprep.subr.mxu0 0.0
  %5178 = vmatpush1.msra.mxu0 0.0
  %5179 = vmatprep.subr.mxu0 0.0
  %5180 = vmatpush1.msra.mxu0 0.0
  %5181 = vmatprep.subr.mxu0 0.0
  %5182 = vmatpush1.msra.mxu0 0.0
  %5183 = vmatprep.subr.mxu0 0.0
  %5184 = vmatpush1.msra.mxu0 0.0
  %5185 = vmatprep.mubr.f32.mxu0 0.0
  %5186 = vmatmul.mubr.f32.gmra.mrb[0].mxu0 %v5119
  %v5187 = vpop.f32.mrb[0].mxu0
  %v5188 = vadd.f32 0.0, %v5187
  %v5189 = vpop.f32.mrb[0].mxu0
  %5190 = vdwg.mxu0
  %v5192 = vsel %vm2575, %v2927, 0
  %5194 = vmatprep.subr.mxu0 0.0
  %5195 = vmatpush1.msra.mxu0 %v141
  %5196 = vmatprep.subr.mxu0 0.0
  %5197 = vmatpush1.msra.mxu0 0.0
  %5198 = vmatprep.subr.mxu0 0.0
  %5199 = vmatpush1.msra.mxu0 0.0
  %5200 = vmatprep.subr.mxu0 0.0
  %5201 = vmatpush1.msra.mxu0 0.0
  %5202 = vmatprep.subr.mxu0 0.0
  %5203 = vmatpush1.msra.mxu0 0.0
  %5204 = vmatprep.subr.mxu0 0.0
  %5205 = vmatpush1.msra.mxu0 0.0
  %5206 = vmatprep.subr.mxu0 0.0
  %5207 = vmatpush1.msra.mxu0 0.0
  %5208 = vmatprep.subr.mxu0 0.0
  %5209 = vmatpush1.msra.mxu0 0.0
  %5210 = vmatprep.subr.mxu0 0.0
  %5211 = vmatpush1.msra.mxu0 0.0
  %5212 = vmatprep.subr.mxu0 0.0
  %5213 = vmatpush1.msra.mxu0 0.0
  %5214 = vmatprep.subr.mxu0 0.0
  %5215 = vmatpush1.msra.mxu0 0.0
  %5216 = vmatprep.subr.mxu0 0.0
  %5217 = vmatpush1.msra.mxu0 0.0
  %5218 = vmatprep.subr.mxu0 0.0
  %5219 = vmatpush1.msra.mxu0 0.0
  %5220 = vmatprep.subr.mxu0 0.0
  %5221 = vmatpush1.msra.mxu0 0.0
  %5222 = vmatprep.subr.mxu0 0.0
  %5223 = vmatpush1.msra.mxu0 0.0
  %5224 = vmatprep.subr.mxu0 0.0
  %5225 = vmatpush1.msra.mxu0 0.0
  %5226 = vmatprep.subr.mxu0 0.0
  %5227 = vmatpush1.msra.mxu0 0.0
  %5228 = vmatprep.subr.mxu0 0.0
  %5229 = vmatpush1.msra.mxu0 0.0
  %5230 = vmatprep.subr.mxu0 0.0
  %5231 = vmatpush1.msra.mxu0 0.0
  %5232 = vmatprep.subr.mxu0 0.0
  %5233 = vmatpush1.msra.mxu0 0.0
  %5234 = vmatprep.subr.mxu0 0.0
  %5235 = vmatpush1.msra.mxu0 0.0
  %5236 = vmatprep.subr.mxu0 0.0
  %5237 = vmatpush1.msra.mxu0 0.0
  %5238 = vmatprep.subr.mxu0 0.0
  %5239 = vmatpush1.msra.mxu0 0.0
  %5240 = vmatprep.subr.mxu0 0.0
  %5241 = vmatpush1.msra.mxu0 0.0
  %5242 = vmatprep.subr.mxu0 0.0
  %5243 = vmatpush1.msra.mxu0 0.0
  %5244 = vmatprep.subr.mxu0 0.0
  %5245 = vmatpush1.msra.mxu0 0.0
  %5246 = vmatprep.subr.mxu0 0.0
  %5247 = vmatpush1.msra.mxu0 0.0
  %5248 = vmatprep.subr.mxu0 0.0
  %5249 = vmatpush1.msra.mxu0 0.0
  %5250 = vmatprep.subr.mxu0 0.0
  %5251 = vmatpush1.msra.mxu0 0.0
  %5252 = vmatprep.subr.mxu0 0.0
  %5253 = vmatpush1.msra.mxu0 0.0
  %5254 = vmatprep.subr.mxu0 0.0
  %5255 = vmatpush1.msra.mxu0 0.0
  %5256 = vmatprep.subr.mxu0 0.0
  %5257 = vmatpush1.msra.mxu0 0.0
  %5258 = vmatprep.mubr.f32.mxu0 0.0
  %5259 = vmatmul.mubr.f32.gmra.mrb[0].mxu0 %v5192
  %v5260 = vpop.f32.mrb[0].mxu0
  %v5261 = vadd.f32 0.0, %v5260
  %v5262 = vpop.f32.mrb[0].mxu0
  %5263 = vdwg.mxu0
  %5264 = vst.msk [vmem:[%s3] sm:$0xff] %vm142, %v2998
  %5265 = vst.msk [vmem:[%s3 + $0x8] sm:$0xff] %vm142, %v3071
  %5266 = vst.msk [vmem:[%s3 + $0x10] sm:$0xff] %vm142, %v3144
  %5267 = vst.msk [vmem:[%s3 + $0x18] sm:$0xff] %vm142, %v3217
  %5268 = vst.msk [vmem:[%s3 + $0x20] sm:$0xff] %vm142, %v3290
  %5269 = vst.msk [vmem:[%s3 + $0x28] sm:$0xff] %vm142, %v3363
  %5270 = vst.msk [vmem:[%s3 + $0x30] sm:$0xff] %vm142, %v3436
  %5271 = vst.msk [vmem:[%s3 + $0x38] sm:$0xff] %vm142, %v3509
  %5272 = vst.msk [vmem:[%s3 + $0x40] sm:$0xff] %vm142, %v3582
  %5273 = vst.msk [vmem:[%s3 + $0x48] sm:$0xff] %vm142, %v3655
  %5274 = vst.msk [vmem:[%s3 + $0x50] sm:$0xff] %vm142, %v3728
  %5275 = vst.msk [vmem:[%s3 + $0x58] sm:$0xff] %vm142, %v3801
  %5276 = vst.msk [vmem:[%s3 + $0x60] sm:$0xff] %vm142, %v3874
  %5277 = vst.msk [vmem:[%s3 + $0x68] sm:$0xff] %vm142, %v3947
  %5278 = vst.msk [vmem:[%s3 + $0x70] sm:$0xff] %vm142, %v4020
  %5279 = vst.msk [vmem:[%s3 + $0x78] sm:$0xff] %vm142, %v4093
  %5280 = vst.msk [vmem:[%s3 + $0x80] sm:$0xff] %vm142, %v4166
  %5281 = vst.msk [vmem:[%s3 + $0x88] sm:$0xff] %vm142, %v4239
  %5282 = vst.msk [vmem:[%s3 + $0x90] sm:$0xff] %vm142, %v4312
  %5283 = vst.msk [vmem:[%s3 + $0x98] sm:$0xff] %vm142, %v4385
  %5284 = vst.msk [vmem:[%s3 + $0xa0] sm:$0xff] %vm142, %v4458
  %5285 = vst.msk [vmem:[%s3 + $0xa8] sm:$0xff] %vm142, %v4531
  %5286 = vst.msk [vmem:[%s3 + $0xb0] sm:$0xff] %vm142, %v4604
  %5287 = vst.msk [vmem:[%s3 + $0xb8] sm:$0xff] %vm142, %v4677
  %5288 = vst.msk [vmem:[%s3 + $0xc0] sm:$0xff] %vm142, %v4750
  %5289 = vst.msk [vmem:[%s3 + $0xc8] sm:$0xff] %vm142, %v4823
  %5290 = vst.msk [vmem:[%s3 + $0xd0] sm:$0xff] %vm142, %v4896
  %5291 = vst.msk [vmem:[%s3 + $0xd8] sm:$0xff] %vm142, %v4969
  %5292 = vst.msk [vmem:[%s3 + $0xe0] sm:$0xff] %vm142, %v5042
  %5293 = vst.msk [vmem:[%s3 + $0xe8] sm:$0xff] %vm142, %v5115
  %5294 = vst.msk [vmem:[%s3 + $0xf0] sm:$0xff] %vm142, %v5188
  %5295 = vst.msk [vmem:[%s3 + $0xf8] sm:$0xff] %vm142, %v5261
  // Predicated region
  $region14: #{fi_en_translator_forward.25} parent=0 // pred_check
    _
  $region15: #{fi_en_translator_forward.25} parent=0 // pred_check_branch
    %5297 = sbr.rel (0) target = $region17
  $region16: #{fi_en_translator_forward.25} parent=0 // pred_region
    _
  $region17: #{fi_en_translator_forward.25} parent=0 // pred_fallthru
    _
  // Predicated region
  $region18: #{fi_en_translator_forward.25} parent=0 // pred_check
    _
  $region19: #{fi_en_translator_forward.25} parent=0 // pred_check_branch
    %5299 = sbr.rel (0) target = $region21
  $region20: #{fi_en_translator_forward.25} parent=0 // pred_region
    _
  $region21: #{fi_en_translator_forward.25} parent=0 // pred_fallthru
    _

</llo_original>
